<compile_context>
chip_gen: v7x
topology: tpu7x:2x2x1
jax: 0.10.0
libtpu: 0.0.40
codegen_flags: <defaults>
</compile_context>

<pallas_src>
import functools

import numpy as np
import jax
import jax.numpy as jnp
from jax.experimental import pallas as pl
from jax.experimental.pallas import tpu as pltpu

BN_EPS = 1e-5


# ---------------------------------------------------------------------------
# Fused kernel: fc MLP + factorized g_0 + pair-sum + f_0, one batch block per
# grid step.
# ---------------------------------------------------------------------------
def trn_kernel(dot_ref, x_ref,
               # fc (BatchNorm folded into following Linear)
               fw1, fb1, fw2, fb2, fw3, fb3, fw4, fb4,
               # g_0 layer-1 factorization: merged [x_j|x_i] weight, total weight, bias
               wg1ab, wg1c, bg1,
               # g_0 layers 2..4
               wg2, bg2, wg3, bg3, wg4, bg4,
               # f_0 head
               wf1, bf1, wf2, bf2,
               out_ref):
    bbwh, _ = dot_ref.shape
    bb = x_ref.shape[0]
    wh = bbwh // bb
    H = wg1c.shape[1]                                  # 256

    def lin(h, w_ref, b_ref):                          # bf16 x bf16 -> f32 acc
        return jnp.dot(h, w_ref[...], preferred_element_type=jnp.float32) + b_ref[...]

    def lin_relu_bf16(h, w_ref, b_ref):                # ReLU + carry act in bf16
        return jnp.maximum(lin(h, w_ref, b_ref), 0.0).astype(jnp.bfloat16)

    # --- fc path (cnn_total), stays in VMEM ---------------------------------
    t = x_ref[...].reshape(bb, -1).astype(jnp.bfloat16)   # (bb, W*H*C)
    t = lin_relu_bf16(t, fw1, fb1)                         # (bb, 1024)
    t = lin_relu_bf16(t, fw2, fb2)                         # (bb, 512)
    t = lin_relu_bf16(t, fw3, fb3)                         # (bb, 256)
    t = lin(t, fw4, fb4).astype(jnp.bfloat16)              # (bb, tv)  (no ReLU)

    # --- factorized g_0 layer 1 ---------------------------------------------
    d = dot_ref[...].astype(jnp.bfloat16)                  # (bb*wh, C+2)
    acts = jnp.dot(d, wg1ab[...], preferred_element_type=jnp.float32)  # (bb*wh, 2H)
    acts_j = acts[:, :H]                                   # x_j block (varies with 2nd idx)
    acts_i = acts[:, H:]                                   # x_i block (varies with 1st idx)
    c = lin(t, wg1c, bg1)                                  # (bb, H) f32, bias included
    # Fold c into acts_i before the pair broadcast: saves one full-size
    # (bb*wh^2, H) VPU add per step.
    acts_i = acts_i.reshape(bb, wh, H) + c[:, None, :]     # (bb, wh, H)

    # h[b, p, q] = relu(acts_j[b, q] + acts_i[b, p] + c[b]); all in VMEM.
    h = jnp.maximum(
        acts_j.reshape(bb, 1, wh, H) + acts_i.reshape(bb, wh, 1, H), 0.0
    ).astype(jnp.bfloat16).reshape(bb * wh * wh, H)

    # --- g_0 layers 2..4 (bf16 matmuls, f32 accumulate) ----------------------
    h = lin_relu_bf16(h, wg2, bg2)
    h = lin_relu_bf16(h, wg3, bg3)
    h = jnp.maximum(lin(h, wg4, bg4), 0.0)                 # f32: feeds the pair-sum

    # --- pair sum: cross-sublane reduce (XLU slot) ---------------------------
    s = jnp.sum(h.reshape(bb, wh * wh, H), axis=1)         # (bb, H) f32

    # --- f_0 head (Dropout(p=0.1) is identity in eval mode) ------------------
    y = lin_relu_bf16(s.astype(jnp.bfloat16), wf1, bf1)
    y = lin(y, wf2, bf2)                                   # (bb, output_size)
    out_ref[...] = y.reshape(bb, 1, -1)


# ---------------------------------------------------------------------------
# Parameter construction (PyTorch-like init, weights stored (in, out))
# ---------------------------------------------------------------------------
def init_params(key, channel, width, height, tv_size, output_size):
    D = 2 * (channel + 2) + tv_size
    in_fc = width * height * channel
    keys = iter(jax.random.split(key, 64))

    def linear(fan_in, fan_out):
        lim = 1.0 / np.sqrt(fan_in)
        w = jax.random.uniform(next(keys), (fan_in, fan_out), jnp.float32, -lim, lim)
        b = jax.random.uniform(next(keys), (1, fan_out), jnp.float32, -lim, lim)
        return w, b

    def bn(n):  # PyTorch BatchNorm1d defaults (eval mode)
        return dict(gamma=jnp.ones((n,), jnp.float32),
                    beta=jnp.zeros((n,), jnp.float32),
                    mean=jnp.zeros((n,), jnp.float32),
                    var=jnp.ones((n,), jnp.float32))

    fc = dict(l1=linear(in_fc, 1024), bn1=bn(1024),
              l2=linear(1024, 512),   bn2=bn(512),
              l3=linear(512, 256),    bn3=bn(256),
              l4=linear(256, tv_size))
    g0 = [linear(D, 256), linear(256, 256), linear(256, 256), linear(256, 256)]
    f0 = [linear(256, 256), linear(256, output_size)]
    return dict(fc=fc, g0=g0, f0=f0)


def prepare_params(raw, channel):
    """Fold eval-mode BN into the following Linear (exact: reference order is
    Linear->ReLU->BN->Linear), split g_0 layer-1 weight into its
    [x_j | x_i | cnn_total] row blocks, merge the two position blocks into a
    single (C+2, 512) matmul, and cast all weights to bf16 (biases stay f32)."""
    cp2 = channel + 2
    cast = lambda w: w.astype(jnp.bfloat16)

    def fold(bn, w_next, b_next):
        scale = bn["gamma"] * jax.lax.rsqrt(bn["var"] + BN_EPS)
        shift = bn["beta"] - bn["mean"] * scale
        return w_next * scale[:, None], b_next + shift[None, :] @ w_next

    fc = raw["fc"]
    w1, b1 = fc["l1"]
    w2, b2 = fold(fc["bn1"], *fc["l2"])
    w3, b3 = fold(fc["bn2"], *fc["l3"])
    w4, b4 = fold(fc["bn3"], *fc["l4"])
    fc_args = [cast(w1), b1, cast(w2), b2, cast(w3), b3, cast(w4), b4]

    (wg1, bg1), (wg2, bg2), (wg3, bg3), (wg4, bg4) = raw["g0"]
    (wf1, bf1), (wf2, bf2) = raw["f0"]
    wg1ab = jnp.concatenate([wg1[:cp2], wg1[cp2:2 * cp2]], axis=1)   # (C+2, 512)
    wg1c = wg1[2 * cp2:]                                             # (tv, 256)
    rn_args = [cast(wg1ab), cast(wg1c), bg1,
               cast(wg2), bg2, cast(wg3), bg3, cast(wg4), bg4,
               cast(wf1), bf1, cast(wf2), bf2]
    return dict(fc=fc_args, rn=rn_args)


def _default_batch_block(B):
    """One grid step on single-TC v5e/v6e; two 'parallel' steps on dual-TC v7x."""
    try:
        kind = jax.devices()[0].device_kind.lower()
    except Exception:
        kind = ""
    if "v7" in kind and B % 2 == 0:
        return B // 2
    return B


# ---------------------------------------------------------------------------
# Forward wrapper (cheap reshapes/concat in plain JAX; everything else fused)
# ---------------------------------------------------------------------------
def trn_forward(x, params, *, channel, width, height, tv_size, output_size,
                batch_block=None):
    del tv_size  # cnn_total never leaves the kernel
    B = x.shape[0]
    wh = width * height
    cp2 = channel + 2
    cwh = channel * wh

    if batch_block is None:
        batch_block = _default_batch_block(B)
    bb = batch_block if (0 < batch_block <= B and B % batch_block == 0) else B

    # ---- coordinate tensor (exact cvt_coord: Python-3 true division) --------
    mid = height // 2
    coord = np.zeros((wh, 2), dtype=np.float32)
    for i in range(wh):
        coord[i, 0] = (i / height - mid) / float(mid)
        coord[i, 1] = (i % height - mid) / float(mid)
    coord = jnp.asarray(coord)

    # (B*wh, C+2): the only pair-related tensor that touches HBM; 2D so the
    # Pallas block needs no in-kernel relayout.
    cnn_flat = x.reshape(B, channel, wh).transpose(0, 2, 1)
    cnn_dot = jnp.concatenate(
        [cnn_flat, jnp.broadcast_to(coord[None], (B, wh, 2))], axis=2
    ).reshape(B * wh, cp2)

    # fc input kept 3D so the block keeps full last-two dims for any bb.
    x_flat = x.reshape(B, 1, cwh)

    weight_args = params["fc"] + params["rn"]
    weight_specs = [pl.BlockSpec(w.shape, lambda i: (0, 0)) for w in weight_args]

    out = pl.pallas_call(
        trn_kernel,
        out_shape=jax.ShapeDtypeStruct((B, 1, output_size), jnp.float32),
        grid_spec=pltpu.PrefetchScalarGridSpec(
            num_scalar_prefetch=0,
            grid=(B // bb,),
            in_specs=[pl.BlockSpec((bb * wh, cp2), lambda i: (i, 0)),
                      pl.BlockSpec((bb, 1, cwh), lambda i: (i, 0, 0))]
                     + weight_specs,
            out_specs=pl.BlockSpec((bb, 1, output_size), lambda i: (i, 0, 0)),
        ),
        compiler_params=pltpu.CompilerParams(
            dimension_semantics=("parallel",)),
    )(cnn_dot, x_flat, *weight_args)

    return out.reshape(B, output_size)


if __name__ == "__main__":
    B, C, W, H = 4, 4, 4, 4
    OUTPUT_SIZE = 10
    TV_SIZE = C            # total_vector_size=None -> channel

    key = jax.random.PRNGKey(0)
    kx, kp = jax.random.split(key)
    x = jax.random.normal(kx, (B, C, W, H), dtype=jnp.float32)
    params = prepare_params(init_params(kp, C, W, H, TV_SIZE, OUTPUT_SIZE), C)

    fwd = jax.jit(functools.partial(
        trn_forward, channel=C, width=W, height=H,
        tv_size=TV_SIZE, output_size=OUTPUT_SIZE))

    y = jax.block_until_ready(fwd(x, params))
    assert y.shape == (B, OUTPUT_SIZE)
    assert bool(jnp.all(jnp.isfinite(y)))
    print("KERNEL_OK")
</pallas_src>

<mosaic_0001>
module attributes {stable_mosaic.version = 11 : i64} {
  func.func @trn_kernel(%arg0: i32, %arg1: memref<64x6xf32, #tpu.memory_space<vmem>>, %arg2: memref<4x1x64xf32, #tpu.memory_space<vmem>>, %arg3: memref<64x1024xbf16, #tpu.memory_space<vmem>>, %arg4: memref<1x1024xf32, #tpu.memory_space<vmem>>, %arg5: memref<1024x512xbf16, #tpu.memory_space<vmem>>, %arg6: memref<1x512xf32, #tpu.memory_space<vmem>>, %arg7: memref<512x256xbf16, #tpu.memory_space<vmem>>, %arg8: memref<1x256xf32, #tpu.memory_space<vmem>>, %arg9: memref<256x4xbf16, #tpu.memory_space<vmem>>, %arg10: memref<1x4xf32, #tpu.memory_space<vmem>>, %arg11: memref<6x512xbf16, #tpu.memory_space<vmem>>, %arg12: memref<4x256xbf16, #tpu.memory_space<vmem>>, %arg13: memref<1x256xf32, #tpu.memory_space<vmem>>, %arg14: memref<256x256xbf16, #tpu.memory_space<vmem>>, %arg15: memref<1x256xf32, #tpu.memory_space<vmem>>, %arg16: memref<256x256xbf16, #tpu.memory_space<vmem>>, %arg17: memref<1x256xf32, #tpu.memory_space<vmem>>, %arg18: memref<256x256xbf16, #tpu.memory_space<vmem>>, %arg19: memref<1x256xf32, #tpu.memory_space<vmem>>, %arg20: memref<256x256xbf16, #tpu.memory_space<vmem>>, %arg21: memref<1x256xf32, #tpu.memory_space<vmem>>, %arg22: memref<256x10xbf16, #tpu.memory_space<vmem>>, %arg23: memref<1x10xf32, #tpu.memory_space<vmem>>, %arg24: memref<4x1x10xf32, #tpu.memory_space<vmem>>) attributes {dimension_semantics = [#tpu.dimension_semantics<parallel>], iteration_bounds = array<i64: 1>, scalar_prefetch = 0 : i64, scratch_operands = 0 : i64, tpu.core_type = #tpu.core_type<tc>, window_params = [{transform_indices = @transform_0, window_bounds = array<i64: 64, 6>}, {transform_indices = @transform_1, window_bounds = array<i64: 4, 1, 64>}, {pipeline_mode = #tpu.pipeline_mode<synchronous>, transform_indices = @transform_2, window_bounds = array<i64: 64, 1024>}, {pipeline_mode = #tpu.pipeline_mode<synchronous>, transform_indices = @transform_3, window_bounds = array<i64: 1, 1024>}, {pipeline_mode = #tpu.pipeline_mode<synchronous>, transform_indices = @transform_4, window_bounds = array<i64: 1024, 512>}, {pipeline_mode = #tpu.pipeline_mode<synchronous>, transform_indices = @transform_5, window_bounds = array<i64: 1, 512>}, {pipeline_mode = #tpu.pipeline_mode<synchronous>, transform_indices = @transform_6, window_bounds = array<i64: 512, 256>}, {pipeline_mode = #tpu.pipeline_mode<synchronous>, transform_indices = @transform_7, window_bounds = array<i64: 1, 256>}, {pipeline_mode = #tpu.pipeline_mode<synchronous>, transform_indices = @transform_8, window_bounds = array<i64: 256, 4>}, {pipeline_mode = #tpu.pipeline_mode<synchronous>, transform_indices = @transform_9, window_bounds = array<i64: 1, 4>}, {pipeline_mode = #tpu.pipeline_mode<synchronous>, transform_indices = @transform_10, window_bounds = array<i64: 6, 512>}, {pipeline_mode = #tpu.pipeline_mode<synchronous>, transform_indices = @transform_11, window_bounds = array<i64: 4, 256>}, {pipeline_mode = #tpu.pipeline_mode<synchronous>, transform_indices = @transform_12, window_bounds = array<i64: 1, 256>}, {pipeline_mode = #tpu.pipeline_mode<synchronous>, transform_indices = @transform_13, window_bounds = array<i64: 256, 256>}, {pipeline_mode = #tpu.pipeline_mode<synchronous>, transform_indices = @transform_14, window_bounds = array<i64: 1, 256>}, {pipeline_mode = #tpu.pipeline_mode<synchronous>, transform_indices = @transform_15, window_bounds = array<i64: 256, 256>}, {pipeline_mode = #tpu.pipeline_mode<synchronous>, transform_indices = @transform_16, window_bounds = array<i64: 1, 256>}, {pipeline_mode = #tpu.pipeline_mode<synchronous>, transform_indices = @transform_17, window_bounds = array<i64: 256, 256>}, {pipeline_mode = #tpu.pipeline_mode<synchronous>, transform_indices = @transform_18, window_bounds = array<i64: 1, 256>}, {pipeline_mode = #tpu.pipeline_mode<synchronous>, transform_indices = @transform_19, window_bounds = array<i64: 256, 256>}, {pipeline_mode = #tpu.pipeline_mode<synchronous>, transform_indices = @transform_20, window_bounds = array<i64: 1, 256>}, {pipeline_mode = #tpu.pipeline_mode<synchronous>, transform_indices = @transform_21, window_bounds = array<i64: 256, 10>}, {pipeline_mode = #tpu.pipeline_mode<synchronous>, transform_indices = @transform_22, window_bounds = array<i64: 1, 10>}, {transform_indices = @transform_23, window_bounds = array<i64: 4, 1, 10>}]} {
    %c0 = arith.constant 0 : index
    %c0_0 = arith.constant 0 : index
    %c0_1 = arith.constant 0 : index
    %0 = vector.load %arg2[%c0, %c0_0, %c0_1] : memref<4x1x64xf32, #tpu.memory_space<vmem>>, vector<4x1x64xf32>
    %1 = vector.shape_cast %0 : vector<4x1x64xf32> to vector<4x64xf32>
    %2 = arith.truncf %1 : vector<4x64xf32> to vector<4x64xbf16>
    %c0_2 = arith.constant 0 : index
    %c0_3 = arith.constant 0 : index
    %3 = vector.load %arg3[%c0_2, %c0_3] : memref<64x1024xbf16, #tpu.memory_space<vmem>>, vector<64x1024xbf16>
    %cst = arith.constant dense<0.000000e+00> : vector<4x1024xf32>
    %4 = tpu.matmul %2, %3, %cst {dimension_numbers = #tpu.dot_dimension_numbers<[1], [0], [0], [1], [0, 0, 1, 1], [], []>} : vector<4x64xbf16>, vector<64x1024xbf16>, vector<4x1024xf32> -> vector<4x1024xf32>
    %c0_4 = arith.constant 0 : index
    %c0_5 = arith.constant 0 : index
    %5 = vector.load %arg4[%c0_4, %c0_5] : memref<1x1024xf32, #tpu.memory_space<vmem>>, vector<1x1024xf32>
    %6 = vector.broadcast %5 : vector<1x1024xf32> to vector<4x1024xf32>
    %7 = arith.addf %4, %6 : vector<4x1024xf32>
    %cst_6 = arith.constant 0.000000e+00 : f32
    %8 = vector.broadcast %cst_6 : f32 to vector<4x1024xf32>
    %9 = arith.maximumf %7, %8 : vector<4x1024xf32>
    %10 = arith.truncf %9 : vector<4x1024xf32> to vector<4x1024xbf16>
    %c0_7 = arith.constant 0 : index
    %c0_8 = arith.constant 0 : index
    %11 = vector.load %arg5[%c0_7, %c0_8] : memref<1024x512xbf16, #tpu.memory_space<vmem>>, vector<1024x512xbf16>
    %cst_9 = arith.constant dense<0.000000e+00> : vector<4x512xf32>
    %12 = tpu.matmul %10, %11, %cst_9 {dimension_numbers = #tpu.dot_dimension_numbers<[1], [0], [0], [1], [0, 0, 1, 1], [], []>} : vector<4x1024xbf16>, vector<1024x512xbf16>, vector<4x512xf32> -> vector<4x512xf32>
    %c0_10 = arith.constant 0 : index
    %c0_11 = arith.constant 0 : index
    %13 = vector.load %arg6[%c0_10, %c0_11] : memref<1x512xf32, #tpu.memory_space<vmem>>, vector<1x512xf32>
    %14 = vector.broadcast %13 : vector<1x512xf32> to vector<4x512xf32>
    %15 = arith.addf %12, %14 : vector<4x512xf32>
    %cst_12 = arith.constant 0.000000e+00 : f32
    %16 = vector.broadcast %cst_12 : f32 to vector<4x512xf32>
    %17 = arith.maximumf %15, %16 : vector<4x512xf32>
    %18 = arith.truncf %17 : vector<4x512xf32> to vector<4x512xbf16>
    %c0_13 = arith.constant 0 : index
    %c0_14 = arith.constant 0 : index
    %19 = vector.load %arg7[%c0_13, %c0_14] : memref<512x256xbf16, #tpu.memory_space<vmem>>, vector<512x256xbf16>
    %cst_15 = arith.constant dense<0.000000e+00> : vector<4x256xf32>
    %20 = tpu.matmul %18, %19, %cst_15 {dimension_numbers = #tpu.dot_dimension_numbers<[1], [0], [0], [1], [0, 0, 1, 1], [], []>} : vector<4x512xbf16>, vector<512x256xbf16>, vector<4x256xf32> -> vector<4x256xf32>
    %c0_16 = arith.constant 0 : index
    %c0_17 = arith.constant 0 : index
    %21 = vector.load %arg8[%c0_16, %c0_17] : memref<1x256xf32, #tpu.memory_space<vmem>>, vector<1x256xf32>
    %22 = vector.broadcast %21 : vector<1x256xf32> to vector<4x256xf32>
    %23 = arith.addf %20, %22 : vector<4x256xf32>
    %cst_18 = arith.constant 0.000000e+00 : f32
    %24 = vector.broadcast %cst_18 : f32 to vector<4x256xf32>
    %25 = arith.maximumf %23, %24 : vector<4x256xf32>
    %26 = arith.truncf %25 : vector<4x256xf32> to vector<4x256xbf16>
    %c0_19 = arith.constant 0 : index
    %c0_20 = arith.constant 0 : index
    %27 = vector.load %arg9[%c0_19, %c0_20] : memref<256x4xbf16, #tpu.memory_space<vmem>>, vector<256x4xbf16>
    %cst_21 = arith.constant dense<0.000000e+00> : vector<4x4xf32>
    %28 = tpu.matmul %26, %27, %cst_21 {dimension_numbers = #tpu.dot_dimension_numbers<[1], [0], [0], [1], [0, 0, 1, 1], [], []>} : vector<4x256xbf16>, vector<256x4xbf16>, vector<4x4xf32> -> vector<4x4xf32>
    %c0_22 = arith.constant 0 : index
    %c0_23 = arith.constant 0 : index
    %29 = vector.load %arg10[%c0_22, %c0_23] : memref<1x4xf32, #tpu.memory_space<vmem>>, vector<1x4xf32>
    %30 = vector.broadcast %29 : vector<1x4xf32> to vector<4x4xf32>
    %31 = arith.addf %28, %30 : vector<4x4xf32>
    %32 = arith.truncf %31 : vector<4x4xf32> to vector<4x4xbf16>
    %c0_24 = arith.constant 0 : index
    %c0_25 = arith.constant 0 : index
    %33 = vector.load %arg1[%c0_24, %c0_25] : memref<64x6xf32, #tpu.memory_space<vmem>>, vector<64x6xf32>
    %34 = arith.truncf %33 : vector<64x6xf32> to vector<64x6xbf16>
    %c0_26 = arith.constant 0 : index
    %c0_27 = arith.constant 0 : index
    %35 = vector.load %arg11[%c0_26, %c0_27] : memref<6x512xbf16, #tpu.memory_space<vmem>>, vector<6x512xbf16>
    %cst_28 = arith.constant dense<0.000000e+00> : vector<64x512xf32>
    %36 = tpu.matmul %34, %35, %cst_28 {dimension_numbers = #tpu.dot_dimension_numbers<[1], [0], [0], [1], [0, 0, 1, 1], [], []>} : vector<64x6xbf16>, vector<6x512xbf16>, vector<64x512xf32> -> vector<64x512xf32>
    %37 = vector.extract_strided_slice %36 {offsets = [0, 0], sizes = [64, 256], strides = [1, 1]} : vector<64x512xf32> to vector<64x256xf32>
    %38 = vector.extract_strided_slice %36 {offsets = [0, 256], sizes = [64, 256], strides = [1, 1]} : vector<64x512xf32> to vector<64x256xf32>
    %c0_29 = arith.constant 0 : index
    %c0_30 = arith.constant 0 : index
    %39 = vector.load %arg12[%c0_29, %c0_30] : memref<4x256xbf16, #tpu.memory_space<vmem>>, vector<4x256xbf16>
    %cst_31 = arith.constant dense<0.000000e+00> : vector<4x256xf32>
    %40 = tpu.matmul %32, %39, %cst_31 {dimension_numbers = #tpu.dot_dimension_numbers<[1], [0], [0], [1], [0, 0, 1, 1], [], []>} : vector<4x4xbf16>, vector<4x256xbf16>, vector<4x256xf32> -> vector<4x256xf32>
    %c0_32 = arith.constant 0 : index
    %c0_33 = arith.constant 0 : index
    %41 = vector.load %arg13[%c0_32, %c0_33] : memref<1x256xf32, #tpu.memory_space<vmem>>, vector<1x256xf32>
    %42 = vector.broadcast %41 : vector<1x256xf32> to vector<4x256xf32>
    %43 = arith.addf %40, %42 : vector<4x256xf32>
    %44 = vector.shape_cast %38 : vector<64x256xf32> to vector<4x16x256xf32>
    %45 = vector.shape_cast %43 : vector<4x256xf32> to vector<4x1x256xf32>
    %46 = vector.broadcast %45 : vector<4x1x256xf32> to vector<4x16x256xf32>
    %47 = arith.addf %44, %46 : vector<4x16x256xf32>
    %48 = vector.shape_cast %37 : vector<64x256xf32> to vector<4x1x16x256xf32>
    %49 = vector.shape_cast %47 : vector<4x16x256xf32> to vector<4x16x1x256xf32>
    %50 = vector.broadcast %48 : vector<4x1x16x256xf32> to vector<4x16x16x256xf32>
    %51 = vector.broadcast %49 : vector<4x16x1x256xf32> to vector<4x16x16x256xf32>
    %52 = arith.addf %50, %51 : vector<4x16x16x256xf32>
    %cst_34 = arith.constant 0.000000e+00 : f32
    %53 = vector.broadcast %cst_34 : f32 to vector<4x16x16x256xf32>
    %54 = arith.maximumf %52, %53 : vector<4x16x16x256xf32>
    %55 = arith.truncf %54 : vector<4x16x16x256xf32> to vector<4x16x16x256xbf16>
    %56 = vector.shape_cast %55 : vector<4x16x16x256xbf16> to vector<1024x256xbf16>
    %c0_35 = arith.constant 0 : index
    %c0_36 = arith.constant 0 : index
    %57 = vector.load %arg14[%c0_35, %c0_36] : memref<256x256xbf16, #tpu.memory_space<vmem>>, vector<256x256xbf16>
    %cst_37 = arith.constant dense<0.000000e+00> : vector<1024x256xf32>
    %58 = tpu.matmul %56, %57, %cst_37 {dimension_numbers = #tpu.dot_dimension_numbers<[1], [0], [0], [1], [0, 0, 1, 1], [], []>} : vector<1024x256xbf16>, vector<256x256xbf16>, vector<1024x256xf32> -> vector<1024x256xf32>
    %c0_38 = arith.constant 0 : index
    %c0_39 = arith.constant 0 : index
    %59 = vector.load %arg15[%c0_38, %c0_39] : memref<1x256xf32, #tpu.memory_space<vmem>>, vector<1x256xf32>
    %60 = vector.broadcast %59 : vector<1x256xf32> to vector<1024x256xf32>
    %61 = arith.addf %58, %60 : vector<1024x256xf32>
    %cst_40 = arith.constant 0.000000e+00 : f32
    %62 = vector.broadcast %cst_40 : f32 to vector<1024x256xf32>
    %63 = arith.maximumf %61, %62 : vector<1024x256xf32>
    %64 = arith.truncf %63 : vector<1024x256xf32> to vector<1024x256xbf16>
    %c0_41 = arith.constant 0 : index
    %c0_42 = arith.constant 0 : index
    %65 = vector.load %arg16[%c0_41, %c0_42] : memref<256x256xbf16, #tpu.memory_space<vmem>>, vector<256x256xbf16>
    %cst_43 = arith.constant dense<0.000000e+00> : vector<1024x256xf32>
    %66 = tpu.matmul %64, %65, %cst_43 {dimension_numbers = #tpu.dot_dimension_numbers<[1], [0], [0], [1], [0, 0, 1, 1], [], []>} : vector<1024x256xbf16>, vector<256x256xbf16>, vector<1024x256xf32> -> vector<1024x256xf32>
    %c0_44 = arith.constant 0 : index
    %c0_45 = arith.constant 0 : index
    %67 = vector.load %arg17[%c0_44, %c0_45] : memref<1x256xf32, #tpu.memory_space<vmem>>, vector<1x256xf32>
    %68 = vector.broadcast %67 : vector<1x256xf32> to vector<1024x256xf32>
    %69 = arith.addf %66, %68 : vector<1024x256xf32>
    %cst_46 = arith.constant 0.000000e+00 : f32
    %70 = vector.broadcast %cst_46 : f32 to vector<1024x256xf32>
    %71 = arith.maximumf %69, %70 : vector<1024x256xf32>
    %72 = arith.truncf %71 : vector<1024x256xf32> to vector<1024x256xbf16>
    %c0_47 = arith.constant 0 : index
    %c0_48 = arith.constant 0 : index
    %73 = vector.load %arg18[%c0_47, %c0_48] : memref<256x256xbf16, #tpu.memory_space<vmem>>, vector<256x256xbf16>
    %cst_49 = arith.constant dense<0.000000e+00> : vector<1024x256xf32>
    %74 = tpu.matmul %72, %73, %cst_49 {dimension_numbers = #tpu.dot_dimension_numbers<[1], [0], [0], [1], [0, 0, 1, 1], [], []>} : vector<1024x256xbf16>, vector<256x256xbf16>, vector<1024x256xf32> -> vector<1024x256xf32>
    %c0_50 = arith.constant 0 : index
    %c0_51 = arith.constant 0 : index
    %75 = vector.load %arg19[%c0_50, %c0_51] : memref<1x256xf32, #tpu.memory_space<vmem>>, vector<1x256xf32>
    %76 = vector.broadcast %75 : vector<1x256xf32> to vector<1024x256xf32>
    %77 = arith.addf %74, %76 : vector<1024x256xf32>
    %cst_52 = arith.constant 0.000000e+00 : f32
    %78 = vector.broadcast %cst_52 : f32 to vector<1024x256xf32>
    %79 = arith.maximumf %77, %78 : vector<1024x256xf32>
    %80 = vector.shape_cast %79 : vector<1024x256xf32> to vector<4x256x256xf32>
    %cst_53 = arith.constant dense<0.000000e+00> : vector<4x256xf32>
    %81 = vector.multi_reduction <add>, %80, %cst_53 [1] : vector<4x256x256xf32> to vector<4x256xf32>
    %82 = arith.truncf %81 : vector<4x256xf32> to vector<4x256xbf16>
    %c0_54 = arith.constant 0 : index
    %c0_55 = arith.constant 0 : index
    %83 = vector.load %arg20[%c0_54, %c0_55] : memref<256x256xbf16, #tpu.memory_space<vmem>>, vector<256x256xbf16>
    %cst_56 = arith.constant dense<0.000000e+00> : vector<4x256xf32>
    %84 = tpu.matmul %82, %83, %cst_56 {dimension_numbers = #tpu.dot_dimension_numbers<[1], [0], [0], [1], [0, 0, 1, 1], [], []>} : vector<4x256xbf16>, vector<256x256xbf16>, vector<4x256xf32> -> vector<4x256xf32>
    %c0_57 = arith.constant 0 : index
    %c0_58 = arith.constant 0 : index
    %85 = vector.load %arg21[%c0_57, %c0_58] : memref<1x256xf32, #tpu.memory_space<vmem>>, vector<1x256xf32>
    %86 = vector.broadcast %85 : vector<1x256xf32> to vector<4x256xf32>
    %87 = arith.addf %84, %86 : vector<4x256xf32>
    %cst_59 = arith.constant 0.000000e+00 : f32
    %88 = vector.broadcast %cst_59 : f32 to vector<4x256xf32>
    %89 = arith.maximumf %87, %88 : vector<4x256xf32>
    %90 = arith.truncf %89 : vector<4x256xf32> to vector<4x256xbf16>
    %c0_60 = arith.constant 0 : index
    %c0_61 = arith.constant 0 : index
    %91 = vector.load %arg22[%c0_60, %c0_61] : memref<256x10xbf16, #tpu.memory_space<vmem>>, vector<256x10xbf16>
    %cst_62 = arith.constant dense<0.000000e+00> : vector<4x10xf32>
    %92 = tpu.matmul %90, %91, %cst_62 {dimension_numbers = #tpu.dot_dimension_numbers<[1], [0], [0], [1], [0, 0, 1, 1], [], []>} : vector<4x256xbf16>, vector<256x10xbf16>, vector<4x10xf32> -> vector<4x10xf32>
    %c0_63 = arith.constant 0 : index
    %c0_64 = arith.constant 0 : index
    %93 = vector.load %arg23[%c0_63, %c0_64] : memref<1x10xf32, #tpu.memory_space<vmem>>, vector<1x10xf32>
    %94 = vector.broadcast %93 : vector<1x10xf32> to vector<4x10xf32>
    %95 = arith.addf %92, %94 : vector<4x10xf32>
    %96 = vector.shape_cast %95 : vector<4x10xf32> to vector<4x1x10xf32>
    %c0_65 = arith.constant 0 : index
    %c0_66 = arith.constant 0 : index
    %c0_67 = arith.constant 0 : index
    %97 = vector.load %arg24[%c0_65, %c0_66, %c0_67] : memref<4x1x10xf32, #tpu.memory_space<vmem>>, vector<4x1x10xf32>
    tpu.vector_store %arg24[%c0_65, %c0_66, %c0_67], %96 {strides = array<i32>} : memref<4x1x10xf32, #tpu.memory_space<vmem>>, vector<4x1x10xf32>,
    return
  }
  func.func @transform_0(%arg0: i32) -> (i32, i32) {
    %c0_i32 = arith.constant 0 : i32
    %c0_i32_0 = arith.constant 0 : i32
    return %arg0, %c0_i32 : i32, i32
  }
  func.func @transform_1(%arg0: i32) -> (i32, i32, i32) {
    %c0_i32 = arith.constant 0 : i32
    %c0_i32_0 = arith.constant 0 : i32
    %c0_i32_1 = arith.constant 0 : i32
    return %arg0, %c0_i32, %c0_i32_0 : i32, i32, i32
  }
  func.func @transform_2(%arg0: i32) -> (i32, i32) {
    %c0_i32 = arith.constant 0 : i32
    %c0_i32_0 = arith.constant 0 : i32
    %c0_i32_1 = arith.constant 0 : i32
    return %c0_i32, %c0_i32_0 : i32, i32
  }
  func.func @transform_3(%arg0: i32) -> (i32, i32) {
    %c0_i32 = arith.constant 0 : i32
    %c0_i32_0 = arith.constant 0 : i32
    %c0_i32_1 = arith.constant 0 : i32
    return %c0_i32, %c0_i32_0 : i32, i32
  }
  func.func @transform_4(%arg0: i32) -> (i32, i32) {
    %c0_i32 = arith.constant 0 : i32
    %c0_i32_0 = arith.constant 0 : i32
    %c0_i32_1 = arith.constant 0 : i32
    return %c0_i32, %c0_i32_0 : i32, i32
  }
  func.func @transform_5(%arg0: i32) -> (i32, i32) {
    %c0_i32 = arith.constant 0 : i32
    %c0_i32_0 = arith.constant 0 : i32
    %c0_i32_1 = arith.constant 0 : i32
    return %c0_i32, %c0_i32_0 : i32, i32
  }
  func.func @transform_6(%arg0: i32) -> (i32, i32) {
    %c0_i32 = arith.constant 0 : i32
    %c0_i32_0 = arith.constant 0 : i32
    %c0_i32_1 = arith.constant 0 : i32
    return %c0_i32, %c0_i32_0 : i32, i32
  }
  func.func @transform_7(%arg0: i32) -> (i32, i32) {
    %c0_i32 = arith.constant 0 : i32
    %c0_i32_0 = arith.constant 0 : i32
    %c0_i32_1 = arith.constant 0 : i32
    return %c0_i32, %c0_i32_0 : i32, i32
  }
  func.func @transform_8(%arg0: i32) -> (i32, i32) {
    %c0_i32 = arith.constant 0 : i32
    %c0_i32_0 = arith.constant 0 : i32
    %c0_i32_1 = arith.constant 0 : i32
    return %c0_i32, %c0_i32_0 : i32, i32
  }
  func.func @transform_9(%arg0: i32) -> (i32, i32) {
    %c0_i32 = arith.constant 0 : i32
    %c0_i32_0 = arith.constant 0 : i32
    %c0_i32_1 = arith.constant 0 : i32
    return %c0_i32, %c0_i32_0 : i32, i32
  }
  func.func @transform_10(%arg0: i32) -> (i32, i32) {
    %c0_i32 = arith.constant 0 : i32
    %c0_i32_0 = arith.constant 0 : i32
    %c0_i32_1 = arith.constant 0 : i32
    return %c0_i32, %c0_i32_0 : i32, i32
  }
  func.func @transform_11(%arg0: i32) -> (i32, i32) {
    %c0_i32 = arith.constant 0 : i32
    %c0_i32_0 = arith.constant 0 : i32
    %c0_i32_1 = arith.constant 0 : i32
    return %c0_i32, %c0_i32_0 : i32, i32
  }
  func.func @transform_12(%arg0: i32) -> (i32, i32) {
    %c0_i32 = arith.constant 0 : i32
    %c0_i32_0 = arith.constant 0 : i32
    %c0_i32_1 = arith.constant 0 : i32
    return %c0_i32, %c0_i32_0 : i32, i32
  }
  func.func @transform_13(%arg0: i32) -> (i32, i32) {
    %c0_i32 = arith.constant 0 : i32
    %c0_i32_0 = arith.constant 0 : i32
    %c0_i32_1 = arith.constant 0 : i32
    return %c0_i32, %c0_i32_0 : i32, i32
  }
  func.func @transform_14(%arg0: i32) -> (i32, i32) {
    %c0_i32 = arith.constant 0 : i32
    %c0_i32_0 = arith.constant 0 : i32
    %c0_i32_1 = arith.constant 0 : i32
    return %c0_i32, %c0_i32_0 : i32, i32
  }
  func.func @transform_15(%arg0: i32) -> (i32, i32) {
    %c0_i32 = arith.constant 0 : i32
    %c0_i32_0 = arith.constant 0 : i32
    %c0_i32_1 = arith.constant 0 : i32
    return %c0_i32, %c0_i32_0 : i32, i32
  }
  func.func @transform_16(%arg0: i32) -> (i32, i32) {
    %c0_i32 = arith.constant 0 : i32
    %c0_i32_0 = arith.constant 0 : i32
    %c0_i32_1 = arith.constant 0 : i32
    return %c0_i32, %c0_i32_0 : i32, i32
  }
  func.func @transform_17(%arg0: i32) -> (i32, i32) {
    %c0_i32 = arith.constant 0 : i32
    %c0_i32_0 = arith.constant 0 : i32
    %c0_i32_1 = arith.constant 0 : i32
    return %c0_i32, %c0_i32_0 : i32, i32
  }
  func.func @transform_18(%arg0: i32) -> (i32, i32) {
    %c0_i32 = arith.constant 0 : i32
    %c0_i32_0 = arith.constant 0 : i32
    %c0_i32_1 = arith.constant 0 : i32
    return %c0_i32, %c0_i32_0 : i32, i32
  }
  func.func @transform_19(%arg0: i32) -> (i32, i32) {
    %c0_i32 = arith.constant 0 : i32
    %c0_i32_0 = arith.constant 0 : i32
    %c0_i32_1 = arith.constant 0 : i32
    return %c0_i32, %c0_i32_0 : i32, i32
  }
  func.func @transform_20(%arg0: i32) -> (i32, i32) {
    %c0_i32 = arith.constant 0 : i32
    %c0_i32_0 = arith.constant 0 : i32
    %c0_i32_1 = arith.constant 0 : i32
    return %c0_i32, %c0_i32_0 : i32, i32
  }
  func.func @transform_21(%arg0: i32) -> (i32, i32) {
    %c0_i32 = arith.constant 0 : i32
    %c0_i32_0 = arith.constant 0 : i32
    %c0_i32_1 = arith.constant 0 : i32
    return %c0_i32, %c0_i32_0 : i32, i32
  }
  func.func @transform_22(%arg0: i32) -> (i32, i32) {
    %c0_i32 = arith.constant 0 : i32
    %c0_i32_0 = arith.constant 0 : i32
    %c0_i32_1 = arith.constant 0 : i32
    return %c0_i32, %c0_i32_0 : i32, i32
  }
  func.func @transform_23(%arg0: i32) -> (i32, i32, i32) {
    %c0_i32 = arith.constant 0 : i32
    %c0_i32_0 = arith.constant 0 : i32
    %c0_i32_1 = arith.constant 0 : i32
    return %arg0, %c0_i32, %c0_i32_0 : i32, i32, i32
  }
}

</mosaic_0001>

<llo_original>
// kernel: trn_forward.1
$region0: #{trn_forward.1}
  #allocation0 [shape = 'u32[]', space=smem, size = 0x4, offset = 0x4, fixed_abs, tag = 'smem constant byte address 0x4 - core index']
  #allocation1 [shape = 'u32[144,128]{1,0:T(1,128)}', space=vmem, size = 0x12000, scoped, tag = 'internal scratch']
  %s0 = inlined_call_operand.vmem [shape: f32[64,6], index: 0, kind: input, shape index: {}]
  %s1 = inlined_call_operand.vmem [shape: f32[4,1,64], index: 1, kind: input, shape index: {}]
  %s2 = inlined_call_operand.hbm [shape: bf16[64,1024], index: 2, kind: input, shape index: {}]
  %s3 = inlined_call_operand.vmem [shape: f32[1,1024], index: 3, kind: input, shape index: {}]
  %s4 = inlined_call_operand.hbm [shape: bf16[1024,512], index: 4, kind: input, shape index: {}]
  %s5 = inlined_call_operand.vmem [shape: f32[1,512], index: 5, kind: input, shape index: {}]
  %s6 = inlined_call_operand.vmem [shape: bf16[512,256], index: 6, kind: input, shape index: {}]
  %s7 = inlined_call_operand.vmem [shape: f32[1,256], index: 7, kind: input, shape index: {}]
  %s8 = inlined_call_operand.vmem [shape: bf16[256,4], index: 8, kind: input, shape index: {}]
  %s9 = inlined_call_operand.vmem [shape: f32[1,4], index: 9, kind: input, shape index: {}]
  %s10 = inlined_call_operand.vmem [shape: bf16[6,512], index: 10, kind: input, shape index: {}]
  %s11 = inlined_call_operand.vmem [shape: bf16[4,256], index: 11, kind: input, shape index: {}]
  %s12 = inlined_call_operand.vmem [shape: f32[1,256], index: 12, kind: input, shape index: {}]
  %s13 = inlined_call_operand.hbm [shape: bf16[256,256], index: 13, kind: input, shape index: {}]
  %s14 = inlined_call_operand.vmem [shape: f32[1,256], index: 14, kind: input, shape index: {}]
  %s15 = inlined_call_operand.hbm [shape: bf16[256,256], index: 15, kind: input, shape index: {}]
  %s16 = inlined_call_operand.vmem [shape: f32[1,256], index: 16, kind: input, shape index: {}]
  %s17 = inlined_call_operand.hbm [shape: bf16[256,256], index: 17, kind: input, shape index: {}]
  %s18 = inlined_call_operand.vmem [shape: f32[1,256], index: 18, kind: input, shape index: {}]
  %s19 = inlined_call_operand.hbm [shape: bf16[256,256], index: 19, kind: input, shape index: {}]
  %s20 = inlined_call_operand.vmem [shape: f32[1,256], index: 20, kind: input, shape index: {}]
  %s21 = inlined_call_operand.vmem [shape: bf16[256,10], index: 21, kind: input, shape index: {}]
  %s22 = inlined_call_operand.vmem [shape: f32[1,10], index: 22, kind: input, shape index: {}]
  %s23 = inlined_call_operand.hbm [shape: f32[4,1,10], index: 23, kind: output, shape index: {}]
  %s24 = sld [smem:[#allocation0]]
  $region126: #{trn_forward.1} parent=0
    _
  %s26 = ssub.s32 1, %s24
  %s27 = scalar_select 0, %s26, %s24
  $region1: #{trn_forward.1} parent=0
    #allocation2 [shape = 'u8[131072]{0}', space=vmem, size = 0x20000, scoped, tag = 'input window, operand 2, single buffered']
    #allocation3 [shape = 's32[1]{0}', space=sflag, size = 0x4, scoped, tag = 'scoped memory for trn_forward.1']
    #allocation4 [shape = 's32[1]{0}', space=sflag, size = 0x4, scoped, tag = 'scoped memory for trn_forward.1']
    #allocation5 [shape = 'u8[1048576]{0}', space=vmem, size = 0x100000, scoped, tag = 'input window, operand 4, single buffered']
    #allocation6 [shape = 's32[1]{0}', space=sflag, size = 0x4, scoped, tag = 'scoped memory for trn_forward.1']
    #allocation7 [shape = 'u8[131072]{0}', space=vmem, size = 0x20000, scoped, tag = 'input window, operand 13, single buffered']
    #allocation8 [shape = 'u8[131072]{0}', space=vmem, size = 0x20000, scoped, tag = 'input window, operand 15, single buffered']
    #allocation9 [shape = 's32[1]{0}', space=sflag, size = 0x4, scoped, tag = 'scoped memory for trn_forward.1']
    #allocation10 [shape = 'u8[131072]{0}', space=vmem, size = 0x20000, scoped, tag = 'input window, operand 17, single buffered']
    #allocation11 [shape = 'u8[131072]{0}', space=vmem, size = 0x20000, scoped, tag = 'input window, operand 19, single buffered']
    #allocation12 [shape = 's32[1]{0}', space=sflag, size = 0x4, scoped, tag = 'scoped memory for trn_forward.1']
    #allocation13 [shape = 'u8[2048]{0}', space=vmem, size = 0x800, scoped, tag = 'output window, operand 0, single buffered']
    %28 = vsyncpa [#allocation3], 0
    %29 = vsyncpa [#allocation6], 0
    %30 = vsyncpa [#allocation9], 0
    %31 = vsyncpa [#allocation12], 0
    %32 = vsyncpa [#allocation4], 0
    // Predicated region
    $region2: #{trn_forward.1} parent=1 // pred_check
      _
    $region3: #{trn_forward.1} parent=1 // pred_check_branch
      %34 = sbr.rel (0) target = $region5
    $region4: #{trn_forward.1} parent=1 // pred_region
      _
    $region5: #{trn_forward.1} parent=1 // pred_fallthru
      _
    // Predicated region
    $region6: #{trn_forward.1} parent=1 // pred_check
      _
    $region7: #{trn_forward.1} parent=1 // pred_check_branch
      %36 = sbr.rel (0) target = $region9
    $region8: #{trn_forward.1} parent=1 // pred_region
      _
    $region9: #{trn_forward.1} parent=1 // pred_fallthru
      _
    // Predicated region
    $region10: #{trn_forward.1} parent=1 // pred_check
      _
    $region11: #{trn_forward.1} parent=1 // pred_check_branch
      %38 = sbr.rel (0) target = $region13
    $region12: #{trn_forward.1} parent=1 // pred_region
      %s40 = ssub.s32 4096, 4096
      %41 = vsyncadd [#allocation3], %s40
      %s42 = sshll.u32 [#allocation2], 4
      %s43 = int_to_ptr.vmem [resolvable:$true] %s42
      %48 = dma.hbm_to_vmem [thread:$0]  %s2, 4096, %s43, [#allocation3], 512, 512, 32
    $region13: #{trn_forward.1} parent=1 // pred_fallthru
      _
    // Predicated region
    $region14: #{trn_forward.1} parent=1 // pred_check
      _
    $region15: #{trn_forward.1} parent=1 // pred_check_branch
      %50 = sbr.rel (0) target = $region17
    $region16: #{trn_forward.1} parent=1 // pred_region
      _
    $region17: #{trn_forward.1} parent=1 // pred_fallthru
      _
    // Predicated region
    $region18: #{trn_forward.1} parent=1 // pred_check
      _
    $region19: #{trn_forward.1} parent=1 // pred_check_branch
      %52 = sbr.rel (0) target = $region21
    $region20: #{trn_forward.1} parent=1 // pred_region
      %s54 = ssub.s32 32768, 32768
      %55 = vsyncadd [#allocation6], %s54
      %s56 = sshll.u32 [#allocation5], 4
      %s57 = int_to_ptr.vmem [resolvable:$true] %s56
      %62 = dma.hbm_to_vmem [thread:$0]  %s4, 32768, %s57, [#allocation6], 256, 256, 16
    $region21: #{trn_forward.1} parent=1 // pred_fallthru
      _
    // Predicated region
    $region22: #{trn_forward.1} parent=1 // pred_check
      _
    $region23: #{trn_forward.1} parent=1 // pred_check_branch
      %64 = sbr.rel (0) target = $region25
    $region24: #{trn_forward.1} parent=1 // pred_region
      _
    $region25: #{trn_forward.1} parent=1 // pred_fallthru
      _
    // Predicated region
    $region26: #{trn_forward.1} parent=1 // pred_check
      _
    $region27: #{trn_forward.1} parent=1 // pred_check_branch
      %66 = sbr.rel (0) target = $region29
    $region28: #{trn_forward.1} parent=1 // pred_region
      _
    $region29: #{trn_forward.1} parent=1 // pred_fallthru
      _
    // Predicated region
    $region30: #{trn_forward.1} parent=1 // pred_check
      _
    $region31: #{trn_forward.1} parent=1 // pred_check_branch
      %68 = sbr.rel (0) target = $region33
    $region32: #{trn_forward.1} parent=1 // pred_region
      _
    $region33: #{trn_forward.1} parent=1 // pred_fallthru
      _
    // Predicated region
    $region34: #{trn_forward.1} parent=1 // pred_check
      _
    $region35: #{trn_forward.1} parent=1 // pred_check_branch
      %70 = sbr.rel (0) target = $region37
    $region36: #{trn_forward.1} parent=1 // pred_region
      _
    $region37: #{trn_forward.1} parent=1 // pred_fallthru
      _
    // Predicated region
    $region38: #{trn_forward.1} parent=1 // pred_check
      _
    $region39: #{trn_forward.1} parent=1 // pred_check_branch
      %72 = sbr.rel (0) target = $region41
    $region40: #{trn_forward.1} parent=1 // pred_region
      _
    $region41: #{trn_forward.1} parent=1 // pred_fallthru
      _
    // Predicated region
    $region42: #{trn_forward.1} parent=1 // pred_check
      _
    $region43: #{trn_forward.1} parent=1 // pred_check_branch
      %74 = sbr.rel (0) target = $region45
    $region44: #{trn_forward.1} parent=1 // pred_region
      _
    $region45: #{trn_forward.1} parent=1 // pred_fallthru
      _
    // Predicated region
    $region46: #{trn_forward.1} parent=1 // pred_check
      _
    $region47: #{trn_forward.1} parent=1 // pred_check_branch
      %76 = sbr.rel (0) target = $region49
    $region48: #{trn_forward.1} parent=1 // pred_region
      _
    $region49: #{trn_forward.1} parent=1 // pred_fallthru
      _
    // Predicated region
    $region50: #{trn_forward.1} parent=1 // pred_check
      _
    $region51: #{trn_forward.1} parent=1 // pred_check_branch
      %78 = sbr.rel (0) target = $region53
    $region52: #{trn_forward.1} parent=1 // pred_region
      _
    $region53: #{trn_forward.1} parent=1 // pred_fallthru
      _
    // Predicated region
    $region54: #{trn_forward.1} parent=1 // pred_check
      _
    $region55: #{trn_forward.1} parent=1 // pred_check_branch
      %80 = sbr.rel (0) target = $region57
    $region56: #{trn_forward.1} parent=1 // pred_region
      %s82 = ssub.s32 4096, 4096
      %83 = vsyncadd [#allocation6], %s82
      %s84 = sshll.u32 [#allocation7], 4
      %s85 = int_to_ptr.vmem [resolvable:$true] %s84
      %90 = dma.hbm_to_vmem [thread:$0]  %s13, 4096, %s85, [#allocation6], 128, 128, 8
    $region57: #{trn_forward.1} parent=1 // pred_fallthru
      _
    // Predicated region
    $region58: #{trn_forward.1} parent=1 // pred_check
      _
    $region59: #{trn_forward.1} parent=1 // pred_check_branch
      %92 = sbr.rel (0) target = $region61
    $region60: #{trn_forward.1} parent=1 // pred_region
      _
    $region61: #{trn_forward.1} parent=1 // pred_fallthru
      _
    // Predicated region
    $region62: #{trn_forward.1} parent=1 // pred_check
      _
    $region63: #{trn_forward.1} parent=1 // pred_check_branch
      %94 = sbr.rel (0) target = $region65
    $region64: #{trn_forward.1} parent=1 // pred_region
      %s96 = ssub.s32 4096, 4096
      %97 = vsyncadd [#allocation9], %s96
      %s98 = sshll.u32 [#allocation8], 4
      %s99 = int_to_ptr.vmem [resolvable:$true] %s98
      %104 = dma.hbm_to_vmem [thread:$0]  %s15, 4096, %s99, [#allocation9], 128, 128, 8
    $region65: #{trn_forward.1} parent=1 // pred_fallthru
      _
    // Predicated region
    $region66: #{trn_forward.1} parent=1 // pred_check
      _
    $region67: #{trn_forward.1} parent=1 // pred_check_branch
      %106 = sbr.rel (0) target = $region69
    $region68: #{trn_forward.1} parent=1 // pred_region
      _
    $region69: #{trn_forward.1} parent=1 // pred_fallthru
      _
    // Predicated region
    $region70: #{trn_forward.1} parent=1 // pred_check
      _
    $region71: #{trn_forward.1} parent=1 // pred_check_branch
      %108 = sbr.rel (0) target = $region73
    $region72: #{trn_forward.1} parent=1 // pred_region
      %s110 = ssub.s32 4096, 4096
      %111 = vsyncadd [#allocation9], %s110
      %s112 = sshll.u32 [#allocation10], 4
      %s113 = int_to_ptr.vmem [resolvable:$true] %s112
      %118 = dma.hbm_to_vmem [thread:$0]  %s17, 4096, %s113, [#allocation9], 128, 128, 8
    $region73: #{trn_forward.1} parent=1 // pred_fallthru
      _
    // Predicated region
    $region74: #{trn_forward.1} parent=1 // pred_check
      _
    $region75: #{trn_forward.1} parent=1 // pred_check_branch
      %120 = sbr.rel (0) target = $region77
    $region76: #{trn_forward.1} parent=1 // pred_region
      _
    $region77: #{trn_forward.1} parent=1 // pred_fallthru
      _
    // Predicated region
    $region78: #{trn_forward.1} parent=1 // pred_check
      _
    $region79: #{trn_forward.1} parent=1 // pred_check_branch
      %122 = sbr.rel (0) target = $region81
    $region80: #{trn_forward.1} parent=1 // pred_region
      %s124 = ssub.s32 4096, 4096
      %125 = vsyncadd [#allocation12], %s124
      %s126 = sshll.u32 [#allocation11], 4
      %s127 = int_to_ptr.vmem [resolvable:$true] %s126
      %132 = dma.hbm_to_vmem [thread:$0]  %s19, 4096, %s127, [#allocation12], 128, 128, 8
    $region81: #{trn_forward.1} parent=1 // pred_fallthru
      _
    // Predicated region
    $region82: #{trn_forward.1} parent=1 // pred_check
      _
    $region83: #{trn_forward.1} parent=1 // pred_check_branch
      %134 = sbr.rel (0) target = $region85
    $region84: #{trn_forward.1} parent=1 // pred_region
      _
    $region85: #{trn_forward.1} parent=1 // pred_fallthru
      _
    // Predicated region
    $region86: #{trn_forward.1} parent=1 // pred_check
      _
    $region87: #{trn_forward.1} parent=1 // pred_check_branch
      %136 = sbr.rel (0) target = $region89
    $region88: #{trn_forward.1} parent=1 // pred_region
      _
    $region89: #{trn_forward.1} parent=1 // pred_fallthru
      _
    // Predicated region
    $region90: #{trn_forward.1} parent=1 // pred_check
      _
    $region91: #{trn_forward.1} parent=1 // pred_check_branch
      %138 = sbr.rel (0) target = $region93
    $region92: #{trn_forward.1} parent=1 // pred_region
      _
    $region93: #{trn_forward.1} parent=1 // pred_fallthru
      _
    // Predicated region
    $region94: #{trn_forward.1} parent=1 // pred_check
      _
    $region95: #{trn_forward.1} parent=1 // pred_check_branch
      %140 = sbr.rel (0) target = $region97
    $region96: #{trn_forward.1} parent=1 // pred_region
      %141 = dma.done [#allocation3], 4096
    $region97: #{trn_forward.1} parent=1 // pred_fallthru
      _
    // Predicated region
    $region98: #{trn_forward.1} parent=1 // pred_check
      _
    $region99: #{trn_forward.1} parent=1 // pred_check_branch
      %143 = sbr.rel (0) target = $region101
    $region100: #{trn_forward.1} parent=1 // pred_region
      %144 = dma.done [#allocation6], 32768
    $region101: #{trn_forward.1} parent=1 // pred_fallthru
      _
    // Predicated region
    $region102: #{trn_forward.1} parent=1 // pred_check
      _
    $region103: #{trn_forward.1} parent=1 // pred_check_branch
      %146 = sbr.rel (0) target = $region105
    $region104: #{trn_forward.1} parent=1 // pred_region
      %147 = dma.done [#allocation6], 4096
    $region105: #{trn_forward.1} parent=1 // pred_fallthru
      _
    // Predicated region
    $region106: #{trn_forward.1} parent=1 // pred_check
      _
    $region107: #{trn_forward.1} parent=1 // pred_check_branch
      %149 = sbr.rel (0) target = $region109
    $region108: #{trn_forward.1} parent=1 // pred_region
      %150 = dma.done [#allocation9], 4096
    $region109: #{trn_forward.1} parent=1 // pred_fallthru
      _
    // Predicated region
    $region110: #{trn_forward.1} parent=1 // pred_check
      _
    $region111: #{trn_forward.1} parent=1 // pred_check_branch
      %152 = sbr.rel (0) target = $region113
    $region112: #{trn_forward.1} parent=1 // pred_region
      %153 = dma.done [#allocation9], 4096
    $region113: #{trn_forward.1} parent=1 // pred_fallthru
      _
    // Predicated region
    $region114: #{trn_forward.1} parent=1 // pred_check
      _
    $region115: #{trn_forward.1} parent=1 // pred_check_branch
      %155 = sbr.rel (0) target = $region117
    $region116: #{trn_forward.1} parent=1 // pred_region
      %156 = dma.done [#allocation12], 4096
    $region117: #{trn_forward.1} parent=1 // pred_fallthru
      _
    %v158 = vld [vmem:[%s1] sm:$0x1]
    %v159 = vld [vmem:[%s1 + $0x1] sm:$0x1]
    %v160 = vld [vmem:[%s1 + $0x2] sm:$0x1]
    %v161 = vld [vmem:[%s1 + $0x3] sm:$0x1]
    %v162 = vpack.c.bf16 %v158, %v158
    %v163 = vpack.c.bf16 %v159, %v159
    %v164 = vpack.c.bf16 %v160, %v160
    %v165 = vpack.c.bf16 %v161, %v161
    %v166 = vld [vmem:[#allocation2] sm:$0xff]
    %v167 = vld [vmem:[#allocation2 + $0x8] sm:$0xff]
    %v168 = vld [vmem:[#allocation2 + $0x10] sm:$0xff]
    %v169 = vld [vmem:[#allocation2 + $0x18] sm:$0xff]
    %v170 = vld [vmem:[#allocation2 + $0x20] sm:$0xff]
    %v171 = vld [vmem:[#allocation2 + $0x28] sm:$0xff]
    %v172 = vld [vmem:[#allocation2 + $0x30] sm:$0xff]
    %v173 = vld [vmem:[#allocation2 + $0x38] sm:$0xff]
    %v174 = vld [vmem:[#allocation2 + $0x40] sm:$0xff]
    %v175 = vld [vmem:[#allocation2 + $0x48] sm:$0xff]
    %v176 = vld [vmem:[#allocation2 + $0x50] sm:$0xff]
    %v177 = vld [vmem:[#allocation2 + $0x58] sm:$0xff]
    %v178 = vld [vmem:[#allocation2 + $0x60] sm:$0xff]
    %v179 = vld [vmem:[#allocation2 + $0x68] sm:$0xff]
    %v180 = vld [vmem:[#allocation2 + $0x70] sm:$0xff]
    %v181 = vld [vmem:[#allocation2 + $0x78] sm:$0xff]
    %v182 = vld [vmem:[#allocation2 + $0x80] sm:$0xff]
    %v183 = vld [vmem:[#allocation2 + $0x88] sm:$0xff]
    %v184 = vld [vmem:[#allocation2 + $0x90] sm:$0xff]
    %v185 = vld [vmem:[#allocation2 + $0x98] sm:$0xff]
    %v186 = vld [vmem:[#allocation2 + $0xa0] sm:$0xff]
    %v187 = vld [vmem:[#allocation2 + $0xa8] sm:$0xff]
    %v188 = vld [vmem:[#allocation2 + $0xb0] sm:$0xff]
    %v189 = vld [vmem:[#allocation2 + $0xb8] sm:$0xff]
    %v190 = vld [vmem:[#allocation2 + $0xc0] sm:$0xff]
    %v191 = vld [vmem:[#allocation2 + $0xc8] sm:$0xff]
    %v192 = vld [vmem:[#allocation2 + $0xd0] sm:$0xff]
    %v193 = vld [vmem:[#allocation2 + $0xd8] sm:$0xff]
    %v194 = vld [vmem:[#allocation2 + $0xe0] sm:$0xff]
    %v195 = vld [vmem:[#allocation2 + $0xe8] sm:$0xff]
    %v196 = vld [vmem:[#allocation2 + $0xf0] sm:$0xff]
    %v197 = vld [vmem:[#allocation2 + $0xf8] sm:$0xff]
    %v198 = vld [vmem:[%s3] sm:$0xff]
    %v200 = vlaneseq
    %v201 = vshrl.u32 %v200, 7
    %v202 = vsub.s32 0, %v201
    %v203 = vrot.slane %v198, %v202
    %v204 = vlaneseq
    %v205 = vshrl.u32 %v204, 7
    %v206 = vsub.s32 1, %v205
    %v207 = vrot.slane %v198, %v206
    %v208 = vlaneseq
    %v209 = vshrl.u32 %v208, 7
    %v210 = vsub.s32 2, %v209
    %v211 = vrot.slane %v198, %v210
    %v212 = vlaneseq
    %v213 = vshrl.u32 %v212, 7
    %v214 = vsub.s32 3, %v213
    %v215 = vrot.slane %v198, %v214
    %v216 = vlaneseq
    %v217 = vshrl.u32 %v216, 7
    %v218 = vsub.s32 4, %v217
    %v219 = vrot.slane %v198, %v218
    %v220 = vlaneseq
    %v221 = vshrl.u32 %v220, 7
    %v222 = vsub.s32 5, %v221
    %v223 = vrot.slane %v198, %v222
    %v224 = vlaneseq
    %v225 = vshrl.u32 %v224, 7
    %v226 = vsub.s32 6, %v225
    %v227 = vrot.slane %v198, %v226
    %v228 = vlaneseq
    %v229 = vshrl.u32 %v228, 7
    %v230 = vsub.s32 7, %v229
    %v231 = vrot.slane %v198, %v230
    %v244 = vunpack.c.l.b16 %v162
    %v245 = vunpack.c.l.b16 %v163
    %v246 = vunpack.c.l.b16 %v164
    %v247 = vunpack.c.l.b16 %v165
    %v248 = vrot.slane %v245, 7
    %vm249 = vcmask 1041409
    %v250 = vsel %vm249, %v248, %v244
    %v251 = vrot.slane %v246, 6
    %vm252 = vcmask 1042434
    %v253 = vsel %vm252, %v251, %v250
    %v254 = vrot.slane %v247, 5
    %vm255 = vcmask 1043459
    %v256 = vsel %vm255, %v254, %v253
    %v257 = vpack.c.b16 %v256, %v256
    %v290 = vunpack.c.l.b16 %v166
    %v291 = vunpack.c.h.b16 %v166
    %v292 = vunpack.c.l.b16 %v167
    %v293 = vunpack.c.h.b16 %v167
    %v294 = vunpack.c.l.b16 %v168
    %v295 = vunpack.c.h.b16 %v168
    %v296 = vunpack.c.l.b16 %v169
    %v297 = vunpack.c.h.b16 %v169
    %v298 = vunpack.c.l.b16 %v170
    %v299 = vunpack.c.h.b16 %v170
    %v300 = vunpack.c.l.b16 %v171
    %v301 = vunpack.c.h.b16 %v171
    %v302 = vunpack.c.l.b16 %v172
    %v303 = vunpack.c.h.b16 %v172
    %v304 = vunpack.c.l.b16 %v173
    %v305 = vunpack.c.h.b16 %v173
    %v306 = vunpack.c.l.b16 %v174
    %v307 = vunpack.c.h.b16 %v174
    %v308 = vunpack.c.l.b16 %v175
    %v309 = vunpack.c.h.b16 %v175
    %v310 = vunpack.c.l.b16 %v176
    %v311 = vunpack.c.h.b16 %v176
    %v312 = vunpack.c.l.b16 %v177
    %v313 = vunpack.c.h.b16 %v177
    %v314 = vunpack.c.l.b16 %v178
    %v315 = vunpack.c.h.b16 %v178
    %v316 = vunpack.c.l.b16 %v179
    %v317 = vunpack.c.h.b16 %v179
    %v318 = vunpack.c.l.b16 %v180
    %v319 = vunpack.c.h.b16 %v180
    %v320 = vunpack.c.l.b16 %v181
    %v321 = vunpack.c.h.b16 %v181
    %v322 = vunpack.c.l.b16 %v182
    %v323 = vunpack.c.h.b16 %v182
    %v324 = vunpack.c.l.b16 %v183
    %v325 = vunpack.c.h.b16 %v183
    %v326 = vunpack.c.l.b16 %v184
    %v327 = vunpack.c.h.b16 %v184
    %v328 = vunpack.c.l.b16 %v185
    %v329 = vunpack.c.h.b16 %v185
    %v330 = vunpack.c.l.b16 %v186
    %v331 = vunpack.c.h.b16 %v186
    %v332 = vunpack.c.l.b16 %v187
    %v333 = vunpack.c.h.b16 %v187
    %v334 = vunpack.c.l.b16 %v188
    %v335 = vunpack.c.h.b16 %v188
    %v336 = vunpack.c.l.b16 %v189
    %v337 = vunpack.c.h.b16 %v189
    %v338 = vunpack.c.l.b16 %v190
    %v339 = vunpack.c.h.b16 %v190
    %v340 = vunpack.c.l.b16 %v191
    %v341 = vunpack.c.h.b16 %v191
    %v342 = vunpack.c.l.b16 %v192
    %v343 = vunpack.c.h.b16 %v192
    %v344 = vunpack.c.l.b16 %v193
    %v345 = vunpack.c.h.b16 %v193
    %v346 = vunpack.c.l.b16 %v194
    %v347 = vunpack.c.h.b16 %v194
    %v348 = vunpack.c.l.b16 %v195
    %v349 = vunpack.c.h.b16 %v195
    %v350 = vunpack.c.l.b16 %v196
    %v351 = vunpack.c.h.b16 %v196
    %v352 = vunpack.c.l.b16 %v197
    %v353 = vunpack.c.h.b16 %v197
    %v354 = vpack.c.b16 %v298, %v290
    %v355 = vpack.c.b16 %v299, %v291
    %v356 = vpack.c.b16 %v300, %v292
    %v357 = vpack.c.b16 %v301, %v293
    %v358 = vpack.c.b16 %v302, %v294
    %v359 = vpack.c.b16 %v303, %v295
    %v360 = vpack.c.b16 %v304, %v296
    %v361 = vpack.c.b16 %v305, %v297
    %v362 = vpack.c.b16 %v314, %v306
    %v363 = vpack.c.b16 %v315, %v307
    %v364 = vpack.c.b16 %v316, %v308
    %v365 = vpack.c.b16 %v317, %v309
    %v366 = vpack.c.b16 %v318, %v310
    %v367 = vpack.c.b16 %v319, %v311
    %v368 = vpack.c.b16 %v320, %v312
    %v369 = vpack.c.b16 %v321, %v313
    %v370 = vpack.c.b16 %v330, %v322
    %v371 = vpack.c.b16 %v331, %v323
    %v372 = vpack.c.b16 %v332, %v324
    %v373 = vpack.c.b16 %v333, %v325
    %v374 = vpack.c.b16 %v334, %v326
    %v375 = vpack.c.b16 %v335, %v327
    %v376 = vpack.c.b16 %v336, %v328
    %v377 = vpack.c.b16 %v337, %v329
    %v378 = vpack.c.b16 %v346, %v338
    %v379 = vpack.c.b16 %v347, %v339
    %v380 = vpack.c.b16 %v348, %v340
    %v381 = vpack.c.b16 %v349, %v341
    %v382 = vpack.c.b16 %v350, %v342
    %v383 = vpack.c.b16 %v351, %v343
    %v384 = vpack.c.b16 %v352, %v344
    %v385 = vpack.c.b16 %v353, %v345
    %vm418 = vcmask 523264
    %v420 = vsel %vm418, %v257, 0
    %422 = vmatprep.subr.bf16.mxu0 %v355
    %423 = vmatpush1.bf16.msra.mxu0 %v354
    %424 = vmatprep.subr.bf16.mxu0 %v363
    %425 = vmatpush1.bf16.msra.mxu0 %v362
    %426 = vmatprep.subr.bf16.mxu0 %v371
    %427 = vmatpush1.bf16.msra.mxu0 %v370
    %428 = vmatprep.subr.bf16.mxu0 %v379
    %429 = vmatpush1.bf16.msra.mxu0 %v378
    %430 = vmatprep.subr.bf16.mxu0 0
    %431 = vmatpush1.bf16.msra.mxu0 0
    %432 = vmatprep.subr.bf16.mxu0 0
    %433 = vmatpush1.bf16.msra.mxu0 0
    %434 = vmatprep.subr.bf16.mxu0 0
    %435 = vmatpush1.bf16.msra.mxu0 0
    %436 = vmatprep.subr.bf16.mxu0 0
    %437 = vmatpush1.bf16.msra.mxu0 0
    %438 = vmatprep.subr.bf16.mxu0 0
    %439 = vmatpush1.bf16.msra.mxu0 0
    %440 = vmatprep.subr.bf16.mxu0 0
    %441 = vmatpush1.bf16.msra.mxu0 0
    %442 = vmatprep.subr.bf16.mxu0 0
    %443 = vmatpush1.bf16.msra.mxu0 0
    %444 = vmatprep.subr.bf16.mxu0 0
    %445 = vmatpush1.bf16.msra.mxu0 0
    %446 = vmatprep.subr.bf16.mxu0 0
    %447 = vmatpush1.bf16.msra.mxu0 0
    %448 = vmatprep.subr.bf16.mxu0 0
    %449 = vmatpush1.bf16.msra.mxu0 0
    %450 = vmatprep.subr.bf16.mxu0 0
    %451 = vmatpush1.bf16.msra.mxu0 0
    %452 = vmatprep.subr.bf16.mxu0 0
    %453 = vmatpush1.bf16.msra.mxu0 0
    %454 = vmatprep.mubr.bf16.mxu0 0
    %455 = vmatmul.mubr.bf16.gmra.mrb[0].mxu0 %v420
    %v456 = vpop.f32.mrb[0].mxu0
    %v457 = vadd.f32 %v203, %v456
    %v458 = vpop.f32.mrb[0].mxu0
    %v459 = vadd.f32 %v207, %v458
    %v460 = vpop.f32.mrb[0].mxu0
    %v461 = vpop.f32.mrb[0].mxu0
    %462 = vdwg.mxu0
    %463 = vmatprep.subr.bf16.mxu0 %v357
    %464 = vmatpush1.bf16.msra.mxu0 %v356
    %465 = vmatprep.subr.bf16.mxu0 %v365
    %466 = vmatpush1.bf16.msra.mxu0 %v364
    %467 = vmatprep.subr.bf16.mxu0 %v373
    %468 = vmatpush1.bf16.msra.mxu0 %v372
    %469 = vmatprep.subr.bf16.mxu0 %v381
    %470 = vmatpush1.bf16.msra.mxu0 %v380
    %471 = vmatprep.subr.bf16.mxu0 0
    %472 = vmatpush1.bf16.msra.mxu0 0
    %473 = vmatprep.subr.bf16.mxu0 0
    %474 = vmatpush1.bf16.msra.mxu0 0
    %475 = vmatprep.subr.bf16.mxu0 0
    %476 = vmatpush1.bf16.msra.mxu0 0
    %477 = vmatprep.subr.bf16.mxu0 0
    %478 = vmatpush1.bf16.msra.mxu0 0
    %479 = vmatprep.subr.bf16.mxu0 0
    %480 = vmatpush1.bf16.msra.mxu0 0
    %481 = vmatprep.subr.bf16.mxu0 0
    %482 = vmatpush1.bf16.msra.mxu0 0
    %483 = vmatprep.subr.bf16.mxu0 0
    %484 = vmatpush1.bf16.msra.mxu0 0
    %485 = vmatprep.subr.bf16.mxu0 0
    %486 = vmatpush1.bf16.msra.mxu0 0
    %487 = vmatprep.subr.bf16.mxu0 0
    %488 = vmatpush1.bf16.msra.mxu0 0
    %489 = vmatprep.subr.bf16.mxu0 0
    %490 = vmatpush1.bf16.msra.mxu0 0
    %491 = vmatprep.subr.bf16.mxu0 0
    %492 = vmatpush1.bf16.msra.mxu0 0
    %493 = vmatprep.subr.bf16.mxu0 0
    %494 = vmatpush1.bf16.msra.mxu0 0
    %495 = vmatprep.mubr.bf16.mxu0 0
    %496 = vmatmul.mubr.bf16.gmra.mrb[0].mxu0 %v420
    %v497 = vpop.f32.mrb[0].mxu0
    %v498 = vadd.f32 %v211, %v497
    %v499 = vpop.f32.mrb[0].mxu0
    %v500 = vadd.f32 %v215, %v499
    %v501 = vpop.f32.mrb[0].mxu0
    %v502 = vpop.f32.mrb[0].mxu0
    %503 = vdwg.mxu0
    %504 = vmatprep.subr.bf16.mxu0 %v359
    %505 = vmatpush1.bf16.msra.mxu0 %v358
    %506 = vmatprep.subr.bf16.mxu0 %v367
    %507 = vmatpush1.bf16.msra.mxu0 %v366
    %508 = vmatprep.subr.bf16.mxu0 %v375
    %509 = vmatpush1.bf16.msra.mxu0 %v374
    %510 = vmatprep.subr.bf16.mxu0 %v383
    %511 = vmatpush1.bf16.msra.mxu0 %v382
    %512 = vmatprep.subr.bf16.mxu0 0
    %513 = vmatpush1.bf16.msra.mxu0 0
    %514 = vmatprep.subr.bf16.mxu0 0
    %515 = vmatpush1.bf16.msra.mxu0 0
    %516 = vmatprep.subr.bf16.mxu0 0
    %517 = vmatpush1.bf16.msra.mxu0 0
    %518 = vmatprep.subr.bf16.mxu0 0
    %519 = vmatpush1.bf16.msra.mxu0 0
    %520 = vmatprep.subr.bf16.mxu0 0
    %521 = vmatpush1.bf16.msra.mxu0 0
    %522 = vmatprep.subr.bf16.mxu0 0
    %523 = vmatpush1.bf16.msra.mxu0 0
    %524 = vmatprep.subr.bf16.mxu0 0
    %525 = vmatpush1.bf16.msra.mxu0 0
    %526 = vmatprep.subr.bf16.mxu0 0
    %527 = vmatpush1.bf16.msra.mxu0 0
    %528 = vmatprep.subr.bf16.mxu0 0
    %529 = vmatpush1.bf16.msra.mxu0 0
    %530 = vmatprep.subr.bf16.mxu0 0
    %531 = vmatpush1.bf16.msra.mxu0 0
    %532 = vmatprep.subr.bf16.mxu0 0
    %533 = vmatpush1.bf16.msra.mxu0 0
    %534 = vmatprep.subr.bf16.mxu0 0
    %535 = vmatpush1.bf16.msra.mxu0 0
    %536 = vmatprep.mubr.bf16.mxu0 0
    %537 = vmatmul.mubr.bf16.gmra.mrb[0].mxu0 %v420
    %v538 = vpop.f32.mrb[0].mxu0
    %v539 = vadd.f32 %v219, %v538
    %v540 = vpop.f32.mrb[0].mxu0
    %v541 = vadd.f32 %v223, %v540
    %v542 = vpop.f32.mrb[0].mxu0
    %v543 = vpop.f32.mrb[0].mxu0
    %544 = vdwg.mxu0
    %545 = vmatprep.subr.bf16.mxu0 %v361
    %546 = vmatpush1.bf16.msra.mxu0 %v360
    %547 = vmatprep.subr.bf16.mxu0 %v369
    %548 = vmatpush1.bf16.msra.mxu0 %v368
    %549 = vmatprep.subr.bf16.mxu0 %v377
    %550 = vmatpush1.bf16.msra.mxu0 %v376
    %551 = vmatprep.subr.bf16.mxu0 %v385
    %552 = vmatpush1.bf16.msra.mxu0 %v384
    %553 = vmatprep.subr.bf16.mxu0 0
    %554 = vmatpush1.bf16.msra.mxu0 0
    %555 = vmatprep.subr.bf16.mxu0 0
    %556 = vmatpush1.bf16.msra.mxu0 0
    %557 = vmatprep.subr.bf16.mxu0 0
    %558 = vmatpush1.bf16.msra.mxu0 0
    %559 = vmatprep.subr.bf16.mxu0 0
    %560 = vmatpush1.bf16.msra.mxu0 0
    %561 = vmatprep.subr.bf16.mxu0 0
    %562 = vmatpush1.bf16.msra.mxu0 0
    %563 = vmatprep.subr.bf16.mxu0 0
    %564 = vmatpush1.bf16.msra.mxu0 0
    %565 = vmatprep.subr.bf16.mxu0 0
    %566 = vmatpush1.bf16.msra.mxu0 0
    %567 = vmatprep.subr.bf16.mxu0 0
    %568 = vmatpush1.bf16.msra.mxu0 0
    %569 = vmatprep.subr.bf16.mxu0 0
    %570 = vmatpush1.bf16.msra.mxu0 0
    %571 = vmatprep.subr.bf16.mxu0 0
    %572 = vmatpush1.bf16.msra.mxu0 0
    %573 = vmatprep.subr.bf16.mxu0 0
    %574 = vmatpush1.bf16.msra.mxu0 0
    %575 = vmatprep.subr.bf16.mxu0 0
    %576 = vmatpush1.bf16.msra.mxu0 0
    %577 = vmatprep.mubr.bf16.mxu0 0
    %578 = vmatmul.mubr.bf16.gmra.mrb[0].mxu0 %v420
    %v579 = vpop.f32.mrb[0].mxu0
    %v580 = vadd.f32 %v227, %v579
    %v581 = vpop.f32.mrb[0].mxu0
    %v582 = vadd.f32 %v231, %v581
    %v583 = vpop.f32.mrb[0].mxu0
    %v584 = vpop.f32.mrb[0].mxu0
    %585 = vdwg.mxu0
    %v586 = vmax.f32 %v457, 0.0
    %v587 = vmax.f32 %v459, 0.0
    %v588 = vmax.f32 %v498, 0.0
    %v589 = vmax.f32 %v500, 0.0
    %v590 = vmax.f32 %v539, 0.0
    %v591 = vmax.f32 %v541, 0.0
    %v592 = vmax.f32 %v580, 0.0
    %v593 = vmax.f32 %v582, 0.0
    %v594 = vpack.c.bf16 %v586, %v586
    %v595 = vpack.c.bf16 %v587, %v587
    %v596 = vpack.c.bf16 %v588, %v588
    %v597 = vpack.c.bf16 %v589, %v589
    %v598 = vpack.c.bf16 %v590, %v590
    %v599 = vpack.c.bf16 %v591, %v591
    %v600 = vpack.c.bf16 %v592, %v592
    %v601 = vpack.c.bf16 %v593, %v593
    %v602 = vld [vmem:[#allocation5] sm:$0xff]
    %v603 = vld [vmem:[#allocation5 + $0x8] sm:$0xff]
    %v604 = vld [vmem:[#allocation5 + $0x10] sm:$0xff]
    %v605 = vld [vmem:[#allocation5 + $0x18] sm:$0xff]
    %v606 = vld [vmem:[#allocation5 + $0x20] sm:$0xff]
    %v607 = vld [vmem:[#allocation5 + $0x28] sm:$0xff]
    %v608 = vld [vmem:[#allocation5 + $0x30] sm:$0xff]
    %v609 = vld [vmem:[#allocation5 + $0x38] sm:$0xff]
    %v610 = vld [vmem:[#allocation5 + $0x40] sm:$0xff]
    %v611 = vld [vmem:[#allocation5 + $0x48] sm:$0xff]
    %v612 = vld [vmem:[#allocation5 + $0x50] sm:$0xff]
    %v613 = vld [vmem:[#allocation5 + $0x58] sm:$0xff]
    %v614 = vld [vmem:[#allocation5 + $0x60] sm:$0xff]
    %v615 = vld [vmem:[#allocation5 + $0x68] sm:$0xff]
    %v616 = vld [vmem:[#allocation5 + $0x70] sm:$0xff]
    %v617 = vld [vmem:[#allocation5 + $0x78] sm:$0xff]
    %v618 = vld [vmem:[#allocation5 + $0x80] sm:$0xff]
    %v619 = vld [vmem:[#allocation5 + $0x88] sm:$0xff]
    %v620 = vld [vmem:[#allocation5 + $0x90] sm:$0xff]
    %v621 = vld [vmem:[#allocation5 + $0x98] sm:$0xff]
    %v622 = vld [vmem:[#allocation5 + $0xa0] sm:$0xff]
    %v623 = vld [vmem:[#allocation5 + $0xa8] sm:$0xff]
    %v624 = vld [vmem:[#allocation5 + $0xb0] sm:$0xff]
    %v625 = vld [vmem:[#allocation5 + $0xb8] sm:$0xff]
    %v626 = vld [vmem:[#allocation5 + $0xc0] sm:$0xff]
    %v627 = vld [vmem:[#allocation5 + $0xc8] sm:$0xff]
    %v628 = vld [vmem:[#allocation5 + $0xd0] sm:$0xff]
    %v629 = vld [vmem:[#allocation5 + $0xd8] sm:$0xff]
    %v630 = vld [vmem:[#allocation5 + $0xe0] sm:$0xff]
    %v631 = vld [vmem:[#allocation5 + $0xe8] sm:$0xff]
    %v632 = vld [vmem:[#allocation5 + $0xf0] sm:$0xff]
    %v633 = vld [vmem:[#allocation5 + $0xf8] sm:$0xff]
    %v634 = vld [vmem:[#allocation5 + $0x100] sm:$0xff]
    %v635 = vld [vmem:[#allocation5 + $0x108] sm:$0xff]
    %v636 = vld [vmem:[#allocation5 + $0x110] sm:$0xff]
    %v637 = vld [vmem:[#allocation5 + $0x118] sm:$0xff]
    %v638 = vld [vmem:[#allocation5 + $0x120] sm:$0xff]
    %v639 = vld [vmem:[#allocation5 + $0x128] sm:$0xff]
    %v640 = vld [vmem:[#allocation5 + $0x130] sm:$0xff]
    %v641 = vld [vmem:[#allocation5 + $0x138] sm:$0xff]
    %v642 = vld [vmem:[#allocation5 + $0x140] sm:$0xff]
    %v643 = vld [vmem:[#allocation5 + $0x148] sm:$0xff]
    %v644 = vld [vmem:[#allocation5 + $0x150] sm:$0xff]
    %v645 = vld [vmem:[#allocation5 + $0x158] sm:$0xff]
    %v646 = vld [vmem:[#allocation5 + $0x160] sm:$0xff]
    %v647 = vld [vmem:[#allocation5 + $0x168] sm:$0xff]
    %v648 = vld [vmem:[#allocation5 + $0x170] sm:$0xff]
    %v649 = vld [vmem:[#allocation5 + $0x178] sm:$0xff]
    %v650 = vld [vmem:[#allocation5 + $0x180] sm:$0xff]
    %v651 = vld [vmem:[#allocation5 + $0x188] sm:$0xff]
    %v652 = vld [vmem:[#allocation5 + $0x190] sm:$0xff]
    %v653 = vld [vmem:[#allocation5 + $0x198] sm:$0xff]
    %v654 = vld [vmem:[#allocation5 + $0x1a0] sm:$0xff]
    %v655 = vld [vmem:[#allocation5 + $0x1a8] sm:$0xff]
    %v656 = vld [vmem:[#allocation5 + $0x1b0] sm:$0xff]
    %v657 = vld [vmem:[#allocation5 + $0x1b8] sm:$0xff]
    %v658 = vld [vmem:[#allocation5 + $0x1c0] sm:$0xff]
    %v659 = vld [vmem:[#allocation5 + $0x1c8] sm:$0xff]
    %v660 = vld [vmem:[#allocation5 + $0x1d0] sm:$0xff]
    %v661 = vld [vmem:[#allocation5 + $0x1d8] sm:$0xff]
    %v662 = vld [vmem:[#allocation5 + $0x1e0] sm:$0xff]
    %v663 = vld [vmem:[#allocation5 + $0x1e8] sm:$0xff]
    %v664 = vld [vmem:[#allocation5 + $0x1f0] sm:$0xff]
    %v665 = vld [vmem:[#allocation5 + $0x1f8] sm:$0xff]
    %v666 = vld [vmem:[#allocation5 + $0x200] sm:$0xff]
    %v667 = vld [vmem:[#allocation5 + $0x208] sm:$0xff]
    %v668 = vld [vmem:[#allocation5 + $0x210] sm:$0xff]
    %v669 = vld [vmem:[#allocation5 + $0x218] sm:$0xff]
    %v670 = vld [vmem:[#allocation5 + $0x220] sm:$0xff]
    %v671 = vld [vmem:[#allocation5 + $0x228] sm:$0xff]
    %v672 = vld [vmem:[#allocation5 + $0x230] sm:$0xff]
    %v673 = vld [vmem:[#allocation5 + $0x238] sm:$0xff]
    %v674 = vld [vmem:[#allocation5 + $0x240] sm:$0xff]
    %v675 = vld [vmem:[#allocation5 + $0x248] sm:$0xff]
    %v676 = vld [vmem:[#allocation5 + $0x250] sm:$0xff]
    %v677 = vld [vmem:[#allocation5 + $0x258] sm:$0xff]
    %v678 = vld [vmem:[#allocation5 + $0x260] sm:$0xff]
    %v679 = vld [vmem:[#allocation5 + $0x268] sm:$0xff]
    %v680 = vld [vmem:[#allocation5 + $0x270] sm:$0xff]
    %v681 = vld [vmem:[#allocation5 + $0x278] sm:$0xff]
    %v682 = vld [vmem:[#allocation5 + $0x280] sm:$0xff]
    %v683 = vld [vmem:[#allocation5 + $0x288] sm:$0xff]
    %v684 = vld [vmem:[#allocation5 + $0x290] sm:$0xff]
    %v685 = vld [vmem:[#allocation5 + $0x298] sm:$0xff]
    %v686 = vld [vmem:[#allocation5 + $0x2a0] sm:$0xff]
    %v687 = vld [vmem:[#allocation5 + $0x2a8] sm:$0xff]
    %v688 = vld [vmem:[#allocation5 + $0x2b0] sm:$0xff]
    %v689 = vld [vmem:[#allocation5 + $0x2b8] sm:$0xff]
    %v690 = vld [vmem:[#allocation5 + $0x2c0] sm:$0xff]
    %v691 = vld [vmem:[#allocation5 + $0x2c8] sm:$0xff]
    %v692 = vld [vmem:[#allocation5 + $0x2d0] sm:$0xff]
    %v693 = vld [vmem:[#allocation5 + $0x2d8] sm:$0xff]
    %v694 = vld [vmem:[#allocation5 + $0x2e0] sm:$0xff]
    %v695 = vld [vmem:[#allocation5 + $0x2e8] sm:$0xff]
    %v696 = vld [vmem:[#allocation5 + $0x2f0] sm:$0xff]
    %v697 = vld [vmem:[#allocation5 + $0x2f8] sm:$0xff]
    %v698 = vld [vmem:[#allocation5 + $0x300] sm:$0xff]
    %v699 = vld [vmem:[#allocation5 + $0x308] sm:$0xff]
    %v700 = vld [vmem:[#allocation5 + $0x310] sm:$0xff]
    %v701 = vld [vmem:[#allocation5 + $0x318] sm:$0xff]
    %v702 = vld [vmem:[#allocation5 + $0x320] sm:$0xff]
    %v703 = vld [vmem:[#allocation5 + $0x328] sm:$0xff]
    %v704 = vld [vmem:[#allocation5 + $0x330] sm:$0xff]
    %v705 = vld [vmem:[#allocation5 + $0x338] sm:$0xff]
    %v706 = vld [vmem:[#allocation5 + $0x340] sm:$0xff]
    %v707 = vld [vmem:[#allocation5 + $0x348] sm:$0xff]
    %v708 = vld [vmem:[#allocation5 + $0x350] sm:$0xff]
    %v709 = vld [vmem:[#allocation5 + $0x358] sm:$0xff]
    %v710 = vld [vmem:[#allocation5 + $0x360] sm:$0xff]
    %v711 = vld [vmem:[#allocation5 + $0x368] sm:$0xff]
    %v712 = vld [vmem:[#allocation5 + $0x370] sm:$0xff]
    %v713 = vld [vmem:[#allocation5 + $0x378] sm:$0xff]
    %v714 = vld [vmem:[#allocation5 + $0x380] sm:$0xff]
    %v715 = vld [vmem:[#allocation5 + $0x388] sm:$0xff]
    %v716 = vld [vmem:[#allocation5 + $0x390] sm:$0xff]
    %v717 = vld [vmem:[#allocation5 + $0x398] sm:$0xff]
    %v718 = vld [vmem:[#allocation5 + $0x3a0] sm:$0xff]
    %v719 = vld [vmem:[#allocation5 + $0x3a8] sm:$0xff]
    %v720 = vld [vmem:[#allocation5 + $0x3b0] sm:$0xff]
    %v721 = vld [vmem:[#allocation5 + $0x3b8] sm:$0xff]
    %v722 = vld [vmem:[#allocation5 + $0x3c0] sm:$0xff]
    %v723 = vld [vmem:[#allocation5 + $0x3c8] sm:$0xff]
    %v724 = vld [vmem:[#allocation5 + $0x3d0] sm:$0xff]
    %v725 = vld [vmem:[#allocation5 + $0x3d8] sm:$0xff]
    %v726 = vld [vmem:[#allocation5 + $0x3e0] sm:$0xff]
    %v727 = vld [vmem:[#allocation5 + $0x3e8] sm:$0xff]
    %v728 = vld [vmem:[#allocation5 + $0x3f0] sm:$0xff]
    %v729 = vld [vmem:[#allocation5 + $0x3f8] sm:$0xff]
    %v730 = vld [vmem:[#allocation5 + $0x400] sm:$0xff]
    %v731 = vld [vmem:[#allocation5 + $0x408] sm:$0xff]
    %v732 = vld [vmem:[#allocation5 + $0x410] sm:$0xff]
    %v733 = vld [vmem:[#allocation5 + $0x418] sm:$0xff]
    %v734 = vld [vmem:[#allocation5 + $0x420] sm:$0xff]
    %v735 = vld [vmem:[#allocation5 + $0x428] sm:$0xff]
    %v736 = vld [vmem:[#allocation5 + $0x430] sm:$0xff]
    %v737 = vld [vmem:[#allocation5 + $0x438] sm:$0xff]
    %v738 = vld [vmem:[#allocation5 + $0x440] sm:$0xff]
    %v739 = vld [vmem:[#allocation5 + $0x448] sm:$0xff]
    %v740 = vld [vmem:[#allocation5 + $0x450] sm:$0xff]
    %v741 = vld [vmem:[#allocation5 + $0x458] sm:$0xff]
    %v742 = vld [vmem:[#allocation5 + $0x460] sm:$0xff]
    %v743 = vld [vmem:[#allocation5 + $0x468] sm:$0xff]
    %v744 = vld [vmem:[#allocation5 + $0x470] sm:$0xff]
    %v745 = vld [vmem:[#allocation5 + $0x478] sm:$0xff]
    %v746 = vld [vmem:[#allocation5 + $0x480] sm:$0xff]
    %v747 = vld [vmem:[#allocation5 + $0x488] sm:$0xff]
    %v748 = vld [vmem:[#allocation5 + $0x490] sm:$0xff]
    %v749 = vld [vmem:[#allocation5 + $0x498] sm:$0xff]
    %v750 = vld [vmem:[#allocation5 + $0x4a0] sm:$0xff]
    %v751 = vld [vmem:[#allocation5 + $0x4a8] sm:$0xff]
    %v752 = vld [vmem:[#allocation5 + $0x4b0] sm:$0xff]
    %v753 = vld [vmem:[#allocation5 + $0x4b8] sm:$0xff]
    %v754 = vld [vmem:[#allocation5 + $0x4c0] sm:$0xff]
    %v755 = vld [vmem:[#allocation5 + $0x4c8] sm:$0xff]
    %v756 = vld [vmem:[#allocation5 + $0x4d0] sm:$0xff]
    %v757 = vld [vmem:[#allocation5 + $0x4d8] sm:$0xff]
    %v758 = vld [vmem:[#allocation5 + $0x4e0] sm:$0xff]
    %v759 = vld [vmem:[#allocation5 + $0x4e8] sm:$0xff]
    %v760 = vld [vmem:[#allocation5 + $0x4f0] sm:$0xff]
    %v761 = vld [vmem:[#allocation5 + $0x4f8] sm:$0xff]
    %v762 = vld [vmem:[#allocation5 + $0x500] sm:$0xff]
    %v763 = vld [vmem:[#allocation5 + $0x508] sm:$0xff]
    %v764 = vld [vmem:[#allocation5 + $0x510] sm:$0xff]
    %v765 = vld [vmem:[#allocation5 + $0x518] sm:$0xff]
    %v766 = vld [vmem:[#allocation5 + $0x520] sm:$0xff]
    %v767 = vld [vmem:[#allocation5 + $0x528] sm:$0xff]
    %v768 = vld [vmem:[#allocation5 + $0x530] sm:$0xff]
    %v769 = vld [vmem:[#allocation5 + $0x538] sm:$0xff]
    %v770 = vld [vmem:[#allocation5 + $0x540] sm:$0xff]
    %v771 = vld [vmem:[#allocation5 + $0x548] sm:$0xff]
    %v772 = vld [vmem:[#allocation5 + $0x550] sm:$0xff]
    %v773 = vld [vmem:[#allocation5 + $0x558] sm:$0xff]
    %v774 = vld [vmem:[#allocation5 + $0x560] sm:$0xff]
    %v775 = vld [vmem:[#allocation5 + $0x568] sm:$0xff]
    %v776 = vld [vmem:[#allocation5 + $0x570] sm:$0xff]
    %v777 = vld [vmem:[#allocation5 + $0x578] sm:$0xff]
    %v778 = vld [vmem:[#allocation5 + $0x580] sm:$0xff]
    %v779 = vld [vmem:[#allocation5 + $0x588] sm:$0xff]
    %v780 = vld [vmem:[#allocation5 + $0x590] sm:$0xff]
    %v781 = vld [vmem:[#allocation5 + $0x598] sm:$0xff]
    %v782 = vld [vmem:[#allocation5 + $0x5a0] sm:$0xff]
    %v783 = vld [vmem:[#allocation5 + $0x5a8] sm:$0xff]
    %v784 = vld [vmem:[#allocation5 + $0x5b0] sm:$0xff]
    %v785 = vld [vmem:[#allocation5 + $0x5b8] sm:$0xff]
    %v786 = vld [vmem:[#allocation5 + $0x5c0] sm:$0xff]
    %v787 = vld [vmem:[#allocation5 + $0x5c8] sm:$0xff]
    %v788 = vld [vmem:[#allocation5 + $0x5d0] sm:$0xff]
    %v789 = vld [vmem:[#allocation5 + $0x5d8] sm:$0xff]
    %v790 = vld [vmem:[#allocation5 + $0x5e0] sm:$0xff]
    %v791 = vld [vmem:[#allocation5 + $0x5e8] sm:$0xff]
    %v792 = vld [vmem:[#allocation5 + $0x5f0] sm:$0xff]
    %v793 = vld [vmem:[#allocation5 + $0x5f8] sm:$0xff]
    %v794 = vld [vmem:[#allocation5 + $0x600] sm:$0xff]
    %v795 = vld [vmem:[#allocation5 + $0x608] sm:$0xff]
    %v796 = vld [vmem:[#allocation5 + $0x610] sm:$0xff]
    %v797 = vld [vmem:[#allocation5 + $0x618] sm:$0xff]
    %v798 = vld [vmem:[#allocation5 + $0x620] sm:$0xff]
    %v799 = vld [vmem:[#allocation5 + $0x628] sm:$0xff]
    %v800 = vld [vmem:[#allocation5 + $0x630] sm:$0xff]
    %v801 = vld [vmem:[#allocation5 + $0x638] sm:$0xff]
    %v802 = vld [vmem:[#allocation5 + $0x640] sm:$0xff]
    %v803 = vld [vmem:[#allocation5 + $0x648] sm:$0xff]
    %v804 = vld [vmem:[#allocation5 + $0x650] sm:$0xff]
    %v805 = vld [vmem:[#allocation5 + $0x658] sm:$0xff]
    %v806 = vld [vmem:[#allocation5 + $0x660] sm:$0xff]
    %v807 = vld [vmem:[#allocation5 + $0x668] sm:$0xff]
    %v808 = vld [vmem:[#allocation5 + $0x670] sm:$0xff]
    %v809 = vld [vmem:[#allocation5 + $0x678] sm:$0xff]
    %v810 = vld [vmem:[#allocation5 + $0x680] sm:$0xff]
    %v811 = vld [vmem:[#allocation5 + $0x688] sm:$0xff]
    %v812 = vld [vmem:[#allocation5 + $0x690] sm:$0xff]
    %v813 = vld [vmem:[#allocation5 + $0x698] sm:$0xff]
    %v814 = vld [vmem:[#allocation5 + $0x6a0] sm:$0xff]
    %v815 = vld [vmem:[#allocation5 + $0x6a8] sm:$0xff]
    %v816 = vld [vmem:[#allocation5 + $0x6b0] sm:$0xff]
    %v817 = vld [vmem:[#allocation5 + $0x6b8] sm:$0xff]
    %v818 = vld [vmem:[#allocation5 + $0x6c0] sm:$0xff]
    %v819 = vld [vmem:[#allocation5 + $0x6c8] sm:$0xff]
    %v820 = vld [vmem:[#allocation5 + $0x6d0] sm:$0xff]
    %v821 = vld [vmem:[#allocation5 + $0x6d8] sm:$0xff]
    %v822 = vld [vmem:[#allocation5 + $0x6e0] sm:$0xff]
    %v823 = vld [vmem:[#allocation5 + $0x6e8] sm:$0xff]
    %v824 = vld [vmem:[#allocation5 + $0x6f0] sm:$0xff]
    %v825 = vld [vmem:[#allocation5 + $0x6f8] sm:$0xff]
    %v826 = vld [vmem:[#allocation5 + $0x700] sm:$0xff]
    %v827 = vld [vmem:[#allocation5 + $0x708] sm:$0xff]
    %v828 = vld [vmem:[#allocation5 + $0x710] sm:$0xff]
    %v829 = vld [vmem:[#allocation5 + $0x718] sm:$0xff]
    %v830 = vld [vmem:[#allocation5 + $0x720] sm:$0xff]
    %v831 = vld [vmem:[#allocation5 + $0x728] sm:$0xff]
    %v832 = vld [vmem:[#allocation5 + $0x730] sm:$0xff]
    %v833 = vld [vmem:[#allocation5 + $0x738] sm:$0xff]
    %v834 = vld [vmem:[#allocation5 + $0x740] sm:$0xff]
    %v835 = vld [vmem:[#allocation5 + $0x748] sm:$0xff]
    %v836 = vld [vmem:[#allocation5 + $0x750] sm:$0xff]
    %v837 = vld [vmem:[#allocation5 + $0x758] sm:$0xff]
    %v838 = vld [vmem:[#allocation5 + $0x760] sm:$0xff]
    %v839 = vld [vmem:[#allocation5 + $0x768] sm:$0xff]
    %v840 = vld [vmem:[#allocation5 + $0x770] sm:$0xff]
    %v841 = vld [vmem:[#allocation5 + $0x778] sm:$0xff]
    %v842 = vld [vmem:[#allocation5 + $0x780] sm:$0xff]
    %v843 = vld [vmem:[#allocation5 + $0x788] sm:$0xff]
    %v844 = vld [vmem:[#allocation5 + $0x790] sm:$0xff]
    %v845 = vld [vmem:[#allocation5 + $0x798] sm:$0xff]
    %v846 = vld [vmem:[#allocation5 + $0x7a0] sm:$0xff]
    %v847 = vld [vmem:[#allocation5 + $0x7a8] sm:$0xff]
    %v848 = vld [vmem:[#allocation5 + $0x7b0] sm:$0xff]
    %v849 = vld [vmem:[#allocation5 + $0x7b8] sm:$0xff]
    %v850 = vld [vmem:[#allocation5 + $0x7c0] sm:$0xff]
    %v851 = vld [vmem:[#allocation5 + $0x7c8] sm:$0xff]
    %v852 = vld [vmem:[#allocation5 + $0x7d0] sm:$0xff]
    %v853 = vld [vmem:[#allocation5 + $0x7d8] sm:$0xff]
    %v854 = vld [vmem:[#allocation5 + $0x7e0] sm:$0xff]
    %v855 = vld [vmem:[#allocation5 + $0x7e8] sm:$0xff]
    %v856 = vld [vmem:[#allocation5 + $0x7f0] sm:$0xff]
    %v857 = vld [vmem:[#allocation5 + $0x7f8] sm:$0xff]
    %v858 = vld [vmem:[%s5] sm:$0xf]
    %v860 = vlaneseq
    %v861 = vshrl.u32 %v860, 7
    %v862 = vsub.s32 0, %v861
    %v863 = vrot.slane %v858, %v862
    %v864 = vlaneseq
    %v865 = vshrl.u32 %v864, 7
    %v866 = vsub.s32 1, %v865
    %v867 = vrot.slane %v858, %v866
    %v868 = vlaneseq
    %v869 = vshrl.u32 %v868, 7
    %v870 = vsub.s32 2, %v869
    %v871 = vrot.slane %v858, %v870
    %v872 = vlaneseq
    %v873 = vshrl.u32 %v872, 7
    %v874 = vsub.s32 3, %v873
    %v875 = vrot.slane %v858, %v874
    %v1136 = vunpack.c.l.b16 %v602
    %v1137 = vunpack.c.h.b16 %v602
    %v1138 = vunpack.c.l.b16 %v603
    %v1139 = vunpack.c.h.b16 %v603
    %v1140 = vunpack.c.l.b16 %v604
    %v1141 = vunpack.c.h.b16 %v604
    %v1142 = vunpack.c.l.b16 %v605
    %v1143 = vunpack.c.h.b16 %v605
    %v1144 = vunpack.c.l.b16 %v606
    %v1145 = vunpack.c.h.b16 %v606
    %v1146 = vunpack.c.l.b16 %v607
    %v1147 = vunpack.c.h.b16 %v607
    %v1148 = vunpack.c.l.b16 %v608
    %v1149 = vunpack.c.h.b16 %v608
    %v1150 = vunpack.c.l.b16 %v609
    %v1151 = vunpack.c.h.b16 %v609
    %v1152 = vunpack.c.l.b16 %v610
    %v1153 = vunpack.c.h.b16 %v610
    %v1154 = vunpack.c.l.b16 %v611
    %v1155 = vunpack.c.h.b16 %v611
    %v1156 = vunpack.c.l.b16 %v612
    %v1157 = vunpack.c.h.b16 %v612
    %v1158 = vunpack.c.l.b16 %v613
    %v1159 = vunpack.c.h.b16 %v613
    %v1160 = vunpack.c.l.b16 %v614
    %v1161 = vunpack.c.h.b16 %v614
    %v1162 = vunpack.c.l.b16 %v615
    %v1163 = vunpack.c.h.b16 %v615
    %v1164 = vunpack.c.l.b16 %v616
    %v1165 = vunpack.c.h.b16 %v616
    %v1166 = vunpack.c.l.b16 %v617
    %v1167 = vunpack.c.h.b16 %v617
    %v1168 = vunpack.c.l.b16 %v618
    %v1169 = vunpack.c.h.b16 %v618
    %v1170 = vunpack.c.l.b16 %v619
    %v1171 = vunpack.c.h.b16 %v619
    %v1172 = vunpack.c.l.b16 %v620
    %v1173 = vunpack.c.h.b16 %v620
    %v1174 = vunpack.c.l.b16 %v621
    %v1175 = vunpack.c.h.b16 %v621
    %v1176 = vunpack.c.l.b16 %v622
    %v1177 = vunpack.c.h.b16 %v622
    %v1178 = vunpack.c.l.b16 %v623
    %v1179 = vunpack.c.h.b16 %v623
    %v1180 = vunpack.c.l.b16 %v624
    %v1181 = vunpack.c.h.b16 %v624
    %v1182 = vunpack.c.l.b16 %v625
    %v1183 = vunpack.c.h.b16 %v625
    %v1184 = vunpack.c.l.b16 %v626
    %v1185 = vunpack.c.h.b16 %v626
    %v1186 = vunpack.c.l.b16 %v627
    %v1187 = vunpack.c.h.b16 %v627
    %v1188 = vunpack.c.l.b16 %v628
    %v1189 = vunpack.c.h.b16 %v628
    %v1190 = vunpack.c.l.b16 %v629
    %v1191 = vunpack.c.h.b16 %v629
    %v1192 = vunpack.c.l.b16 %v630
    %v1193 = vunpack.c.h.b16 %v630
    %v1194 = vunpack.c.l.b16 %v631
    %v1195 = vunpack.c.h.b16 %v631
    %v1196 = vunpack.c.l.b16 %v632
    %v1197 = vunpack.c.h.b16 %v632
    %v1198 = vunpack.c.l.b16 %v633
    %v1199 = vunpack.c.h.b16 %v633
    %v1200 = vunpack.c.l.b16 %v634
    %v1201 = vunpack.c.h.b16 %v634
    %v1202 = vunpack.c.l.b16 %v635
    %v1203 = vunpack.c.h.b16 %v635
    %v1204 = vunpack.c.l.b16 %v636
    %v1205 = vunpack.c.h.b16 %v636
    %v1206 = vunpack.c.l.b16 %v637
    %v1207 = vunpack.c.h.b16 %v637
    %v1208 = vunpack.c.l.b16 %v638
    %v1209 = vunpack.c.h.b16 %v638
    %v1210 = vunpack.c.l.b16 %v639
    %v1211 = vunpack.c.h.b16 %v639
    %v1212 = vunpack.c.l.b16 %v640
    %v1213 = vunpack.c.h.b16 %v640
    %v1214 = vunpack.c.l.b16 %v641
    %v1215 = vunpack.c.h.b16 %v641
    %v1216 = vunpack.c.l.b16 %v642
    %v1217 = vunpack.c.h.b16 %v642
    %v1218 = vunpack.c.l.b16 %v643
    %v1219 = vunpack.c.h.b16 %v643
    %v1220 = vunpack.c.l.b16 %v644
    %v1221 = vunpack.c.h.b16 %v644
    %v1222 = vunpack.c.l.b16 %v645
    %v1223 = vunpack.c.h.b16 %v645
    %v1224 = vunpack.c.l.b16 %v646
    %v1225 = vunpack.c.h.b16 %v646
    %v1226 = vunpack.c.l.b16 %v647
    %v1227 = vunpack.c.h.b16 %v647
    %v1228 = vunpack.c.l.b16 %v648
    %v1229 = vunpack.c.h.b16 %v648
    %v1230 = vunpack.c.l.b16 %v649
    %v1231 = vunpack.c.h.b16 %v649
    %v1232 = vunpack.c.l.b16 %v650
    %v1233 = vunpack.c.h.b16 %v650
    %v1234 = vunpack.c.l.b16 %v651
    %v1235 = vunpack.c.h.b16 %v651
    %v1236 = vunpack.c.l.b16 %v652
    %v1237 = vunpack.c.h.b16 %v652
    %v1238 = vunpack.c.l.b16 %v653
    %v1239 = vunpack.c.h.b16 %v653
    %v1240 = vunpack.c.l.b16 %v654
    %v1241 = vunpack.c.h.b16 %v654
    %v1242 = vunpack.c.l.b16 %v655
    %v1243 = vunpack.c.h.b16 %v655
    %v1244 = vunpack.c.l.b16 %v656
    %v1245 = vunpack.c.h.b16 %v656
    %v1246 = vunpack.c.l.b16 %v657
    %v1247 = vunpack.c.h.b16 %v657
    %v1248 = vunpack.c.l.b16 %v658
    %v1249 = vunpack.c.h.b16 %v658
    %v1250 = vunpack.c.l.b16 %v659
    %v1251 = vunpack.c.h.b16 %v659
    %v1252 = vunpack.c.l.b16 %v660
    %v1253 = vunpack.c.h.b16 %v660
    %v1254 = vunpack.c.l.b16 %v661
    %v1255 = vunpack.c.h.b16 %v661
    %v1256 = vunpack.c.l.b16 %v662
    %v1257 = vunpack.c.h.b16 %v662
    %v1258 = vunpack.c.l.b16 %v663
    %v1259 = vunpack.c.h.b16 %v663
    %v1260 = vunpack.c.l.b16 %v664
    %v1261 = vunpack.c.h.b16 %v664
    %v1262 = vunpack.c.l.b16 %v665
    %v1263 = vunpack.c.h.b16 %v665
    %v1264 = vunpack.c.l.b16 %v666
    %v1265 = vunpack.c.h.b16 %v666
    %v1266 = vunpack.c.l.b16 %v667
    %v1267 = vunpack.c.h.b16 %v667
    %v1268 = vunpack.c.l.b16 %v668
    %v1269 = vunpack.c.h.b16 %v668
    %v1270 = vunpack.c.l.b16 %v669
    %v1271 = vunpack.c.h.b16 %v669
    %v1272 = vunpack.c.l.b16 %v670
    %v1273 = vunpack.c.h.b16 %v670
    %v1274 = vunpack.c.l.b16 %v671
    %v1275 = vunpack.c.h.b16 %v671
    %v1276 = vunpack.c.l.b16 %v672
    %v1277 = vunpack.c.h.b16 %v672
    %v1278 = vunpack.c.l.b16 %v673
    %v1279 = vunpack.c.h.b16 %v673
    %v1280 = vunpack.c.l.b16 %v674
    %v1281 = vunpack.c.h.b16 %v674
    %v1282 = vunpack.c.l.b16 %v675
    %v1283 = vunpack.c.h.b16 %v675
    %v1284 = vunpack.c.l.b16 %v676
    %v1285 = vunpack.c.h.b16 %v676
    %v1286 = vunpack.c.l.b16 %v677
    %v1287 = vunpack.c.h.b16 %v677
    %v1288 = vunpack.c.l.b16 %v678
    %v1289 = vunpack.c.h.b16 %v678
    %v1290 = vunpack.c.l.b16 %v679
    %v1291 = vunpack.c.h.b16 %v679
    %v1292 = vunpack.c.l.b16 %v680
    %v1293 = vunpack.c.h.b16 %v680
    %v1294 = vunpack.c.l.b16 %v681
    %v1295 = vunpack.c.h.b16 %v681
    %v1296 = vunpack.c.l.b16 %v682
    %v1297 = vunpack.c.h.b16 %v682
    %v1298 = vunpack.c.l.b16 %v683
    %v1299 = vunpack.c.h.b16 %v683
    %v1300 = vunpack.c.l.b16 %v684
    %v1301 = vunpack.c.h.b16 %v684
    %v1302 = vunpack.c.l.b16 %v685
    %v1303 = vunpack.c.h.b16 %v685
    %v1304 = vunpack.c.l.b16 %v686
    %v1305 = vunpack.c.h.b16 %v686
    %v1306 = vunpack.c.l.b16 %v687
    %v1307 = vunpack.c.h.b16 %v687
    %v1308 = vunpack.c.l.b16 %v688
    %v1309 = vunpack.c.h.b16 %v688
    %v1310 = vunpack.c.l.b16 %v689
    %v1311 = vunpack.c.h.b16 %v689
    %v1312 = vunpack.c.l.b16 %v690
    %v1313 = vunpack.c.h.b16 %v690
    %v1314 = vunpack.c.l.b16 %v691
    %v1315 = vunpack.c.h.b16 %v691
    %v1316 = vunpack.c.l.b16 %v692
    %v1317 = vunpack.c.h.b16 %v692
    %v1318 = vunpack.c.l.b16 %v693
    %v1319 = vunpack.c.h.b16 %v693
    %v1320 = vunpack.c.l.b16 %v694
    %v1321 = vunpack.c.h.b16 %v694
    %v1322 = vunpack.c.l.b16 %v695
    %v1323 = vunpack.c.h.b16 %v695
    %v1324 = vunpack.c.l.b16 %v696
    %v1325 = vunpack.c.h.b16 %v696
    %v1326 = vunpack.c.l.b16 %v697
    %v1327 = vunpack.c.h.b16 %v697
    %v1328 = vunpack.c.l.b16 %v698
    %v1329 = vunpack.c.h.b16 %v698
    %v1330 = vunpack.c.l.b16 %v699
    %v1331 = vunpack.c.h.b16 %v699
    %v1332 = vunpack.c.l.b16 %v700
    %v1333 = vunpack.c.h.b16 %v700
    %v1334 = vunpack.c.l.b16 %v701
    %v1335 = vunpack.c.h.b16 %v701
    %v1336 = vunpack.c.l.b16 %v702
    %v1337 = vunpack.c.h.b16 %v702
    %v1338 = vunpack.c.l.b16 %v703
    %v1339 = vunpack.c.h.b16 %v703
    %v1340 = vunpack.c.l.b16 %v704
    %v1341 = vunpack.c.h.b16 %v704
    %v1342 = vunpack.c.l.b16 %v705
    %v1343 = vunpack.c.h.b16 %v705
    %v1344 = vunpack.c.l.b16 %v706
    %v1345 = vunpack.c.h.b16 %v706
    %v1346 = vunpack.c.l.b16 %v707
    %v1347 = vunpack.c.h.b16 %v707
    %v1348 = vunpack.c.l.b16 %v708
    %v1349 = vunpack.c.h.b16 %v708
    %v1350 = vunpack.c.l.b16 %v709
    %v1351 = vunpack.c.h.b16 %v709
    %v1352 = vunpack.c.l.b16 %v710
    %v1353 = vunpack.c.h.b16 %v710
    %v1354 = vunpack.c.l.b16 %v711
    %v1355 = vunpack.c.h.b16 %v711
    %v1356 = vunpack.c.l.b16 %v712
    %v1357 = vunpack.c.h.b16 %v712
    %v1358 = vunpack.c.l.b16 %v713
    %v1359 = vunpack.c.h.b16 %v713
    %v1360 = vunpack.c.l.b16 %v714
    %v1361 = vunpack.c.h.b16 %v714
    %v1362 = vunpack.c.l.b16 %v715
    %v1363 = vunpack.c.h.b16 %v715
    %v1364 = vunpack.c.l.b16 %v716
    %v1365 = vunpack.c.h.b16 %v716
    %v1366 = vunpack.c.l.b16 %v717
    %v1367 = vunpack.c.h.b16 %v717
    %v1368 = vunpack.c.l.b16 %v718
    %v1369 = vunpack.c.h.b16 %v718
    %v1370 = vunpack.c.l.b16 %v719
    %v1371 = vunpack.c.h.b16 %v719
    %v1372 = vunpack.c.l.b16 %v720
    %v1373 = vunpack.c.h.b16 %v720
    %v1374 = vunpack.c.l.b16 %v721
    %v1375 = vunpack.c.h.b16 %v721
    %v1376 = vunpack.c.l.b16 %v722
    %v1377 = vunpack.c.h.b16 %v722
    %v1378 = vunpack.c.l.b16 %v723
    %v1379 = vunpack.c.h.b16 %v723
    %v1380 = vunpack.c.l.b16 %v724
    %v1381 = vunpack.c.h.b16 %v724
    %v1382 = vunpack.c.l.b16 %v725
    %v1383 = vunpack.c.h.b16 %v725
    %v1384 = vunpack.c.l.b16 %v726
    %v1385 = vunpack.c.h.b16 %v726
    %v1386 = vunpack.c.l.b16 %v727
    %v1387 = vunpack.c.h.b16 %v727
    %v1388 = vunpack.c.l.b16 %v728
    %v1389 = vunpack.c.h.b16 %v728
    %v1390 = vunpack.c.l.b16 %v729
    %v1391 = vunpack.c.h.b16 %v729
    %v1392 = vunpack.c.l.b16 %v730
    %v1393 = vunpack.c.h.b16 %v730
    %v1394 = vunpack.c.l.b16 %v731
    %v1395 = vunpack.c.h.b16 %v731
    %v1396 = vunpack.c.l.b16 %v732
    %v1397 = vunpack.c.h.b16 %v732
    %v1398 = vunpack.c.l.b16 %v733
    %v1399 = vunpack.c.h.b16 %v733
    %v1400 = vunpack.c.l.b16 %v734
    %v1401 = vunpack.c.h.b16 %v734
    %v1402 = vunpack.c.l.b16 %v735
    %v1403 = vunpack.c.h.b16 %v735
    %v1404 = vunpack.c.l.b16 %v736
    %v1405 = vunpack.c.h.b16 %v736
    %v1406 = vunpack.c.l.b16 %v737
    %v1407 = vunpack.c.h.b16 %v737
    %v1408 = vunpack.c.l.b16 %v738
    %v1409 = vunpack.c.h.b16 %v738
    %v1410 = vunpack.c.l.b16 %v739
    %v1411 = vunpack.c.h.b16 %v739
    %v1412 = vunpack.c.l.b16 %v740
    %v1413 = vunpack.c.h.b16 %v740
    %v1414 = vunpack.c.l.b16 %v741
    %v1415 = vunpack.c.h.b16 %v741
    %v1416 = vunpack.c.l.b16 %v742
    %v1417 = vunpack.c.h.b16 %v742
    %v1418 = vunpack.c.l.b16 %v743
    %v1419 = vunpack.c.h.b16 %v743
    %v1420 = vunpack.c.l.b16 %v744
    %v1421 = vunpack.c.h.b16 %v744
    %v1422 = vunpack.c.l.b16 %v745
    %v1423 = vunpack.c.h.b16 %v745
    %v1424 = vunpack.c.l.b16 %v746
    %v1425 = vunpack.c.h.b16 %v746
    %v1426 = vunpack.c.l.b16 %v747
    %v1427 = vunpack.c.h.b16 %v747
    %v1428 = vunpack.c.l.b16 %v748
    %v1429 = vunpack.c.h.b16 %v748
    %v1430 = vunpack.c.l.b16 %v749
    %v1431 = vunpack.c.h.b16 %v749
    %v1432 = vunpack.c.l.b16 %v750
    %v1433 = vunpack.c.h.b16 %v750
    %v1434 = vunpack.c.l.b16 %v751
    %v1435 = vunpack.c.h.b16 %v751
    %v1436 = vunpack.c.l.b16 %v752
    %v1437 = vunpack.c.h.b16 %v752
    %v1438 = vunpack.c.l.b16 %v753
    %v1439 = vunpack.c.h.b16 %v753
    %v1440 = vunpack.c.l.b16 %v754
    %v1441 = vunpack.c.h.b16 %v754
    %v1442 = vunpack.c.l.b16 %v755
    %v1443 = vunpack.c.h.b16 %v755
    %v1444 = vunpack.c.l.b16 %v756
    %v1445 = vunpack.c.h.b16 %v756
    %v1446 = vunpack.c.l.b16 %v757
    %v1447 = vunpack.c.h.b16 %v757
    %v1448 = vunpack.c.l.b16 %v758
    %v1449 = vunpack.c.h.b16 %v758
    %v1450 = vunpack.c.l.b16 %v759
    %v1451 = vunpack.c.h.b16 %v759
    %v1452 = vunpack.c.l.b16 %v760
    %v1453 = vunpack.c.h.b16 %v760
    %v1454 = vunpack.c.l.b16 %v761
    %v1455 = vunpack.c.h.b16 %v761
    %v1456 = vunpack.c.l.b16 %v762
    %v1457 = vunpack.c.h.b16 %v762
    %v1458 = vunpack.c.l.b16 %v763
    %v1459 = vunpack.c.h.b16 %v763
    %v1460 = vunpack.c.l.b16 %v764
    %v1461 = vunpack.c.h.b16 %v764
    %v1462 = vunpack.c.l.b16 %v765
    %v1463 = vunpack.c.h.b16 %v765
    %v1464 = vunpack.c.l.b16 %v766
    %v1465 = vunpack.c.h.b16 %v766
    %v1466 = vunpack.c.l.b16 %v767
    %v1467 = vunpack.c.h.b16 %v767
    %v1468 = vunpack.c.l.b16 %v768
    %v1469 = vunpack.c.h.b16 %v768
    %v1470 = vunpack.c.l.b16 %v769
    %v1471 = vunpack.c.h.b16 %v769
    %v1472 = vunpack.c.l.b16 %v770
    %v1473 = vunpack.c.h.b16 %v770
    %v1474 = vunpack.c.l.b16 %v771
    %v1475 = vunpack.c.h.b16 %v771
    %v1476 = vunpack.c.l.b16 %v772
    %v1477 = vunpack.c.h.b16 %v772
    %v1478 = vunpack.c.l.b16 %v773
    %v1479 = vunpack.c.h.b16 %v773
    %v1480 = vunpack.c.l.b16 %v774
    %v1481 = vunpack.c.h.b16 %v774
    %v1482 = vunpack.c.l.b16 %v775
    %v1483 = vunpack.c.h.b16 %v775
    %v1484 = vunpack.c.l.b16 %v776
    %v1485 = vunpack.c.h.b16 %v776
    %v1486 = vunpack.c.l.b16 %v777
    %v1487 = vunpack.c.h.b16 %v777
    %v1488 = vunpack.c.l.b16 %v778
    %v1489 = vunpack.c.h.b16 %v778
    %v1490 = vunpack.c.l.b16 %v779
    %v1491 = vunpack.c.h.b16 %v779
    %v1492 = vunpack.c.l.b16 %v780
    %v1493 = vunpack.c.h.b16 %v780
    %v1494 = vunpack.c.l.b16 %v781
    %v1495 = vunpack.c.h.b16 %v781
    %v1496 = vunpack.c.l.b16 %v782
    %v1497 = vunpack.c.h.b16 %v782
    %v1498 = vunpack.c.l.b16 %v783
    %v1499 = vunpack.c.h.b16 %v783
    %v1500 = vunpack.c.l.b16 %v784
    %v1501 = vunpack.c.h.b16 %v784
    %v1502 = vunpack.c.l.b16 %v785
    %v1503 = vunpack.c.h.b16 %v785
    %v1504 = vunpack.c.l.b16 %v786
    %v1505 = vunpack.c.h.b16 %v786
    %v1506 = vunpack.c.l.b16 %v787
    %v1507 = vunpack.c.h.b16 %v787
    %v1508 = vunpack.c.l.b16 %v788
    %v1509 = vunpack.c.h.b16 %v788
    %v1510 = vunpack.c.l.b16 %v789
    %v1511 = vunpack.c.h.b16 %v789
    %v1512 = vunpack.c.l.b16 %v790
    %v1513 = vunpack.c.h.b16 %v790
    %v1514 = vunpack.c.l.b16 %v791
    %v1515 = vunpack.c.h.b16 %v791
    %v1516 = vunpack.c.l.b16 %v792
    %v1517 = vunpack.c.h.b16 %v792
    %v1518 = vunpack.c.l.b16 %v793
    %v1519 = vunpack.c.h.b16 %v793
    %v1520 = vunpack.c.l.b16 %v794
    %v1521 = vunpack.c.h.b16 %v794
    %v1522 = vunpack.c.l.b16 %v795
    %v1523 = vunpack.c.h.b16 %v795
    %v1524 = vunpack.c.l.b16 %v796
    %v1525 = vunpack.c.h.b16 %v796
    %v1526 = vunpack.c.l.b16 %v797
    %v1527 = vunpack.c.h.b16 %v797
    %v1528 = vunpack.c.l.b16 %v798
    %v1529 = vunpack.c.h.b16 %v798
    %v1530 = vunpack.c.l.b16 %v799
    %v1531 = vunpack.c.h.b16 %v799
    %v1532 = vunpack.c.l.b16 %v800
    %v1533 = vunpack.c.h.b16 %v800
    %v1534 = vunpack.c.l.b16 %v801
    %v1535 = vunpack.c.h.b16 %v801
    %v1536 = vunpack.c.l.b16 %v802
    %v1537 = vunpack.c.h.b16 %v802
    %v1538 = vunpack.c.l.b16 %v803
    %v1539 = vunpack.c.h.b16 %v803
    %v1540 = vunpack.c.l.b16 %v804
    %v1541 = vunpack.c.h.b16 %v804
    %v1542 = vunpack.c.l.b16 %v805
    %v1543 = vunpack.c.h.b16 %v805
    %v1544 = vunpack.c.l.b16 %v806
    %v1545 = vunpack.c.h.b16 %v806
    %v1546 = vunpack.c.l.b16 %v807
    %v1547 = vunpack.c.h.b16 %v807
    %v1548 = vunpack.c.l.b16 %v808
    %v1549 = vunpack.c.h.b16 %v808
    %v1550 = vunpack.c.l.b16 %v809
    %v1551 = vunpack.c.h.b16 %v809
    %v1552 = vunpack.c.l.b16 %v810
    %v1553 = vunpack.c.h.b16 %v810
    %v1554 = vunpack.c.l.b16 %v811
    %v1555 = vunpack.c.h.b16 %v811
    %v1556 = vunpack.c.l.b16 %v812
    %v1557 = vunpack.c.h.b16 %v812
    %v1558 = vunpack.c.l.b16 %v813
    %v1559 = vunpack.c.h.b16 %v813
    %v1560 = vunpack.c.l.b16 %v814
    %v1561 = vunpack.c.h.b16 %v814
    %v1562 = vunpack.c.l.b16 %v815
    %v1563 = vunpack.c.h.b16 %v815
    %v1564 = vunpack.c.l.b16 %v816
    %v1565 = vunpack.c.h.b16 %v816
    %v1566 = vunpack.c.l.b16 %v817
    %v1567 = vunpack.c.h.b16 %v817
    %v1568 = vunpack.c.l.b16 %v818
    %v1569 = vunpack.c.h.b16 %v818
    %v1570 = vunpack.c.l.b16 %v819
    %v1571 = vunpack.c.h.b16 %v819
    %v1572 = vunpack.c.l.b16 %v820
    %v1573 = vunpack.c.h.b16 %v820
    %v1574 = vunpack.c.l.b16 %v821
    %v1575 = vunpack.c.h.b16 %v821
    %v1576 = vunpack.c.l.b16 %v822
    %v1577 = vunpack.c.h.b16 %v822
    %v1578 = vunpack.c.l.b16 %v823
    %v1579 = vunpack.c.h.b16 %v823
    %v1580 = vunpack.c.l.b16 %v824
    %v1581 = vunpack.c.h.b16 %v824
    %v1582 = vunpack.c.l.b16 %v825
    %v1583 = vunpack.c.h.b16 %v825
    %v1584 = vunpack.c.l.b16 %v826
    %v1585 = vunpack.c.h.b16 %v826
    %v1586 = vunpack.c.l.b16 %v827
    %v1587 = vunpack.c.h.b16 %v827
    %v1588 = vunpack.c.l.b16 %v828
    %v1589 = vunpack.c.h.b16 %v828
    %v1590 = vunpack.c.l.b16 %v829
    %v1591 = vunpack.c.h.b16 %v829
    %v1592 = vunpack.c.l.b16 %v830
    %v1593 = vunpack.c.h.b16 %v830
    %v1594 = vunpack.c.l.b16 %v831
    %v1595 = vunpack.c.h.b16 %v831
    %v1596 = vunpack.c.l.b16 %v832
    %v1597 = vunpack.c.h.b16 %v832
    %v1598 = vunpack.c.l.b16 %v833
    %v1599 = vunpack.c.h.b16 %v833
    %v1600 = vunpack.c.l.b16 %v834
    %v1601 = vunpack.c.h.b16 %v834
    %v1602 = vunpack.c.l.b16 %v835
    %v1603 = vunpack.c.h.b16 %v835
    %v1604 = vunpack.c.l.b16 %v836
    %v1605 = vunpack.c.h.b16 %v836
    %v1606 = vunpack.c.l.b16 %v837
    %v1607 = vunpack.c.h.b16 %v837
    %v1608 = vunpack.c.l.b16 %v838
    %v1609 = vunpack.c.h.b16 %v838
    %v1610 = vunpack.c.l.b16 %v839
    %v1611 = vunpack.c.h.b16 %v839
    %v1612 = vunpack.c.l.b16 %v840
    %v1613 = vunpack.c.h.b16 %v840
    %v1614 = vunpack.c.l.b16 %v841
    %v1615 = vunpack.c.h.b16 %v841
    %v1616 = vunpack.c.l.b16 %v842
    %v1617 = vunpack.c.h.b16 %v842
    %v1618 = vunpack.c.l.b16 %v843
    %v1619 = vunpack.c.h.b16 %v843
    %v1620 = vunpack.c.l.b16 %v844
    %v1621 = vunpack.c.h.b16 %v844
    %v1622 = vunpack.c.l.b16 %v845
    %v1623 = vunpack.c.h.b16 %v845
    %v1624 = vunpack.c.l.b16 %v846
    %v1625 = vunpack.c.h.b16 %v846
    %v1626 = vunpack.c.l.b16 %v847
    %v1627 = vunpack.c.h.b16 %v847
    %v1628 = vunpack.c.l.b16 %v848
    %v1629 = vunpack.c.h.b16 %v848
    %v1630 = vunpack.c.l.b16 %v849
    %v1631 = vunpack.c.h.b16 %v849
    %v1632 = vunpack.c.l.b16 %v850
    %v1633 = vunpack.c.h.b16 %v850
    %v1634 = vunpack.c.l.b16 %v851
    %v1635 = vunpack.c.h.b16 %v851
    %v1636 = vunpack.c.l.b16 %v852
    %v1637 = vunpack.c.h.b16 %v852
    %v1638 = vunpack.c.l.b16 %v853
    %v1639 = vunpack.c.h.b16 %v853
    %v1640 = vunpack.c.l.b16 %v854
    %v1641 = vunpack.c.h.b16 %v854
    %v1642 = vunpack.c.l.b16 %v855
    %v1643 = vunpack.c.h.b16 %v855
    %v1644 = vunpack.c.l.b16 %v856
    %v1645 = vunpack.c.h.b16 %v856
    %v1646 = vunpack.c.l.b16 %v857
    %v1647 = vunpack.c.h.b16 %v857
    %v1648 = vpack.c.b16 %v1140, %v1136
    %v1649 = vpack.c.b16 %v1141, %v1137
    %v1650 = vpack.c.b16 %v1142, %v1138
    %v1651 = vpack.c.b16 %v1143, %v1139
    %v1652 = vpack.c.b16 %v1148, %v1144
    %v1653 = vpack.c.b16 %v1149, %v1145
    %v1654 = vpack.c.b16 %v1150, %v1146
    %v1655 = vpack.c.b16 %v1151, %v1147
    %v1656 = vpack.c.b16 %v1156, %v1152
    %v1657 = vpack.c.b16 %v1157, %v1153
    %v1658 = vpack.c.b16 %v1158, %v1154
    %v1659 = vpack.c.b16 %v1159, %v1155
    %v1660 = vpack.c.b16 %v1164, %v1160
    %v1661 = vpack.c.b16 %v1165, %v1161
    %v1662 = vpack.c.b16 %v1166, %v1162
    %v1663 = vpack.c.b16 %v1167, %v1163
    %v1664 = vpack.c.b16 %v1172, %v1168
    %v1665 = vpack.c.b16 %v1173, %v1169
    %v1666 = vpack.c.b16 %v1174, %v1170
    %v1667 = vpack.c.b16 %v1175, %v1171
    %v1668 = vpack.c.b16 %v1180, %v1176
    %v1669 = vpack.c.b16 %v1181, %v1177
    %v1670 = vpack.c.b16 %v1182, %v1178
    %v1671 = vpack.c.b16 %v1183, %v1179
    %v1672 = vpack.c.b16 %v1188, %v1184
    %v1673 = vpack.c.b16 %v1189, %v1185
    %v1674 = vpack.c.b16 %v1190, %v1186
    %v1675 = vpack.c.b16 %v1191, %v1187
    %v1676 = vpack.c.b16 %v1196, %v1192
    %v1677 = vpack.c.b16 %v1197, %v1193
    %v1678 = vpack.c.b16 %v1198, %v1194
    %v1679 = vpack.c.b16 %v1199, %v1195
    %v1680 = vpack.c.b16 %v1204, %v1200
    %v1681 = vpack.c.b16 %v1205, %v1201
    %v1682 = vpack.c.b16 %v1206, %v1202
    %v1683 = vpack.c.b16 %v1207, %v1203
    %v1684 = vpack.c.b16 %v1212, %v1208
    %v1685 = vpack.c.b16 %v1213, %v1209
    %v1686 = vpack.c.b16 %v1214, %v1210
    %v1687 = vpack.c.b16 %v1215, %v1211
    %v1688 = vpack.c.b16 %v1220, %v1216
    %v1689 = vpack.c.b16 %v1221, %v1217
    %v1690 = vpack.c.b16 %v1222, %v1218
    %v1691 = vpack.c.b16 %v1223, %v1219
    %v1692 = vpack.c.b16 %v1228, %v1224
    %v1693 = vpack.c.b16 %v1229, %v1225
    %v1694 = vpack.c.b16 %v1230, %v1226
    %v1695 = vpack.c.b16 %v1231, %v1227
    %v1696 = vpack.c.b16 %v1236, %v1232
    %v1697 = vpack.c.b16 %v1237, %v1233
    %v1698 = vpack.c.b16 %v1238, %v1234
    %v1699 = vpack.c.b16 %v1239, %v1235
    %v1700 = vpack.c.b16 %v1244, %v1240
    %v1701 = vpack.c.b16 %v1245, %v1241
    %v1702 = vpack.c.b16 %v1246, %v1242
    %v1703 = vpack.c.b16 %v1247, %v1243
    %v1704 = vpack.c.b16 %v1252, %v1248
    %v1705 = vpack.c.b16 %v1253, %v1249
    %v1706 = vpack.c.b16 %v1254, %v1250
    %v1707 = vpack.c.b16 %v1255, %v1251
    %v1708 = vpack.c.b16 %v1260, %v1256
    %v1709 = vpack.c.b16 %v1261, %v1257
    %v1710 = vpack.c.b16 %v1262, %v1258
    %v1711 = vpack.c.b16 %v1263, %v1259
    %v1712 = vpack.c.b16 %v1268, %v1264
    %v1713 = vpack.c.b16 %v1269, %v1265
    %v1714 = vpack.c.b16 %v1270, %v1266
    %v1715 = vpack.c.b16 %v1271, %v1267
    %v1716 = vpack.c.b16 %v1276, %v1272
    %v1717 = vpack.c.b16 %v1277, %v1273
    %v1718 = vpack.c.b16 %v1278, %v1274
    %v1719 = vpack.c.b16 %v1279, %v1275
    %v1720 = vpack.c.b16 %v1284, %v1280
    %v1721 = vpack.c.b16 %v1285, %v1281
    %v1722 = vpack.c.b16 %v1286, %v1282
    %v1723 = vpack.c.b16 %v1287, %v1283
    %v1724 = vpack.c.b16 %v1292, %v1288
    %v1725 = vpack.c.b16 %v1293, %v1289
    %v1726 = vpack.c.b16 %v1294, %v1290
    %v1727 = vpack.c.b16 %v1295, %v1291
    %v1728 = vpack.c.b16 %v1300, %v1296
    %v1729 = vpack.c.b16 %v1301, %v1297
    %v1730 = vpack.c.b16 %v1302, %v1298
    %v1731 = vpack.c.b16 %v1303, %v1299
    %v1732 = vpack.c.b16 %v1308, %v1304
    %v1733 = vpack.c.b16 %v1309, %v1305
    %v1734 = vpack.c.b16 %v1310, %v1306
    %v1735 = vpack.c.b16 %v1311, %v1307
    %v1736 = vpack.c.b16 %v1316, %v1312
    %v1737 = vpack.c.b16 %v1317, %v1313
    %v1738 = vpack.c.b16 %v1318, %v1314
    %v1739 = vpack.c.b16 %v1319, %v1315
    %v1740 = vpack.c.b16 %v1324, %v1320
    %v1741 = vpack.c.b16 %v1325, %v1321
    %v1742 = vpack.c.b16 %v1326, %v1322
    %v1743 = vpack.c.b16 %v1327, %v1323
    %v1744 = vpack.c.b16 %v1332, %v1328
    %v1745 = vpack.c.b16 %v1333, %v1329
    %v1746 = vpack.c.b16 %v1334, %v1330
    %v1747 = vpack.c.b16 %v1335, %v1331
    %v1748 = vpack.c.b16 %v1340, %v1336
    %v1749 = vpack.c.b16 %v1341, %v1337
    %v1750 = vpack.c.b16 %v1342, %v1338
    %v1751 = vpack.c.b16 %v1343, %v1339
    %v1752 = vpack.c.b16 %v1348, %v1344
    %v1753 = vpack.c.b16 %v1349, %v1345
    %v1754 = vpack.c.b16 %v1350, %v1346
    %v1755 = vpack.c.b16 %v1351, %v1347
    %v1756 = vpack.c.b16 %v1356, %v1352
    %v1757 = vpack.c.b16 %v1357, %v1353
    %v1758 = vpack.c.b16 %v1358, %v1354
    %v1759 = vpack.c.b16 %v1359, %v1355
    %v1760 = vpack.c.b16 %v1364, %v1360
    %v1761 = vpack.c.b16 %v1365, %v1361
    %v1762 = vpack.c.b16 %v1366, %v1362
    %v1763 = vpack.c.b16 %v1367, %v1363
    %v1764 = vpack.c.b16 %v1372, %v1368
    %v1765 = vpack.c.b16 %v1373, %v1369
    %v1766 = vpack.c.b16 %v1374, %v1370
    %v1767 = vpack.c.b16 %v1375, %v1371
    %v1768 = vpack.c.b16 %v1380, %v1376
    %v1769 = vpack.c.b16 %v1381, %v1377
    %v1770 = vpack.c.b16 %v1382, %v1378
    %v1771 = vpack.c.b16 %v1383, %v1379
    %v1772 = vpack.c.b16 %v1388, %v1384
    %v1773 = vpack.c.b16 %v1389, %v1385
    %v1774 = vpack.c.b16 %v1390, %v1386
    %v1775 = vpack.c.b16 %v1391, %v1387
    %v1776 = vpack.c.b16 %v1396, %v1392
    %v1777 = vpack.c.b16 %v1397, %v1393
    %v1778 = vpack.c.b16 %v1398, %v1394
    %v1779 = vpack.c.b16 %v1399, %v1395
    %v1780 = vpack.c.b16 %v1404, %v1400
    %v1781 = vpack.c.b16 %v1405, %v1401
    %v1782 = vpack.c.b16 %v1406, %v1402
    %v1783 = vpack.c.b16 %v1407, %v1403
    %v1784 = vpack.c.b16 %v1412, %v1408
    %v1785 = vpack.c.b16 %v1413, %v1409
    %v1786 = vpack.c.b16 %v1414, %v1410
    %v1787 = vpack.c.b16 %v1415, %v1411
    %v1788 = vpack.c.b16 %v1420, %v1416
    %v1789 = vpack.c.b16 %v1421, %v1417
    %v1790 = vpack.c.b16 %v1422, %v1418
    %v1791 = vpack.c.b16 %v1423, %v1419
    %v1792 = vpack.c.b16 %v1428, %v1424
    %v1793 = vpack.c.b16 %v1429, %v1425
    %v1794 = vpack.c.b16 %v1430, %v1426
    %v1795 = vpack.c.b16 %v1431, %v1427
    %v1796 = vpack.c.b16 %v1436, %v1432
    %v1797 = vpack.c.b16 %v1437, %v1433
    %v1798 = vpack.c.b16 %v1438, %v1434
    %v1799 = vpack.c.b16 %v1439, %v1435
    %v1800 = vpack.c.b16 %v1444, %v1440
    %v1801 = vpack.c.b16 %v1445, %v1441
    %v1802 = vpack.c.b16 %v1446, %v1442
    %v1803 = vpack.c.b16 %v1447, %v1443
    %v1804 = vpack.c.b16 %v1452, %v1448
    %v1805 = vpack.c.b16 %v1453, %v1449
    %v1806 = vpack.c.b16 %v1454, %v1450
    %v1807 = vpack.c.b16 %v1455, %v1451
    %v1808 = vpack.c.b16 %v1460, %v1456
    %v1809 = vpack.c.b16 %v1461, %v1457
    %v1810 = vpack.c.b16 %v1462, %v1458
    %v1811 = vpack.c.b16 %v1463, %v1459
    %v1812 = vpack.c.b16 %v1468, %v1464
    %v1813 = vpack.c.b16 %v1469, %v1465
    %v1814 = vpack.c.b16 %v1470, %v1466
    %v1815 = vpack.c.b16 %v1471, %v1467
    %v1816 = vpack.c.b16 %v1476, %v1472
    %v1817 = vpack.c.b16 %v1477, %v1473
    %v1818 = vpack.c.b16 %v1478, %v1474
    %v1819 = vpack.c.b16 %v1479, %v1475
    %v1820 = vpack.c.b16 %v1484, %v1480
    %v1821 = vpack.c.b16 %v1485, %v1481
    %v1822 = vpack.c.b16 %v1486, %v1482
    %v1823 = vpack.c.b16 %v1487, %v1483
    %v1824 = vpack.c.b16 %v1492, %v1488
    %v1825 = vpack.c.b16 %v1493, %v1489
    %v1826 = vpack.c.b16 %v1494, %v1490
    %v1827 = vpack.c.b16 %v1495, %v1491
    %v1828 = vpack.c.b16 %v1500, %v1496
    %v1829 = vpack.c.b16 %v1501, %v1497
    %v1830 = vpack.c.b16 %v1502, %v1498
    %v1831 = vpack.c.b16 %v1503, %v1499
    %v1832 = vpack.c.b16 %v1508, %v1504
    %v1833 = vpack.c.b16 %v1509, %v1505
    %v1834 = vpack.c.b16 %v1510, %v1506
    %v1835 = vpack.c.b16 %v1511, %v1507
    %v1836 = vpack.c.b16 %v1516, %v1512
    %v1837 = vpack.c.b16 %v1517, %v1513
    %v1838 = vpack.c.b16 %v1518, %v1514
    %v1839 = vpack.c.b16 %v1519, %v1515
    %v1840 = vpack.c.b16 %v1524, %v1520
    %v1841 = vpack.c.b16 %v1525, %v1521
    %v1842 = vpack.c.b16 %v1526, %v1522
    %v1843 = vpack.c.b16 %v1527, %v1523
    %v1844 = vpack.c.b16 %v1532, %v1528
    %v1845 = vpack.c.b16 %v1533, %v1529
    %v1846 = vpack.c.b16 %v1534, %v1530
    %v1847 = vpack.c.b16 %v1535, %v1531
    %v1848 = vpack.c.b16 %v1540, %v1536
    %v1849 = vpack.c.b16 %v1541, %v1537
    %v1850 = vpack.c.b16 %v1542, %v1538
    %v1851 = vpack.c.b16 %v1543, %v1539
    %v1852 = vpack.c.b16 %v1548, %v1544
    %v1853 = vpack.c.b16 %v1549, %v1545
    %v1854 = vpack.c.b16 %v1550, %v1546
    %v1855 = vpack.c.b16 %v1551, %v1547
    %v1856 = vpack.c.b16 %v1556, %v1552
    %v1857 = vpack.c.b16 %v1557, %v1553
    %v1858 = vpack.c.b16 %v1558, %v1554
    %v1859 = vpack.c.b16 %v1559, %v1555
    %v1860 = vpack.c.b16 %v1564, %v1560
    %v1861 = vpack.c.b16 %v1565, %v1561
    %v1862 = vpack.c.b16 %v1566, %v1562
    %v1863 = vpack.c.b16 %v1567, %v1563
    %v1864 = vpack.c.b16 %v1572, %v1568
    %v1865 = vpack.c.b16 %v1573, %v1569
    %v1866 = vpack.c.b16 %v1574, %v1570
    %v1867 = vpack.c.b16 %v1575, %v1571
    %v1868 = vpack.c.b16 %v1580, %v1576
    %v1869 = vpack.c.b16 %v1581, %v1577
    %v1870 = vpack.c.b16 %v1582, %v1578
    %v1871 = vpack.c.b16 %v1583, %v1579
    %v1872 = vpack.c.b16 %v1588, %v1584
    %v1873 = vpack.c.b16 %v1589, %v1585
    %v1874 = vpack.c.b16 %v1590, %v1586
    %v1875 = vpack.c.b16 %v1591, %v1587
    %v1876 = vpack.c.b16 %v1596, %v1592
    %v1877 = vpack.c.b16 %v1597, %v1593
    %v1878 = vpack.c.b16 %v1598, %v1594
    %v1879 = vpack.c.b16 %v1599, %v1595
    %v1880 = vpack.c.b16 %v1604, %v1600
    %v1881 = vpack.c.b16 %v1605, %v1601
    %v1882 = vpack.c.b16 %v1606, %v1602
    %v1883 = vpack.c.b16 %v1607, %v1603
    %v1884 = vpack.c.b16 %v1612, %v1608
    %v1885 = vpack.c.b16 %v1613, %v1609
    %v1886 = vpack.c.b16 %v1614, %v1610
    %v1887 = vpack.c.b16 %v1615, %v1611
    %v1888 = vpack.c.b16 %v1620, %v1616
    %v1889 = vpack.c.b16 %v1621, %v1617
    %v1890 = vpack.c.b16 %v1622, %v1618
    %v1891 = vpack.c.b16 %v1623, %v1619
    %v1892 = vpack.c.b16 %v1628, %v1624
    %v1893 = vpack.c.b16 %v1629, %v1625
    %v1894 = vpack.c.b16 %v1630, %v1626
    %v1895 = vpack.c.b16 %v1631, %v1627
    %v1896 = vpack.c.b16 %v1636, %v1632
    %v1897 = vpack.c.b16 %v1637, %v1633
    %v1898 = vpack.c.b16 %v1638, %v1634
    %v1899 = vpack.c.b16 %v1639, %v1635
    %v1900 = vpack.c.b16 %v1644, %v1640
    %v1901 = vpack.c.b16 %v1645, %v1641
    %v1902 = vpack.c.b16 %v1646, %v1642
    %v1903 = vpack.c.b16 %v1647, %v1643
    %2160 = vmatprep.subr.bf16.mxu0 %v1649
    %2161 = vmatpush1.bf16.msra.mxu0 %v1648
    %2162 = vmatprep.subr.bf16.mxu0 %v1653
    %2163 = vmatpush1.bf16.msra.mxu0 %v1652
    %2164 = vmatprep.subr.bf16.mxu0 %v1657
    %2165 = vmatpush1.bf16.msra.mxu0 %v1656
    %2166 = vmatprep.subr.bf16.mxu0 %v1661
    %2167 = vmatpush1.bf16.msra.mxu0 %v1660
    %2168 = vmatprep.subr.bf16.mxu0 %v1665
    %2169 = vmatpush1.bf16.msra.mxu0 %v1664
    %2170 = vmatprep.subr.bf16.mxu0 %v1669
    %2171 = vmatpush1.bf16.msra.mxu0 %v1668
    %2172 = vmatprep.subr.bf16.mxu0 %v1673
    %2173 = vmatpush1.bf16.msra.mxu0 %v1672
    %2174 = vmatprep.subr.bf16.mxu0 %v1677
    %2175 = vmatpush1.bf16.msra.mxu0 %v1676
    %2176 = vmatprep.subr.bf16.mxu0 %v1681
    %2177 = vmatpush1.bf16.msra.mxu0 %v1680
    %2178 = vmatprep.subr.bf16.mxu0 %v1685
    %2179 = vmatpush1.bf16.msra.mxu0 %v1684
    %2180 = vmatprep.subr.bf16.mxu0 %v1689
    %2181 = vmatpush1.bf16.msra.mxu0 %v1688
    %2182 = vmatprep.subr.bf16.mxu0 %v1693
    %2183 = vmatpush1.bf16.msra.mxu0 %v1692
    %2184 = vmatprep.subr.bf16.mxu0 %v1697
    %2185 = vmatpush1.bf16.msra.mxu0 %v1696
    %2186 = vmatprep.subr.bf16.mxu0 %v1701
    %2187 = vmatpush1.bf16.msra.mxu0 %v1700
    %2188 = vmatprep.subr.bf16.mxu0 %v1705
    %2189 = vmatpush1.bf16.msra.mxu0 %v1704
    %2190 = vmatprep.subr.bf16.mxu0 %v1709
    %2191 = vmatpush1.bf16.msra.mxu0 %v1708
    %2192 = vmatprep.mubr.bf16.mxu0 %v595
    %2193 = vmatmul.mubr.bf16.gmra.mrb[0].mxu0 %v594
    %v2194 = vpop.f32.mrb[0].mxu0
    %v2195 = vadd.f32 %v863, %v2194
    %v2196 = vpop.f32.mrb[0].mxu0
    %v2197 = vadd.f32 %v867, %v2196
    %v2198 = vpop.f32.mrb[0].mxu0
    %v2199 = vpop.f32.mrb[0].mxu0
    %2200 = vdwg.mxu0
    %2201 = vmatprep.subr.bf16.mxu0 %v1713
    %2202 = vmatpush1.bf16.msra.mxu0 %v1712
    %2203 = vmatprep.subr.bf16.mxu0 %v1717
    %2204 = vmatpush1.bf16.msra.mxu0 %v1716
    %2205 = vmatprep.subr.bf16.mxu0 %v1721
    %2206 = vmatpush1.bf16.msra.mxu0 %v1720
    %2207 = vmatprep.subr.bf16.mxu0 %v1725
    %2208 = vmatpush1.bf16.msra.mxu0 %v1724
    %2209 = vmatprep.subr.bf16.mxu0 %v1729
    %2210 = vmatpush1.bf16.msra.mxu0 %v1728
    %2211 = vmatprep.subr.bf16.mxu0 %v1733
    %2212 = vmatpush1.bf16.msra.mxu0 %v1732
    %2213 = vmatprep.subr.bf16.mxu0 %v1737
    %2214 = vmatpush1.bf16.msra.mxu0 %v1736
    %2215 = vmatprep.subr.bf16.mxu0 %v1741
    %2216 = vmatpush1.bf16.msra.mxu0 %v1740
    %2217 = vmatprep.subr.bf16.mxu0 %v1745
    %2218 = vmatpush1.bf16.msra.mxu0 %v1744
    %2219 = vmatprep.subr.bf16.mxu0 %v1749
    %2220 = vmatpush1.bf16.msra.mxu0 %v1748
    %2221 = vmatprep.subr.bf16.mxu0 %v1753
    %2222 = vmatpush1.bf16.msra.mxu0 %v1752
    %2223 = vmatprep.subr.bf16.mxu0 %v1757
    %2224 = vmatpush1.bf16.msra.mxu0 %v1756
    %2225 = vmatprep.subr.bf16.mxu0 %v1761
    %2226 = vmatpush1.bf16.msra.mxu0 %v1760
    %2227 = vmatprep.subr.bf16.mxu0 %v1765
    %2228 = vmatpush1.bf16.msra.mxu0 %v1764
    %2229 = vmatprep.subr.bf16.mxu0 %v1769
    %2230 = vmatpush1.bf16.msra.mxu0 %v1768
    %2231 = vmatprep.subr.bf16.mxu0 %v1773
    %2232 = vmatpush1.bf16.msra.mxu0 %v1772
    %2233 = vmatprep.mubr.bf16.mxu0 %v597
    %2234 = vmatmul.mubr.bf16.gmra.mrb[0].mxu0 %v596
    %v2235 = vpop.f32.mrb[0].mxu0
    %v2236 = vadd.f32 %v2195, %v2235
    %v2237 = vpop.f32.mrb[0].mxu0
    %v2238 = vadd.f32 %v2197, %v2237
    %v2239 = vpop.f32.mrb[0].mxu0
    %v2240 = vpop.f32.mrb[0].mxu0
    %2241 = vdwg.mxu0
    %2242 = vmatprep.subr.bf16.mxu0 %v1777
    %2243 = vmatpush1.bf16.msra.mxu0 %v1776
    %2244 = vmatprep.subr.bf16.mxu0 %v1781
    %2245 = vmatpush1.bf16.msra.mxu0 %v1780
    %2246 = vmatprep.subr.bf16.mxu0 %v1785
    %2247 = vmatpush1.bf16.msra.mxu0 %v1784
    %2248 = vmatprep.subr.bf16.mxu0 %v1789
    %2249 = vmatpush1.bf16.msra.mxu0 %v1788
    %2250 = vmatprep.subr.bf16.mxu0 %v1793
    %2251 = vmatpush1.bf16.msra.mxu0 %v1792
    %2252 = vmatprep.subr.bf16.mxu0 %v1797
    %2253 = vmatpush1.bf16.msra.mxu0 %v1796
    %2254 = vmatprep.subr.bf16.mxu0 %v1801
    %2255 = vmatpush1.bf16.msra.mxu0 %v1800
    %2256 = vmatprep.subr.bf16.mxu0 %v1805
    %2257 = vmatpush1.bf16.msra.mxu0 %v1804
    %2258 = vmatprep.subr.bf16.mxu0 %v1809
    %2259 = vmatpush1.bf16.msra.mxu0 %v1808
    %2260 = vmatprep.subr.bf16.mxu0 %v1813
    %2261 = vmatpush1.bf16.msra.mxu0 %v1812
    %2262 = vmatprep.subr.bf16.mxu0 %v1817
    %2263 = vmatpush1.bf16.msra.mxu0 %v1816
    %2264 = vmatprep.subr.bf16.mxu0 %v1821
    %2265 = vmatpush1.bf16.msra.mxu0 %v1820
    %2266 = vmatprep.subr.bf16.mxu0 %v1825
    %2267 = vmatpush1.bf16.msra.mxu0 %v1824
    %2268 = vmatprep.subr.bf16.mxu0 %v1829
    %2269 = vmatpush1.bf16.msra.mxu0 %v1828
    %2270 = vmatprep.subr.bf16.mxu0 %v1833
    %2271 = vmatpush1.bf16.msra.mxu0 %v1832
    %2272 = vmatprep.subr.bf16.mxu0 %v1837
    %2273 = vmatpush1.bf16.msra.mxu0 %v1836
    %2274 = vmatprep.mubr.bf16.mxu0 %v599
    %2275 = vmatmul.mubr.bf16.gmra.mrb[0].mxu0 %v598
    %v2276 = vpop.f32.mrb[0].mxu0
    %v2277 = vadd.f32 %v2236, %v2276
    %v2278 = vpop.f32.mrb[0].mxu0
    %v2279 = vadd.f32 %v2238, %v2278
    %v2280 = vpop.f32.mrb[0].mxu0
    %v2281 = vpop.f32.mrb[0].mxu0
    %2282 = vdwg.mxu0
    %2283 = vmatprep.subr.bf16.mxu0 %v1841
    %2284 = vmatpush1.bf16.msra.mxu0 %v1840
    %2285 = vmatprep.subr.bf16.mxu0 %v1845
    %2286 = vmatpush1.bf16.msra.mxu0 %v1844
    %2287 = vmatprep.subr.bf16.mxu0 %v1849
    %2288 = vmatpush1.bf16.msra.mxu0 %v1848
    %2289 = vmatprep.subr.bf16.mxu0 %v1853
    %2290 = vmatpush1.bf16.msra.mxu0 %v1852
    %2291 = vmatprep.subr.bf16.mxu0 %v1857
    %2292 = vmatpush1.bf16.msra.mxu0 %v1856
    %2293 = vmatprep.subr.bf16.mxu0 %v1861
    %2294 = vmatpush1.bf16.msra.mxu0 %v1860
    %2295 = vmatprep.subr.bf16.mxu0 %v1865
    %2296 = vmatpush1.bf16.msra.mxu0 %v1864
    %2297 = vmatprep.subr.bf16.mxu0 %v1869
    %2298 = vmatpush1.bf16.msra.mxu0 %v1868
    %2299 = vmatprep.subr.bf16.mxu0 %v1873
    %2300 = vmatpush1.bf16.msra.mxu0 %v1872
    %2301 = vmatprep.subr.bf16.mxu0 %v1877
    %2302 = vmatpush1.bf16.msra.mxu0 %v1876
    %2303 = vmatprep.subr.bf16.mxu0 %v1881
    %2304 = vmatpush1.bf16.msra.mxu0 %v1880
    %2305 = vmatprep.subr.bf16.mxu0 %v1885
    %2306 = vmatpush1.bf16.msra.mxu0 %v1884
    %2307 = vmatprep.subr.bf16.mxu0 %v1889
    %2308 = vmatpush1.bf16.msra.mxu0 %v1888
    %2309 = vmatprep.subr.bf16.mxu0 %v1893
    %2310 = vmatpush1.bf16.msra.mxu0 %v1892
    %2311 = vmatprep.subr.bf16.mxu0 %v1897
    %2312 = vmatpush1.bf16.msra.mxu0 %v1896
    %2313 = vmatprep.subr.bf16.mxu0 %v1901
    %2314 = vmatpush1.bf16.msra.mxu0 %v1900
    %2315 = vmatprep.mubr.bf16.mxu0 %v601
    %2316 = vmatmul.mubr.bf16.gmra.mrb[0].mxu0 %v600
    %v2317 = vpop.f32.mrb[0].mxu0
    %v2318 = vadd.f32 %v2277, %v2317
    %v2319 = vpop.f32.mrb[0].mxu0
    %v2320 = vadd.f32 %v2279, %v2319
    %v2321 = vpop.f32.mrb[0].mxu0
    %v2322 = vpop.f32.mrb[0].mxu0
    %2323 = vdwg.mxu0
    %2324 = vmatprep.subr.bf16.mxu0 %v1651
    %2325 = vmatpush1.bf16.msra.mxu0 %v1650
    %2326 = vmatprep.subr.bf16.mxu0 %v1655
    %2327 = vmatpush1.bf16.msra.mxu0 %v1654
    %2328 = vmatprep.subr.bf16.mxu0 %v1659
    %2329 = vmatpush1.bf16.msra.mxu0 %v1658
    %2330 = vmatprep.subr.bf16.mxu0 %v1663
    %2331 = vmatpush1.bf16.msra.mxu0 %v1662
    %2332 = vmatprep.subr.bf16.mxu0 %v1667
    %2333 = vmatpush1.bf16.msra.mxu0 %v1666
    %2334 = vmatprep.subr.bf16.mxu0 %v1671
    %2335 = vmatpush1.bf16.msra.mxu0 %v1670
    %2336 = vmatprep.subr.bf16.mxu0 %v1675
    %2337 = vmatpush1.bf16.msra.mxu0 %v1674
    %2338 = vmatprep.subr.bf16.mxu0 %v1679
    %2339 = vmatpush1.bf16.msra.mxu0 %v1678
    %2340 = vmatprep.subr.bf16.mxu0 %v1683
    %2341 = vmatpush1.bf16.msra.mxu0 %v1682
    %2342 = vmatprep.subr.bf16.mxu0 %v1687
    %2343 = vmatpush1.bf16.msra.mxu0 %v1686
    %2344 = vmatprep.subr.bf16.mxu0 %v1691
    %2345 = vmatpush1.bf16.msra.mxu0 %v1690
    %2346 = vmatprep.subr.bf16.mxu0 %v1695
    %2347 = vmatpush1.bf16.msra.mxu0 %v1694
    %2348 = vmatprep.subr.bf16.mxu0 %v1699
    %2349 = vmatpush1.bf16.msra.mxu0 %v1698
    %2350 = vmatprep.subr.bf16.mxu0 %v1703
    %2351 = vmatpush1.bf16.msra.mxu0 %v1702
    %2352 = vmatprep.subr.bf16.mxu0 %v1707
    %2353 = vmatpush1.bf16.msra.mxu0 %v1706
    %2354 = vmatprep.subr.bf16.mxu0 %v1711
    %2355 = vmatpush1.bf16.msra.mxu0 %v1710
    %2356 = vmatprep.mubr.bf16.mxu0 %v595
    %2357 = vmatmul.mubr.bf16.gmra.mrb[0].mxu0 %v594
    %v2358 = vpop.f32.mrb[0].mxu0
    %v2359 = vadd.f32 %v871, %v2358
    %v2360 = vpop.f32.mrb[0].mxu0
    %v2361 = vadd.f32 %v875, %v2360
    %v2362 = vpop.f32.mrb[0].mxu0
    %v2363 = vpop.f32.mrb[0].mxu0
    %2364 = vdwg.mxu0
    %2365 = vmatprep.subr.bf16.mxu0 %v1715
    %2366 = vmatpush1.bf16.msra.mxu0 %v1714
    %2367 = vmatprep.subr.bf16.mxu0 %v1719
    %2368 = vmatpush1.bf16.msra.mxu0 %v1718
    %2369 = vmatprep.subr.bf16.mxu0 %v1723
    %2370 = vmatpush1.bf16.msra.mxu0 %v1722
    %2371 = vmatprep.subr.bf16.mxu0 %v1727
    %2372 = vmatpush1.bf16.msra.mxu0 %v1726
    %2373 = vmatprep.subr.bf16.mxu0 %v1731
    %2374 = vmatpush1.bf16.msra.mxu0 %v1730
    %2375 = vmatprep.subr.bf16.mxu0 %v1735
    %2376 = vmatpush1.bf16.msra.mxu0 %v1734
    %2377 = vmatprep.subr.bf16.mxu0 %v1739
    %2378 = vmatpush1.bf16.msra.mxu0 %v1738
    %2379 = vmatprep.subr.bf16.mxu0 %v1743
    %2380 = vmatpush1.bf16.msra.mxu0 %v1742
    %2381 = vmatprep.subr.bf16.mxu0 %v1747
    %2382 = vmatpush1.bf16.msra.mxu0 %v1746
    %2383 = vmatprep.subr.bf16.mxu0 %v1751
    %2384 = vmatpush1.bf16.msra.mxu0 %v1750
    %2385 = vmatprep.subr.bf16.mxu0 %v1755
    %2386 = vmatpush1.bf16.msra.mxu0 %v1754
    %2387 = vmatprep.subr.bf16.mxu0 %v1759
    %2388 = vmatpush1.bf16.msra.mxu0 %v1758
    %2389 = vmatprep.subr.bf16.mxu0 %v1763
    %2390 = vmatpush1.bf16.msra.mxu0 %v1762
    %2391 = vmatprep.subr.bf16.mxu0 %v1767
    %2392 = vmatpush1.bf16.msra.mxu0 %v1766
    %2393 = vmatprep.subr.bf16.mxu0 %v1771
    %2394 = vmatpush1.bf16.msra.mxu0 %v1770
    %2395 = vmatprep.subr.bf16.mxu0 %v1775
    %2396 = vmatpush1.bf16.msra.mxu0 %v1774
    %2397 = vmatprep.mubr.bf16.mxu0 %v597
    %2398 = vmatmul.mubr.bf16.gmra.mrb[0].mxu0 %v596
    %v2399 = vpop.f32.mrb[0].mxu0
    %v2400 = vadd.f32 %v2359, %v2399
    %v2401 = vpop.f32.mrb[0].mxu0
    %v2402 = vadd.f32 %v2361, %v2401
    %v2403 = vpop.f32.mrb[0].mxu0
    %v2404 = vpop.f32.mrb[0].mxu0
    %2405 = vdwg.mxu0
    %2406 = vmatprep.subr.bf16.mxu0 %v1779
    %2407 = vmatpush1.bf16.msra.mxu0 %v1778
    %2408 = vmatprep.subr.bf16.mxu0 %v1783
    %2409 = vmatpush1.bf16.msra.mxu0 %v1782
    %2410 = vmatprep.subr.bf16.mxu0 %v1787
    %2411 = vmatpush1.bf16.msra.mxu0 %v1786
    %2412 = vmatprep.subr.bf16.mxu0 %v1791
    %2413 = vmatpush1.bf16.msra.mxu0 %v1790
    %2414 = vmatprep.subr.bf16.mxu0 %v1795
    %2415 = vmatpush1.bf16.msra.mxu0 %v1794
    %2416 = vmatprep.subr.bf16.mxu0 %v1799
    %2417 = vmatpush1.bf16.msra.mxu0 %v1798
    %2418 = vmatprep.subr.bf16.mxu0 %v1803
    %2419 = vmatpush1.bf16.msra.mxu0 %v1802
    %2420 = vmatprep.subr.bf16.mxu0 %v1807
    %2421 = vmatpush1.bf16.msra.mxu0 %v1806
    %2422 = vmatprep.subr.bf16.mxu0 %v1811
    %2423 = vmatpush1.bf16.msra.mxu0 %v1810
    %2424 = vmatprep.subr.bf16.mxu0 %v1815
    %2425 = vmatpush1.bf16.msra.mxu0 %v1814
    %2426 = vmatprep.subr.bf16.mxu0 %v1819
    %2427 = vmatpush1.bf16.msra.mxu0 %v1818
    %2428 = vmatprep.subr.bf16.mxu0 %v1823
    %2429 = vmatpush1.bf16.msra.mxu0 %v1822
    %2430 = vmatprep.subr.bf16.mxu0 %v1827
    %2431 = vmatpush1.bf16.msra.mxu0 %v1826
    %2432 = vmatprep.subr.bf16.mxu0 %v1831
    %2433 = vmatpush1.bf16.msra.mxu0 %v1830
    %2434 = vmatprep.subr.bf16.mxu0 %v1835
    %2435 = vmatpush1.bf16.msra.mxu0 %v1834
    %2436 = vmatprep.subr.bf16.mxu0 %v1839
    %2437 = vmatpush1.bf16.msra.mxu0 %v1838
    %2438 = vmatprep.mubr.bf16.mxu0 %v599
    %2439 = vmatmul.mubr.bf16.gmra.mrb[0].mxu0 %v598
    %v2440 = vpop.f32.mrb[0].mxu0
    %v2441 = vadd.f32 %v2400, %v2440
    %v2442 = vpop.f32.mrb[0].mxu0
    %v2443 = vadd.f32 %v2402, %v2442
    %v2444 = vpop.f32.mrb[0].mxu0
    %v2445 = vpop.f32.mrb[0].mxu0
    %2446 = vdwg.mxu0
    %2447 = vmatprep.subr.bf16.mxu0 %v1843
    %2448 = vmatpush1.bf16.msra.mxu0 %v1842
    %2449 = vmatprep.subr.bf16.mxu0 %v1847
    %2450 = vmatpush1.bf16.msra.mxu0 %v1846
    %2451 = vmatprep.subr.bf16.mxu0 %v1851
    %2452 = vmatpush1.bf16.msra.mxu0 %v1850
    %2453 = vmatprep.subr.bf16.mxu0 %v1855
    %2454 = vmatpush1.bf16.msra.mxu0 %v1854
    %2455 = vmatprep.subr.bf16.mxu0 %v1859
    %2456 = vmatpush1.bf16.msra.mxu0 %v1858
    %2457 = vmatprep.subr.bf16.mxu0 %v1863
    %2458 = vmatpush1.bf16.msra.mxu0 %v1862
    %2459 = vmatprep.subr.bf16.mxu0 %v1867
    %2460 = vmatpush1.bf16.msra.mxu0 %v1866
    %2461 = vmatprep.subr.bf16.mxu0 %v1871
    %2462 = vmatpush1.bf16.msra.mxu0 %v1870
    %2463 = vmatprep.subr.bf16.mxu0 %v1875
    %2464 = vmatpush1.bf16.msra.mxu0 %v1874
    %2465 = vmatprep.subr.bf16.mxu0 %v1879
    %2466 = vmatpush1.bf16.msra.mxu0 %v1878
    %2467 = vmatprep.subr.bf16.mxu0 %v1883
    %2468 = vmatpush1.bf16.msra.mxu0 %v1882
    %2469 = vmatprep.subr.bf16.mxu0 %v1887
    %2470 = vmatpush1.bf16.msra.mxu0 %v1886
    %2471 = vmatprep.subr.bf16.mxu0 %v1891
    %2472 = vmatpush1.bf16.msra.mxu0 %v1890
    %2473 = vmatprep.subr.bf16.mxu0 %v1895
    %2474 = vmatpush1.bf16.msra.mxu0 %v1894
    %2475 = vmatprep.subr.bf16.mxu0 %v1899
    %2476 = vmatpush1.bf16.msra.mxu0 %v1898
    %2477 = vmatprep.subr.bf16.mxu0 %v1903
    %2478 = vmatpush1.bf16.msra.mxu0 %v1902
    %2479 = vmatprep.mubr.bf16.mxu0 %v601
    %2480 = vmatmul.mubr.bf16.gmra.mrb[0].mxu0 %v600
    %v2481 = vpop.f32.mrb[0].mxu0
    %v2482 = vadd.f32 %v2441, %v2481
    %v2483 = vpop.f32.mrb[0].mxu0
    %v2484 = vadd.f32 %v2443, %v2483
    %v2485 = vpop.f32.mrb[0].mxu0
    %v2486 = vpop.f32.mrb[0].mxu0
    %2487 = vdwg.mxu0
    %v2488 = vmax.f32 %v2318, 0.0
    %v2489 = vmax.f32 %v2320, 0.0
    %v2490 = vmax.f32 %v2482, 0.0
    %v2491 = vmax.f32 %v2484, 0.0
    %v2492 = vpack.c.bf16 %v2488, %v2488
    %v2493 = vpack.c.bf16 %v2489, %v2489
    %v2494 = vpack.c.bf16 %v2490, %v2490
    %v2495 = vpack.c.bf16 %v2491, %v2491
    %v2496 = vld [vmem:[%s6] sm:$0xff]
    %v2497 = vld [vmem:[%s6 + $0x8] sm:$0xff]
    %v2498 = vld [vmem:[%s6 + $0x10] sm:$0xff]
    %v2499 = vld [vmem:[%s6 + $0x18] sm:$0xff]
    %v2500 = vld [vmem:[%s6 + $0x20] sm:$0xff]
    %v2501 = vld [vmem:[%s6 + $0x28] sm:$0xff]
    %v2502 = vld [vmem:[%s6 + $0x30] sm:$0xff]
    %v2503 = vld [vmem:[%s6 + $0x38] sm:$0xff]
    %v2504 = vld [vmem:[%s6 + $0x40] sm:$0xff]
    %v2505 = vld [vmem:[%s6 + $0x48] sm:$0xff]
    %v2506 = vld [vmem:[%s6 + $0x50] sm:$0xff]
    %v2507 = vld [vmem:[%s6 + $0x58] sm:$0xff]
    %v2508 = vld [vmem:[%s6 + $0x60] sm:$0xff]
    %v2509 = vld [vmem:[%s6 + $0x68] sm:$0xff]
    %v2510 = vld [vmem:[%s6 + $0x70] sm:$0xff]
    %v2511 = vld [vmem:[%s6 + $0x78] sm:$0xff]
    %v2512 = vld [vmem:[%s6 + $0x80] sm:$0xff]
    %v2513 = vld [vmem:[%s6 + $0x88] sm:$0xff]
    %v2514 = vld [vmem:[%s6 + $0x90] sm:$0xff]
    %v2515 = vld [vmem:[%s6 + $0x98] sm:$0xff]
    %v2516 = vld [vmem:[%s6 + $0xa0] sm:$0xff]
    %v2517 = vld [vmem:[%s6 + $0xa8] sm:$0xff]
    %v2518 = vld [vmem:[%s6 + $0xb0] sm:$0xff]
    %v2519 = vld [vmem:[%s6 + $0xb8] sm:$0xff]
    %v2520 = vld [vmem:[%s6 + $0xc0] sm:$0xff]
    %v2521 = vld [vmem:[%s6 + $0xc8] sm:$0xff]
    %v2522 = vld [vmem:[%s6 + $0xd0] sm:$0xff]
    %v2523 = vld [vmem:[%s6 + $0xd8] sm:$0xff]
    %v2524 = vld [vmem:[%s6 + $0xe0] sm:$0xff]
    %v2525 = vld [vmem:[%s6 + $0xe8] sm:$0xff]
    %v2526 = vld [vmem:[%s6 + $0xf0] sm:$0xff]
    %v2527 = vld [vmem:[%s6 + $0xf8] sm:$0xff]
    %v2528 = vld [vmem:[%s6 + $0x100] sm:$0xff]
    %v2529 = vld [vmem:[%s6 + $0x108] sm:$0xff]
    %v2530 = vld [vmem:[%s6 + $0x110] sm:$0xff]
    %v2531 = vld [vmem:[%s6 + $0x118] sm:$0xff]
    %v2532 = vld [vmem:[%s6 + $0x120] sm:$0xff]
    %v2533 = vld [vmem:[%s6 + $0x128] sm:$0xff]
    %v2534 = vld [vmem:[%s6 + $0x130] sm:$0xff]
    %v2535 = vld [vmem:[%s6 + $0x138] sm:$0xff]
    %v2536 = vld [vmem:[%s6 + $0x140] sm:$0xff]
    %v2537 = vld [vmem:[%s6 + $0x148] sm:$0xff]
    %v2538 = vld [vmem:[%s6 + $0x150] sm:$0xff]
    %v2539 = vld [vmem:[%s6 + $0x158] sm:$0xff]
    %v2540 = vld [vmem:[%s6 + $0x160] sm:$0xff]
    %v2541 = vld [vmem:[%s6 + $0x168] sm:$0xff]
    %v2542 = vld [vmem:[%s6 + $0x170] sm:$0xff]
    %v2543 = vld [vmem:[%s6 + $0x178] sm:$0xff]
    %v2544 = vld [vmem:[%s6 + $0x180] sm:$0xff]
    %v2545 = vld [vmem:[%s6 + $0x188] sm:$0xff]
    %v2546 = vld [vmem:[%s6 + $0x190] sm:$0xff]
    %v2547 = vld [vmem:[%s6 + $0x198] sm:$0xff]
    %v2548 = vld [vmem:[%s6 + $0x1a0] sm:$0xff]
    %v2549 = vld [vmem:[%s6 + $0x1a8] sm:$0xff]
    %v2550 = vld [vmem:[%s6 + $0x1b0] sm:$0xff]
    %v2551 = vld [vmem:[%s6 + $0x1b8] sm:$0xff]
    %v2552 = vld [vmem:[%s6 + $0x1c0] sm:$0xff]
    %v2553 = vld [vmem:[%s6 + $0x1c8] sm:$0xff]
    %v2554 = vld [vmem:[%s6 + $0x1d0] sm:$0xff]
    %v2555 = vld [vmem:[%s6 + $0x1d8] sm:$0xff]
    %v2556 = vld [vmem:[%s6 + $0x1e0] sm:$0xff]
    %v2557 = vld [vmem:[%s6 + $0x1e8] sm:$0xff]
    %v2558 = vld [vmem:[%s6 + $0x1f0] sm:$0xff]
    %v2559 = vld [vmem:[%s6 + $0x1f8] sm:$0xff]
    %v2560 = vld [vmem:[%s7] sm:$0x3]
    %v2562 = vlaneseq
    %v2563 = vshrl.u32 %v2562, 7
    %v2564 = vsub.s32 0, %v2563
    %v2565 = vrot.slane %v2560, %v2564
    %v2566 = vlaneseq
    %v2567 = vshrl.u32 %v2566, 7
    %v2568 = vsub.s32 1, %v2567
    %v2569 = vrot.slane %v2560, %v2568
    %v2636 = vunpack.c.l.b16 %v2496
    %v2637 = vunpack.c.h.b16 %v2496
    %v2638 = vunpack.c.l.b16 %v2497
    %v2639 = vunpack.c.h.b16 %v2497
    %v2640 = vunpack.c.l.b16 %v2498
    %v2641 = vunpack.c.h.b16 %v2498
    %v2642 = vunpack.c.l.b16 %v2499
    %v2643 = vunpack.c.h.b16 %v2499
    %v2644 = vunpack.c.l.b16 %v2500
    %v2645 = vunpack.c.h.b16 %v2500
    %v2646 = vunpack.c.l.b16 %v2501
    %v2647 = vunpack.c.h.b16 %v2501
    %v2648 = vunpack.c.l.b16 %v2502
    %v2649 = vunpack.c.h.b16 %v2502
    %v2650 = vunpack.c.l.b16 %v2503
    %v2651 = vunpack.c.h.b16 %v2503
    %v2652 = vunpack.c.l.b16 %v2504
    %v2653 = vunpack.c.h.b16 %v2504
    %v2654 = vunpack.c.l.b16 %v2505
    %v2655 = vunpack.c.h.b16 %v2505
    %v2656 = vunpack.c.l.b16 %v2506
    %v2657 = vunpack.c.h.b16 %v2506
    %v2658 = vunpack.c.l.b16 %v2507
    %v2659 = vunpack.c.h.b16 %v2507
    %v2660 = vunpack.c.l.b16 %v2508
    %v2661 = vunpack.c.h.b16 %v2508
    %v2662 = vunpack.c.l.b16 %v2509
    %v2663 = vunpack.c.h.b16 %v2509
    %v2664 = vunpack.c.l.b16 %v2510
    %v2665 = vunpack.c.h.b16 %v2510
    %v2666 = vunpack.c.l.b16 %v2511
    %v2667 = vunpack.c.h.b16 %v2511
    %v2668 = vunpack.c.l.b16 %v2512
    %v2669 = vunpack.c.h.b16 %v2512
    %v2670 = vunpack.c.l.b16 %v2513
    %v2671 = vunpack.c.h.b16 %v2513
    %v2672 = vunpack.c.l.b16 %v2514
    %v2673 = vunpack.c.h.b16 %v2514
    %v2674 = vunpack.c.l.b16 %v2515
    %v2675 = vunpack.c.h.b16 %v2515
    %v2676 = vunpack.c.l.b16 %v2516
    %v2677 = vunpack.c.h.b16 %v2516
    %v2678 = vunpack.c.l.b16 %v2517
    %v2679 = vunpack.c.h.b16 %v2517
    %v2680 = vunpack.c.l.b16 %v2518
    %v2681 = vunpack.c.h.b16 %v2518
    %v2682 = vunpack.c.l.b16 %v2519
    %v2683 = vunpack.c.h.b16 %v2519
    %v2684 = vunpack.c.l.b16 %v2520
    %v2685 = vunpack.c.h.b16 %v2520
    %v2686 = vunpack.c.l.b16 %v2521
    %v2687 = vunpack.c.h.b16 %v2521
    %v2688 = vunpack.c.l.b16 %v2522
    %v2689 = vunpack.c.h.b16 %v2522
    %v2690 = vunpack.c.l.b16 %v2523
    %v2691 = vunpack.c.h.b16 %v2523
    %v2692 = vunpack.c.l.b16 %v2524
    %v2693 = vunpack.c.h.b16 %v2524
    %v2694 = vunpack.c.l.b16 %v2525
    %v2695 = vunpack.c.h.b16 %v2525
    %v2696 = vunpack.c.l.b16 %v2526
    %v2697 = vunpack.c.h.b16 %v2526
    %v2698 = vunpack.c.l.b16 %v2527
    %v2699 = vunpack.c.h.b16 %v2527
    %v2700 = vunpack.c.l.b16 %v2528
    %v2701 = vunpack.c.h.b16 %v2528
    %v2702 = vunpack.c.l.b16 %v2529
    %v2703 = vunpack.c.h.b16 %v2529
    %v2704 = vunpack.c.l.b16 %v2530
    %v2705 = vunpack.c.h.b16 %v2530
    %v2706 = vunpack.c.l.b16 %v2531
    %v2707 = vunpack.c.h.b16 %v2531
    %v2708 = vunpack.c.l.b16 %v2532
    %v2709 = vunpack.c.h.b16 %v2532
    %v2710 = vunpack.c.l.b16 %v2533
    %v2711 = vunpack.c.h.b16 %v2533
    %v2712 = vunpack.c.l.b16 %v2534
    %v2713 = vunpack.c.h.b16 %v2534
    %v2714 = vunpack.c.l.b16 %v2535
    %v2715 = vunpack.c.h.b16 %v2535
    %v2716 = vunpack.c.l.b16 %v2536
    %v2717 = vunpack.c.h.b16 %v2536
    %v2718 = vunpack.c.l.b16 %v2537
    %v2719 = vunpack.c.h.b16 %v2537
    %v2720 = vunpack.c.l.b16 %v2538
    %v2721 = vunpack.c.h.b16 %v2538
    %v2722 = vunpack.c.l.b16 %v2539
    %v2723 = vunpack.c.h.b16 %v2539
    %v2724 = vunpack.c.l.b16 %v2540
    %v2725 = vunpack.c.h.b16 %v2540
    %v2726 = vunpack.c.l.b16 %v2541
    %v2727 = vunpack.c.h.b16 %v2541
    %v2728 = vunpack.c.l.b16 %v2542
    %v2729 = vunpack.c.h.b16 %v2542
    %v2730 = vunpack.c.l.b16 %v2543
    %v2731 = vunpack.c.h.b16 %v2543
    %v2732 = vunpack.c.l.b16 %v2544
    %v2733 = vunpack.c.h.b16 %v2544
    %v2734 = vunpack.c.l.b16 %v2545
    %v2735 = vunpack.c.h.b16 %v2545
    %v2736 = vunpack.c.l.b16 %v2546
    %v2737 = vunpack.c.h.b16 %v2546
    %v2738 = vunpack.c.l.b16 %v2547
    %v2739 = vunpack.c.h.b16 %v2547
    %v2740 = vunpack.c.l.b16 %v2548
    %v2741 = vunpack.c.h.b16 %v2548
    %v2742 = vunpack.c.l.b16 %v2549
    %v2743 = vunpack.c.h.b16 %v2549
    %v2744 = vunpack.c.l.b16 %v2550
    %v2745 = vunpack.c.h.b16 %v2550
    %v2746 = vunpack.c.l.b16 %v2551
    %v2747 = vunpack.c.h.b16 %v2551
    %v2748 = vunpack.c.l.b16 %v2552
    %v2749 = vunpack.c.h.b16 %v2552
    %v2750 = vunpack.c.l.b16 %v2553
    %v2751 = vunpack.c.h.b16 %v2553
    %v2752 = vunpack.c.l.b16 %v2554
    %v2753 = vunpack.c.h.b16 %v2554
    %v2754 = vunpack.c.l.b16 %v2555
    %v2755 = vunpack.c.h.b16 %v2555
    %v2756 = vunpack.c.l.b16 %v2556
    %v2757 = vunpack.c.h.b16 %v2556
    %v2758 = vunpack.c.l.b16 %v2557
    %v2759 = vunpack.c.h.b16 %v2557
    %v2760 = vunpack.c.l.b16 %v2558
    %v2761 = vunpack.c.h.b16 %v2558
    %v2762 = vunpack.c.l.b16 %v2559
    %v2763 = vunpack.c.h.b16 %v2559
    %v2764 = vpack.c.b16 %v2638, %v2636
    %v2765 = vpack.c.b16 %v2639, %v2637
    %v2766 = vpack.c.b16 %v2642, %v2640
    %v2767 = vpack.c.b16 %v2643, %v2641
    %v2768 = vpack.c.b16 %v2646, %v2644
    %v2769 = vpack.c.b16 %v2647, %v2645
    %v2770 = vpack.c.b16 %v2650, %v2648
    %v2771 = vpack.c.b16 %v2651, %v2649
    %v2772 = vpack.c.b16 %v2654, %v2652
    %v2773 = vpack.c.b16 %v2655, %v2653
    %v2774 = vpack.c.b16 %v2658, %v2656
    %v2775 = vpack.c.b16 %v2659, %v2657
    %v2776 = vpack.c.b16 %v2662, %v2660
    %v2777 = vpack.c.b16 %v2663, %v2661
    %v2778 = vpack.c.b16 %v2666, %v2664
    %v2779 = vpack.c.b16 %v2667, %v2665
    %v2780 = vpack.c.b16 %v2670, %v2668
    %v2781 = vpack.c.b16 %v2671, %v2669
    %v2782 = vpack.c.b16 %v2674, %v2672
    %v2783 = vpack.c.b16 %v2675, %v2673
    %v2784 = vpack.c.b16 %v2678, %v2676
    %v2785 = vpack.c.b16 %v2679, %v2677
    %v2786 = vpack.c.b16 %v2682, %v2680
    %v2787 = vpack.c.b16 %v2683, %v2681
    %v2788 = vpack.c.b16 %v2686, %v2684
    %v2789 = vpack.c.b16 %v2687, %v2685
    %v2790 = vpack.c.b16 %v2690, %v2688
    %v2791 = vpack.c.b16 %v2691, %v2689
    %v2792 = vpack.c.b16 %v2694, %v2692
    %v2793 = vpack.c.b16 %v2695, %v2693
    %v2794 = vpack.c.b16 %v2698, %v2696
    %v2795 = vpack.c.b16 %v2699, %v2697
    %v2796 = vpack.c.b16 %v2702, %v2700
    %v2797 = vpack.c.b16 %v2703, %v2701
    %v2798 = vpack.c.b16 %v2706, %v2704
    %v2799 = vpack.c.b16 %v2707, %v2705
    %v2800 = vpack.c.b16 %v2710, %v2708
    %v2801 = vpack.c.b16 %v2711, %v2709
    %v2802 = vpack.c.b16 %v2714, %v2712
    %v2803 = vpack.c.b16 %v2715, %v2713
    %v2804 = vpack.c.b16 %v2718, %v2716
    %v2805 = vpack.c.b16 %v2719, %v2717
    %v2806 = vpack.c.b16 %v2722, %v2720
    %v2807 = vpack.c.b16 %v2723, %v2721
    %v2808 = vpack.c.b16 %v2726, %v2724
    %v2809 = vpack.c.b16 %v2727, %v2725
    %v2810 = vpack.c.b16 %v2730, %v2728
    %v2811 = vpack.c.b16 %v2731, %v2729
    %v2812 = vpack.c.b16 %v2734, %v2732
    %v2813 = vpack.c.b16 %v2735, %v2733
    %v2814 = vpack.c.b16 %v2738, %v2736
    %v2815 = vpack.c.b16 %v2739, %v2737
    %v2816 = vpack.c.b16 %v2742, %v2740
    %v2817 = vpack.c.b16 %v2743, %v2741
    %v2818 = vpack.c.b16 %v2746, %v2744
    %v2819 = vpack.c.b16 %v2747, %v2745
    %v2820 = vpack.c.b16 %v2750, %v2748
    %v2821 = vpack.c.b16 %v2751, %v2749
    %v2822 = vpack.c.b16 %v2754, %v2752
    %v2823 = vpack.c.b16 %v2755, %v2753
    %v2824 = vpack.c.b16 %v2758, %v2756
    %v2825 = vpack.c.b16 %v2759, %v2757
    %v2826 = vpack.c.b16 %v2762, %v2760
    %v2827 = vpack.c.b16 %v2763, %v2761
    %2892 = vmatprep.subr.bf16.mxu0 %v2765
    %2893 = vmatpush1.bf16.msra.mxu0 %v2764
    %2894 = vmatprep.subr.bf16.mxu0 %v2767
    %2895 = vmatpush1.bf16.msra.mxu0 %v2766
    %2896 = vmatprep.subr.bf16.mxu0 %v2769
    %2897 = vmatpush1.bf16.msra.mxu0 %v2768
    %2898 = vmatprep.subr.bf16.mxu0 %v2771
    %2899 = vmatpush1.bf16.msra.mxu0 %v2770
    %2900 = vmatprep.subr.bf16.mxu0 %v2773
    %2901 = vmatpush1.bf16.msra.mxu0 %v2772
    %2902 = vmatprep.subr.bf16.mxu0 %v2775
    %2903 = vmatpush1.bf16.msra.mxu0 %v2774
    %2904 = vmatprep.subr.bf16.mxu0 %v2777
    %2905 = vmatpush1.bf16.msra.mxu0 %v2776
    %2906 = vmatprep.subr.bf16.mxu0 %v2779
    %2907 = vmatpush1.bf16.msra.mxu0 %v2778
    %2908 = vmatprep.subr.bf16.mxu0 %v2781
    %2909 = vmatpush1.bf16.msra.mxu0 %v2780
    %2910 = vmatprep.subr.bf16.mxu0 %v2783
    %2911 = vmatpush1.bf16.msra.mxu0 %v2782
    %2912 = vmatprep.subr.bf16.mxu0 %v2785
    %2913 = vmatpush1.bf16.msra.mxu0 %v2784
    %2914 = vmatprep.subr.bf16.mxu0 %v2787
    %2915 = vmatpush1.bf16.msra.mxu0 %v2786
    %2916 = vmatprep.subr.bf16.mxu0 %v2789
    %2917 = vmatpush1.bf16.msra.mxu0 %v2788
    %2918 = vmatprep.subr.bf16.mxu0 %v2791
    %2919 = vmatpush1.bf16.msra.mxu0 %v2790
    %2920 = vmatprep.subr.bf16.mxu0 %v2793
    %2921 = vmatpush1.bf16.msra.mxu0 %v2792
    %2922 = vmatprep.subr.bf16.mxu0 %v2795
    %2923 = vmatpush1.bf16.msra.mxu0 %v2794
    %2924 = vmatprep.mubr.bf16.mxu0 %v2493
    %2925 = vmatmul.mubr.bf16.gmra.mrb[0].mxu0 %v2492
    %v2926 = vpop.f32.mrb[0].mxu0
    %v2927 = vadd.f32 %v2565, %v2926
    %v2928 = vpop.f32.mrb[0].mxu0
    %v2929 = vadd.f32 %v2569, %v2928
    %v2930 = vpop.f32.mrb[0].mxu0
    %v2931 = vpop.f32.mrb[0].mxu0
    %2932 = vdwg.mxu0
    %2933 = vmatprep.subr.bf16.mxu0 %v2797
    %2934 = vmatpush1.bf16.msra.mxu0 %v2796
    %2935 = vmatprep.subr.bf16.mxu0 %v2799
    %2936 = vmatpush1.bf16.msra.mxu0 %v2798
    %2937 = vmatprep.subr.bf16.mxu0 %v2801
    %2938 = vmatpush1.bf16.msra.mxu0 %v2800
    %2939 = vmatprep.subr.bf16.mxu0 %v2803
    %2940 = vmatpush1.bf16.msra.mxu0 %v2802
    %2941 = vmatprep.subr.bf16.mxu0 %v2805
    %2942 = vmatpush1.bf16.msra.mxu0 %v2804
    %2943 = vmatprep.subr.bf16.mxu0 %v2807
    %2944 = vmatpush1.bf16.msra.mxu0 %v2806
    %2945 = vmatprep.subr.bf16.mxu0 %v2809
    %2946 = vmatpush1.bf16.msra.mxu0 %v2808
    %2947 = vmatprep.subr.bf16.mxu0 %v2811
    %2948 = vmatpush1.bf16.msra.mxu0 %v2810
    %2949 = vmatprep.subr.bf16.mxu0 %v2813
    %2950 = vmatpush1.bf16.msra.mxu0 %v2812
    %2951 = vmatprep.subr.bf16.mxu0 %v2815
    %2952 = vmatpush1.bf16.msra.mxu0 %v2814
    %2953 = vmatprep.subr.bf16.mxu0 %v2817
    %2954 = vmatpush1.bf16.msra.mxu0 %v2816
    %2955 = vmatprep.subr.bf16.mxu0 %v2819
    %2956 = vmatpush1.bf16.msra.mxu0 %v2818
    %2957 = vmatprep.subr.bf16.mxu0 %v2821
    %2958 = vmatpush1.bf16.msra.mxu0 %v2820
    %2959 = vmatprep.subr.bf16.mxu0 %v2823
    %2960 = vmatpush1.bf16.msra.mxu0 %v2822
    %2961 = vmatprep.subr.bf16.mxu0 %v2825
    %2962 = vmatpush1.bf16.msra.mxu0 %v2824
    %2963 = vmatprep.subr.bf16.mxu0 %v2827
    %2964 = vmatpush1.bf16.msra.mxu0 %v2826
    %2965 = vmatprep.mubr.bf16.mxu0 %v2495
    %2966 = vmatmul.mubr.bf16.gmra.mrb[0].mxu0 %v2494
    %v2967 = vpop.f32.mrb[0].mxu0
    %v2968 = vadd.f32 %v2927, %v2967
    %v2969 = vpop.f32.mrb[0].mxu0
    %v2970 = vadd.f32 %v2929, %v2969
    %v2971 = vpop.f32.mrb[0].mxu0
    %v2972 = vpop.f32.mrb[0].mxu0
    %2973 = vdwg.mxu0
    %v2974 = vmax.f32 %v2968, 0.0
    %v2975 = vmax.f32 %v2970, 0.0
    %v2976 = vpack.c.bf16 %v2974, %v2974
    %v2977 = vpack.c.bf16 %v2975, %v2975
    %v2978 = vld [vmem:[%s8] sm:$0xf]
    %v2979 = vld [vmem:[%s8 + $0x4] sm:$0xf]
    %v2980 = vld [vmem:[%s8 + $0x8] sm:$0xf]
    %v2981 = vld [vmem:[%s8 + $0xc] sm:$0xf]
    %v2982 = vld [vmem:[%s8 + $0x10] sm:$0xf]
    %v2983 = vld [vmem:[%s8 + $0x14] sm:$0xf]
    %v2984 = vld [vmem:[%s8 + $0x18] sm:$0xf]
    %v2985 = vld [vmem:[%s8 + $0x1c] sm:$0xf]
    %v2986 = vld [vmem:[%s8 + $0x20] sm:$0xf]
    %v2987 = vld [vmem:[%s8 + $0x24] sm:$0xf]
    %v2988 = vld [vmem:[%s8 + $0x28] sm:$0xf]
    %v2989 = vld [vmem:[%s8 + $0x2c] sm:$0xf]
    %v2990 = vld [vmem:[%s8 + $0x30] sm:$0xf]
    %v2991 = vld [vmem:[%s8 + $0x34] sm:$0xf]
    %v2992 = vld [vmem:[%s8 + $0x38] sm:$0xf]
    %v2993 = vld [vmem:[%s8 + $0x3c] sm:$0xf]
    %v2994 = vld [vmem:[%s8 + $0x40] sm:$0xf]
    %v2995 = vld [vmem:[%s8 + $0x44] sm:$0xf]
    %v2996 = vld [vmem:[%s8 + $0x48] sm:$0xf]
    %v2997 = vld [vmem:[%s8 + $0x4c] sm:$0xf]
    %v2998 = vld [vmem:[%s8 + $0x50] sm:$0xf]
    %v2999 = vld [vmem:[%s8 + $0x54] sm:$0xf]
    %v3000 = vld [vmem:[%s8 + $0x58] sm:$0xf]
    %v3001 = vld [vmem:[%s8 + $0x5c] sm:$0xf]
    %v3002 = vld [vmem:[%s8 + $0x60] sm:$0xf]
    %v3003 = vld [vmem:[%s8 + $0x64] sm:$0xf]
    %v3004 = vld [vmem:[%s8 + $0x68] sm:$0xf]
    %v3005 = vld [vmem:[%s8 + $0x6c] sm:$0xf]
    %v3006 = vld [vmem:[%s8 + $0x70] sm:$0xf]
    %v3007 = vld [vmem:[%s8 + $0x74] sm:$0xf]
    %v3008 = vld [vmem:[%s8 + $0x78] sm:$0xf]
    %v3009 = vld [vmem:[%s8 + $0x7c] sm:$0xf]
    %v3010 = vld [vmem:[%s9] sm:$0x1]
    %v3012 = vlaneseq
    %v3013 = vshrl.u32 %v3012, 7
    %v3014 = vsub.s32 0, %v3013
    %v3015 = vrot.slane %v3010, %v3014
    %v3049 = vunpack.c.l.b16 %v2978
    %v3050 = vunpack.c.l.b16 %v2979
    %v3051 = vunpack.c.l.b16 %v2980
    %v3052 = vunpack.c.l.b16 %v2981
    %v3053 = vunpack.c.l.b16 %v2982
    %v3054 = vunpack.c.l.b16 %v2983
    %v3055 = vunpack.c.l.b16 %v2984
    %v3056 = vunpack.c.l.b16 %v2985
    %v3057 = vunpack.c.l.b16 %v2986
    %v3058 = vunpack.c.l.b16 %v2987
    %v3059 = vunpack.c.l.b16 %v2988
    %v3060 = vunpack.c.l.b16 %v2989
    %v3061 = vunpack.c.l.b16 %v2990
    %v3062 = vunpack.c.l.b16 %v2991
    %v3063 = vunpack.c.l.b16 %v2992
    %v3064 = vunpack.c.l.b16 %v2993
    %v3065 = vunpack.c.l.b16 %v2994
    %v3066 = vunpack.c.l.b16 %v2995
    %v3067 = vunpack.c.l.b16 %v2996
    %v3068 = vunpack.c.l.b16 %v2997
    %v3069 = vunpack.c.l.b16 %v2998
    %v3070 = vunpack.c.l.b16 %v2999
    %v3071 = vunpack.c.l.b16 %v3000
    %v3072 = vunpack.c.l.b16 %v3001
    %v3073 = vunpack.c.l.b16 %v3002
    %v3074 = vunpack.c.l.b16 %v3003
    %v3075 = vunpack.c.l.b16 %v3004
    %v3076 = vunpack.c.l.b16 %v3005
    %v3077 = vunpack.c.l.b16 %v3006
    %v3078 = vunpack.c.l.b16 %v3007
    %v3079 = vunpack.c.l.b16 %v3008
    %v3080 = vunpack.c.l.b16 %v3009
    %v3081 = vpack.c.b16 %v3050, %v3049
    %v3082 = vpack.c.b16 %v3052, %v3051
    %v3083 = vpack.c.b16 %v3054, %v3053
    %v3084 = vpack.c.b16 %v3056, %v3055
    %v3085 = vpack.c.b16 %v3058, %v3057
    %v3086 = vpack.c.b16 %v3060, %v3059
    %v3087 = vpack.c.b16 %v3062, %v3061
    %v3088 = vpack.c.b16 %v3064, %v3063
    %v3089 = vpack.c.b16 %v3066, %v3065
    %v3090 = vpack.c.b16 %v3068, %v3067
    %v3091 = vpack.c.b16 %v3070, %v3069
    %v3092 = vpack.c.b16 %v3072, %v3071
    %v3093 = vpack.c.b16 %v3074, %v3073
    %v3094 = vpack.c.b16 %v3076, %v3075
    %v3095 = vpack.c.b16 %v3078, %v3077
    %v3096 = vpack.c.b16 %v3080, %v3079
    %3113 = vmatprep.subr.bf16.mxu0 0
    %3114 = vmatpush1.bf16.msra.mxu0 %v3081
    %3115 = vmatprep.subr.bf16.mxu0 0
    %3116 = vmatpush1.bf16.msra.mxu0 %v3082
    %3117 = vmatprep.subr.bf16.mxu0 0
    %3118 = vmatpush1.bf16.msra.mxu0 %v3083
    %3119 = vmatprep.subr.bf16.mxu0 0
    %3120 = vmatpush1.bf16.msra.mxu0 %v3084
    %3121 = vmatprep.subr.bf16.mxu0 0
    %3122 = vmatpush1.bf16.msra.mxu0 %v3085
    %3123 = vmatprep.subr.bf16.mxu0 0
    %3124 = vmatpush1.bf16.msra.mxu0 %v3086
    %3125 = vmatprep.subr.bf16.mxu0 0
    %3126 = vmatpush1.bf16.msra.mxu0 %v3087
    %3127 = vmatprep.subr.bf16.mxu0 0
    %3128 = vmatpush1.bf16.msra.mxu0 %v3088
    %3129 = vmatprep.subr.bf16.mxu0 0
    %3130 = vmatpush1.bf16.msra.mxu0 %v3089
    %3131 = vmatprep.subr.bf16.mxu0 0
    %3132 = vmatpush1.bf16.msra.mxu0 %v3090
    %3133 = vmatprep.subr.bf16.mxu0 0
    %3134 = vmatpush1.bf16.msra.mxu0 %v3091
    %3135 = vmatprep.subr.bf16.mxu0 0
    %3136 = vmatpush1.bf16.msra.mxu0 %v3092
    %3137 = vmatprep.subr.bf16.mxu0 0
    %3138 = vmatpush1.bf16.msra.mxu0 %v3093
    %3139 = vmatprep.subr.bf16.mxu0 0
    %3140 = vmatpush1.bf16.msra.mxu0 %v3094
    %3141 = vmatprep.subr.bf16.mxu0 0
    %3142 = vmatpush1.bf16.msra.mxu0 %v3095
    %3143 = vmatprep.subr.bf16.mxu0 0
    %3144 = vmatpush1.bf16.msra.mxu0 %v3096
    %3145 = vmatprep.mubr.bf16.mxu0 %v2977
    %3146 = vmatmul.mubr.bf16.gmra.mrb[0].mxu0 %v2976
    %v3147 = vpop.f32.mrb[0].mxu0
    %v3148 = vadd.f32 %v3015, %v3147
    %v3149 = vpop.f32.mrb[0].mxu0
    %v3150 = vpop.f32.mrb[0].mxu0
    %v3151 = vpop.f32.mrb[0].mxu0
    %3152 = vdwg.mxu0
    %v3153 = vpack.c.bf16 %v3148, %v3148
    %v3154 = vld [vmem:[%s0] sm:$0xff]
    %v3155 = vld [vmem:[%s0 + $0x8] sm:$0xff]
    %v3156 = vld [vmem:[%s0 + $0x10] sm:$0xff]
    %v3157 = vld [vmem:[%s0 + $0x18] sm:$0xff]
    %v3158 = vld [vmem:[%s0 + $0x20] sm:$0xff]
    %v3159 = vld [vmem:[%s0 + $0x28] sm:$0xff]
    %v3160 = vld [vmem:[%s0 + $0x30] sm:$0xff]
    %v3161 = vld [vmem:[%s0 + $0x38] sm:$0xff]
    %v3162 = vpack.c.bf16 %v3155, %v3154
    %v3163 = vpack.c.bf16 %v3157, %v3156
    %v3164 = vpack.c.bf16 %v3159, %v3158
    %v3165 = vpack.c.bf16 %v3161, %v3160
    %v3166 = vld [vmem:[%s10] sm:$0x77]
    %v3167 = vld [vmem:[%s10 + $0x8] sm:$0x77]
    %v3170 = vunpack.c.l.b16 %v3166
    %v3171 = vunpack.c.h.b16 %v3166
    %v3172 = vunpack.c.l.b16 %v3167
    %v3173 = vunpack.c.h.b16 %v3167
    %v3174 = vpack.c.b16 %v3170, %v3170
    %v3175 = vpack.c.b16 %v3171, %v3171
    %v3176 = vpack.c.b16 %v3172, %v3172
    %v3177 = vpack.c.b16 %v3173, %v3173
    %vm3178 = vcmask 48128
    %v3180 = vsel %vm3178, %v3162, 0
    %v3183 = vsel %vm3178, %v3163, 0
    %v3186 = vsel %vm3178, %v3164, 0
    %v3189 = vsel %vm3178, %v3165, 0
    %vm3191 = vcmask 1042432
    %v3193 = vsel %vm3191, %v3174, 0
    %v3196 = vsel %vm3191, %v3175, 0
    %v3199 = vsel %vm3191, %v3176, 0
    %v3202 = vsel %vm3191, %v3177, 0
    %3204 = vmatprep.subr.bf16.mxu0 %v3196
    %3205 = vmatpush1.bf16.msra.mxu0 %v3193
    %3206 = vmatprep.subr.bf16.mxu0 0
    %3207 = vmatpush1.bf16.msra.mxu0 0
    %3208 = vmatprep.subr.bf16.mxu0 0
    %3209 = vmatpush1.bf16.msra.mxu0 0
    %3210 = vmatprep.subr.bf16.mxu0 0
    %3211 = vmatpush1.bf16.msra.mxu0 0
    %3212 = vmatprep.subr.bf16.mxu0 0
    %3213 = vmatpush1.bf16.msra.mxu0 0
    %3214 = vmatprep.subr.bf16.mxu0 0
    %3215 = vmatpush1.bf16.msra.mxu0 0
    %3216 = vmatprep.subr.bf16.mxu0 0
    %3217 = vmatpush1.bf16.msra.mxu0 0
    %3218 = vmatprep.subr.bf16.mxu0 0
    %3219 = vmatpush1.bf16.msra.mxu0 0
    %3220 = vmatprep.subr.bf16.mxu0 0
    %3221 = vmatpush1.bf16.msra.mxu0 0
    %3222 = vmatprep.subr.bf16.mxu0 0
    %3223 = vmatpush1.bf16.msra.mxu0 0
    %3224 = vmatprep.subr.bf16.mxu0 0
    %3225 = vmatpush1.bf16.msra.mxu0 0
    %3226 = vmatprep.subr.bf16.mxu0 0
    %3227 = vmatpush1.bf16.msra.mxu0 0
    %3228 = vmatprep.subr.bf16.mxu0 0
    %3229 = vmatpush1.bf16.msra.mxu0 0
    %3230 = vmatprep.subr.bf16.mxu0 0
    %3231 = vmatpush1.bf16.msra.mxu0 0
    %3232 = vmatprep.subr.bf16.mxu0 0
    %3233 = vmatpush1.bf16.msra.mxu0 0
    %3234 = vmatprep.subr.bf16.mxu0 0
    %3235 = vmatpush1.bf16.msra.mxu0 0
    %3236 = vmatprep.mubr.bf16.mxu0 0
    %3237 = vmatmul.mubr.bf16.gmra.mrb[0].mxu0 %v3180
    %v3238 = vpop.f32.mrb[0].mxu0
    %v3239 = vadd.f32 0.0, %v3238
    %v3240 = vpop.f32.mrb[0].mxu0
    %v3241 = vadd.f32 0.0, %v3240
    %v3242 = vpop.f32.mrb[0].mxu0
    %v3243 = vadd.f32 0.0, %v3242
    %v3244 = vpop.f32.mrb[0].mxu0
    %v3245 = vadd.f32 0.0, %v3244
    %3246 = vmatprep.mubr.bf16.mxu0 0
    %3247 = vmatmul.mubr.bf16.gmra.mrb[0].mxu0 %v3183
    %v3248 = vpop.f32.mrb[0].mxu0
    %v3249 = vadd.f32 0.0, %v3248
    %v3250 = vpop.f32.mrb[0].mxu0
    %v3251 = vadd.f32 0.0, %v3250
    %v3252 = vpop.f32.mrb[0].mxu0
    %v3253 = vadd.f32 0.0, %v3252
    %v3254 = vpop.f32.mrb[0].mxu0
    %v3255 = vadd.f32 0.0, %v3254
    %3256 = vmatprep.mubr.bf16.mxu0 0
    %3257 = vmatmul.mubr.bf16.gmra.mrb[0].mxu0 %v3186
    %v3258 = vpop.f32.mrb[0].mxu0
    %v3259 = vadd.f32 0.0, %v3258
    %v3260 = vpop.f32.mrb[0].mxu0
    %v3261 = vadd.f32 0.0, %v3260
    %v3262 = vpop.f32.mrb[0].mxu0
    %v3263 = vadd.f32 0.0, %v3262
    %v3264 = vpop.f32.mrb[0].mxu0
    %v3265 = vadd.f32 0.0, %v3264
    %3266 = vmatprep.mubr.bf16.mxu0 0
    %3267 = vmatmul.mubr.bf16.gmra.mrb[0].mxu0 %v3189
    %v3268 = vpop.f32.mrb[0].mxu0
    %v3269 = vadd.f32 0.0, %v3268
    %v3270 = vpop.f32.mrb[0].mxu0
    %v3271 = vadd.f32 0.0, %v3270
    %v3272 = vpop.f32.mrb[0].mxu0
    %v3273 = vadd.f32 0.0, %v3272
    %v3274 = vpop.f32.mrb[0].mxu0
    %v3275 = vadd.f32 0.0, %v3274
    %3276 = vdwg.mxu0
    %3277 = vmatprep.subr.bf16.mxu0 %v3202
    %3278 = vmatpush1.bf16.msra.mxu0 %v3199
    %3279 = vmatprep.subr.bf16.mxu0 0
    %3280 = vmatpush1.bf16.msra.mxu0 0
    %3281 = vmatprep.subr.bf16.mxu0 0
    %3282 = vmatpush1.bf16.msra.mxu0 0
    %3283 = vmatprep.subr.bf16.mxu0 0
    %3284 = vmatpush1.bf16.msra.mxu0 0
    %3285 = vmatprep.subr.bf16.mxu0 0
    %3286 = vmatpush1.bf16.msra.mxu0 0
    %3287 = vmatprep.subr.bf16.mxu0 0
    %3288 = vmatpush1.bf16.msra.mxu0 0
    %3289 = vmatprep.subr.bf16.mxu0 0
    %3290 = vmatpush1.bf16.msra.mxu0 0
    %3291 = vmatprep.subr.bf16.mxu0 0
    %3292 = vmatpush1.bf16.msra.mxu0 0
    %3293 = vmatprep.subr.bf16.mxu0 0
    %3294 = vmatpush1.bf16.msra.mxu0 0
    %3295 = vmatprep.subr.bf16.mxu0 0
    %3296 = vmatpush1.bf16.msra.mxu0 0
    %3297 = vmatprep.subr.bf16.mxu0 0
    %3298 = vmatpush1.bf16.msra.mxu0 0
    %3299 = vmatprep.subr.bf16.mxu0 0
    %3300 = vmatpush1.bf16.msra.mxu0 0
    %3301 = vmatprep.subr.bf16.mxu0 0
    %3302 = vmatpush1.bf16.msra.mxu0 0
    %3303 = vmatprep.subr.bf16.mxu0 0
    %3304 = vmatpush1.bf16.msra.mxu0 0
    %3305 = vmatprep.subr.bf16.mxu0 0
    %3306 = vmatpush1.bf16.msra.mxu0 0
    %3307 = vmatprep.subr.bf16.mxu0 0
    %3308 = vmatpush1.bf16.msra.mxu0 0
    %3309 = vmatprep.mubr.bf16.mxu0 0
    %3310 = vmatmul.mubr.bf16.gmra.mrb[0].mxu0 %v3180
    %v3311 = vpop.f32.mrb[0].mxu0
    %v3312 = vadd.f32 0.0, %v3311
    %v3313 = vpop.f32.mrb[0].mxu0
    %v3314 = vadd.f32 0.0, %v3313
    %v3315 = vpop.f32.mrb[0].mxu0
    %v3316 = vadd.f32 0.0, %v3315
    %v3317 = vpop.f32.mrb[0].mxu0
    %v3318 = vadd.f32 0.0, %v3317
    %3319 = vmatprep.mubr.bf16.mxu0 0
    %3320 = vmatmul.mubr.bf16.gmra.mrb[0].mxu0 %v3183
    %v3321 = vpop.f32.mrb[0].mxu0
    %v3322 = vadd.f32 0.0, %v3321
    %v3323 = vpop.f32.mrb[0].mxu0
    %v3324 = vadd.f32 0.0, %v3323
    %v3325 = vpop.f32.mrb[0].mxu0
    %v3326 = vadd.f32 0.0, %v3325
    %v3327 = vpop.f32.mrb[0].mxu0
    %v3328 = vadd.f32 0.0, %v3327
    %3329 = vmatprep.mubr.bf16.mxu0 0
    %3330 = vmatmul.mubr.bf16.gmra.mrb[0].mxu0 %v3186
    %v3331 = vpop.f32.mrb[0].mxu0
    %v3332 = vadd.f32 0.0, %v3331
    %v3333 = vpop.f32.mrb[0].mxu0
    %v3334 = vadd.f32 0.0, %v3333
    %v3335 = vpop.f32.mrb[0].mxu0
    %v3336 = vadd.f32 0.0, %v3335
    %v3337 = vpop.f32.mrb[0].mxu0
    %v3338 = vadd.f32 0.0, %v3337
    %3339 = vmatprep.mubr.bf16.mxu0 0
    %3340 = vmatmul.mubr.bf16.gmra.mrb[0].mxu0 %v3189
    %v3341 = vpop.f32.mrb[0].mxu0
    %v3342 = vadd.f32 0.0, %v3341
    %v3343 = vpop.f32.mrb[0].mxu0
    %v3344 = vadd.f32 0.0, %v3343
    %v3345 = vpop.f32.mrb[0].mxu0
    %v3346 = vadd.f32 0.0, %v3345
    %v3347 = vpop.f32.mrb[0].mxu0
    %v3348 = vadd.f32 0.0, %v3347
    %3349 = vdwg.mxu0
    %v3350 = vld [vmem:[%s11] sm:$0xf]
    %v3351 = vld [vmem:[%s12] sm:$0x3]
    %v3353 = vlaneseq
    %v3354 = vshrl.u32 %v3353, 7
    %v3355 = vsub.s32 0, %v3354
    %v3356 = vrot.slane %v3351, %v3355
    %v3357 = vlaneseq
    %v3358 = vshrl.u32 %v3357, 7
    %v3359 = vsub.s32 1, %v3358
    %v3360 = vrot.slane %v3351, %v3359
    %v3365 = vunpack.c.l.s4 1983009808
    %v3366 = vunpack.c.0.s8 %v3365
    %v3367 = vlaneseq
    %v3368 = vshrl.u32 %v3367, 7
    %v3369 = vsub.s32 %v3366, %v3368
    %v3370 = vrot.slane %v3350, %v3369
    %v3371 = vcombine.high %v3370, %v3370
    %vm3372 = vcmask 31744
    %v3374 = vsel %vm3372, %v3153, 0
    %vm3376 = vcmask 1041408
    %v3378 = vsel %vm3376, %v3370, 0
    %v3381 = vsel %vm3376, %v3371, 0
    %3383 = vmatprep.subr.bf16.mxu0 %v3381
    %3384 = vmatpush1.bf16.msra.mxu0 %v3378
    %3385 = vmatprep.subr.bf16.mxu0 0
    %3386 = vmatpush1.bf16.msra.mxu0 0
    %3387 = vmatprep.subr.bf16.mxu0 0
    %3388 = vmatpush1.bf16.msra.mxu0 0
    %3389 = vmatprep.subr.bf16.mxu0 0
    %3390 = vmatpush1.bf16.msra.mxu0 0
    %3391 = vmatprep.subr.bf16.mxu0 0
    %3392 = vmatpush1.bf16.msra.mxu0 0
    %3393 = vmatprep.subr.bf16.mxu0 0
    %3394 = vmatpush1.bf16.msra.mxu0 0
    %3395 = vmatprep.subr.bf16.mxu0 0
    %3396 = vmatpush1.bf16.msra.mxu0 0
    %3397 = vmatprep.subr.bf16.mxu0 0
    %3398 = vmatpush1.bf16.msra.mxu0 0
    %3399 = vmatprep.subr.bf16.mxu0 0
    %3400 = vmatpush1.bf16.msra.mxu0 0
    %3401 = vmatprep.subr.bf16.mxu0 0
    %3402 = vmatpush1.bf16.msra.mxu0 0
    %3403 = vmatprep.subr.bf16.mxu0 0
    %3404 = vmatpush1.bf16.msra.mxu0 0
    %3405 = vmatprep.subr.bf16.mxu0 0
    %3406 = vmatpush1.bf16.msra.mxu0 0
    %3407 = vmatprep.subr.bf16.mxu0 0
    %3408 = vmatpush1.bf16.msra.mxu0 0
    %3409 = vmatprep.subr.bf16.mxu0 0
    %3410 = vmatpush1.bf16.msra.mxu0 0
    %3411 = vmatprep.subr.bf16.mxu0 0
    %3412 = vmatpush1.bf16.msra.mxu0 0
    %3413 = vmatprep.subr.bf16.mxu0 0
    %3414 = vmatpush1.bf16.msra.mxu0 0
    %3415 = vmatprep.mubr.bf16.mxu0 0
    %3416 = vmatmul.mubr.bf16.gmra.mrb[0].mxu0 %v3374
    %v3417 = vpop.f32.mrb[0].mxu0
    %v3418 = vadd.f32 %v3356, %v3417
    %v3419 = vpop.f32.mrb[0].mxu0
    %v3420 = vadd.f32 %v3360, %v3419
    %v3421 = vpop.f32.mrb[0].mxu0
    %v3422 = vpop.f32.mrb[0].mxu0
    %3423 = vdwg.mxu0
    %v3426 = vcombine.low %v3418, %v3420
    %v3428 = vunpack.c.l.s4 1966171168
    %v3429 = vunpack.c.0.s8 %v3428
    %v3430 = vlaneseq
    %v3431 = vshrl.u32 %v3430, 7
    %v3432 = vsub.s32 %v3429, %v3431
    %v3433 = vrot.slane %v3426, %v3432
    %v3434 = vcombine.high %v3433, %v3433
    %v3436 = vunpack.c.l.s4 1966171168
    %v3437 = vunpack.c.0.s8 %v3436
    %v3438 = vlaneseq
    %v3439 = vshrl.u32 %v3438, 7
    %v3440 = vsub.s32 %v3437, %v3439
    %v3441 = vrot.slane %v3433, %v3440
    %v3443 = vunpack.c.l.s4 1966171168
    %v3444 = vunpack.c.0.s8 %v3443
    %v3445 = vlaneseq
    %v3446 = vshrl.u32 %v3445, 7
    %v3447 = vsub.s32 %v3444, %v3446
    %v3448 = vrot.slane %v3434, %v3447
    %v3449 = vcombine.high %v3441, %v3441
    %v3450 = vcombine.high %v3448, %v3448
    %v3451 = vlaneseq
    %v3452 = vshrl.u32 %v3451, 7
    %v3453 = vsub.s32 0, %v3452
    %v3454 = vrot.slane %v3441, %v3453
    %v3455 = vlaneseq
    %v3456 = vshrl.u32 %v3455, 7
    %v3457 = vsub.s32 1, %v3456
    %v3458 = vrot.slane %v3441, %v3457
    %v3459 = vlaneseq
    %v3460 = vshrl.u32 %v3459, 7
    %v3461 = vsub.s32 0, %v3460
    %v3462 = vrot.slane %v3448, %v3461
    %v3463 = vlaneseq
    %v3464 = vshrl.u32 %v3463, 7
    %v3465 = vsub.s32 1, %v3464
    %v3466 = vrot.slane %v3448, %v3465
    %v3467 = vlaneseq
    %v3468 = vshrl.u32 %v3467, 7
    %v3469 = vsub.s32 0, %v3468
    %v3470 = vrot.slane %v3449, %v3469
    %v3471 = vlaneseq
    %v3472 = vshrl.u32 %v3471, 7
    %v3473 = vsub.s32 1, %v3472
    %v3474 = vrot.slane %v3449, %v3473
    %v3475 = vlaneseq
    %v3476 = vshrl.u32 %v3475, 7
    %v3477 = vsub.s32 0, %v3476
    %v3478 = vrot.slane %v3450, %v3477
    %v3479 = vlaneseq
    %v3480 = vshrl.u32 %v3479, 7
    %v3481 = vsub.s32 1, %v3480
    %v3482 = vrot.slane %v3450, %v3481
    %v3491 = vadd.f32 %v3312, %v3454
    %v3492 = vadd.f32 %v3314, %v3458
    %v3493 = vadd.f32 %v3316, %v3454
    %v3494 = vadd.f32 %v3318, %v3458
    %v3495 = vadd.f32 %v3322, %v3462
    %v3496 = vadd.f32 %v3324, %v3466
    %v3497 = vadd.f32 %v3326, %v3462
    %v3498 = vadd.f32 %v3328, %v3466
    %v3499 = vadd.f32 %v3332, %v3470
    %v3500 = vadd.f32 %v3334, %v3474
    %v3501 = vadd.f32 %v3336, %v3470
    %v3502 = vadd.f32 %v3338, %v3474
    %v3503 = vadd.f32 %v3342, %v3478
    %v3504 = vadd.f32 %v3344, %v3482
    %v3505 = vadd.f32 %v3346, %v3478
    %v3506 = vadd.f32 %v3348, %v3482
    %v3523 = vcombine.low %v3491, %v3492
    %v3524 = vcombine.high %v3491, %v3492
    %v3526 = vunpack.c.l.s4 1966171168
    %v3527 = vunpack.c.0.s8 %v3526
    %v3528 = vlaneseq
    %v3529 = vshrl.u32 %v3528, 7
    %v3530 = vsub.s32 %v3527, %v3529
    %v3531 = vrot.slane %v3523, %v3530
    %v3533 = vunpack.c.l.s4 1966171168
    %v3534 = vunpack.c.0.s8 %v3533
    %v3535 = vlaneseq
    %v3536 = vshrl.u32 %v3535, 7
    %v3537 = vsub.s32 %v3534, %v3536
    %v3538 = vrot.slane %v3524, %v3537
    %v3539 = vcombine.high %v3531, %v3531
    %v3540 = vcombine.high %v3538, %v3538
    %v3542 = vunpack.c.l.s4 1966171168
    %v3543 = vunpack.c.0.s8 %v3542
    %v3544 = vlaneseq
    %v3545 = vshrl.u32 %v3544, 7
    %v3546 = vsub.s32 %v3543, %v3545
    %v3547 = vrot.slane %v3531, %v3546
    %v3549 = vunpack.c.l.s4 1966171168
    %v3550 = vunpack.c.0.s8 %v3549
    %v3551 = vlaneseq
    %v3552 = vshrl.u32 %v3551, 7
    %v3553 = vsub.s32 %v3550, %v3552
    %v3554 = vrot.slane %v3538, %v3553
    %v3556 = vunpack.c.l.s4 1966171168
    %v3557 = vunpack.c.0.s8 %v3556
    %v3558 = vlaneseq
    %v3559 = vshrl.u32 %v3558, 7
    %v3560 = vsub.s32 %v3557, %v3559
    %v3561 = vrot.slane %v3539, %v3560
    %v3563 = vunpack.c.l.s4 1966171168
    %v3564 = vunpack.c.0.s8 %v3563
    %v3565 = vlaneseq
    %v3566 = vshrl.u32 %v3565, 7
    %v3567 = vsub.s32 %v3564, %v3566
    %v3568 = vrot.slane %v3540, %v3567
    %v3569 = vcombine.high %v3547, %v3547
    %v3570 = vcombine.high %v3554, %v3554
    %v3571 = vcombine.high %v3561, %v3561
    %v3572 = vcombine.high %v3568, %v3568
    %v3573 = vcombine.low %v3493, %v3494
    %v3574 = vcombine.high %v3493, %v3494
    %v3576 = vunpack.c.l.s4 1966171168
    %v3577 = vunpack.c.0.s8 %v3576
    %v3578 = vlaneseq
    %v3579 = vshrl.u32 %v3578, 7
    %v3580 = vsub.s32 %v3577, %v3579
    %v3581 = vrot.slane %v3573, %v3580
    %v3583 = vunpack.c.l.s4 1966171168
    %v3584 = vunpack.c.0.s8 %v3583
    %v3585 = vlaneseq
    %v3586 = vshrl.u32 %v3585, 7
    %v3587 = vsub.s32 %v3584, %v3586
    %v3588 = vrot.slane %v3574, %v3587
    %v3589 = vcombine.high %v3581, %v3581
    %v3590 = vcombine.high %v3588, %v3588
    %v3592 = vunpack.c.l.s4 1966171168
    %v3593 = vunpack.c.0.s8 %v3592
    %v3594 = vlaneseq
    %v3595 = vshrl.u32 %v3594, 7
    %v3596 = vsub.s32 %v3593, %v3595
    %v3597 = vrot.slane %v3581, %v3596
    %v3599 = vunpack.c.l.s4 1966171168
    %v3600 = vunpack.c.0.s8 %v3599
    %v3601 = vlaneseq
    %v3602 = vshrl.u32 %v3601, 7
    %v3603 = vsub.s32 %v3600, %v3602
    %v3604 = vrot.slane %v3588, %v3603
    %v3606 = vunpack.c.l.s4 1966171168
    %v3607 = vunpack.c.0.s8 %v3606
    %v3608 = vlaneseq
    %v3609 = vshrl.u32 %v3608, 7
    %v3610 = vsub.s32 %v3607, %v3609
    %v3611 = vrot.slane %v3589, %v3610
    %v3613 = vunpack.c.l.s4 1966171168
    %v3614 = vunpack.c.0.s8 %v3613
    %v3615 = vlaneseq
    %v3616 = vshrl.u32 %v3615, 7
    %v3617 = vsub.s32 %v3614, %v3616
    %v3618 = vrot.slane %v3590, %v3617
    %v3619 = vcombine.high %v3597, %v3597
    %v3620 = vcombine.high %v3604, %v3604
    %v3621 = vcombine.high %v3611, %v3611
    %v3622 = vcombine.high %v3618, %v3618
    %v3623 = vcombine.low %v3495, %v3496
    %v3624 = vcombine.high %v3495, %v3496
    %v3626 = vunpack.c.l.s4 1966171168
    %v3627 = vunpack.c.0.s8 %v3626
    %v3628 = vlaneseq
    %v3629 = vshrl.u32 %v3628, 7
    %v3630 = vsub.s32 %v3627, %v3629
    %v3631 = vrot.slane %v3623, %v3630
    %v3633 = vunpack.c.l.s4 1966171168
    %v3634 = vunpack.c.0.s8 %v3633
    %v3635 = vlaneseq
    %v3636 = vshrl.u32 %v3635, 7
    %v3637 = vsub.s32 %v3634, %v3636
    %v3638 = vrot.slane %v3624, %v3637
    %v3639 = vcombine.high %v3631, %v3631
    %v3640 = vcombine.high %v3638, %v3638
    %v3642 = vunpack.c.l.s4 1966171168
    %v3643 = vunpack.c.0.s8 %v3642
    %v3644 = vlaneseq
    %v3645 = vshrl.u32 %v3644, 7
    %v3646 = vsub.s32 %v3643, %v3645
    %v3647 = vrot.slane %v3631, %v3646
    %v3649 = vunpack.c.l.s4 1966171168
    %v3650 = vunpack.c.0.s8 %v3649
    %v3651 = vlaneseq
    %v3652 = vshrl.u32 %v3651, 7
    %v3653 = vsub.s32 %v3650, %v3652
    %v3654 = vrot.slane %v3638, %v3653
    %v3656 = vunpack.c.l.s4 1966171168
    %v3657 = vunpack.c.0.s8 %v3656
    %v3658 = vlaneseq
    %v3659 = vshrl.u32 %v3658, 7
    %v3660 = vsub.s32 %v3657, %v3659
    %v3661 = vrot.slane %v3639, %v3660
    %v3663 = vunpack.c.l.s4 1966171168
    %v3664 = vunpack.c.0.s8 %v3663
    %v3665 = vlaneseq
    %v3666 = vshrl.u32 %v3665, 7
    %v3667 = vsub.s32 %v3664, %v3666
    %v3668 = vrot.slane %v3640, %v3667
    %v3669 = vcombine.high %v3647, %v3647
    %v3670 = vcombine.high %v3654, %v3654
    %v3671 = vcombine.high %v3661, %v3661
    %v3672 = vcombine.high %v3668, %v3668
    %v3673 = vcombine.low %v3497, %v3498
    %v3674 = vcombine.high %v3497, %v3498
    %v3676 = vunpack.c.l.s4 1966171168
    %v3677 = vunpack.c.0.s8 %v3676
    %v3678 = vlaneseq
    %v3679 = vshrl.u32 %v3678, 7
    %v3680 = vsub.s32 %v3677, %v3679
    %v3681 = vrot.slane %v3673, %v3680
    %v3683 = vunpack.c.l.s4 1966171168
    %v3684 = vunpack.c.0.s8 %v3683
    %v3685 = vlaneseq
    %v3686 = vshrl.u32 %v3685, 7
    %v3687 = vsub.s32 %v3684, %v3686
    %v3688 = vrot.slane %v3674, %v3687
    %v3689 = vcombine.high %v3681, %v3681
    %v3690 = vcombine.high %v3688, %v3688
    %v3692 = vunpack.c.l.s4 1966171168
    %v3693 = vunpack.c.0.s8 %v3692
    %v3694 = vlaneseq
    %v3695 = vshrl.u32 %v3694, 7
    %v3696 = vsub.s32 %v3693, %v3695
    %v3697 = vrot.slane %v3681, %v3696
    %v3699 = vunpack.c.l.s4 1966171168
    %v3700 = vunpack.c.0.s8 %v3699
    %v3701 = vlaneseq
    %v3702 = vshrl.u32 %v3701, 7
    %v3703 = vsub.s32 %v3700, %v3702
    %v3704 = vrot.slane %v3688, %v3703
    %v3706 = vunpack.c.l.s4 1966171168
    %v3707 = vunpack.c.0.s8 %v3706
    %v3708 = vlaneseq
    %v3709 = vshrl.u32 %v3708, 7
    %v3710 = vsub.s32 %v3707, %v3709
    %v3711 = vrot.slane %v3689, %v3710
    %v3713 = vunpack.c.l.s4 1966171168
    %v3714 = vunpack.c.0.s8 %v3713
    %v3715 = vlaneseq
    %v3716 = vshrl.u32 %v3715, 7
    %v3717 = vsub.s32 %v3714, %v3716
    %v3718 = vrot.slane %v3690, %v3717
    %v3719 = vcombine.high %v3697, %v3697
    %v3720 = vcombine.high %v3704, %v3704
    %v3721 = vcombine.high %v3711, %v3711
    %v3722 = vcombine.high %v3718, %v3718
    %v3723 = vcombine.low %v3499, %v3500
    %v3724 = vcombine.high %v3499, %v3500
    %v3726 = vunpack.c.l.s4 1966171168
    %v3727 = vunpack.c.0.s8 %v3726
    %v3728 = vlaneseq
    %v3729 = vshrl.u32 %v3728, 7
    %v3730 = vsub.s32 %v3727, %v3729
    %v3731 = vrot.slane %v3723, %v3730
    %v3733 = vunpack.c.l.s4 1966171168
    %v3734 = vunpack.c.0.s8 %v3733
    %v3735 = vlaneseq
    %v3736 = vshrl.u32 %v3735, 7
    %v3737 = vsub.s32 %v3734, %v3736
    %v3738 = vrot.slane %v3724, %v3737
    %v3739 = vcombine.high %v3731, %v3731
    %v3740 = vcombine.high %v3738, %v3738
    %v3742 = vunpack.c.l.s4 1966171168
    %v3743 = vunpack.c.0.s8 %v3742
    %v3744 = vlaneseq
    %v3745 = vshrl.u32 %v3744, 7
    %v3746 = vsub.s32 %v3743, %v3745
    %v3747 = vrot.slane %v3731, %v3746
    %v3749 = vunpack.c.l.s4 1966171168
    %v3750 = vunpack.c.0.s8 %v3749
    %v3751 = vlaneseq
    %v3752 = vshrl.u32 %v3751, 7
    %v3753 = vsub.s32 %v3750, %v3752
    %v3754 = vrot.slane %v3738, %v3753
    %v3756 = vunpack.c.l.s4 1966171168
    %v3757 = vunpack.c.0.s8 %v3756
    %v3758 = vlaneseq
    %v3759 = vshrl.u32 %v3758, 7
    %v3760 = vsub.s32 %v3757, %v3759
    %v3761 = vrot.slane %v3739, %v3760
    %v3763 = vunpack.c.l.s4 1966171168
    %v3764 = vunpack.c.0.s8 %v3763
    %v3765 = vlaneseq
    %v3766 = vshrl.u32 %v3765, 7
    %v3767 = vsub.s32 %v3764, %v3766
    %v3768 = vrot.slane %v3740, %v3767
    %v3769 = vcombine.high %v3747, %v3747
    %v3770 = vcombine.high %v3754, %v3754
    %v3771 = vcombine.high %v3761, %v3761
    %v3772 = vcombine.high %v3768, %v3768
    %v3773 = vcombine.low %v3501, %v3502
    %v3774 = vcombine.high %v3501, %v3502
    %v3776 = vunpack.c.l.s4 1966171168
    %v3777 = vunpack.c.0.s8 %v3776
    %v3778 = vlaneseq
    %v3779 = vshrl.u32 %v3778, 7
    %v3780 = vsub.s32 %v3777, %v3779
    %v3781 = vrot.slane %v3773, %v3780
    %v3783 = vunpack.c.l.s4 1966171168
    %v3784 = vunpack.c.0.s8 %v3783
    %v3785 = vlaneseq
    %v3786 = vshrl.u32 %v3785, 7
    %v3787 = vsub.s32 %v3784, %v3786
    %v3788 = vrot.slane %v3774, %v3787
    %v3789 = vcombine.high %v3781, %v3781
    %v3790 = vcombine.high %v3788, %v3788
    %v3792 = vunpack.c.l.s4 1966171168
    %v3793 = vunpack.c.0.s8 %v3792
    %v3794 = vlaneseq
    %v3795 = vshrl.u32 %v3794, 7
    %v3796 = vsub.s32 %v3793, %v3795
    %v3797 = vrot.slane %v3781, %v3796
    %v3799 = vunpack.c.l.s4 1966171168
    %v3800 = vunpack.c.0.s8 %v3799
    %v3801 = vlaneseq
    %v3802 = vshrl.u32 %v3801, 7
    %v3803 = vsub.s32 %v3800, %v3802
    %v3804 = vrot.slane %v3788, %v3803
    %v3806 = vunpack.c.l.s4 1966171168
    %v3807 = vunpack.c.0.s8 %v3806
    %v3808 = vlaneseq
    %v3809 = vshrl.u32 %v3808, 7
    %v3810 = vsub.s32 %v3807, %v3809
    %v3811 = vrot.slane %v3789, %v3810
    %v3813 = vunpack.c.l.s4 1966171168
    %v3814 = vunpack.c.0.s8 %v3813
    %v3815 = vlaneseq
    %v3816 = vshrl.u32 %v3815, 7
    %v3817 = vsub.s32 %v3814, %v3816
    %v3818 = vrot.slane %v3790, %v3817
    %v3819 = vcombine.high %v3797, %v3797
    %v3820 = vcombine.high %v3804, %v3804
    %v3821 = vcombine.high %v3811, %v3811
    %v3822 = vcombine.high %v3818, %v3818
    %v3823 = vcombine.low %v3503, %v3504
    %v3824 = vcombine.high %v3503, %v3504
    %v3826 = vunpack.c.l.s4 1966171168
    %v3827 = vunpack.c.0.s8 %v3826
    %v3828 = vlaneseq
    %v3829 = vshrl.u32 %v3828, 7
    %v3830 = vsub.s32 %v3827, %v3829
    %v3831 = vrot.slane %v3823, %v3830
    %v3833 = vunpack.c.l.s4 1966171168
    %v3834 = vunpack.c.0.s8 %v3833
    %v3835 = vlaneseq
    %v3836 = vshrl.u32 %v3835, 7
    %v3837 = vsub.s32 %v3834, %v3836
    %v3838 = vrot.slane %v3824, %v3837
    %v3839 = vcombine.high %v3831, %v3831
    %v3840 = vcombine.high %v3838, %v3838
    %v3842 = vunpack.c.l.s4 1966171168
    %v3843 = vunpack.c.0.s8 %v3842
    %v3844 = vlaneseq
    %v3845 = vshrl.u32 %v3844, 7
    %v3846 = vsub.s32 %v3843, %v3845
    %v3847 = vrot.slane %v3831, %v3846
    %v3849 = vunpack.c.l.s4 1966171168
    %v3850 = vunpack.c.0.s8 %v3849
    %v3851 = vlaneseq
    %v3852 = vshrl.u32 %v3851, 7
    %v3853 = vsub.s32 %v3850, %v3852
    %v3854 = vrot.slane %v3838, %v3853
    %v3856 = vunpack.c.l.s4 1966171168
    %v3857 = vunpack.c.0.s8 %v3856
    %v3858 = vlaneseq
    %v3859 = vshrl.u32 %v3858, 7
    %v3860 = vsub.s32 %v3857, %v3859
    %v3861 = vrot.slane %v3839, %v3860
    %v3863 = vunpack.c.l.s4 1966171168
    %v3864 = vunpack.c.0.s8 %v3863
    %v3865 = vlaneseq
    %v3866 = vshrl.u32 %v3865, 7
    %v3867 = vsub.s32 %v3864, %v3866
    %v3868 = vrot.slane %v3840, %v3867
    %v3869 = vcombine.high %v3847, %v3847
    %v3870 = vcombine.high %v3854, %v3854
    %v3871 = vcombine.high %v3861, %v3861
    %v3872 = vcombine.high %v3868, %v3868
    %v3873 = vcombine.low %v3505, %v3506
    %v3874 = vcombine.high %v3505, %v3506
    %v3876 = vunpack.c.l.s4 1966171168
    %v3877 = vunpack.c.0.s8 %v3876
    %v3878 = vlaneseq
    %v3879 = vshrl.u32 %v3878, 7
    %v3880 = vsub.s32 %v3877, %v3879
    %v3881 = vrot.slane %v3873, %v3880
    %v3883 = vunpack.c.l.s4 1966171168
    %v3884 = vunpack.c.0.s8 %v3883
    %v3885 = vlaneseq
    %v3886 = vshrl.u32 %v3885, 7
    %v3887 = vsub.s32 %v3884, %v3886
    %v3888 = vrot.slane %v3874, %v3887
    %v3889 = vcombine.high %v3881, %v3881
    %v3890 = vcombine.high %v3888, %v3888
    %v3892 = vunpack.c.l.s4 1966171168
    %v3893 = vunpack.c.0.s8 %v3892
    %v3894 = vlaneseq
    %v3895 = vshrl.u32 %v3894, 7
    %v3896 = vsub.s32 %v3893, %v3895
    %v3897 = vrot.slane %v3881, %v3896
    %v3899 = vunpack.c.l.s4 1966171168
    %v3900 = vunpack.c.0.s8 %v3899
    %v3901 = vlaneseq
    %v3902 = vshrl.u32 %v3901, 7
    %v3903 = vsub.s32 %v3900, %v3902
    %v3904 = vrot.slane %v3888, %v3903
    %v3906 = vunpack.c.l.s4 1966171168
    %v3907 = vunpack.c.0.s8 %v3906
    %v3908 = vlaneseq
    %v3909 = vshrl.u32 %v3908, 7
    %v3910 = vsub.s32 %v3907, %v3909
    %v3911 = vrot.slane %v3889, %v3910
    %v3913 = vunpack.c.l.s4 1966171168
    %v3914 = vunpack.c.0.s8 %v3913
    %v3915 = vlaneseq
    %v3916 = vshrl.u32 %v3915, 7
    %v3917 = vsub.s32 %v3914, %v3916
    %v3918 = vrot.slane %v3890, %v3917
    %v3919 = vcombine.high %v3897, %v3897
    %v3920 = vcombine.high %v3904, %v3904
    %v3921 = vcombine.high %v3911, %v3911
    %v3922 = vcombine.high %v3918, %v3918
    %v3923 = vlaneseq
    %v3924 = vshrl.u32 %v3923, 7
    %v3925 = vsub.s32 0, %v3924
    %v3926 = vrot.slane %v3547, %v3925
    %v3927 = vlaneseq
    %v3928 = vshrl.u32 %v3927, 7
    %v3929 = vsub.s32 1, %v3928
    %v3930 = vrot.slane %v3547, %v3929
    %v3931 = vlaneseq
    %v3932 = vshrl.u32 %v3931, 7
    %v3933 = vsub.s32 0, %v3932
    %v3934 = vrot.slane %v3561, %v3933
    %v3935 = vlaneseq
    %v3936 = vshrl.u32 %v3935, 7
    %v3937 = vsub.s32 1, %v3936
    %v3938 = vrot.slane %v3561, %v3937
    %v3939 = vlaneseq
    %v3940 = vshrl.u32 %v3939, 7
    %v3941 = vsub.s32 0, %v3940
    %v3942 = vrot.slane %v3569, %v3941
    %v3943 = vlaneseq
    %v3944 = vshrl.u32 %v3943, 7
    %v3945 = vsub.s32 1, %v3944
    %v3946 = vrot.slane %v3569, %v3945
    %v3947 = vlaneseq
    %v3948 = vshrl.u32 %v3947, 7
    %v3949 = vsub.s32 0, %v3948
    %v3950 = vrot.slane %v3571, %v3949
    %v3951 = vlaneseq
    %v3952 = vshrl.u32 %v3951, 7
    %v3953 = vsub.s32 1, %v3952
    %v3954 = vrot.slane %v3571, %v3953
    %v3955 = vlaneseq
    %v3956 = vshrl.u32 %v3955, 7
    %v3957 = vsub.s32 0, %v3956
    %v3958 = vrot.slane %v3554, %v3957
    %v3959 = vlaneseq
    %v3960 = vshrl.u32 %v3959, 7
    %v3961 = vsub.s32 1, %v3960
    %v3962 = vrot.slane %v3554, %v3961
    %v3963 = vlaneseq
    %v3964 = vshrl.u32 %v3963, 7
    %v3965 = vsub.s32 0, %v3964
    %v3966 = vrot.slane %v3568, %v3965
    %v3967 = vlaneseq
    %v3968 = vshrl.u32 %v3967, 7
    %v3969 = vsub.s32 1, %v3968
    %v3970 = vrot.slane %v3568, %v3969
    %v3971 = vlaneseq
    %v3972 = vshrl.u32 %v3971, 7
    %v3973 = vsub.s32 0, %v3972
    %v3974 = vrot.slane %v3570, %v3973
    %v3975 = vlaneseq
    %v3976 = vshrl.u32 %v3975, 7
    %v3977 = vsub.s32 1, %v3976
    %v3978 = vrot.slane %v3570, %v3977
    %v3979 = vlaneseq
    %v3980 = vshrl.u32 %v3979, 7
    %v3981 = vsub.s32 0, %v3980
    %v3982 = vrot.slane %v3572, %v3981
    %v3983 = vlaneseq
    %v3984 = vshrl.u32 %v3983, 7
    %v3985 = vsub.s32 1, %v3984
    %v3986 = vrot.slane %v3572, %v3985
    %v3987 = vlaneseq
    %v3988 = vshrl.u32 %v3987, 7
    %v3989 = vsub.s32 0, %v3988
    %v3990 = vrot.slane %v3597, %v3989
    %v3991 = vlaneseq
    %v3992 = vshrl.u32 %v3991, 7
    %v3993 = vsub.s32 1, %v3992
    %v3994 = vrot.slane %v3597, %v3993
    %v3995 = vlaneseq
    %v3996 = vshrl.u32 %v3995, 7
    %v3997 = vsub.s32 0, %v3996
    %v3998 = vrot.slane %v3611, %v3997
    %v3999 = vlaneseq
    %v4000 = vshrl.u32 %v3999, 7
    %v4001 = vsub.s32 1, %v4000
    %v4002 = vrot.slane %v3611, %v4001
    %v4003 = vlaneseq
    %v4004 = vshrl.u32 %v4003, 7
    %v4005 = vsub.s32 0, %v4004
    %v4006 = vrot.slane %v3619, %v4005
    %v4007 = vlaneseq
    %v4008 = vshrl.u32 %v4007, 7
    %v4009 = vsub.s32 1, %v4008
    %v4010 = vrot.slane %v3619, %v4009
    %v4011 = vlaneseq
    %v4012 = vshrl.u32 %v4011, 7
    %v4013 = vsub.s32 0, %v4012
    %v4014 = vrot.slane %v3621, %v4013
    %v4015 = vlaneseq
    %v4016 = vshrl.u32 %v4015, 7
    %v4017 = vsub.s32 1, %v4016
    %v4018 = vrot.slane %v3621, %v4017
    %v4019 = vlaneseq
    %v4020 = vshrl.u32 %v4019, 7
    %v4021 = vsub.s32 0, %v4020
    %v4022 = vrot.slane %v3604, %v4021
    %v4023 = vlaneseq
    %v4024 = vshrl.u32 %v4023, 7
    %v4025 = vsub.s32 1, %v4024
    %v4026 = vrot.slane %v3604, %v4025
    %v4027 = vlaneseq
    %v4028 = vshrl.u32 %v4027, 7
    %v4029 = vsub.s32 0, %v4028
    %v4030 = vrot.slane %v3618, %v4029
    %v4031 = vlaneseq
    %v4032 = vshrl.u32 %v4031, 7
    %v4033 = vsub.s32 1, %v4032
    %v4034 = vrot.slane %v3618, %v4033
    %v4035 = vlaneseq
    %v4036 = vshrl.u32 %v4035, 7
    %v4037 = vsub.s32 0, %v4036
    %v4038 = vrot.slane %v3620, %v4037
    %v4039 = vlaneseq
    %v4040 = vshrl.u32 %v4039, 7
    %v4041 = vsub.s32 1, %v4040
    %v4042 = vrot.slane %v3620, %v4041
    %v4043 = vlaneseq
    %v4044 = vshrl.u32 %v4043, 7
    %v4045 = vsub.s32 0, %v4044
    %v4046 = vrot.slane %v3622, %v4045
    %v4047 = vlaneseq
    %v4048 = vshrl.u32 %v4047, 7
    %v4049 = vsub.s32 1, %v4048
    %v4050 = vrot.slane %v3622, %v4049
    %v4051 = vlaneseq
    %v4052 = vshrl.u32 %v4051, 7
    %v4053 = vsub.s32 0, %v4052
    %v4054 = vrot.slane %v3647, %v4053
    %v4055 = vlaneseq
    %v4056 = vshrl.u32 %v4055, 7
    %v4057 = vsub.s32 1, %v4056
    %v4058 = vrot.slane %v3647, %v4057
    %v4059 = vlaneseq
    %v4060 = vshrl.u32 %v4059, 7
    %v4061 = vsub.s32 0, %v4060
    %v4062 = vrot.slane %v3661, %v4061
    %v4063 = vlaneseq
    %v4064 = vshrl.u32 %v4063, 7
    %v4065 = vsub.s32 1, %v4064
    %v4066 = vrot.slane %v3661, %v4065
    %v4067 = vlaneseq
    %v4068 = vshrl.u32 %v4067, 7
    %v4069 = vsub.s32 0, %v4068
    %v4070 = vrot.slane %v3669, %v4069
    %v4071 = vlaneseq
    %v4072 = vshrl.u32 %v4071, 7
    %v4073 = vsub.s32 1, %v4072
    %v4074 = vrot.slane %v3669, %v4073
    %v4075 = vlaneseq
    %v4076 = vshrl.u32 %v4075, 7
    %v4077 = vsub.s32 0, %v4076
    %v4078 = vrot.slane %v3671, %v4077
    %v4079 = vlaneseq
    %v4080 = vshrl.u32 %v4079, 7
    %v4081 = vsub.s32 1, %v4080
    %v4082 = vrot.slane %v3671, %v4081
    %v4083 = vlaneseq
    %v4084 = vshrl.u32 %v4083, 7
    %v4085 = vsub.s32 0, %v4084
    %v4086 = vrot.slane %v3654, %v4085
    %v4087 = vlaneseq
    %v4088 = vshrl.u32 %v4087, 7
    %v4089 = vsub.s32 1, %v4088
    %v4090 = vrot.slane %v3654, %v4089
    %v4091 = vlaneseq
    %v4092 = vshrl.u32 %v4091, 7
    %v4093 = vsub.s32 0, %v4092
    %v4094 = vrot.slane %v3668, %v4093
    %v4095 = vlaneseq
    %v4096 = vshrl.u32 %v4095, 7
    %v4097 = vsub.s32 1, %v4096
    %v4098 = vrot.slane %v3668, %v4097
    %v4099 = vlaneseq
    %v4100 = vshrl.u32 %v4099, 7
    %v4101 = vsub.s32 0, %v4100
    %v4102 = vrot.slane %v3670, %v4101
    %v4103 = vlaneseq
    %v4104 = vshrl.u32 %v4103, 7
    %v4105 = vsub.s32 1, %v4104
    %v4106 = vrot.slane %v3670, %v4105
    %v4107 = vlaneseq
    %v4108 = vshrl.u32 %v4107, 7
    %v4109 = vsub.s32 0, %v4108
    %v4110 = vrot.slane %v3672, %v4109
    %v4111 = vlaneseq
    %v4112 = vshrl.u32 %v4111, 7
    %v4113 = vsub.s32 1, %v4112
    %v4114 = vrot.slane %v3672, %v4113
    %v4115 = vlaneseq
    %v4116 = vshrl.u32 %v4115, 7
    %v4117 = vsub.s32 0, %v4116
    %v4118 = vrot.slane %v3697, %v4117
    %v4119 = vlaneseq
    %v4120 = vshrl.u32 %v4119, 7
    %v4121 = vsub.s32 1, %v4120
    %v4122 = vrot.slane %v3697, %v4121
    %v4123 = vlaneseq
    %v4124 = vshrl.u32 %v4123, 7
    %v4125 = vsub.s32 0, %v4124
    %v4126 = vrot.slane %v3711, %v4125
    %v4127 = vlaneseq
    %v4128 = vshrl.u32 %v4127, 7
    %v4129 = vsub.s32 1, %v4128
    %v4130 = vrot.slane %v3711, %v4129
    %v4131 = vlaneseq
    %v4132 = vshrl.u32 %v4131, 7
    %v4133 = vsub.s32 0, %v4132
    %v4134 = vrot.slane %v3719, %v4133
    %v4135 = vlaneseq
    %v4136 = vshrl.u32 %v4135, 7
    %v4137 = vsub.s32 1, %v4136
    %v4138 = vrot.slane %v3719, %v4137
    %v4139 = vlaneseq
    %v4140 = vshrl.u32 %v4139, 7
    %v4141 = vsub.s32 0, %v4140
    %v4142 = vrot.slane %v3721, %v4141
    %v4143 = vlaneseq
    %v4144 = vshrl.u32 %v4143, 7
    %v4145 = vsub.s32 1, %v4144
    %v4146 = vrot.slane %v3721, %v4145
    %v4147 = vlaneseq
    %v4148 = vshrl.u32 %v4147, 7
    %v4149 = vsub.s32 0, %v4148
    %v4150 = vrot.slane %v3704, %v4149
    %v4151 = vlaneseq
    %v4152 = vshrl.u32 %v4151, 7
    %v4153 = vsub.s32 1, %v4152
    %v4154 = vrot.slane %v3704, %v4153
    %v4155 = vlaneseq
    %v4156 = vshrl.u32 %v4155, 7
    %v4157 = vsub.s32 0, %v4156
    %v4158 = vrot.slane %v3718, %v4157
    %v4159 = vlaneseq
    %v4160 = vshrl.u32 %v4159, 7
    %v4161 = vsub.s32 1, %v4160
    %v4162 = vrot.slane %v3718, %v4161
    %v4163 = vlaneseq
    %v4164 = vshrl.u32 %v4163, 7
    %v4165 = vsub.s32 0, %v4164
    %v4166 = vrot.slane %v3720, %v4165
    %v4167 = vlaneseq
    %v4168 = vshrl.u32 %v4167, 7
    %v4169 = vsub.s32 1, %v4168
    %v4170 = vrot.slane %v3720, %v4169
    %v4171 = vlaneseq
    %v4172 = vshrl.u32 %v4171, 7
    %v4173 = vsub.s32 0, %v4172
    %v4174 = vrot.slane %v3722, %v4173
    %v4175 = vlaneseq
    %v4176 = vshrl.u32 %v4175, 7
    %v4177 = vsub.s32 1, %v4176
    %v4178 = vrot.slane %v3722, %v4177
    %v4179 = vlaneseq
    %v4180 = vshrl.u32 %v4179, 7
    %v4181 = vsub.s32 0, %v4180
    %v4182 = vrot.slane %v3747, %v4181
    %v4183 = vlaneseq
    %v4184 = vshrl.u32 %v4183, 7
    %v4185 = vsub.s32 1, %v4184
    %v4186 = vrot.slane %v3747, %v4185
    %v4187 = vlaneseq
    %v4188 = vshrl.u32 %v4187, 7
    %v4189 = vsub.s32 0, %v4188
    %v4190 = vrot.slane %v3761, %v4189
    %v4191 = vlaneseq
    %v4192 = vshrl.u32 %v4191, 7
    %v4193 = vsub.s32 1, %v4192
    %v4194 = vrot.slane %v3761, %v4193
    %v4195 = vlaneseq
    %v4196 = vshrl.u32 %v4195, 7
    %v4197 = vsub.s32 0, %v4196
    %v4198 = vrot.slane %v3769, %v4197
    %v4199 = vlaneseq
    %v4200 = vshrl.u32 %v4199, 7
    %v4201 = vsub.s32 1, %v4200
    %v4202 = vrot.slane %v3769, %v4201
    %v4203 = vlaneseq
    %v4204 = vshrl.u32 %v4203, 7
    %v4205 = vsub.s32 0, %v4204
    %v4206 = vrot.slane %v3771, %v4205
    %v4207 = vlaneseq
    %v4208 = vshrl.u32 %v4207, 7
    %v4209 = vsub.s32 1, %v4208
    %v4210 = vrot.slane %v3771, %v4209
    %v4211 = vlaneseq
    %v4212 = vshrl.u32 %v4211, 7
    %v4213 = vsub.s32 0, %v4212
    %v4214 = vrot.slane %v3754, %v4213
    %v4215 = vlaneseq
    %v4216 = vshrl.u32 %v4215, 7
    %v4217 = vsub.s32 1, %v4216
    %v4218 = vrot.slane %v3754, %v4217
    %v4219 = vlaneseq
    %v4220 = vshrl.u32 %v4219, 7
    %v4221 = vsub.s32 0, %v4220
    %v4222 = vrot.slane %v3768, %v4221
    %v4223 = vlaneseq
    %v4224 = vshrl.u32 %v4223, 7
    %v4225 = vsub.s32 1, %v4224
    %v4226 = vrot.slane %v3768, %v4225
    %v4227 = vlaneseq
    %v4228 = vshrl.u32 %v4227, 7
    %v4229 = vsub.s32 0, %v4228
    %v4230 = vrot.slane %v3770, %v4229
    %v4231 = vlaneseq
    %v4232 = vshrl.u32 %v4231, 7
    %v4233 = vsub.s32 1, %v4232
    %v4234 = vrot.slane %v3770, %v4233
    %v4235 = vlaneseq
    %v4236 = vshrl.u32 %v4235, 7
    %v4237 = vsub.s32 0, %v4236
    %v4238 = vrot.slane %v3772, %v4237
    %v4239 = vlaneseq
    %v4240 = vshrl.u32 %v4239, 7
    %v4241 = vsub.s32 1, %v4240
    %v4242 = vrot.slane %v3772, %v4241
    %v4243 = vlaneseq
    %v4244 = vshrl.u32 %v4243, 7
    %v4245 = vsub.s32 0, %v4244
    %v4246 = vrot.slane %v3797, %v4245
    %v4247 = vlaneseq
    %v4248 = vshrl.u32 %v4247, 7
    %v4249 = vsub.s32 1, %v4248
    %v4250 = vrot.slane %v3797, %v4249
    %v4251 = vlaneseq
    %v4252 = vshrl.u32 %v4251, 7
    %v4253 = vsub.s32 0, %v4252
    %v4254 = vrot.slane %v3811, %v4253
    %v4255 = vlaneseq
    %v4256 = vshrl.u32 %v4255, 7
    %v4257 = vsub.s32 1, %v4256
    %v4258 = vrot.slane %v3811, %v4257
    %v4259 = vlaneseq
    %v4260 = vshrl.u32 %v4259, 7
    %v4261 = vsub.s32 0, %v4260
    %v4262 = vrot.slane %v3819, %v4261
    %v4263 = vlaneseq
    %v4264 = vshrl.u32 %v4263, 7
    %v4265 = vsub.s32 1, %v4264
    %v4266 = vrot.slane %v3819, %v4265
    %v4267 = vlaneseq
    %v4268 = vshrl.u32 %v4267, 7
    %v4269 = vsub.s32 0, %v4268
    %v4270 = vrot.slane %v3821, %v4269
    %v4271 = vlaneseq
    %v4272 = vshrl.u32 %v4271, 7
    %v4273 = vsub.s32 1, %v4272
    %v4274 = vrot.slane %v3821, %v4273
    %v4275 = vlaneseq
    %v4276 = vshrl.u32 %v4275, 7
    %v4277 = vsub.s32 0, %v4276
    %v4278 = vrot.slane %v3804, %v4277
    %v4279 = vlaneseq
    %v4280 = vshrl.u32 %v4279, 7
    %v4281 = vsub.s32 1, %v4280
    %v4282 = vrot.slane %v3804, %v4281
    %v4283 = vlaneseq
    %v4284 = vshrl.u32 %v4283, 7
    %v4285 = vsub.s32 0, %v4284
    %v4286 = vrot.slane %v3818, %v4285
    %v4287 = vlaneseq
    %v4288 = vshrl.u32 %v4287, 7
    %v4289 = vsub.s32 1, %v4288
    %v4290 = vrot.slane %v3818, %v4289
    %v4291 = vlaneseq
    %v4292 = vshrl.u32 %v4291, 7
    %v4293 = vsub.s32 0, %v4292
    %v4294 = vrot.slane %v3820, %v4293
    %v4295 = vlaneseq
    %v4296 = vshrl.u32 %v4295, 7
    %v4297 = vsub.s32 1, %v4296
    %v4298 = vrot.slane %v3820, %v4297
    %v4299 = vlaneseq
    %v4300 = vshrl.u32 %v4299, 7
    %v4301 = vsub.s32 0, %v4300
    %v4302 = vrot.slane %v3822, %v4301
    %v4303 = vlaneseq
    %v4304 = vshrl.u32 %v4303, 7
    %v4305 = vsub.s32 1, %v4304
    %v4306 = vrot.slane %v3822, %v4305
    %v4307 = vlaneseq
    %v4308 = vshrl.u32 %v4307, 7
    %v4309 = vsub.s32 0, %v4308
    %v4310 = vrot.slane %v3847, %v4309
    %v4311 = vlaneseq
    %v4312 = vshrl.u32 %v4311, 7
    %v4313 = vsub.s32 1, %v4312
    %v4314 = vrot.slane %v3847, %v4313
    %v4315 = vlaneseq
    %v4316 = vshrl.u32 %v4315, 7
    %v4317 = vsub.s32 0, %v4316
    %v4318 = vrot.slane %v3861, %v4317
    %v4319 = vlaneseq
    %v4320 = vshrl.u32 %v4319, 7
    %v4321 = vsub.s32 1, %v4320
    %v4322 = vrot.slane %v3861, %v4321
    %v4323 = vlaneseq
    %v4324 = vshrl.u32 %v4323, 7
    %v4325 = vsub.s32 0, %v4324
    %v4326 = vrot.slane %v3869, %v4325
    %v4327 = vlaneseq
    %v4328 = vshrl.u32 %v4327, 7
    %v4329 = vsub.s32 1, %v4328
    %v4330 = vrot.slane %v3869, %v4329
    %v4331 = vlaneseq
    %v4332 = vshrl.u32 %v4331, 7
    %v4333 = vsub.s32 0, %v4332
    %v4334 = vrot.slane %v3871, %v4333
    %v4335 = vlaneseq
    %v4336 = vshrl.u32 %v4335, 7
    %v4337 = vsub.s32 1, %v4336
    %v4338 = vrot.slane %v3871, %v4337
    %v4339 = vlaneseq
    %v4340 = vshrl.u32 %v4339, 7
    %v4341 = vsub.s32 0, %v4340
    %v4342 = vrot.slane %v3854, %v4341
    %v4343 = vlaneseq
    %v4344 = vshrl.u32 %v4343, 7
    %v4345 = vsub.s32 1, %v4344
    %v4346 = vrot.slane %v3854, %v4345
    %v4347 = vlaneseq
    %v4348 = vshrl.u32 %v4347, 7
    %v4349 = vsub.s32 0, %v4348
    %v4350 = vrot.slane %v3868, %v4349
    %v4351 = vlaneseq
    %v4352 = vshrl.u32 %v4351, 7
    %v4353 = vsub.s32 1, %v4352
    %v4354 = vrot.slane %v3868, %v4353
    %v4355 = vlaneseq
    %v4356 = vshrl.u32 %v4355, 7
    %v4357 = vsub.s32 0, %v4356
    %v4358 = vrot.slane %v3870, %v4357
    %v4359 = vlaneseq
    %v4360 = vshrl.u32 %v4359, 7
    %v4361 = vsub.s32 1, %v4360
    %v4362 = vrot.slane %v3870, %v4361
    %v4363 = vlaneseq
    %v4364 = vshrl.u32 %v4363, 7
    %v4365 = vsub.s32 0, %v4364
    %v4366 = vrot.slane %v3872, %v4365
    %v4367 = vlaneseq
    %v4368 = vshrl.u32 %v4367, 7
    %v4369 = vsub.s32 1, %v4368
    %v4370 = vrot.slane %v3872, %v4369
    %v4371 = vlaneseq
    %v4372 = vshrl.u32 %v4371, 7
    %v4373 = vsub.s32 0, %v4372
    %v4374 = vrot.slane %v3897, %v4373
    %v4375 = vlaneseq
    %v4376 = vshrl.u32 %v4375, 7
    %v4377 = vsub.s32 1, %v4376
    %v4378 = vrot.slane %v3897, %v4377
    %v4379 = vlaneseq
    %v4380 = vshrl.u32 %v4379, 7
    %v4381 = vsub.s32 0, %v4380
    %v4382 = vrot.slane %v3911, %v4381
    %v4383 = vlaneseq
    %v4384 = vshrl.u32 %v4383, 7
    %v4385 = vsub.s32 1, %v4384
    %v4386 = vrot.slane %v3911, %v4385
    %v4387 = vlaneseq
    %v4388 = vshrl.u32 %v4387, 7
    %v4389 = vsub.s32 0, %v4388
    %v4390 = vrot.slane %v3919, %v4389
    %v4391 = vlaneseq
    %v4392 = vshrl.u32 %v4391, 7
    %v4393 = vsub.s32 1, %v4392
    %v4394 = vrot.slane %v3919, %v4393
    %v4395 = vlaneseq
    %v4396 = vshrl.u32 %v4395, 7
    %v4397 = vsub.s32 0, %v4396
    %v4398 = vrot.slane %v3921, %v4397
    %v4399 = vlaneseq
    %v4400 = vshrl.u32 %v4399, 7
    %v4401 = vsub.s32 1, %v4400
    %v4402 = vrot.slane %v3921, %v4401
    %v4403 = vlaneseq
    %v4404 = vshrl.u32 %v4403, 7
    %v4405 = vsub.s32 0, %v4404
    %v4406 = vrot.slane %v3904, %v4405
    %v4407 = vlaneseq
    %v4408 = vshrl.u32 %v4407, 7
    %v4409 = vsub.s32 1, %v4408
    %v4410 = vrot.slane %v3904, %v4409
    %v4411 = vlaneseq
    %v4412 = vshrl.u32 %v4411, 7
    %v4413 = vsub.s32 0, %v4412
    %v4414 = vrot.slane %v3918, %v4413
    %v4415 = vlaneseq
    %v4416 = vshrl.u32 %v4415, 7
    %v4417 = vsub.s32 1, %v4416
    %v4418 = vrot.slane %v3918, %v4417
    %v4419 = vlaneseq
    %v4420 = vshrl.u32 %v4419, 7
    %v4421 = vsub.s32 0, %v4420
    %v4422 = vrot.slane %v3920, %v4421
    %v4423 = vlaneseq
    %v4424 = vshrl.u32 %v4423, 7
    %v4425 = vsub.s32 1, %v4424
    %v4426 = vrot.slane %v3920, %v4425
    %v4427 = vlaneseq
    %v4428 = vshrl.u32 %v4427, 7
    %v4429 = vsub.s32 0, %v4428
    %v4430 = vrot.slane %v3922, %v4429
    %v4431 = vlaneseq
    %v4432 = vshrl.u32 %v4431, 7
    %v4433 = vsub.s32 1, %v4432
    %v4434 = vrot.slane %v3922, %v4433
    %v4563 = vadd.f32 %v3239, %v3926
    %v4564 = vadd.f32 %v3241, %v3930
    %v4565 = vadd.f32 %v3243, %v3926
    %v4566 = vadd.f32 %v3245, %v3930
    %v4567 = vadd.f32 %v3239, %v3934
    %v4568 = vadd.f32 %v3241, %v3938
    %v4569 = vadd.f32 %v3243, %v3934
    %v4570 = vadd.f32 %v3245, %v3938
    %v4571 = vadd.f32 %v3239, %v3942
    %v4572 = vadd.f32 %v3241, %v3946
    %v4573 = vadd.f32 %v3243, %v3942
    %v4574 = vadd.f32 %v3245, %v3946
    %v4575 = vadd.f32 %v3239, %v3950
    %v4576 = vadd.f32 %v3241, %v3954
    %v4577 = vadd.f32 %v3243, %v3950
    %v4578 = vadd.f32 %v3245, %v3954
    %v4579 = vadd.f32 %v3239, %v3958
    %v4580 = vadd.f32 %v3241, %v3962
    %v4581 = vadd.f32 %v3243, %v3958
    %v4582 = vadd.f32 %v3245, %v3962
    %v4583 = vadd.f32 %v3239, %v3966
    %v4584 = vadd.f32 %v3241, %v3970
    %v4585 = vadd.f32 %v3243, %v3966
    %v4586 = vadd.f32 %v3245, %v3970
    %v4587 = vadd.f32 %v3239, %v3974
    %v4588 = vadd.f32 %v3241, %v3978
    %v4589 = vadd.f32 %v3243, %v3974
    %v4590 = vadd.f32 %v3245, %v3978
    %v4591 = vadd.f32 %v3239, %v3982
    %v4592 = vadd.f32 %v3241, %v3986
    %v4593 = vadd.f32 %v3243, %v3982
    %v4594 = vadd.f32 %v3245, %v3986
    %v4595 = vadd.f32 %v3239, %v3990
    %v4596 = vadd.f32 %v3241, %v3994
    %v4597 = vadd.f32 %v3243, %v3990
    %v4598 = vadd.f32 %v3245, %v3994
    %v4599 = vadd.f32 %v3239, %v3998
    %v4600 = vadd.f32 %v3241, %v4002
    %v4601 = vadd.f32 %v3243, %v3998
    %v4602 = vadd.f32 %v3245, %v4002
    %v4603 = vadd.f32 %v3239, %v4006
    %v4604 = vadd.f32 %v3241, %v4010
    %v4605 = vadd.f32 %v3243, %v4006
    %v4606 = vadd.f32 %v3245, %v4010
    %v4607 = vadd.f32 %v3239, %v4014
    %v4608 = vadd.f32 %v3241, %v4018
    %v4609 = vadd.f32 %v3243, %v4014
    %v4610 = vadd.f32 %v3245, %v4018
    %v4611 = vadd.f32 %v3239, %v4022
    %v4612 = vadd.f32 %v3241, %v4026
    %v4613 = vadd.f32 %v3243, %v4022
    %v4614 = vadd.f32 %v3245, %v4026
    %v4615 = vadd.f32 %v3239, %v4030
    %v4616 = vadd.f32 %v3241, %v4034
    %v4617 = vadd.f32 %v3243, %v4030
    %v4618 = vadd.f32 %v3245, %v4034
    %v4619 = vadd.f32 %v3239, %v4038
    %v4620 = vadd.f32 %v3241, %v4042
    %v4621 = vadd.f32 %v3243, %v4038
    %v4622 = vadd.f32 %v3245, %v4042
    %v4623 = vadd.f32 %v3239, %v4046
    %v4624 = vadd.f32 %v3241, %v4050
    %v4625 = vadd.f32 %v3243, %v4046
    %v4626 = vadd.f32 %v3245, %v4050
    %v4627 = vadd.f32 %v3249, %v4054
    %v4628 = vadd.f32 %v3251, %v4058
    %v4629 = vadd.f32 %v3253, %v4054
    %v4630 = vadd.f32 %v3255, %v4058
    %v4631 = vadd.f32 %v3249, %v4062
    %v4632 = vadd.f32 %v3251, %v4066
    %v4633 = vadd.f32 %v3253, %v4062
    %v4634 = vadd.f32 %v3255, %v4066
    %v4635 = vadd.f32 %v3249, %v4070
    %v4636 = vadd.f32 %v3251, %v4074
    %v4637 = vadd.f32 %v3253, %v4070
    %v4638 = vadd.f32 %v3255, %v4074
    %v4639 = vadd.f32 %v3249, %v4078
    %v4640 = vadd.f32 %v3251, %v4082
    %v4641 = vadd.f32 %v3253, %v4078
    %v4642 = vadd.f32 %v3255, %v4082
    %v4643 = vadd.f32 %v3249, %v4086
    %v4644 = vadd.f32 %v3251, %v4090
    %v4645 = vadd.f32 %v3253, %v4086
    %v4646 = vadd.f32 %v3255, %v4090
    %v4647 = vadd.f32 %v3249, %v4094
    %v4648 = vadd.f32 %v3251, %v4098
    %v4649 = vadd.f32 %v3253, %v4094
    %v4650 = vadd.f32 %v3255, %v4098
    %v4651 = vadd.f32 %v3249, %v4102
    %v4652 = vadd.f32 %v3251, %v4106
    %v4653 = vadd.f32 %v3253, %v4102
    %v4654 = vadd.f32 %v3255, %v4106
    %v4655 = vadd.f32 %v3249, %v4110
    %v4656 = vadd.f32 %v3251, %v4114
    %v4657 = vadd.f32 %v3253, %v4110
    %v4658 = vadd.f32 %v3255, %v4114
    %v4659 = vadd.f32 %v3249, %v4118
    %v4660 = vadd.f32 %v3251, %v4122
    %v4661 = vadd.f32 %v3253, %v4118
    %v4662 = vadd.f32 %v3255, %v4122
    %v4663 = vadd.f32 %v3249, %v4126
    %v4664 = vadd.f32 %v3251, %v4130
    %v4665 = vadd.f32 %v3253, %v4126
    %v4666 = vadd.f32 %v3255, %v4130
    %v4667 = vadd.f32 %v3249, %v4134
    %v4668 = vadd.f32 %v3251, %v4138
    %v4669 = vadd.f32 %v3253, %v4134
    %v4670 = vadd.f32 %v3255, %v4138
    %v4671 = vadd.f32 %v3249, %v4142
    %v4672 = vadd.f32 %v3251, %v4146
    %v4673 = vadd.f32 %v3253, %v4142
    %v4674 = vadd.f32 %v3255, %v4146
    %v4675 = vadd.f32 %v3249, %v4150
    %v4676 = vadd.f32 %v3251, %v4154
    %v4677 = vadd.f32 %v3253, %v4150
    %v4678 = vadd.f32 %v3255, %v4154
    %v4679 = vadd.f32 %v3249, %v4158
    %v4680 = vadd.f32 %v3251, %v4162
    %v4681 = vadd.f32 %v3253, %v4158
    %v4682 = vadd.f32 %v3255, %v4162
    %v4683 = vadd.f32 %v3249, %v4166
    %v4684 = vadd.f32 %v3251, %v4170
    %v4685 = vadd.f32 %v3253, %v4166
    %v4686 = vadd.f32 %v3255, %v4170
    %v4687 = vadd.f32 %v3249, %v4174
    %v4688 = vadd.f32 %v3251, %v4178
    %v4689 = vadd.f32 %v3253, %v4174
    %v4690 = vadd.f32 %v3255, %v4178
    %v4691 = vadd.f32 %v3259, %v4182
    %v4692 = vadd.f32 %v3261, %v4186
    %v4693 = vadd.f32 %v3263, %v4182
    %v4694 = vadd.f32 %v3265, %v4186
    %v4695 = vadd.f32 %v3259, %v4190
    %v4696 = vadd.f32 %v3261, %v4194
    %v4697 = vadd.f32 %v3263, %v4190
    %v4698 = vadd.f32 %v3265, %v4194
    %v4699 = vadd.f32 %v3259, %v4198
    %v4700 = vadd.f32 %v3261, %v4202
    %v4701 = vadd.f32 %v3263, %v4198
    %v4702 = vadd.f32 %v3265, %v4202
    %v4703 = vadd.f32 %v3259, %v4206
    %v4704 = vadd.f32 %v3261, %v4210
    %v4705 = vadd.f32 %v3263, %v4206
    %v4706 = vadd.f32 %v3265, %v4210
    %v4707 = vadd.f32 %v3259, %v4214
    %v4708 = vadd.f32 %v3261, %v4218
    %v4709 = vadd.f32 %v3263, %v4214
    %v4710 = vadd.f32 %v3265, %v4218
    %v4711 = vadd.f32 %v3259, %v4222
    %v4712 = vadd.f32 %v3261, %v4226
    %v4713 = vadd.f32 %v3263, %v4222
    %v4714 = vadd.f32 %v3265, %v4226
    %v4715 = vadd.f32 %v3259, %v4230
    %v4716 = vadd.f32 %v3261, %v4234
    %v4717 = vadd.f32 %v3263, %v4230
    %v4718 = vadd.f32 %v3265, %v4234
    %v4719 = vadd.f32 %v3259, %v4238
    %v4720 = vadd.f32 %v3261, %v4242
    %v4721 = vadd.f32 %v3263, %v4238
    %v4722 = vadd.f32 %v3265, %v4242
    %v4723 = vadd.f32 %v3259, %v4246
    %v4724 = vadd.f32 %v3261, %v4250
    %v4725 = vadd.f32 %v3263, %v4246
    %v4726 = vadd.f32 %v3265, %v4250
    %v4727 = vadd.f32 %v3259, %v4254
    %v4728 = vadd.f32 %v3261, %v4258
    %v4729 = vadd.f32 %v3263, %v4254
    %v4730 = vadd.f32 %v3265, %v4258
    %v4731 = vadd.f32 %v3259, %v4262
    %v4732 = vadd.f32 %v3261, %v4266
    %v4733 = vadd.f32 %v3263, %v4262
    %v4734 = vadd.f32 %v3265, %v4266
    %v4735 = vadd.f32 %v3259, %v4270
    %v4736 = vadd.f32 %v3261, %v4274
    %v4737 = vadd.f32 %v3263, %v4270
    %v4738 = vadd.f32 %v3265, %v4274
    %v4739 = vadd.f32 %v3259, %v4278
    %v4740 = vadd.f32 %v3261, %v4282
    %v4741 = vadd.f32 %v3263, %v4278
    %v4742 = vadd.f32 %v3265, %v4282
    %v4743 = vadd.f32 %v3259, %v4286
    %v4744 = vadd.f32 %v3261, %v4290
    %v4745 = vadd.f32 %v3263, %v4286
    %v4746 = vadd.f32 %v3265, %v4290
    %v4747 = vadd.f32 %v3259, %v4294
    %v4748 = vadd.f32 %v3261, %v4298
    %v4749 = vadd.f32 %v3263, %v4294
    %v4750 = vadd.f32 %v3265, %v4298
    %v4751 = vadd.f32 %v3259, %v4302
    %v4752 = vadd.f32 %v3261, %v4306
    %v4753 = vadd.f32 %v3263, %v4302
    %v4754 = vadd.f32 %v3265, %v4306
    %v4755 = vadd.f32 %v3269, %v4310
    %v4756 = vadd.f32 %v3271, %v4314
    %v4757 = vadd.f32 %v3273, %v4310
    %v4758 = vadd.f32 %v3275, %v4314
    %v4759 = vadd.f32 %v3269, %v4318
    %v4760 = vadd.f32 %v3271, %v4322
    %v4761 = vadd.f32 %v3273, %v4318
    %v4762 = vadd.f32 %v3275, %v4322
    %v4763 = vadd.f32 %v3269, %v4326
    %v4764 = vadd.f32 %v3271, %v4330
    %v4765 = vadd.f32 %v3273, %v4326
    %v4766 = vadd.f32 %v3275, %v4330
    %v4767 = vadd.f32 %v3269, %v4334
    %v4768 = vadd.f32 %v3271, %v4338
    %v4769 = vadd.f32 %v3273, %v4334
    %v4770 = vadd.f32 %v3275, %v4338
    %v4771 = vadd.f32 %v3269, %v4342
    %v4772 = vadd.f32 %v3271, %v4346
    %v4773 = vadd.f32 %v3273, %v4342
    %v4774 = vadd.f32 %v3275, %v4346
    %v4775 = vadd.f32 %v3269, %v4350
    %v4776 = vadd.f32 %v3271, %v4354
    %v4777 = vadd.f32 %v3273, %v4350
    %v4778 = vadd.f32 %v3275, %v4354
    %v4779 = vadd.f32 %v3269, %v4358
    %v4780 = vadd.f32 %v3271, %v4362
    %v4781 = vadd.f32 %v3273, %v4358
    %v4782 = vadd.f32 %v3275, %v4362
    %v4783 = vadd.f32 %v3269, %v4366
    %v4784 = vadd.f32 %v3271, %v4370
    %v4785 = vadd.f32 %v3273, %v4366
    %v4786 = vadd.f32 %v3275, %v4370
    %v4787 = vadd.f32 %v3269, %v4374
    %v4788 = vadd.f32 %v3271, %v4378
    %v4789 = vadd.f32 %v3273, %v4374
    %v4790 = vadd.f32 %v3275, %v4378
    %v4791 = vadd.f32 %v3269, %v4382
    %v4792 = vadd.f32 %v3271, %v4386
    %v4793 = vadd.f32 %v3273, %v4382
    %v4794 = vadd.f32 %v3275, %v4386
    %v4795 = vadd.f32 %v3269, %v4390
    %v4796 = vadd.f32 %v3271, %v4394
    %v4797 = vadd.f32 %v3273, %v4390
    %v4798 = vadd.f32 %v3275, %v4394
    %v4799 = vadd.f32 %v3269, %v4398
    %v4800 = vadd.f32 %v3271, %v4402
    %v4801 = vadd.f32 %v3273, %v4398
    %v4802 = vadd.f32 %v3275, %v4402
    %v4803 = vadd.f32 %v3269, %v4406
    %v4804 = vadd.f32 %v3271, %v4410
    %v4805 = vadd.f32 %v3273, %v4406
    %v4806 = vadd.f32 %v3275, %v4410
    %v4807 = vadd.f32 %v3269, %v4414
    %v4808 = vadd.f32 %v3271, %v4418
    %v4809 = vadd.f32 %v3273, %v4414
    %v4810 = vadd.f32 %v3275, %v4418
    %v4811 = vadd.f32 %v3269, %v4422
    %v4812 = vadd.f32 %v3271, %v4426
    %v4813 = vadd.f32 %v3273, %v4422
    %v4814 = vadd.f32 %v3275, %v4426
    %v4815 = vadd.f32 %v3269, %v4430
    %v4816 = vadd.f32 %v3271, %v4434
    %v4817 = vadd.f32 %v3273, %v4430
    %v4818 = vadd.f32 %v3275, %v4434
    %v4819 = vmax.f32 %v4563, 0.0
    %v4820 = vmax.f32 %v4564, 0.0
    %v4821 = vmax.f32 %v4565, 0.0
    %v4822 = vmax.f32 %v4566, 0.0
    %v4823 = vmax.f32 %v4567, 0.0
    %v4824 = vmax.f32 %v4568, 0.0
    %v4825 = vmax.f32 %v4569, 0.0
    %v4826 = vmax.f32 %v4570, 0.0
    %v4827 = vmax.f32 %v4571, 0.0
    %v4828 = vmax.f32 %v4572, 0.0
    %v4829 = vmax.f32 %v4573, 0.0
    %v4830 = vmax.f32 %v4574, 0.0
    %v4831 = vmax.f32 %v4575, 0.0
    %v4832 = vmax.f32 %v4576, 0.0
    %v4833 = vmax.f32 %v4577, 0.0
    %v4834 = vmax.f32 %v4578, 0.0
    %v4835 = vmax.f32 %v4579, 0.0
    %v4836 = vmax.f32 %v4580, 0.0
    %v4837 = vmax.f32 %v4581, 0.0
    %v4838 = vmax.f32 %v4582, 0.0
    %v4839 = vmax.f32 %v4583, 0.0
    %v4840 = vmax.f32 %v4584, 0.0
    %v4841 = vmax.f32 %v4585, 0.0
    %v4842 = vmax.f32 %v4586, 0.0
    %v4843 = vmax.f32 %v4587, 0.0
    %v4844 = vmax.f32 %v4588, 0.0
    %v4845 = vmax.f32 %v4589, 0.0
    %v4846 = vmax.f32 %v4590, 0.0
    %v4847 = vmax.f32 %v4591, 0.0
    %v4848 = vmax.f32 %v4592, 0.0
    %v4849 = vmax.f32 %v4593, 0.0
    %v4850 = vmax.f32 %v4594, 0.0
    %v4851 = vmax.f32 %v4595, 0.0
    %v4852 = vmax.f32 %v4596, 0.0
    %v4853 = vmax.f32 %v4597, 0.0
    %v4854 = vmax.f32 %v4598, 0.0
    %v4855 = vmax.f32 %v4599, 0.0
    %v4856 = vmax.f32 %v4600, 0.0
    %v4857 = vmax.f32 %v4601, 0.0
    %v4858 = vmax.f32 %v4602, 0.0
    %v4859 = vmax.f32 %v4603, 0.0
    %v4860 = vmax.f32 %v4604, 0.0
    %v4861 = vmax.f32 %v4605, 0.0
    %v4862 = vmax.f32 %v4606, 0.0
    %v4863 = vmax.f32 %v4607, 0.0
    %v4864 = vmax.f32 %v4608, 0.0
    %v4865 = vmax.f32 %v4609, 0.0
    %v4866 = vmax.f32 %v4610, 0.0
    %v4867 = vmax.f32 %v4611, 0.0
    %v4868 = vmax.f32 %v4612, 0.0
    %v4869 = vmax.f32 %v4613, 0.0
    %v4870 = vmax.f32 %v4614, 0.0
    %v4871 = vmax.f32 %v4615, 0.0
    %v4872 = vmax.f32 %v4616, 0.0
    %v4873 = vmax.f32 %v4617, 0.0
    %v4874 = vmax.f32 %v4618, 0.0
    %v4875 = vmax.f32 %v4619, 0.0
    %v4876 = vmax.f32 %v4620, 0.0
    %v4877 = vmax.f32 %v4621, 0.0
    %v4878 = vmax.f32 %v4622, 0.0
    %v4879 = vmax.f32 %v4623, 0.0
    %v4880 = vmax.f32 %v4624, 0.0
    %v4881 = vmax.f32 %v4625, 0.0
    %v4882 = vmax.f32 %v4626, 0.0
    %v4883 = vmax.f32 %v4627, 0.0
    %v4884 = vmax.f32 %v4628, 0.0
    %v4885 = vmax.f32 %v4629, 0.0
    %v4886 = vmax.f32 %v4630, 0.0
    %v4887 = vmax.f32 %v4631, 0.0
    %v4888 = vmax.f32 %v4632, 0.0
    %v4889 = vmax.f32 %v4633, 0.0
    %v4890 = vmax.f32 %v4634, 0.0
    %v4891 = vmax.f32 %v4635, 0.0
    %v4892 = vmax.f32 %v4636, 0.0
    %v4893 = vmax.f32 %v4637, 0.0
    %v4894 = vmax.f32 %v4638, 0.0
    %v4895 = vmax.f32 %v4639, 0.0
    %v4896 = vmax.f32 %v4640, 0.0
    %v4897 = vmax.f32 %v4641, 0.0
    %v4898 = vmax.f32 %v4642, 0.0
    %v4899 = vmax.f32 %v4643, 0.0
    %v4900 = vmax.f32 %v4644, 0.0
    %v4901 = vmax.f32 %v4645, 0.0
    %v4902 = vmax.f32 %v4646, 0.0
    %v4903 = vmax.f32 %v4647, 0.0
    %v4904 = vmax.f32 %v4648, 0.0
    %v4905 = vmax.f32 %v4649, 0.0
    %v4906 = vmax.f32 %v4650, 0.0
    %v4907 = vmax.f32 %v4651, 0.0
    %v4908 = vmax.f32 %v4652, 0.0
    %v4909 = vmax.f32 %v4653, 0.0
    %v4910 = vmax.f32 %v4654, 0.0
    %v4911 = vmax.f32 %v4655, 0.0
    %v4912 = vmax.f32 %v4656, 0.0
    %v4913 = vmax.f32 %v4657, 0.0
    %v4914 = vmax.f32 %v4658, 0.0
    %v4915 = vmax.f32 %v4659, 0.0
    %v4916 = vmax.f32 %v4660, 0.0
    %v4917 = vmax.f32 %v4661, 0.0
    %v4918 = vmax.f32 %v4662, 0.0
    %v4919 = vmax.f32 %v4663, 0.0
    %v4920 = vmax.f32 %v4664, 0.0
    %v4921 = vmax.f32 %v4665, 0.0
    %v4922 = vmax.f32 %v4666, 0.0
    %v4923 = vmax.f32 %v4667, 0.0
    %v4924 = vmax.f32 %v4668, 0.0
    %v4925 = vmax.f32 %v4669, 0.0
    %v4926 = vmax.f32 %v4670, 0.0
    %v4927 = vmax.f32 %v4671, 0.0
    %v4928 = vmax.f32 %v4672, 0.0
    %v4929 = vmax.f32 %v4673, 0.0
    %v4930 = vmax.f32 %v4674, 0.0
    %v4931 = vmax.f32 %v4675, 0.0
    %v4932 = vmax.f32 %v4676, 0.0
    %v4933 = vmax.f32 %v4677, 0.0
    %v4934 = vmax.f32 %v4678, 0.0
    %v4935 = vmax.f32 %v4679, 0.0
    %v4936 = vmax.f32 %v4680, 0.0
    %v4937 = vmax.f32 %v4681, 0.0
    %v4938 = vmax.f32 %v4682, 0.0
    %v4939 = vmax.f32 %v4683, 0.0
    %v4940 = vmax.f32 %v4684, 0.0
    %v4941 = vmax.f32 %v4685, 0.0
    %v4942 = vmax.f32 %v4686, 0.0
    %v4943 = vmax.f32 %v4687, 0.0
    %v4944 = vmax.f32 %v4688, 0.0
    %v4945 = vmax.f32 %v4689, 0.0
    %v4946 = vmax.f32 %v4690, 0.0
    %v4947 = vmax.f32 %v4691, 0.0
    %v4948 = vmax.f32 %v4692, 0.0
    %v4949 = vmax.f32 %v4693, 0.0
    %v4950 = vmax.f32 %v4694, 0.0
    %v4951 = vmax.f32 %v4695, 0.0
    %v4952 = vmax.f32 %v4696, 0.0
    %v4953 = vmax.f32 %v4697, 0.0
    %v4954 = vmax.f32 %v4698, 0.0
    %v4955 = vmax.f32 %v4699, 0.0
    %v4956 = vmax.f32 %v4700, 0.0
    %v4957 = vmax.f32 %v4701, 0.0
    %v4958 = vmax.f32 %v4702, 0.0
    %v4959 = vmax.f32 %v4703, 0.0
    %v4960 = vmax.f32 %v4704, 0.0
    %v4961 = vmax.f32 %v4705, 0.0
    %v4962 = vmax.f32 %v4706, 0.0
    %v4963 = vmax.f32 %v4707, 0.0
    %v4964 = vmax.f32 %v4708, 0.0
    %v4965 = vmax.f32 %v4709, 0.0
    %v4966 = vmax.f32 %v4710, 0.0
    %v4967 = vmax.f32 %v4711, 0.0
    %v4968 = vmax.f32 %v4712, 0.0
    %v4969 = vmax.f32 %v4713, 0.0
    %v4970 = vmax.f32 %v4714, 0.0
    %v4971 = vmax.f32 %v4715, 0.0
    %v4972 = vmax.f32 %v4716, 0.0
    %v4973 = vmax.f32 %v4717, 0.0
    %v4974 = vmax.f32 %v4718, 0.0
    %v4975 = vmax.f32 %v4719, 0.0
    %v4976 = vmax.f32 %v4720, 0.0
    %v4977 = vmax.f32 %v4721, 0.0
    %v4978 = vmax.f32 %v4722, 0.0
    %v4979 = vmax.f32 %v4723, 0.0
    %v4980 = vmax.f32 %v4724, 0.0
    %v4981 = vmax.f32 %v4725, 0.0
    %v4982 = vmax.f32 %v4726, 0.0
    %v4983 = vmax.f32 %v4727, 0.0
    %v4984 = vmax.f32 %v4728, 0.0
    %v4985 = vmax.f32 %v4729, 0.0
    %v4986 = vmax.f32 %v4730, 0.0
    %v4987 = vmax.f32 %v4731, 0.0
    %v4988 = vmax.f32 %v4732, 0.0
    %v4989 = vmax.f32 %v4733, 0.0
    %v4990 = vmax.f32 %v4734, 0.0
    %v4991 = vmax.f32 %v4735, 0.0
    %v4992 = vmax.f32 %v4736, 0.0
    %v4993 = vmax.f32 %v4737, 0.0
    %v4994 = vmax.f32 %v4738, 0.0
    %v4995 = vmax.f32 %v4739, 0.0
    %v4996 = vmax.f32 %v4740, 0.0
    %v4997 = vmax.f32 %v4741, 0.0
    %v4998 = vmax.f32 %v4742, 0.0
    %v4999 = vmax.f32 %v4743, 0.0
    %v5000 = vmax.f32 %v4744, 0.0
    %v5001 = vmax.f32 %v4745, 0.0
    %v5002 = vmax.f32 %v4746, 0.0
    %v5003 = vmax.f32 %v4747, 0.0
    %v5004 = vmax.f32 %v4748, 0.0
    %v5005 = vmax.f32 %v4749, 0.0
    %v5006 = vmax.f32 %v4750, 0.0
    %v5007 = vmax.f32 %v4751, 0.0
    %v5008 = vmax.f32 %v4752, 0.0
    %v5009 = vmax.f32 %v4753, 0.0
    %v5010 = vmax.f32 %v4754, 0.0
    %v5011 = vmax.f32 %v4755, 0.0
    %v5012 = vmax.f32 %v4756, 0.0
    %v5013 = vmax.f32 %v4757, 0.0
    %v5014 = vmax.f32 %v4758, 0.0
    %v5015 = vmax.f32 %v4759, 0.0
    %v5016 = vmax.f32 %v4760, 0.0
    %v5017 = vmax.f32 %v4761, 0.0
    %v5018 = vmax.f32 %v4762, 0.0
    %v5019 = vmax.f32 %v4763, 0.0
    %v5020 = vmax.f32 %v4764, 0.0
    %v5021 = vmax.f32 %v4765, 0.0
    %v5022 = vmax.f32 %v4766, 0.0
    %v5023 = vmax.f32 %v4767, 0.0
    %v5024 = vmax.f32 %v4768, 0.0
    %v5025 = vmax.f32 %v4769, 0.0
    %v5026 = vmax.f32 %v4770, 0.0
    %v5027 = vmax.f32 %v4771, 0.0
    %v5028 = vmax.f32 %v4772, 0.0
    %v5029 = vmax.f32 %v4773, 0.0
    %v5030 = vmax.f32 %v4774, 0.0
    %v5031 = vmax.f32 %v4775, 0.0
    %v5032 = vmax.f32 %v4776, 0.0
    %v5033 = vmax.f32 %v4777, 0.0
    %v5034 = vmax.f32 %v4778, 0.0
    %v5035 = vmax.f32 %v4779, 0.0
    %v5036 = vmax.f32 %v4780, 0.0
    %v5037 = vmax.f32 %v4781, 0.0
    %v5038 = vmax.f32 %v4782, 0.0
    %v5039 = vmax.f32 %v4783, 0.0
    %v5040 = vmax.f32 %v4784, 0.0
    %v5041 = vmax.f32 %v4785, 0.0
    %v5042 = vmax.f32 %v4786, 0.0
    %v5043 = vmax.f32 %v4787, 0.0
    %v5044 = vmax.f32 %v4788, 0.0
    %v5045 = vmax.f32 %v4789, 0.0
    %v5046 = vmax.f32 %v4790, 0.0
    %v5047 = vmax.f32 %v4791, 0.0
    %v5048 = vmax.f32 %v4792, 0.0
    %v5049 = vmax.f32 %v4793, 0.0
    %v5050 = vmax.f32 %v4794, 0.0
    %v5051 = vmax.f32 %v4795, 0.0
    %v5052 = vmax.f32 %v4796, 0.0
    %v5053 = vmax.f32 %v4797, 0.0
    %v5054 = vmax.f32 %v4798, 0.0
    %v5055 = vmax.f32 %v4799, 0.0
    %v5056 = vmax.f32 %v4800, 0.0
    %v5057 = vmax.f32 %v4801, 0.0
    %v5058 = vmax.f32 %v4802, 0.0
    %v5059 = vmax.f32 %v4803, 0.0
    %v5060 = vmax.f32 %v4804, 0.0
    %v5061 = vmax.f32 %v4805, 0.0
    %v5062 = vmax.f32 %v4806, 0.0
    %v5063 = vmax.f32 %v4807, 0.0
    %v5064 = vmax.f32 %v4808, 0.0
    %v5065 = vmax.f32 %v4809, 0.0
    %v5066 = vmax.f32 %v4810, 0.0
    %v5067 = vmax.f32 %v4811, 0.0
    %v5068 = vmax.f32 %v4812, 0.0
    %v5069 = vmax.f32 %v4813, 0.0
    %v5070 = vmax.f32 %v4814, 0.0
    %v5071 = vmax.f32 %v4815, 0.0
    %v5072 = vmax.f32 %v4816, 0.0
    %v5073 = vmax.f32 %v4817, 0.0
    %v5074 = vmax.f32 %v4818, 0.0
    %v5075 = vpack.c.bf16 %v4821, %v4819
    %v5076 = vpack.c.bf16 %v4822, %v4820
    %v5077 = vpack.c.bf16 %v4825, %v4823
    %v5078 = vpack.c.bf16 %v4826, %v4824
    %v5079 = vpack.c.bf16 %v4829, %v4827
    %v5080 = vpack.c.bf16 %v4830, %v4828
    %v5081 = vpack.c.bf16 %v4833, %v4831
    %v5082 = vpack.c.bf16 %v4834, %v4832
    %v5083 = vpack.c.bf16 %v4837, %v4835
    %v5084 = vpack.c.bf16 %v4838, %v4836
    %v5085 = vpack.c.bf16 %v4841, %v4839
    %v5086 = vpack.c.bf16 %v4842, %v4840
    %v5087 = vpack.c.bf16 %v4845, %v4843
    %v5088 = vpack.c.bf16 %v4846, %v4844
    %v5089 = vpack.c.bf16 %v4849, %v4847
    %v5090 = vpack.c.bf16 %v4850, %v4848
    %v5091 = vpack.c.bf16 %v4853, %v4851
    %v5092 = vpack.c.bf16 %v4854, %v4852
    %v5093 = vpack.c.bf16 %v4857, %v4855
    %v5094 = vpack.c.bf16 %v4858, %v4856
    %v5095 = vpack.c.bf16 %v4861, %v4859
    %v5096 = vpack.c.bf16 %v4862, %v4860
    %v5097 = vpack.c.bf16 %v4865, %v4863
    %v5098 = vpack.c.bf16 %v4866, %v4864
    %v5099 = vpack.c.bf16 %v4869, %v4867
    %v5100 = vpack.c.bf16 %v4870, %v4868
    %v5101 = vpack.c.bf16 %v4873, %v4871
    %v5102 = vpack.c.bf16 %v4874, %v4872
    %v5103 = vpack.c.bf16 %v4877, %v4875
    %v5104 = vpack.c.bf16 %v4878, %v4876
    %v5105 = vpack.c.bf16 %v4881, %v4879
    %v5106 = vpack.c.bf16 %v4882, %v4880
    %v5107 = vpack.c.bf16 %v4885, %v4883
    %v5108 = vpack.c.bf16 %v4886, %v4884
    %v5109 = vpack.c.bf16 %v4889, %v4887
    %v5110 = vpack.c.bf16 %v4890, %v4888
    %v5111 = vpack.c.bf16 %v4893, %v4891
    %v5112 = vpack.c.bf16 %v4894, %v4892
    %v5113 = vpack.c.bf16 %v4897, %v4895
    %v5114 = vpack.c.bf16 %v4898, %v4896
    %v5115 = vpack.c.bf16 %v4901, %v4899
    %v5116 = vpack.c.bf16 %v4902, %v4900
    %v5117 = vpack.c.bf16 %v4905, %v4903
    %v5118 = vpack.c.bf16 %v4906, %v4904
    %v5119 = vpack.c.bf16 %v4909, %v4907
    %v5120 = vpack.c.bf16 %v4910, %v4908
    %v5121 = vpack.c.bf16 %v4913, %v4911
    %v5122 = vpack.c.bf16 %v4914, %v4912
    %v5123 = vpack.c.bf16 %v4917, %v4915
    %v5124 = vpack.c.bf16 %v4918, %v4916
    %v5125 = vpack.c.bf16 %v4921, %v4919
    %v5126 = vpack.c.bf16 %v4922, %v4920
    %v5127 = vpack.c.bf16 %v4925, %v4923
    %v5128 = vpack.c.bf16 %v4926, %v4924
    %v5129 = vpack.c.bf16 %v4929, %v4927
    %v5130 = vpack.c.bf16 %v4930, %v4928
    %v5131 = vpack.c.bf16 %v4933, %v4931
    %v5132 = vpack.c.bf16 %v4934, %v4932
    %v5133 = vpack.c.bf16 %v4937, %v4935
    %v5134 = vpack.c.bf16 %v4938, %v4936
    %v5135 = vpack.c.bf16 %v4941, %v4939
    %v5136 = vpack.c.bf16 %v4942, %v4940
    %v5137 = vpack.c.bf16 %v4945, %v4943
    %v5138 = vpack.c.bf16 %v4946, %v4944
    %v5139 = vpack.c.bf16 %v4949, %v4947
    %v5140 = vpack.c.bf16 %v4950, %v4948
    %v5141 = vpack.c.bf16 %v4953, %v4951
    %v5142 = vpack.c.bf16 %v4954, %v4952
    %v5143 = vpack.c.bf16 %v4957, %v4955
    %v5144 = vpack.c.bf16 %v4958, %v4956
    %v5145 = vpack.c.bf16 %v4961, %v4959
    %v5146 = vpack.c.bf16 %v4962, %v4960
    %v5147 = vpack.c.bf16 %v4965, %v4963
    %v5148 = vpack.c.bf16 %v4966, %v4964
    %v5149 = vpack.c.bf16 %v4969, %v4967
    %v5150 = vpack.c.bf16 %v4970, %v4968
    %v5151 = vpack.c.bf16 %v4973, %v4971
    %v5152 = vpack.c.bf16 %v4974, %v4972
    %v5153 = vpack.c.bf16 %v4977, %v4975
    %v5154 = vpack.c.bf16 %v4978, %v4976
    %v5155 = vpack.c.bf16 %v4981, %v4979
    %v5156 = vpack.c.bf16 %v4982, %v4980
    %v5157 = vpack.c.bf16 %v4985, %v4983
    %v5158 = vpack.c.bf16 %v4986, %v4984
    %v5159 = vpack.c.bf16 %v4989, %v4987
    %v5160 = vpack.c.bf16 %v4990, %v4988
    %v5161 = vpack.c.bf16 %v4993, %v4991
    %v5162 = vpack.c.bf16 %v4994, %v4992
    %v5163 = vpack.c.bf16 %v4997, %v4995
    %v5164 = vpack.c.bf16 %v4998, %v4996
    %v5165 = vpack.c.bf16 %v5001, %v4999
    %v5166 = vpack.c.bf16 %v5002, %v5000
    %v5167 = vpack.c.bf16 %v5005, %v5003
    %v5168 = vpack.c.bf16 %v5006, %v5004
    %v5169 = vpack.c.bf16 %v5009, %v5007
    %v5170 = vpack.c.bf16 %v5010, %v5008
    %v5171 = vpack.c.bf16 %v5013, %v5011
    %v5172 = vpack.c.bf16 %v5014, %v5012
    %v5173 = vpack.c.bf16 %v5017, %v5015
    %v5174 = vpack.c.bf16 %v5018, %v5016
    %v5175 = vpack.c.bf16 %v5021, %v5019
    %v5176 = vpack.c.bf16 %v5022, %v5020
    %v5177 = vpack.c.bf16 %v5025, %v5023
    %v5178 = vpack.c.bf16 %v5026, %v5024
    %v5179 = vpack.c.bf16 %v5029, %v5027
    %v5180 = vpack.c.bf16 %v5030, %v5028
    %v5181 = vpack.c.bf16 %v5033, %v5031
    %v5182 = vpack.c.bf16 %v5034, %v5032
    %v5183 = vpack.c.bf16 %v5037, %v5035
    %v5184 = vpack.c.bf16 %v5038, %v5036
    %v5185 = vpack.c.bf16 %v5041, %v5039
    %v5186 = vpack.c.bf16 %v5042, %v5040
    %v5187 = vpack.c.bf16 %v5045, %v5043
    %v5188 = vpack.c.bf16 %v5046, %v5044
    %v5189 = vpack.c.bf16 %v5049, %v5047
    %v5190 = vpack.c.bf16 %v5050, %v5048
    %v5191 = vpack.c.bf16 %v5053, %v5051
    %v5192 = vpack.c.bf16 %v5054, %v5052
    %v5193 = vpack.c.bf16 %v5057, %v5055
    %v5194 = vpack.c.bf16 %v5058, %v5056
    %v5195 = vpack.c.bf16 %v5061, %v5059
    %v5196 = vpack.c.bf16 %v5062, %v5060
    %v5197 = vpack.c.bf16 %v5065, %v5063
    %v5198 = vpack.c.bf16 %v5066, %v5064
    %v5199 = vpack.c.bf16 %v5069, %v5067
    %v5200 = vpack.c.bf16 %v5070, %v5068
    %v5201 = vpack.c.bf16 %v5073, %v5071
    %v5202 = vpack.c.bf16 %v5074, %v5072
    %v5203 = vld [vmem:[#allocation7] sm:$0xff]
    %v5204 = vld [vmem:[#allocation7 + $0x8] sm:$0xff]
    %v5205 = vld [vmem:[#allocation7 + $0x10] sm:$0xff]
    %v5206 = vld [vmem:[#allocation7 + $0x18] sm:$0xff]
    %v5207 = vld [vmem:[#allocation7 + $0x20] sm:$0xff]
    %v5208 = vld [vmem:[#allocation7 + $0x28] sm:$0xff]
    %v5209 = vld [vmem:[#allocation7 + $0x30] sm:$0xff]
    %v5210 = vld [vmem:[#allocation7 + $0x38] sm:$0xff]
    %v5211 = vld [vmem:[#allocation7 + $0x40] sm:$0xff]
    %v5212 = vld [vmem:[#allocation7 + $0x48] sm:$0xff]
    %v5213 = vld [vmem:[#allocation7 + $0x50] sm:$0xff]
    %v5214 = vld [vmem:[#allocation7 + $0x58] sm:$0xff]
    %v5215 = vld [vmem:[#allocation7 + $0x60] sm:$0xff]
    %v5216 = vld [vmem:[#allocation7 + $0x68] sm:$0xff]
    %v5217 = vld [vmem:[#allocation7 + $0x70] sm:$0xff]
    %v5218 = vld [vmem:[#allocation7 + $0x78] sm:$0xff]
    %v5219 = vld [vmem:[#allocation7 + $0x80] sm:$0xff]
    %v5220 = vld [vmem:[#allocation7 + $0x88] sm:$0xff]
    %v5221 = vld [vmem:[#allocation7 + $0x90] sm:$0xff]
    %v5222 = vld [vmem:[#allocation7 + $0x98] sm:$0xff]
    %v5223 = vld [vmem:[#allocation7 + $0xa0] sm:$0xff]
    %v5224 = vld [vmem:[#allocation7 + $0xa8] sm:$0xff]
    %v5225 = vld [vmem:[#allocation7 + $0xb0] sm:$0xff]
    %v5226 = vld [vmem:[#allocation7 + $0xb8] sm:$0xff]
    %v5227 = vld [vmem:[#allocation7 + $0xc0] sm:$0xff]
    %v5228 = vld [vmem:[#allocation7 + $0xc8] sm:$0xff]
    %v5229 = vld [vmem:[#allocation7 + $0xd0] sm:$0xff]
    %v5230 = vld [vmem:[#allocation7 + $0xd8] sm:$0xff]
    %v5231 = vld [vmem:[#allocation7 + $0xe0] sm:$0xff]
    %v5232 = vld [vmem:[#allocation7 + $0xe8] sm:$0xff]
    %v5233 = vld [vmem:[#allocation7 + $0xf0] sm:$0xff]
    %v5234 = vld [vmem:[#allocation7 + $0xf8] sm:$0xff]
    %v5235 = vld [vmem:[%s14] sm:$0x3]
    %v5237 = vlaneseq
    %v5238 = vshrl.u32 %v5237, 7
    %v5239 = vsub.s32 0, %v5238
    %v5240 = vrot.slane %v5235, %v5239
    %v5241 = vlaneseq
    %v5242 = vshrl.u32 %v5241, 7
    %v5243 = vsub.s32 1, %v5242
    %v5244 = vrot.slane %v5235, %v5243
    %v5279 = vunpack.c.l.b16 %v5203
    %v5280 = vunpack.c.h.b16 %v5203
    %v5281 = vunpack.c.l.b16 %v5204
    %v5282 = vunpack.c.h.b16 %v5204
    %v5283 = vunpack.c.l.b16 %v5205
    %v5284 = vunpack.c.h.b16 %v5205
    %v5285 = vunpack.c.l.b16 %v5206
    %v5286 = vunpack.c.h.b16 %v5206
    %v5287 = vunpack.c.l.b16 %v5207
    %v5288 = vunpack.c.h.b16 %v5207
    %v5289 = vunpack.c.l.b16 %v5208
    %v5290 = vunpack.c.h.b16 %v5208
    %v5291 = vunpack.c.l.b16 %v5209
    %v5292 = vunpack.c.h.b16 %v5209
    %v5293 = vunpack.c.l.b16 %v5210
    %v5294 = vunpack.c.h.b16 %v5210
    %v5295 = vunpack.c.l.b16 %v5211
    %v5296 = vunpack.c.h.b16 %v5211
    %v5297 = vunpack.c.l.b16 %v5212
    %v5298 = vunpack.c.h.b16 %v5212
    %v5299 = vunpack.c.l.b16 %v5213
    %v5300 = vunpack.c.h.b16 %v5213
    %v5301 = vunpack.c.l.b16 %v5214
    %v5302 = vunpack.c.h.b16 %v5214
    %v5303 = vunpack.c.l.b16 %v5215
    %v5304 = vunpack.c.h.b16 %v5215
    %v5305 = vunpack.c.l.b16 %v5216
    %v5306 = vunpack.c.h.b16 %v5216
    %v5307 = vunpack.c.l.b16 %v5217
    %v5308 = vunpack.c.h.b16 %v5217
    %v5309 = vunpack.c.l.b16 %v5218
    %v5310 = vunpack.c.h.b16 %v5218
    %v5311 = vunpack.c.l.b16 %v5219
    %v5312 = vunpack.c.h.b16 %v5219
    %v5313 = vunpack.c.l.b16 %v5220
    %v5314 = vunpack.c.h.b16 %v5220
    %v5315 = vunpack.c.l.b16 %v5221
    %v5316 = vunpack.c.h.b16 %v5221
    %v5317 = vunpack.c.l.b16 %v5222
    %v5318 = vunpack.c.h.b16 %v5222
    %v5319 = vunpack.c.l.b16 %v5223
    %v5320 = vunpack.c.h.b16 %v5223
    %v5321 = vunpack.c.l.b16 %v5224
    %v5322 = vunpack.c.h.b16 %v5224
    %v5323 = vunpack.c.l.b16 %v5225
    %v5324 = vunpack.c.h.b16 %v5225
    %v5325 = vunpack.c.l.b16 %v5226
    %v5326 = vunpack.c.h.b16 %v5226
    %v5327 = vunpack.c.l.b16 %v5227
    %v5328 = vunpack.c.h.b16 %v5227
    %v5329 = vunpack.c.l.b16 %v5228
    %v5330 = vunpack.c.h.b16 %v5228
    %v5331 = vunpack.c.l.b16 %v5229
    %v5332 = vunpack.c.h.b16 %v5229
    %v5333 = vunpack.c.l.b16 %v5230
    %v5334 = vunpack.c.h.b16 %v5230
    %v5335 = vunpack.c.l.b16 %v5231
    %v5336 = vunpack.c.h.b16 %v5231
    %v5337 = vunpack.c.l.b16 %v5232
    %v5338 = vunpack.c.h.b16 %v5232
    %v5339 = vunpack.c.l.b16 %v5233
    %v5340 = vunpack.c.h.b16 %v5233
    %v5341 = vunpack.c.l.b16 %v5234
    %v5342 = vunpack.c.h.b16 %v5234
    %v5343 = vpack.c.b16 %v5281, %v5279
    %v5344 = vpack.c.b16 %v5282, %v5280
    %v5345 = vpack.c.b16 %v5285, %v5283
    %v5346 = vpack.c.b16 %v5286, %v5284
    %v5347 = vpack.c.b16 %v5289, %v5287
    %v5348 = vpack.c.b16 %v5290, %v5288
    %v5349 = vpack.c.b16 %v5293, %v5291
    %v5350 = vpack.c.b16 %v5294, %v5292
    %v5351 = vpack.c.b16 %v5297, %v5295
    %v5352 = vpack.c.b16 %v5298, %v5296
    %v5353 = vpack.c.b16 %v5301, %v5299
    %v5354 = vpack.c.b16 %v5302, %v5300
    %v5355 = vpack.c.b16 %v5305, %v5303
    %v5356 = vpack.c.b16 %v5306, %v5304
    %v5357 = vpack.c.b16 %v5309, %v5307
    %v5358 = vpack.c.b16 %v5310, %v5308
    %v5359 = vpack.c.b16 %v5313, %v5311
    %v5360 = vpack.c.b16 %v5314, %v5312
    %v5361 = vpack.c.b16 %v5317, %v5315
    %v5362 = vpack.c.b16 %v5318, %v5316
    %v5363 = vpack.c.b16 %v5321, %v5319
    %v5364 = vpack.c.b16 %v5322, %v5320
    %v5365 = vpack.c.b16 %v5325, %v5323
    %v5366 = vpack.c.b16 %v5326, %v5324
    %v5367 = vpack.c.b16 %v5329, %v5327
    %v5368 = vpack.c.b16 %v5330, %v5328
    %v5369 = vpack.c.b16 %v5333, %v5331
    %v5370 = vpack.c.b16 %v5334, %v5332
    %v5371 = vpack.c.b16 %v5337, %v5335
    %v5372 = vpack.c.b16 %v5338, %v5336
    %v5373 = vpack.c.b16 %v5341, %v5339
    %v5374 = vpack.c.b16 %v5342, %v5340
    %5407 = vmatprep.subr.bf16.mxu0 %v5344
    %5408 = vmatpush1.bf16.msra.mxu0 %v5343
    %5409 = vmatprep.subr.bf16.mxu0 %v5346
    %5410 = vmatpush1.bf16.msra.mxu0 %v5345
    %5411 = vmatprep.subr.bf16.mxu0 %v5348
    %5412 = vmatpush1.bf16.msra.mxu0 %v5347
    %5413 = vmatprep.subr.bf16.mxu0 %v5350
    %5414 = vmatpush1.bf16.msra.mxu0 %v5349
    %5415 = vmatprep.subr.bf16.mxu0 %v5352
    %5416 = vmatpush1.bf16.msra.mxu0 %v5351
    %5417 = vmatprep.subr.bf16.mxu0 %v5354
    %5418 = vmatpush1.bf16.msra.mxu0 %v5353
    %5419 = vmatprep.subr.bf16.mxu0 %v5356
    %5420 = vmatpush1.bf16.msra.mxu0 %v5355
    %5421 = vmatprep.subr.bf16.mxu0 %v5358
    %5422 = vmatpush1.bf16.msra.mxu0 %v5357
    %5423 = vmatprep.subr.bf16.mxu0 %v5360
    %5424 = vmatpush1.bf16.msra.mxu0 %v5359
    %5425 = vmatprep.subr.bf16.mxu0 %v5362
    %5426 = vmatpush1.bf16.msra.mxu0 %v5361
    %5427 = vmatprep.subr.bf16.mxu0 %v5364
    %5428 = vmatpush1.bf16.msra.mxu0 %v5363
    %5429 = vmatprep.subr.bf16.mxu0 %v5366
    %5430 = vmatpush1.bf16.msra.mxu0 %v5365
    %5431 = vmatprep.subr.bf16.mxu0 %v5368
    %5432 = vmatpush1.bf16.msra.mxu0 %v5367
    %5433 = vmatprep.subr.bf16.mxu0 %v5370
    %5434 = vmatpush1.bf16.msra.mxu0 %v5369
    %5435 = vmatprep.subr.bf16.mxu0 %v5372
    %5436 = vmatpush1.bf16.msra.mxu0 %v5371
    %5437 = vmatprep.subr.bf16.mxu0 %v5374
    %5438 = vmatpush1.bf16.msra.mxu0 %v5373
    %5439 = vmatprep.mubr.bf16.mxu0 %v5076
    %5440 = vmatmul.mubr.bf16.gmra.mrb[0].mxu0 %v5075
    %v5441 = vpop.f32.mrb[0].mxu0
    %v5442 = vadd.f32 %v5240, %v5441
    %v5443 = vpop.f32.mrb[0].mxu0
    %v5444 = vadd.f32 %v5244, %v5443
    %v5445 = vpop.f32.mrb[0].mxu0
    %v5446 = vadd.f32 %v5240, %v5445
    %v5447 = vpop.f32.mrb[0].mxu0
    %v5448 = vadd.f32 %v5244, %v5447
    %5449 = vmatprep.mubr.bf16.mxu0 %v5078
    %5450 = vmatmul.mubr.bf16.gmra.mrb[0].mxu0 %v5077
    %v5451 = vpop.f32.mrb[0].mxu0
    %v5452 = vadd.f32 %v5240, %v5451
    %v5453 = vpop.f32.mrb[0].mxu0
    %v5454 = vadd.f32 %v5244, %v5453
    %v5455 = vpop.f32.mrb[0].mxu0
    %v5456 = vadd.f32 %v5240, %v5455
    %v5457 = vpop.f32.mrb[0].mxu0
    %v5458 = vadd.f32 %v5244, %v5457
    %5459 = vmatprep.mubr.bf16.mxu0 %v5080
    %5460 = vmatmul.mubr.bf16.gmra.mrb[0].mxu0 %v5079
    %v5461 = vpop.f32.mrb[0].mxu0
    %v5462 = vadd.f32 %v5240, %v5461
    %v5463 = vpop.f32.mrb[0].mxu0
    %v5464 = vadd.f32 %v5244, %v5463
    %v5465 = vpop.f32.mrb[0].mxu0
    %v5466 = vadd.f32 %v5240, %v5465
    %v5467 = vpop.f32.mrb[0].mxu0
    %v5468 = vadd.f32 %v5244, %v5467
    %5469 = vmatprep.mubr.bf16.mxu0 %v5082
    %5470 = vmatmul.mubr.bf16.gmra.mrb[0].mxu0 %v5081
    %v5471 = vpop.f32.mrb[0].mxu0
    %v5472 = vadd.f32 %v5240, %v5471
    %v5473 = vpop.f32.mrb[0].mxu0
    %v5474 = vadd.f32 %v5244, %v5473
    %v5475 = vpop.f32.mrb[0].mxu0
    %v5476 = vadd.f32 %v5240, %v5475
    %v5477 = vpop.f32.mrb[0].mxu0
    %v5478 = vadd.f32 %v5244, %v5477
    %5479 = vmatprep.mubr.bf16.mxu0 %v5084
    %5480 = vmatmul.mubr.bf16.gmra.mrb[0].mxu0 %v5083
    %v5481 = vpop.f32.mrb[0].mxu0
    %v5482 = vadd.f32 %v5240, %v5481
    %v5483 = vpop.f32.mrb[0].mxu0
    %v5484 = vadd.f32 %v5244, %v5483
    %v5485 = vpop.f32.mrb[0].mxu0
    %v5486 = vadd.f32 %v5240, %v5485
    %v5487 = vpop.f32.mrb[0].mxu0
    %v5488 = vadd.f32 %v5244, %v5487
    %5489 = vmatprep.mubr.bf16.mxu0 %v5086
    %5490 = vmatmul.mubr.bf16.gmra.mrb[0].mxu0 %v5085
    %v5491 = vpop.f32.mrb[0].mxu0
    %v5492 = vadd.f32 %v5240, %v5491
    %v5493 = vpop.f32.mrb[0].mxu0
    %v5494 = vadd.f32 %v5244, %v5493
    %v5495 = vpop.f32.mrb[0].mxu0
    %v5496 = vadd.f32 %v5240, %v5495
    %v5497 = vpop.f32.mrb[0].mxu0
    %v5498 = vadd.f32 %v5244, %v5497
    %5499 = vmatprep.mubr.bf16.mxu0 %v5088
    %5500 = vmatmul.mubr.bf16.gmra.mrb[0].mxu0 %v5087
    %v5501 = vpop.f32.mrb[0].mxu0
    %v5502 = vadd.f32 %v5240, %v5501
    %v5503 = vpop.f32.mrb[0].mxu0
    %v5504 = vadd.f32 %v5244, %v5503
    %v5505 = vpop.f32.mrb[0].mxu0
    %v5506 = vadd.f32 %v5240, %v5505
    %v5507 = vpop.f32.mrb[0].mxu0
    %v5508 = vadd.f32 %v5244, %v5507
    %5509 = vmatprep.mubr.bf16.mxu0 %v5090
    %5510 = vmatmul.mubr.bf16.gmra.mrb[0].mxu0 %v5089
    %v5511 = vpop.f32.mrb[0].mxu0
    %v5512 = vadd.f32 %v5240, %v5511
    %v5513 = vpop.f32.mrb[0].mxu0
    %v5514 = vadd.f32 %v5244, %v5513
    %v5515 = vpop.f32.mrb[0].mxu0
    %v5516 = vadd.f32 %v5240, %v5515
    %v5517 = vpop.f32.mrb[0].mxu0
    %v5518 = vadd.f32 %v5244, %v5517
    %5519 = vmatprep.mubr.bf16.mxu0 %v5092
    %5520 = vmatmul.mubr.bf16.gmra.mrb[0].mxu0 %v5091
    %v5521 = vpop.f32.mrb[0].mxu0
    %v5522 = vadd.f32 %v5240, %v5521
    %v5523 = vpop.f32.mrb[0].mxu0
    %v5524 = vadd.f32 %v5244, %v5523
    %v5525 = vpop.f32.mrb[0].mxu0
    %v5526 = vadd.f32 %v5240, %v5525
    %v5527 = vpop.f32.mrb[0].mxu0
    %v5528 = vadd.f32 %v5244, %v5527
    %5529 = vmatprep.mubr.bf16.mxu0 %v5094
    %5530 = vmatmul.mubr.bf16.gmra.mrb[0].mxu0 %v5093
    %v5531 = vpop.f32.mrb[0].mxu0
    %v5532 = vadd.f32 %v5240, %v5531
    %v5533 = vpop.f32.mrb[0].mxu0
    %v5534 = vadd.f32 %v5244, %v5533
    %v5535 = vpop.f32.mrb[0].mxu0
    %v5536 = vadd.f32 %v5240, %v5535
    %v5537 = vpop.f32.mrb[0].mxu0
    %v5538 = vadd.f32 %v5244, %v5537
    %5539 = vmatprep.mubr.bf16.mxu0 %v5096
    %5540 = vmatmul.mubr.bf16.gmra.mrb[0].mxu0 %v5095
    %v5541 = vpop.f32.mrb[0].mxu0
    %v5542 = vadd.f32 %v5240, %v5541
    %v5543 = vpop.f32.mrb[0].mxu0
    %v5544 = vadd.f32 %v5244, %v5543
    %v5545 = vpop.f32.mrb[0].mxu0
    %v5546 = vadd.f32 %v5240, %v5545
    %v5547 = vpop.f32.mrb[0].mxu0
    %v5548 = vadd.f32 %v5244, %v5547
    %5549 = vmatprep.mubr.bf16.mxu0 %v5098
    %5550 = vmatmul.mubr.bf16.gmra.mrb[0].mxu0 %v5097
    %v5551 = vpop.f32.mrb[0].mxu0
    %v5552 = vadd.f32 %v5240, %v5551
    %v5553 = vpop.f32.mrb[0].mxu0
    %v5554 = vadd.f32 %v5244, %v5553
    %v5555 = vpop.f32.mrb[0].mxu0
    %v5556 = vadd.f32 %v5240, %v5555
    %v5557 = vpop.f32.mrb[0].mxu0
    %v5558 = vadd.f32 %v5244, %v5557
    %5559 = vmatprep.mubr.bf16.mxu0 %v5100
    %5560 = vmatmul.mubr.bf16.gmra.mrb[0].mxu0 %v5099
    %v5561 = vpop.f32.mrb[0].mxu0
    %v5562 = vadd.f32 %v5240, %v5561
    %v5563 = vpop.f32.mrb[0].mxu0
    %v5564 = vadd.f32 %v5244, %v5563
    %v5565 = vpop.f32.mrb[0].mxu0
    %v5566 = vadd.f32 %v5240, %v5565
    %v5567 = vpop.f32.mrb[0].mxu0
    %v5568 = vadd.f32 %v5244, %v5567
    %5569 = vmatprep.mubr.bf16.mxu0 %v5102
    %5570 = vmatmul.mubr.bf16.gmra.mrb[0].mxu0 %v5101
    %v5571 = vpop.f32.mrb[0].mxu0
    %v5572 = vadd.f32 %v5240, %v5571
    %v5573 = vpop.f32.mrb[0].mxu0
    %v5574 = vadd.f32 %v5244, %v5573
    %v5575 = vpop.f32.mrb[0].mxu0
    %v5576 = vadd.f32 %v5240, %v5575
    %v5577 = vpop.f32.mrb[0].mxu0
    %v5578 = vadd.f32 %v5244, %v5577
    %5579 = vmatprep.mubr.bf16.mxu0 %v5104
    %5580 = vmatmul.mubr.bf16.gmra.mrb[0].mxu0 %v5103
    %v5581 = vpop.f32.mrb[0].mxu0
    %v5582 = vadd.f32 %v5240, %v5581
    %v5583 = vpop.f32.mrb[0].mxu0
    %v5584 = vadd.f32 %v5244, %v5583
    %v5585 = vpop.f32.mrb[0].mxu0
    %v5586 = vadd.f32 %v5240, %v5585
    %v5587 = vpop.f32.mrb[0].mxu0
    %v5588 = vadd.f32 %v5244, %v5587
    %5589 = vmatprep.mubr.bf16.mxu0 %v5106
    %5590 = vmatmul.mubr.bf16.gmra.mrb[0].mxu0 %v5105
    %v5591 = vpop.f32.mrb[0].mxu0
    %v5592 = vadd.f32 %v5240, %v5591
    %v5593 = vpop.f32.mrb[0].mxu0
    %v5594 = vadd.f32 %v5244, %v5593
    %v5595 = vpop.f32.mrb[0].mxu0
    %v5596 = vadd.f32 %v5240, %v5595
    %v5597 = vpop.f32.mrb[0].mxu0
    %v5598 = vadd.f32 %v5244, %v5597
    %5599 = vmatprep.mubr.bf16.mxu0 %v5108
    %5600 = vmatmul.mubr.bf16.gmra.mrb[0].mxu0 %v5107
    %v5601 = vpop.f32.mrb[0].mxu0
    %v5602 = vadd.f32 %v5240, %v5601
    %v5603 = vpop.f32.mrb[0].mxu0
    %v5604 = vadd.f32 %v5244, %v5603
    %v5605 = vpop.f32.mrb[0].mxu0
    %v5606 = vadd.f32 %v5240, %v5605
    %v5607 = vpop.f32.mrb[0].mxu0
    %v5608 = vadd.f32 %v5244, %v5607
    %5609 = vmatprep.mubr.bf16.mxu0 %v5110
    %5610 = vmatmul.mubr.bf16.gmra.mrb[0].mxu0 %v5109
    %v5611 = vpop.f32.mrb[0].mxu0
    %v5612 = vadd.f32 %v5240, %v5611
    %v5613 = vpop.f32.mrb[0].mxu0
    %v5614 = vadd.f32 %v5244, %v5613
    %v5615 = vpop.f32.mrb[0].mxu0
    %v5616 = vadd.f32 %v5240, %v5615
    %v5617 = vpop.f32.mrb[0].mxu0
    %v5618 = vadd.f32 %v5244, %v5617
    %5619 = vmatprep.mubr.bf16.mxu0 %v5112
    %5620 = vmatmul.mubr.bf16.gmra.mrb[0].mxu0 %v5111
    %v5621 = vpop.f32.mrb[0].mxu0
    %v5622 = vadd.f32 %v5240, %v5621
    %v5623 = vpop.f32.mrb[0].mxu0
    %v5624 = vadd.f32 %v5244, %v5623
    %v5625 = vpop.f32.mrb[0].mxu0
    %v5626 = vadd.f32 %v5240, %v5625
    %v5627 = vpop.f32.mrb[0].mxu0
    %v5628 = vadd.f32 %v5244, %v5627
    %5629 = vmatprep.mubr.bf16.mxu0 %v5114
    %5630 = vmatmul.mubr.bf16.gmra.mrb[0].mxu0 %v5113
    %v5631 = vpop.f32.mrb[0].mxu0
    %v5632 = vadd.f32 %v5240, %v5631
    %v5633 = vpop.f32.mrb[0].mxu0
    %v5634 = vadd.f32 %v5244, %v5633
    %v5635 = vpop.f32.mrb[0].mxu0
    %v5636 = vadd.f32 %v5240, %v5635
    %v5637 = vpop.f32.mrb[0].mxu0
    %v5638 = vadd.f32 %v5244, %v5637
    %5639 = vmatprep.mubr.bf16.mxu0 %v5116
    %5640 = vmatmul.mubr.bf16.gmra.mrb[0].mxu0 %v5115
    %v5641 = vpop.f32.mrb[0].mxu0
    %v5642 = vadd.f32 %v5240, %v5641
    %v5643 = vpop.f32.mrb[0].mxu0
    %v5644 = vadd.f32 %v5244, %v5643
    %v5645 = vpop.f32.mrb[0].mxu0
    %v5646 = vadd.f32 %v5240, %v5645
    %v5647 = vpop.f32.mrb[0].mxu0
    %v5648 = vadd.f32 %v5244, %v5647
    %5649 = vmatprep.mubr.bf16.mxu0 %v5118
    %5650 = vmatmul.mubr.bf16.gmra.mrb[0].mxu0 %v5117
    %v5651 = vpop.f32.mrb[0].mxu0
    %v5652 = vadd.f32 %v5240, %v5651
    %v5653 = vpop.f32.mrb[0].mxu0
    %v5654 = vadd.f32 %v5244, %v5653
    %v5655 = vpop.f32.mrb[0].mxu0
    %v5656 = vadd.f32 %v5240, %v5655
    %v5657 = vpop.f32.mrb[0].mxu0
    %v5658 = vadd.f32 %v5244, %v5657
    %5659 = vmatprep.mubr.bf16.mxu0 %v5120
    %5660 = vmatmul.mubr.bf16.gmra.mrb[0].mxu0 %v5119
    %v5661 = vpop.f32.mrb[0].mxu0
    %v5662 = vadd.f32 %v5240, %v5661
    %v5663 = vpop.f32.mrb[0].mxu0
    %v5664 = vadd.f32 %v5244, %v5663
    %v5665 = vpop.f32.mrb[0].mxu0
    %v5666 = vadd.f32 %v5240, %v5665
    %v5667 = vpop.f32.mrb[0].mxu0
    %v5668 = vadd.f32 %v5244, %v5667
    %5669 = vmatprep.mubr.bf16.mxu0 %v5122
    %5670 = vmatmul.mubr.bf16.gmra.mrb[0].mxu0 %v5121
    %v5671 = vpop.f32.mrb[0].mxu0
    %v5672 = vadd.f32 %v5240, %v5671
    %v5673 = vpop.f32.mrb[0].mxu0
    %v5674 = vadd.f32 %v5244, %v5673
    %v5675 = vpop.f32.mrb[0].mxu0
    %v5676 = vadd.f32 %v5240, %v5675
    %v5677 = vpop.f32.mrb[0].mxu0
    %v5678 = vadd.f32 %v5244, %v5677
    %5679 = vmatprep.mubr.bf16.mxu0 %v5124
    %5680 = vmatmul.mubr.bf16.gmra.mrb[0].mxu0 %v5123
    %v5681 = vpop.f32.mrb[0].mxu0
    %v5682 = vadd.f32 %v5240, %v5681
    %v5683 = vpop.f32.mrb[0].mxu0
    %v5684 = vadd.f32 %v5244, %v5683
    %v5685 = vpop.f32.mrb[0].mxu0
    %v5686 = vadd.f32 %v5240, %v5685
    %v5687 = vpop.f32.mrb[0].mxu0
    %v5688 = vadd.f32 %v5244, %v5687
    %5689 = vmatprep.mubr.bf16.mxu0 %v5126
    %5690 = vmatmul.mubr.bf16.gmra.mrb[0].mxu0 %v5125
    %v5691 = vpop.f32.mrb[0].mxu0
    %v5692 = vadd.f32 %v5240, %v5691
    %v5693 = vpop.f32.mrb[0].mxu0
    %v5694 = vadd.f32 %v5244, %v5693
    %v5695 = vpop.f32.mrb[0].mxu0
    %v5696 = vadd.f32 %v5240, %v5695
    %v5697 = vpop.f32.mrb[0].mxu0
    %v5698 = vadd.f32 %v5244, %v5697
    %5699 = vmatprep.mubr.bf16.mxu0 %v5128
    %5700 = vmatmul.mubr.bf16.gmra.mrb[0].mxu0 %v5127
    %v5701 = vpop.f32.mrb[0].mxu0
    %v5702 = vadd.f32 %v5240, %v5701
    %v5703 = vpop.f32.mrb[0].mxu0
    %v5704 = vadd.f32 %v5244, %v5703
    %v5705 = vpop.f32.mrb[0].mxu0
    %v5706 = vadd.f32 %v5240, %v5705
    %v5707 = vpop.f32.mrb[0].mxu0
    %v5708 = vadd.f32 %v5244, %v5707
    %5709 = vmatprep.mubr.bf16.mxu0 %v5130
    %5710 = vmatmul.mubr.bf16.gmra.mrb[0].mxu0 %v5129
    %v5711 = vpop.f32.mrb[0].mxu0
    %v5712 = vadd.f32 %v5240, %v5711
    %v5713 = vpop.f32.mrb[0].mxu0
    %v5714 = vadd.f32 %v5244, %v5713
    %v5715 = vpop.f32.mrb[0].mxu0
    %v5716 = vadd.f32 %v5240, %v5715
    %v5717 = vpop.f32.mrb[0].mxu0
    %v5718 = vadd.f32 %v5244, %v5717
    %5719 = vmatprep.mubr.bf16.mxu0 %v5132
    %5720 = vmatmul.mubr.bf16.gmra.mrb[0].mxu0 %v5131
    %v5721 = vpop.f32.mrb[0].mxu0
    %v5722 = vadd.f32 %v5240, %v5721
    %v5723 = vpop.f32.mrb[0].mxu0
    %v5724 = vadd.f32 %v5244, %v5723
    %v5725 = vpop.f32.mrb[0].mxu0
    %v5726 = vadd.f32 %v5240, %v5725
    %v5727 = vpop.f32.mrb[0].mxu0
    %v5728 = vadd.f32 %v5244, %v5727
    %5729 = vmatprep.mubr.bf16.mxu0 %v5134
    %5730 = vmatmul.mubr.bf16.gmra.mrb[0].mxu0 %v5133
    %v5731 = vpop.f32.mrb[0].mxu0
    %v5732 = vadd.f32 %v5240, %v5731
    %v5733 = vpop.f32.mrb[0].mxu0
    %v5734 = vadd.f32 %v5244, %v5733
    %v5735 = vpop.f32.mrb[0].mxu0
    %v5736 = vadd.f32 %v5240, %v5735
    %v5737 = vpop.f32.mrb[0].mxu0
    %v5738 = vadd.f32 %v5244, %v5737
    %5739 = vmatprep.mubr.bf16.mxu0 %v5136
    %5740 = vmatmul.mubr.bf16.gmra.mrb[0].mxu0 %v5135
    %v5741 = vpop.f32.mrb[0].mxu0
    %v5742 = vadd.f32 %v5240, %v5741
    %v5743 = vpop.f32.mrb[0].mxu0
    %v5744 = vadd.f32 %v5244, %v5743
    %v5745 = vpop.f32.mrb[0].mxu0
    %v5746 = vadd.f32 %v5240, %v5745
    %v5747 = vpop.f32.mrb[0].mxu0
    %v5748 = vadd.f32 %v5244, %v5747
    %5749 = vmatprep.mubr.bf16.mxu0 %v5138
    %5750 = vmatmul.mubr.bf16.gmra.mrb[0].mxu0 %v5137
    %v5751 = vpop.f32.mrb[0].mxu0
    %v5752 = vadd.f32 %v5240, %v5751
    %v5753 = vpop.f32.mrb[0].mxu0
    %v5754 = vadd.f32 %v5244, %v5753
    %v5755 = vpop.f32.mrb[0].mxu0
    %v5756 = vadd.f32 %v5240, %v5755
    %v5757 = vpop.f32.mrb[0].mxu0
    %v5758 = vadd.f32 %v5244, %v5757
    %5759 = vmatprep.mubr.bf16.mxu0 %v5140
    %5760 = vmatmul.mubr.bf16.gmra.mrb[0].mxu0 %v5139
    %v5761 = vpop.f32.mrb[0].mxu0
    %v5762 = vadd.f32 %v5240, %v5761
    %v5763 = vpop.f32.mrb[0].mxu0
    %v5764 = vadd.f32 %v5244, %v5763
    %v5765 = vpop.f32.mrb[0].mxu0
    %v5766 = vadd.f32 %v5240, %v5765
    %v5767 = vpop.f32.mrb[0].mxu0
    %v5768 = vadd.f32 %v5244, %v5767
    %5769 = vmatprep.mubr.bf16.mxu0 %v5142
    %5770 = vmatmul.mubr.bf16.gmra.mrb[0].mxu0 %v5141
    %v5771 = vpop.f32.mrb[0].mxu0
    %v5772 = vadd.f32 %v5240, %v5771
    %v5773 = vpop.f32.mrb[0].mxu0
    %v5774 = vadd.f32 %v5244, %v5773
    %v5775 = vpop.f32.mrb[0].mxu0
    %v5776 = vadd.f32 %v5240, %v5775
    %v5777 = vpop.f32.mrb[0].mxu0
    %v5778 = vadd.f32 %v5244, %v5777
    %5779 = vmatprep.mubr.bf16.mxu0 %v5144
    %5780 = vmatmul.mubr.bf16.gmra.mrb[0].mxu0 %v5143
    %v5781 = vpop.f32.mrb[0].mxu0
    %v5782 = vadd.f32 %v5240, %v5781
    %v5783 = vpop.f32.mrb[0].mxu0
    %v5784 = vadd.f32 %v5244, %v5783
    %v5785 = vpop.f32.mrb[0].mxu0
    %v5786 = vadd.f32 %v5240, %v5785
    %v5787 = vpop.f32.mrb[0].mxu0
    %v5788 = vadd.f32 %v5244, %v5787
    %5789 = vmatprep.mubr.bf16.mxu0 %v5146
    %5790 = vmatmul.mubr.bf16.gmra.mrb[0].mxu0 %v5145
    %v5791 = vpop.f32.mrb[0].mxu0
    %v5792 = vadd.f32 %v5240, %v5791
    %v5793 = vpop.f32.mrb[0].mxu0
    %v5794 = vadd.f32 %v5244, %v5793
    %v5795 = vpop.f32.mrb[0].mxu0
    %v5796 = vadd.f32 %v5240, %v5795
    %v5797 = vpop.f32.mrb[0].mxu0
    %v5798 = vadd.f32 %v5244, %v5797
    %5799 = vmatprep.mubr.bf16.mxu0 %v5148
    %5800 = vmatmul.mubr.bf16.gmra.mrb[0].mxu0 %v5147
    %v5801 = vpop.f32.mrb[0].mxu0
    %v5802 = vadd.f32 %v5240, %v5801
    %v5803 = vpop.f32.mrb[0].mxu0
    %v5804 = vadd.f32 %v5244, %v5803
    %v5805 = vpop.f32.mrb[0].mxu0
    %v5806 = vadd.f32 %v5240, %v5805
    %v5807 = vpop.f32.mrb[0].mxu0
    %v5808 = vadd.f32 %v5244, %v5807
    %5809 = vmatprep.mubr.bf16.mxu0 %v5150
    %5810 = vmatmul.mubr.bf16.gmra.mrb[0].mxu0 %v5149
    %v5811 = vpop.f32.mrb[0].mxu0
    %v5812 = vadd.f32 %v5240, %v5811
    %v5813 = vpop.f32.mrb[0].mxu0
    %v5814 = vadd.f32 %v5244, %v5813
    %v5815 = vpop.f32.mrb[0].mxu0
    %v5816 = vadd.f32 %v5240, %v5815
    %v5817 = vpop.f32.mrb[0].mxu0
    %v5818 = vadd.f32 %v5244, %v5817
    %5819 = vmatprep.mubr.bf16.mxu0 %v5152
    %5820 = vmatmul.mubr.bf16.gmra.mrb[0].mxu0 %v5151
    %v5821 = vpop.f32.mrb[0].mxu0
    %v5822 = vadd.f32 %v5240, %v5821
    %v5823 = vpop.f32.mrb[0].mxu0
    %v5824 = vadd.f32 %v5244, %v5823
    %v5825 = vpop.f32.mrb[0].mxu0
    %v5826 = vadd.f32 %v5240, %v5825
    %v5827 = vpop.f32.mrb[0].mxu0
    %v5828 = vadd.f32 %v5244, %v5827
    %5829 = vmatprep.mubr.bf16.mxu0 %v5154
    %5830 = vmatmul.mubr.bf16.gmra.mrb[0].mxu0 %v5153
    %v5831 = vpop.f32.mrb[0].mxu0
    %v5832 = vadd.f32 %v5240, %v5831
    %v5833 = vpop.f32.mrb[0].mxu0
    %v5834 = vadd.f32 %v5244, %v5833
    %v5835 = vpop.f32.mrb[0].mxu0
    %v5836 = vadd.f32 %v5240, %v5835
    %v5837 = vpop.f32.mrb[0].mxu0
    %v5838 = vadd.f32 %v5244, %v5837
    %5839 = vmatprep.mubr.bf16.mxu0 %v5156
    %5840 = vmatmul.mubr.bf16.gmra.mrb[0].mxu0 %v5155
    %v5841 = vpop.f32.mrb[0].mxu0
    %v5842 = vadd.f32 %v5240, %v5841
    %v5843 = vpop.f32.mrb[0].mxu0
    %v5844 = vadd.f32 %v5244, %v5843
    %v5845 = vpop.f32.mrb[0].mxu0
    %v5846 = vadd.f32 %v5240, %v5845
    %v5847 = vpop.f32.mrb[0].mxu0
    %v5848 = vadd.f32 %v5244, %v5847
    %5849 = vmatprep.mubr.bf16.mxu0 %v5158
    %5850 = vmatmul.mubr.bf16.gmra.mrb[0].mxu0 %v5157
    %v5851 = vpop.f32.mrb[0].mxu0
    %v5852 = vadd.f32 %v5240, %v5851
    %v5853 = vpop.f32.mrb[0].mxu0
    %v5854 = vadd.f32 %v5244, %v5853
    %v5855 = vpop.f32.mrb[0].mxu0
    %v5856 = vadd.f32 %v5240, %v5855
    %v5857 = vpop.f32.mrb[0].mxu0
    %v5858 = vadd.f32 %v5244, %v5857
    %5859 = vmatprep.mubr.bf16.mxu0 %v5160
    %5860 = vmatmul.mubr.bf16.gmra.mrb[0].mxu0 %v5159
    %v5861 = vpop.f32.mrb[0].mxu0
    %v5862 = vadd.f32 %v5240, %v5861
    %v5863 = vpop.f32.mrb[0].mxu0
    %v5864 = vadd.f32 %v5244, %v5863
    %v5865 = vpop.f32.mrb[0].mxu0
    %v5866 = vadd.f32 %v5240, %v5865
    %v5867 = vpop.f32.mrb[0].mxu0
    %v5868 = vadd.f32 %v5244, %v5867
    %5869 = vmatprep.mubr.bf16.mxu0 %v5162
    %5870 = vmatmul.mubr.bf16.gmra.mrb[0].mxu0 %v5161
    %v5871 = vpop.f32.mrb[0].mxu0
    %v5872 = vadd.f32 %v5240, %v5871
    %v5873 = vpop.f32.mrb[0].mxu0
    %v5874 = vadd.f32 %v5244, %v5873
    %v5875 = vpop.f32.mrb[0].mxu0
    %v5876 = vadd.f32 %v5240, %v5875
    %v5877 = vpop.f32.mrb[0].mxu0
    %v5878 = vadd.f32 %v5244, %v5877
    %5879 = vmatprep.mubr.bf16.mxu0 %v5164
    %5880 = vmatmul.mubr.bf16.gmra.mrb[0].mxu0 %v5163
    %v5881 = vpop.f32.mrb[0].mxu0
    %v5882 = vadd.f32 %v5240, %v5881
    %v5883 = vpop.f32.mrb[0].mxu0
    %v5884 = vadd.f32 %v5244, %v5883
    %v5885 = vpop.f32.mrb[0].mxu0
    %v5886 = vadd.f32 %v5240, %v5885
    %v5887 = vpop.f32.mrb[0].mxu0
    %v5888 = vadd.f32 %v5244, %v5887
    %5889 = vmatprep.mubr.bf16.mxu0 %v5166
    %5890 = vmatmul.mubr.bf16.gmra.mrb[0].mxu0 %v5165
    %v5891 = vpop.f32.mrb[0].mxu0
    %v5892 = vadd.f32 %v5240, %v5891
    %v5893 = vpop.f32.mrb[0].mxu0
    %v5894 = vadd.f32 %v5244, %v5893
    %v5895 = vpop.f32.mrb[0].mxu0
    %v5896 = vadd.f32 %v5240, %v5895
    %v5897 = vpop.f32.mrb[0].mxu0
    %v5898 = vadd.f32 %v5244, %v5897
    %5899 = vmatprep.mubr.bf16.mxu0 %v5168
    %5900 = vmatmul.mubr.bf16.gmra.mrb[0].mxu0 %v5167
    %v5901 = vpop.f32.mrb[0].mxu0
    %v5902 = vadd.f32 %v5240, %v5901
    %v5903 = vpop.f32.mrb[0].mxu0
    %v5904 = vadd.f32 %v5244, %v5903
    %v5905 = vpop.f32.mrb[0].mxu0
    %v5906 = vadd.f32 %v5240, %v5905
    %v5907 = vpop.f32.mrb[0].mxu0
    %v5908 = vadd.f32 %v5244, %v5907
    %5909 = vmatprep.mubr.bf16.mxu0 %v5170
    %5910 = vmatmul.mubr.bf16.gmra.mrb[0].mxu0 %v5169
    %v5911 = vpop.f32.mrb[0].mxu0
    %v5912 = vadd.f32 %v5240, %v5911
    %v5913 = vpop.f32.mrb[0].mxu0
    %v5914 = vadd.f32 %v5244, %v5913
    %v5915 = vpop.f32.mrb[0].mxu0
    %v5916 = vadd.f32 %v5240, %v5915
    %v5917 = vpop.f32.mrb[0].mxu0
    %v5918 = vadd.f32 %v5244, %v5917
    %5919 = vmatprep.mubr.bf16.mxu0 %v5172
    %5920 = vmatmul.mubr.bf16.gmra.mrb[0].mxu0 %v5171
    %v5921 = vpop.f32.mrb[0].mxu0
    %v5922 = vadd.f32 %v5240, %v5921
    %v5923 = vpop.f32.mrb[0].mxu0
    %v5924 = vadd.f32 %v5244, %v5923
    %v5925 = vpop.f32.mrb[0].mxu0
    %v5926 = vadd.f32 %v5240, %v5925
    %v5927 = vpop.f32.mrb[0].mxu0
    %v5928 = vadd.f32 %v5244, %v5927
    %5929 = vmatprep.mubr.bf16.mxu0 %v5174
    %5930 = vmatmul.mubr.bf16.gmra.mrb[0].mxu0 %v5173
    %v5931 = vpop.f32.mrb[0].mxu0
    %v5932 = vadd.f32 %v5240, %v5931
    %v5933 = vpop.f32.mrb[0].mxu0
    %v5934 = vadd.f32 %v5244, %v5933
    %v5935 = vpop.f32.mrb[0].mxu0
    %v5936 = vadd.f32 %v5240, %v5935
    %v5937 = vpop.f32.mrb[0].mxu0
    %v5938 = vadd.f32 %v5244, %v5937
    %5939 = vmatprep.mubr.bf16.mxu0 %v5176
    %5940 = vmatmul.mubr.bf16.gmra.mrb[0].mxu0 %v5175
    %v5941 = vpop.f32.mrb[0].mxu0
    %v5942 = vadd.f32 %v5240, %v5941
    %v5943 = vpop.f32.mrb[0].mxu0
    %v5944 = vadd.f32 %v5244, %v5943
    %v5945 = vpop.f32.mrb[0].mxu0
    %v5946 = vadd.f32 %v5240, %v5945
    %v5947 = vpop.f32.mrb[0].mxu0
    %v5948 = vadd.f32 %v5244, %v5947
    %5949 = vmatprep.mubr.bf16.mxu0 %v5178
    %5950 = vmatmul.mubr.bf16.gmra.mrb[0].mxu0 %v5177
    %v5951 = vpop.f32.mrb[0].mxu0
    %v5952 = vadd.f32 %v5240, %v5951
    %v5953 = vpop.f32.mrb[0].mxu0
    %v5954 = vadd.f32 %v5244, %v5953
    %v5955 = vpop.f32.mrb[0].mxu0
    %v5956 = vadd.f32 %v5240, %v5955
    %v5957 = vpop.f32.mrb[0].mxu0
    %v5958 = vadd.f32 %v5244, %v5957
    %5959 = vmatprep.mubr.bf16.mxu0 %v5180
    %5960 = vmatmul.mubr.bf16.gmra.mrb[0].mxu0 %v5179
    %v5961 = vpop.f32.mrb[0].mxu0
    %v5962 = vadd.f32 %v5240, %v5961
    %v5963 = vpop.f32.mrb[0].mxu0
    %v5964 = vadd.f32 %v5244, %v5963
    %v5965 = vpop.f32.mrb[0].mxu0
    %v5966 = vadd.f32 %v5240, %v5965
    %v5967 = vpop.f32.mrb[0].mxu0
    %v5968 = vadd.f32 %v5244, %v5967
    %5969 = vmatprep.mubr.bf16.mxu0 %v5182
    %5970 = vmatmul.mubr.bf16.gmra.mrb[0].mxu0 %v5181
    %v5971 = vpop.f32.mrb[0].mxu0
    %v5972 = vadd.f32 %v5240, %v5971
    %v5973 = vpop.f32.mrb[0].mxu0
    %v5974 = vadd.f32 %v5244, %v5973
    %v5975 = vpop.f32.mrb[0].mxu0
    %v5976 = vadd.f32 %v5240, %v5975
    %v5977 = vpop.f32.mrb[0].mxu0
    %v5978 = vadd.f32 %v5244, %v5977
    %5979 = vmatprep.mubr.bf16.mxu0 %v5184
    %5980 = vmatmul.mubr.bf16.gmra.mrb[0].mxu0 %v5183
    %v5981 = vpop.f32.mrb[0].mxu0
    %v5982 = vadd.f32 %v5240, %v5981
    %v5983 = vpop.f32.mrb[0].mxu0
    %v5984 = vadd.f32 %v5244, %v5983
    %v5985 = vpop.f32.mrb[0].mxu0
    %v5986 = vadd.f32 %v5240, %v5985
    %v5987 = vpop.f32.mrb[0].mxu0
    %v5988 = vadd.f32 %v5244, %v5987
    %5989 = vmatprep.mubr.bf16.mxu0 %v5186
    %5990 = vmatmul.mubr.bf16.gmra.mrb[0].mxu0 %v5185
    %v5991 = vpop.f32.mrb[0].mxu0
    %v5992 = vadd.f32 %v5240, %v5991
    %v5993 = vpop.f32.mrb[0].mxu0
    %v5994 = vadd.f32 %v5244, %v5993
    %v5995 = vpop.f32.mrb[0].mxu0
    %v5996 = vadd.f32 %v5240, %v5995
    %v5997 = vpop.f32.mrb[0].mxu0
    %v5998 = vadd.f32 %v5244, %v5997
    %5999 = vmatprep.mubr.bf16.mxu0 %v5188
    %6000 = vmatmul.mubr.bf16.gmra.mrb[0].mxu0 %v5187
    %v6001 = vpop.f32.mrb[0].mxu0
    %v6002 = vadd.f32 %v5240, %v6001
    %v6003 = vpop.f32.mrb[0].mxu0
    %v6004 = vadd.f32 %v5244, %v6003
    %v6005 = vpop.f32.mrb[0].mxu0
    %v6006 = vadd.f32 %v5240, %v6005
    %v6007 = vpop.f32.mrb[0].mxu0
    %v6008 = vadd.f32 %v5244, %v6007
    %6009 = vmatprep.mubr.bf16.mxu0 %v5190
    %6010 = vmatmul.mubr.bf16.gmra.mrb[0].mxu0 %v5189
    %v6011 = vpop.f32.mrb[0].mxu0
    %v6012 = vadd.f32 %v5240, %v6011
    %v6013 = vpop.f32.mrb[0].mxu0
    %v6014 = vadd.f32 %v5244, %v6013
    %v6015 = vpop.f32.mrb[0].mxu0
    %v6016 = vadd.f32 %v5240, %v6015
    %v6017 = vpop.f32.mrb[0].mxu0
    %v6018 = vadd.f32 %v5244, %v6017
    %6019 = vmatprep.mubr.bf16.mxu0 %v5192
    %6020 = vmatmul.mubr.bf16.gmra.mrb[0].mxu0 %v5191
    %v6021 = vpop.f32.mrb[0].mxu0
    %v6022 = vadd.f32 %v5240, %v6021
    %v6023 = vpop.f32.mrb[0].mxu0
    %v6024 = vadd.f32 %v5244, %v6023
    %v6025 = vpop.f32.mrb[0].mxu0
    %v6026 = vadd.f32 %v5240, %v6025
    %v6027 = vpop.f32.mrb[0].mxu0
    %v6028 = vadd.f32 %v5244, %v6027
    %6029 = vmatprep.mubr.bf16.mxu0 %v5194
    %6030 = vmatmul.mubr.bf16.gmra.mrb[0].mxu0 %v5193
    %v6031 = vpop.f32.mrb[0].mxu0
    %v6032 = vadd.f32 %v5240, %v6031
    %v6033 = vpop.f32.mrb[0].mxu0
    %v6034 = vadd.f32 %v5244, %v6033
    %v6035 = vpop.f32.mrb[0].mxu0
    %v6036 = vadd.f32 %v5240, %v6035
    %v6037 = vpop.f32.mrb[0].mxu0
    %v6038 = vadd.f32 %v5244, %v6037
    %6039 = vmatprep.mubr.bf16.mxu0 %v5196
    %6040 = vmatmul.mubr.bf16.gmra.mrb[0].mxu0 %v5195
    %v6041 = vpop.f32.mrb[0].mxu0
    %v6042 = vadd.f32 %v5240, %v6041
    %v6043 = vpop.f32.mrb[0].mxu0
    %v6044 = vadd.f32 %v5244, %v6043
    %v6045 = vpop.f32.mrb[0].mxu0
    %v6046 = vadd.f32 %v5240, %v6045
    %v6047 = vpop.f32.mrb[0].mxu0
    %v6048 = vadd.f32 %v5244, %v6047
    %6049 = vmatprep.mubr.bf16.mxu0 %v5198
    %6050 = vmatmul.mubr.bf16.gmra.mrb[0].mxu0 %v5197
    %v6051 = vpop.f32.mrb[0].mxu0
    %v6052 = vadd.f32 %v5240, %v6051
    %v6053 = vpop.f32.mrb[0].mxu0
    %v6054 = vadd.f32 %v5244, %v6053
    %v6055 = vpop.f32.mrb[0].mxu0
    %v6056 = vadd.f32 %v5240, %v6055
    %v6057 = vpop.f32.mrb[0].mxu0
    %v6058 = vadd.f32 %v5244, %v6057
    %6059 = vmatprep.mubr.bf16.mxu0 %v5200
    %6060 = vmatmul.mubr.bf16.gmra.mrb[0].mxu0 %v5199
    %v6061 = vpop.f32.mrb[0].mxu0
    %v6062 = vadd.f32 %v5240, %v6061
    %v6063 = vpop.f32.mrb[0].mxu0
    %v6064 = vadd.f32 %v5244, %v6063
    %v6065 = vpop.f32.mrb[0].mxu0
    %v6066 = vadd.f32 %v5240, %v6065
    %v6067 = vpop.f32.mrb[0].mxu0
    %v6068 = vadd.f32 %v5244, %v6067
    %6069 = vmatprep.mubr.bf16.mxu0 %v5202
    %6070 = vmatmul.mubr.bf16.gmra.mrb[0].mxu0 %v5201
    %v6071 = vpop.f32.mrb[0].mxu0
    %v6072 = vadd.f32 %v5240, %v6071
    %v6073 = vpop.f32.mrb[0].mxu0
    %v6074 = vadd.f32 %v5244, %v6073
    %v6075 = vpop.f32.mrb[0].mxu0
    %v6076 = vadd.f32 %v5240, %v6075
    %v6077 = vpop.f32.mrb[0].mxu0
    %v6078 = vadd.f32 %v5244, %v6077
    %6079 = vdwg.mxu0
    %v6080 = vmax.f32 %v5442, 0.0
    %v6081 = vmax.f32 %v5444, 0.0
    %v6082 = vmax.f32 %v5446, 0.0
    %v6083 = vmax.f32 %v5448, 0.0
    %v6084 = vmax.f32 %v5452, 0.0
    %v6085 = vmax.f32 %v5454, 0.0
    %v6086 = vmax.f32 %v5456, 0.0
    %v6087 = vmax.f32 %v5458, 0.0
    %v6088 = vmax.f32 %v5462, 0.0
    %v6089 = vmax.f32 %v5464, 0.0
    %v6090 = vmax.f32 %v5466, 0.0
    %v6091 = vmax.f32 %v5468, 0.0
    %v6092 = vmax.f32 %v5472, 0.0
    %v6093 = vmax.f32 %v5474, 0.0
    %v6094 = vmax.f32 %v5476, 0.0
    %v6095 = vmax.f32 %v5478, 0.0
    %v6096 = vmax.f32 %v5482, 0.0
    %v6097 = vmax.f32 %v5484, 0.0
    %v6098 = vmax.f32 %v5486, 0.0
    %v6099 = vmax.f32 %v5488, 0.0
    %v6100 = vmax.f32 %v5492, 0.0
    %v6101 = vmax.f32 %v5494, 0.0
    %v6102 = vmax.f32 %v5496, 0.0
    %v6103 = vmax.f32 %v5498, 0.0
    %v6104 = vmax.f32 %v5502, 0.0
    %v6105 = vmax.f32 %v5504, 0.0
    %v6106 = vmax.f32 %v5506, 0.0
    %v6107 = vmax.f32 %v5508, 0.0
    %v6108 = vmax.f32 %v5512, 0.0
    %v6109 = vmax.f32 %v5514, 0.0
    %v6110 = vmax.f32 %v5516, 0.0
    %v6111 = vmax.f32 %v5518, 0.0
    %v6112 = vmax.f32 %v5522, 0.0
    %v6113 = vmax.f32 %v5524, 0.0
    %v6114 = vmax.f32 %v5526, 0.0
    %v6115 = vmax.f32 %v5528, 0.0
    %v6116 = vmax.f32 %v5532, 0.0
    %v6117 = vmax.f32 %v5534, 0.0
    %v6118 = vmax.f32 %v5536, 0.0
    %v6119 = vmax.f32 %v5538, 0.0
    %v6120 = vmax.f32 %v5542, 0.0
    %v6121 = vmax.f32 %v5544, 0.0
    %v6122 = vmax.f32 %v5546, 0.0
    %v6123 = vmax.f32 %v5548, 0.0
    %v6124 = vmax.f32 %v5552, 0.0
    %v6125 = vmax.f32 %v5554, 0.0
    %v6126 = vmax.f32 %v5556, 0.0
    %v6127 = vmax.f32 %v5558, 0.0
    %v6128 = vmax.f32 %v5562, 0.0
    %v6129 = vmax.f32 %v5564, 0.0
    %v6130 = vmax.f32 %v5566, 0.0
    %v6131 = vmax.f32 %v5568, 0.0
    %v6132 = vmax.f32 %v5572, 0.0
    %v6133 = vmax.f32 %v5574, 0.0
    %v6134 = vmax.f32 %v5576, 0.0
    %v6135 = vmax.f32 %v5578, 0.0
    %v6136 = vmax.f32 %v5582, 0.0
    %v6137 = vmax.f32 %v5584, 0.0
    %v6138 = vmax.f32 %v5586, 0.0
    %v6139 = vmax.f32 %v5588, 0.0
    %v6140 = vmax.f32 %v5592, 0.0
    %v6141 = vmax.f32 %v5594, 0.0
    %v6142 = vmax.f32 %v5596, 0.0
    %v6143 = vmax.f32 %v5598, 0.0
    %v6144 = vmax.f32 %v5602, 0.0
    %v6145 = vmax.f32 %v5604, 0.0
    %v6146 = vmax.f32 %v5606, 0.0
    %v6147 = vmax.f32 %v5608, 0.0
    %v6148 = vmax.f32 %v5612, 0.0
    %v6149 = vmax.f32 %v5614, 0.0
    %v6150 = vmax.f32 %v5616, 0.0
    %v6151 = vmax.f32 %v5618, 0.0
    %v6152 = vmax.f32 %v5622, 0.0
    %v6153 = vmax.f32 %v5624, 0.0
    %v6154 = vmax.f32 %v5626, 0.0
    %v6155 = vmax.f32 %v5628, 0.0
    %v6156 = vmax.f32 %v5632, 0.0
    %v6157 = vmax.f32 %v5634, 0.0
    %v6158 = vmax.f32 %v5636, 0.0
    %v6159 = vmax.f32 %v5638, 0.0
    %v6160 = vmax.f32 %v5642, 0.0
    %v6161 = vmax.f32 %v5644, 0.0
    %v6162 = vmax.f32 %v5646, 0.0
    %v6163 = vmax.f32 %v5648, 0.0
    %v6164 = vmax.f32 %v5652, 0.0
    %v6165 = vmax.f32 %v5654, 0.0
    %v6166 = vmax.f32 %v5656, 0.0
    %v6167 = vmax.f32 %v5658, 0.0
    %v6168 = vmax.f32 %v5662, 0.0
    %v6169 = vmax.f32 %v5664, 0.0
    %v6170 = vmax.f32 %v5666, 0.0
    %v6171 = vmax.f32 %v5668, 0.0
    %v6172 = vmax.f32 %v5672, 0.0
    %v6173 = vmax.f32 %v5674, 0.0
    %v6174 = vmax.f32 %v5676, 0.0
    %v6175 = vmax.f32 %v5678, 0.0
    %v6176 = vmax.f32 %v5682, 0.0
    %v6177 = vmax.f32 %v5684, 0.0
    %v6178 = vmax.f32 %v5686, 0.0
    %v6179 = vmax.f32 %v5688, 0.0
    %v6180 = vmax.f32 %v5692, 0.0
    %v6181 = vmax.f32 %v5694, 0.0
    %v6182 = vmax.f32 %v5696, 0.0
    %v6183 = vmax.f32 %v5698, 0.0
    %v6184 = vmax.f32 %v5702, 0.0
    %v6185 = vmax.f32 %v5704, 0.0
    %v6186 = vmax.f32 %v5706, 0.0
    %v6187 = vmax.f32 %v5708, 0.0
    %v6188 = vmax.f32 %v5712, 0.0
    %v6189 = vmax.f32 %v5714, 0.0
    %v6190 = vmax.f32 %v5716, 0.0
    %v6191 = vmax.f32 %v5718, 0.0
    %v6192 = vmax.f32 %v5722, 0.0
    %v6193 = vmax.f32 %v5724, 0.0
    %v6194 = vmax.f32 %v5726, 0.0
    %v6195 = vmax.f32 %v5728, 0.0
    %v6196 = vmax.f32 %v5732, 0.0
    %v6197 = vmax.f32 %v5734, 0.0
    %v6198 = vmax.f32 %v5736, 0.0
    %v6199 = vmax.f32 %v5738, 0.0
    %v6200 = vmax.f32 %v5742, 0.0
    %v6201 = vmax.f32 %v5744, 0.0
    %v6202 = vmax.f32 %v5746, 0.0
    %v6203 = vmax.f32 %v5748, 0.0
    %v6204 = vmax.f32 %v5752, 0.0
    %v6205 = vmax.f32 %v5754, 0.0
    %v6206 = vmax.f32 %v5756, 0.0
    %v6207 = vmax.f32 %v5758, 0.0
    %v6208 = vmax.f32 %v5762, 0.0
    %v6209 = vmax.f32 %v5764, 0.0
    %v6210 = vmax.f32 %v5766, 0.0
    %v6211 = vmax.f32 %v5768, 0.0
    %v6212 = vmax.f32 %v5772, 0.0
    %v6213 = vmax.f32 %v5774, 0.0
    %v6214 = vmax.f32 %v5776, 0.0
    %v6215 = vmax.f32 %v5778, 0.0
    %v6216 = vmax.f32 %v5782, 0.0
    %v6217 = vmax.f32 %v5784, 0.0
    %v6218 = vmax.f32 %v5786, 0.0
    %v6219 = vmax.f32 %v5788, 0.0
    %v6220 = vmax.f32 %v5792, 0.0
    %v6221 = vmax.f32 %v5794, 0.0
    %v6222 = vmax.f32 %v5796, 0.0
    %v6223 = vmax.f32 %v5798, 0.0
    %v6224 = vmax.f32 %v5802, 0.0
    %v6225 = vmax.f32 %v5804, 0.0
    %v6226 = vmax.f32 %v5806, 0.0
    %v6227 = vmax.f32 %v5808, 0.0
    %v6228 = vmax.f32 %v5812, 0.0
    %v6229 = vmax.f32 %v5814, 0.0
    %v6230 = vmax.f32 %v5816, 0.0
    %v6231 = vmax.f32 %v5818, 0.0
    %v6232 = vmax.f32 %v5822, 0.0
    %v6233 = vmax.f32 %v5824, 0.0
    %v6234 = vmax.f32 %v5826, 0.0
    %v6235 = vmax.f32 %v5828, 0.0
    %v6236 = vmax.f32 %v5832, 0.0
    %v6237 = vmax.f32 %v5834, 0.0
    %v6238 = vmax.f32 %v5836, 0.0
    %v6239 = vmax.f32 %v5838, 0.0
    %v6240 = vmax.f32 %v5842, 0.0
    %v6241 = vmax.f32 %v5844, 0.0
    %v6242 = vmax.f32 %v5846, 0.0
    %v6243 = vmax.f32 %v5848, 0.0
    %v6244 = vmax.f32 %v5852, 0.0
    %v6245 = vmax.f32 %v5854, 0.0
    %v6246 = vmax.f32 %v5856, 0.0
    %v6247 = vmax.f32 %v5858, 0.0
    %v6248 = vmax.f32 %v5862, 0.0
    %v6249 = vmax.f32 %v5864, 0.0
    %v6250 = vmax.f32 %v5866, 0.0
    %v6251 = vmax.f32 %v5868, 0.0
    %v6252 = vmax.f32 %v5872, 0.0
    %v6253 = vmax.f32 %v5874, 0.0
    %v6254 = vmax.f32 %v5876, 0.0
    %v6255 = vmax.f32 %v5878, 0.0
    %v6256 = vmax.f32 %v5882, 0.0
    %v6257 = vmax.f32 %v5884, 0.0
    %v6258 = vmax.f32 %v5886, 0.0
    %v6259 = vmax.f32 %v5888, 0.0
    %v6260 = vmax.f32 %v5892, 0.0
    %v6261 = vmax.f32 %v5894, 0.0
    %v6262 = vmax.f32 %v5896, 0.0
    %v6263 = vmax.f32 %v5898, 0.0
    %v6264 = vmax.f32 %v5902, 0.0
    %v6265 = vmax.f32 %v5904, 0.0
    %v6266 = vmax.f32 %v5906, 0.0
    %v6267 = vmax.f32 %v5908, 0.0
    %v6268 = vmax.f32 %v5912, 0.0
    %v6269 = vmax.f32 %v5914, 0.0
    %v6270 = vmax.f32 %v5916, 0.0
    %v6271 = vmax.f32 %v5918, 0.0
    %v6272 = vmax.f32 %v5922, 0.0
    %v6273 = vmax.f32 %v5924, 0.0
    %v6274 = vmax.f32 %v5926, 0.0
    %v6275 = vmax.f32 %v5928, 0.0
    %v6276 = vmax.f32 %v5932, 0.0
    %v6277 = vmax.f32 %v5934, 0.0
    %v6278 = vmax.f32 %v5936, 0.0
    %v6279 = vmax.f32 %v5938, 0.0
    %v6280 = vmax.f32 %v5942, 0.0
    %v6281 = vmax.f32 %v5944, 0.0
    %v6282 = vmax.f32 %v5946, 0.0
    %v6283 = vmax.f32 %v5948, 0.0
    %v6284 = vmax.f32 %v5952, 0.0
    %v6285 = vmax.f32 %v5954, 0.0
    %v6286 = vmax.f32 %v5956, 0.0
    %v6287 = vmax.f32 %v5958, 0.0
    %v6288 = vmax.f32 %v5962, 0.0
    %v6289 = vmax.f32 %v5964, 0.0
    %v6290 = vmax.f32 %v5966, 0.0
    %v6291 = vmax.f32 %v5968, 0.0
    %v6292 = vmax.f32 %v5972, 0.0
    %v6293 = vmax.f32 %v5974, 0.0
    %v6294 = vmax.f32 %v5976, 0.0
    %v6295 = vmax.f32 %v5978, 0.0
    %v6296 = vmax.f32 %v5982, 0.0
    %v6297 = vmax.f32 %v5984, 0.0
    %v6298 = vmax.f32 %v5986, 0.0
    %v6299 = vmax.f32 %v5988, 0.0
    %v6300 = vmax.f32 %v5992, 0.0
    %v6301 = vmax.f32 %v5994, 0.0
    %v6302 = vmax.f32 %v5996, 0.0
    %v6303 = vmax.f32 %v5998, 0.0
    %v6304 = vmax.f32 %v6002, 0.0
    %v6305 = vmax.f32 %v6004, 0.0
    %v6306 = vmax.f32 %v6006, 0.0
    %v6307 = vmax.f32 %v6008, 0.0
    %v6308 = vmax.f32 %v6012, 0.0
    %v6309 = vmax.f32 %v6014, 0.0
    %v6310 = vmax.f32 %v6016, 0.0
    %v6311 = vmax.f32 %v6018, 0.0
    %v6312 = vmax.f32 %v6022, 0.0
    %v6313 = vmax.f32 %v6024, 0.0
    %v6314 = vmax.f32 %v6026, 0.0
    %v6315 = vmax.f32 %v6028, 0.0
    %v6316 = vmax.f32 %v6032, 0.0
    %v6317 = vmax.f32 %v6034, 0.0
    %v6318 = vmax.f32 %v6036, 0.0
    %v6319 = vmax.f32 %v6038, 0.0
    %v6320 = vmax.f32 %v6042, 0.0
    %v6321 = vmax.f32 %v6044, 0.0
    %v6322 = vmax.f32 %v6046, 0.0
    %v6323 = vmax.f32 %v6048, 0.0
    %v6324 = vmax.f32 %v6052, 0.0
    %v6325 = vmax.f32 %v6054, 0.0
    %v6326 = vmax.f32 %v6056, 0.0
    %v6327 = vmax.f32 %v6058, 0.0
    %v6328 = vmax.f32 %v6062, 0.0
    %v6329 = vmax.f32 %v6064, 0.0
    %v6330 = vmax.f32 %v6066, 0.0
    %v6331 = vmax.f32 %v6068, 0.0
    %v6332 = vmax.f32 %v6072, 0.0
    %v6333 = vmax.f32 %v6074, 0.0
    %v6334 = vmax.f32 %v6076, 0.0
    %v6335 = vmax.f32 %v6078, 0.0
    %v6336 = vpack.c.bf16 %v6082, %v6080
    %v6337 = vpack.c.bf16 %v6083, %v6081
    %v6338 = vpack.c.bf16 %v6086, %v6084
    %v6339 = vpack.c.bf16 %v6087, %v6085
    %v6340 = vpack.c.bf16 %v6090, %v6088
    %v6341 = vpack.c.bf16 %v6091, %v6089
    %v6342 = vpack.c.bf16 %v6094, %v6092
    %v6343 = vpack.c.bf16 %v6095, %v6093
    %v6344 = vpack.c.bf16 %v6098, %v6096
    %v6345 = vpack.c.bf16 %v6099, %v6097
    %v6346 = vpack.c.bf16 %v6102, %v6100
    %v6347 = vpack.c.bf16 %v6103, %v6101
    %v6348 = vpack.c.bf16 %v6106, %v6104
    %v6349 = vpack.c.bf16 %v6107, %v6105
    %v6350 = vpack.c.bf16 %v6110, %v6108
    %v6351 = vpack.c.bf16 %v6111, %v6109
    %v6352 = vpack.c.bf16 %v6114, %v6112
    %v6353 = vpack.c.bf16 %v6115, %v6113
    %v6354 = vpack.c.bf16 %v6118, %v6116
    %v6355 = vpack.c.bf16 %v6119, %v6117
    %v6356 = vpack.c.bf16 %v6122, %v6120
    %v6357 = vpack.c.bf16 %v6123, %v6121
    %v6358 = vpack.c.bf16 %v6126, %v6124
    %v6359 = vpack.c.bf16 %v6127, %v6125
    %v6360 = vpack.c.bf16 %v6130, %v6128
    %v6361 = vpack.c.bf16 %v6131, %v6129
    %v6362 = vpack.c.bf16 %v6134, %v6132
    %v6363 = vpack.c.bf16 %v6135, %v6133
    %v6364 = vpack.c.bf16 %v6138, %v6136
    %v6365 = vpack.c.bf16 %v6139, %v6137
    %v6366 = vpack.c.bf16 %v6142, %v6140
    %v6367 = vpack.c.bf16 %v6143, %v6141
    %v6368 = vpack.c.bf16 %v6146, %v6144
    %v6369 = vpack.c.bf16 %v6147, %v6145
    %v6370 = vpack.c.bf16 %v6150, %v6148
    %v6371 = vpack.c.bf16 %v6151, %v6149
    %v6372 = vpack.c.bf16 %v6154, %v6152
    %v6373 = vpack.c.bf16 %v6155, %v6153
    %v6374 = vpack.c.bf16 %v6158, %v6156
    %v6375 = vpack.c.bf16 %v6159, %v6157
    %v6376 = vpack.c.bf16 %v6162, %v6160
    %v6377 = vpack.c.bf16 %v6163, %v6161
    %v6378 = vpack.c.bf16 %v6166, %v6164
    %v6379 = vpack.c.bf16 %v6167, %v6165
    %v6380 = vpack.c.bf16 %v6170, %v6168
    %v6381 = vpack.c.bf16 %v6171, %v6169
    %v6382 = vpack.c.bf16 %v6174, %v6172
    %v6383 = vpack.c.bf16 %v6175, %v6173
    %v6384 = vpack.c.bf16 %v6178, %v6176
    %v6385 = vpack.c.bf16 %v6179, %v6177
    %v6386 = vpack.c.bf16 %v6182, %v6180
    %v6387 = vpack.c.bf16 %v6183, %v6181
    %v6388 = vpack.c.bf16 %v6186, %v6184
    %v6389 = vpack.c.bf16 %v6187, %v6185
    %v6390 = vpack.c.bf16 %v6190, %v6188
    %v6391 = vpack.c.bf16 %v6191, %v6189
    %v6392 = vpack.c.bf16 %v6194, %v6192
    %v6393 = vpack.c.bf16 %v6195, %v6193
    %v6394 = vpack.c.bf16 %v6198, %v6196
    %v6395 = vpack.c.bf16 %v6199, %v6197
    %v6396 = vpack.c.bf16 %v6202, %v6200
    %v6397 = vpack.c.bf16 %v6203, %v6201
    %v6398 = vpack.c.bf16 %v6206, %v6204
    %v6399 = vpack.c.bf16 %v6207, %v6205
    %v6400 = vpack.c.bf16 %v6210, %v6208
    %v6401 = vpack.c.bf16 %v6211, %v6209
    %v6402 = vpack.c.bf16 %v6214, %v6212
    %v6403 = vpack.c.bf16 %v6215, %v6213
    %v6404 = vpack.c.bf16 %v6218, %v6216
    %v6405 = vpack.c.bf16 %v6219, %v6217
    %v6406 = vpack.c.bf16 %v6222, %v6220
    %v6407 = vpack.c.bf16 %v6223, %v6221
    %v6408 = vpack.c.bf16 %v6226, %v6224
    %v6409 = vpack.c.bf16 %v6227, %v6225
    %v6410 = vpack.c.bf16 %v6230, %v6228
    %v6411 = vpack.c.bf16 %v6231, %v6229
    %v6412 = vpack.c.bf16 %v6234, %v6232
    %v6413 = vpack.c.bf16 %v6235, %v6233
    %v6414 = vpack.c.bf16 %v6238, %v6236
    %v6415 = vpack.c.bf16 %v6239, %v6237
    %v6416 = vpack.c.bf16 %v6242, %v6240
    %v6417 = vpack.c.bf16 %v6243, %v6241
    %v6418 = vpack.c.bf16 %v6246, %v6244
    %v6419 = vpack.c.bf16 %v6247, %v6245
    %v6420 = vpack.c.bf16 %v6250, %v6248
    %v6421 = vpack.c.bf16 %v6251, %v6249
    %v6422 = vpack.c.bf16 %v6254, %v6252
    %v6423 = vpack.c.bf16 %v6255, %v6253
    %v6424 = vpack.c.bf16 %v6258, %v6256
    %v6425 = vpack.c.bf16 %v6259, %v6257
    %v6426 = vpack.c.bf16 %v6262, %v6260
    %v6427 = vpack.c.bf16 %v6263, %v6261
    %v6428 = vpack.c.bf16 %v6266, %v6264
    %v6429 = vpack.c.bf16 %v6267, %v6265
    %v6430 = vpack.c.bf16 %v6270, %v6268
    %v6431 = vpack.c.bf16 %v6271, %v6269
    %v6432 = vpack.c.bf16 %v6274, %v6272
    %v6433 = vpack.c.bf16 %v6275, %v6273
    %v6434 = vpack.c.bf16 %v6278, %v6276
    %v6435 = vpack.c.bf16 %v6279, %v6277
    %v6436 = vpack.c.bf16 %v6282, %v6280
    %v6437 = vpack.c.bf16 %v6283, %v6281
    %v6438 = vpack.c.bf16 %v6286, %v6284
    %v6439 = vpack.c.bf16 %v6287, %v6285
    %v6440 = vpack.c.bf16 %v6290, %v6288
    %v6441 = vpack.c.bf16 %v6291, %v6289
    %v6442 = vpack.c.bf16 %v6294, %v6292
    %v6443 = vpack.c.bf16 %v6295, %v6293
    %v6444 = vpack.c.bf16 %v6298, %v6296
    %v6445 = vpack.c.bf16 %v6299, %v6297
    %v6446 = vpack.c.bf16 %v6302, %v6300
    %v6447 = vpack.c.bf16 %v6303, %v6301
    %v6448 = vpack.c.bf16 %v6306, %v6304
    %v6449 = vpack.c.bf16 %v6307, %v6305
    %v6450 = vpack.c.bf16 %v6310, %v6308
    %v6451 = vpack.c.bf16 %v6311, %v6309
    %v6452 = vpack.c.bf16 %v6314, %v6312
    %v6453 = vpack.c.bf16 %v6315, %v6313
    %v6454 = vpack.c.bf16 %v6318, %v6316
    %v6455 = vpack.c.bf16 %v6319, %v6317
    %v6456 = vpack.c.bf16 %v6322, %v6320
    %v6457 = vpack.c.bf16 %v6323, %v6321
    %v6458 = vpack.c.bf16 %v6326, %v6324
    %v6459 = vpack.c.bf16 %v6327, %v6325
    %v6460 = vpack.c.bf16 %v6330, %v6328
    %v6461 = vpack.c.bf16 %v6331, %v6329
    %v6462 = vpack.c.bf16 %v6334, %v6332
    %v6463 = vpack.c.bf16 %v6335, %v6333
    %v6464 = vld [vmem:[#allocation8] sm:$0xff]
    %v6465 = vld [vmem:[#allocation8 + $0x8] sm:$0xff]
    %v6466 = vld [vmem:[#allocation8 + $0x10] sm:$0xff]
    %v6467 = vld [vmem:[#allocation8 + $0x18] sm:$0xff]
    %v6468 = vld [vmem:[#allocation8 + $0x20] sm:$0xff]
    %v6469 = vld [vmem:[#allocation8 + $0x28] sm:$0xff]
    %v6470 = vld [vmem:[#allocation8 + $0x30] sm:$0xff]
    %v6471 = vld [vmem:[#allocation8 + $0x38] sm:$0xff]
    %v6472 = vld [vmem:[#allocation8 + $0x40] sm:$0xff]
    %v6473 = vld [vmem:[#allocation8 + $0x48] sm:$0xff]
    %v6474 = vld [vmem:[#allocation8 + $0x50] sm:$0xff]
    %v6475 = vld [vmem:[#allocation8 + $0x58] sm:$0xff]
    %v6476 = vld [vmem:[#allocation8 + $0x60] sm:$0xff]
    %v6477 = vld [vmem:[#allocation8 + $0x68] sm:$0xff]
    %v6478 = vld [vmem:[#allocation8 + $0x70] sm:$0xff]
    %v6479 = vld [vmem:[#allocation8 + $0x78] sm:$0xff]
    %v6480 = vld [vmem:[#allocation8 + $0x80] sm:$0xff]
    %v6481 = vld [vmem:[#allocation8 + $0x88] sm:$0xff]
    %v6482 = vld [vmem:[#allocation8 + $0x90] sm:$0xff]
    %v6483 = vld [vmem:[#allocation8 + $0x98] sm:$0xff]
    %v6484 = vld [vmem:[#allocation8 + $0xa0] sm:$0xff]
    %v6485 = vld [vmem:[#allocation8 + $0xa8] sm:$0xff]
    %v6486 = vld [vmem:[#allocation8 + $0xb0] sm:$0xff]
    %v6487 = vld [vmem:[#allocation8 + $0xb8] sm:$0xff]
    %v6488 = vld [vmem:[#allocation8 + $0xc0] sm:$0xff]
    %v6489 = vld [vmem:[#allocation8 + $0xc8] sm:$0xff]
    %v6490 = vld [vmem:[#allocation8 + $0xd0] sm:$0xff]
    %v6491 = vld [vmem:[#allocation8 + $0xd8] sm:$0xff]
    %v6492 = vld [vmem:[#allocation8 + $0xe0] sm:$0xff]
    %v6493 = vld [vmem:[#allocation8 + $0xe8] sm:$0xff]
    %v6494 = vld [vmem:[#allocation8 + $0xf0] sm:$0xff]
    %v6495 = vld [vmem:[#allocation8 + $0xf8] sm:$0xff]
    %v6496 = vld [vmem:[%s16] sm:$0x3]
    %v6498 = vlaneseq
    %v6499 = vshrl.u32 %v6498, 7
    %v6500 = vsub.s32 0, %v6499
    %v6501 = vrot.slane %v6496, %v6500
    %v6502 = vlaneseq
    %v6503 = vshrl.u32 %v6502, 7
    %v6504 = vsub.s32 1, %v6503
    %v6505 = vrot.slane %v6496, %v6504
    %v6540 = vunpack.c.l.b16 %v6464
    %v6541 = vunpack.c.h.b16 %v6464
    %v6542 = vunpack.c.l.b16 %v6465
    %v6543 = vunpack.c.h.b16 %v6465
    %v6544 = vunpack.c.l.b16 %v6466
    %v6545 = vunpack.c.h.b16 %v6466
    %v6546 = vunpack.c.l.b16 %v6467
    %v6547 = vunpack.c.h.b16 %v6467
    %v6548 = vunpack.c.l.b16 %v6468
    %v6549 = vunpack.c.h.b16 %v6468
    %v6550 = vunpack.c.l.b16 %v6469
    %v6551 = vunpack.c.h.b16 %v6469
    %v6552 = vunpack.c.l.b16 %v6470
    %v6553 = vunpack.c.h.b16 %v6470
    %v6554 = vunpack.c.l.b16 %v6471
    %v6555 = vunpack.c.h.b16 %v6471
    %v6556 = vunpack.c.l.b16 %v6472
    %v6557 = vunpack.c.h.b16 %v6472
    %v6558 = vunpack.c.l.b16 %v6473
    %v6559 = vunpack.c.h.b16 %v6473
    %v6560 = vunpack.c.l.b16 %v6474
    %v6561 = vunpack.c.h.b16 %v6474
    %v6562 = vunpack.c.l.b16 %v6475
    %v6563 = vunpack.c.h.b16 %v6475
    %v6564 = vunpack.c.l.b16 %v6476
    %v6565 = vunpack.c.h.b16 %v6476
    %v6566 = vunpack.c.l.b16 %v6477
    %v6567 = vunpack.c.h.b16 %v6477
    %v6568 = vunpack.c.l.b16 %v6478
    %v6569 = vunpack.c.h.b16 %v6478
    %v6570 = vunpack.c.l.b16 %v6479
    %v6571 = vunpack.c.h.b16 %v6479
    %v6572 = vunpack.c.l.b16 %v6480
    %v6573 = vunpack.c.h.b16 %v6480
    %v6574 = vunpack.c.l.b16 %v6481
    %v6575 = vunpack.c.h.b16 %v6481
    %v6576 = vunpack.c.l.b16 %v6482
    %v6577 = vunpack.c.h.b16 %v6482
    %v6578 = vunpack.c.l.b16 %v6483
    %v6579 = vunpack.c.h.b16 %v6483
    %v6580 = vunpack.c.l.b16 %v6484
    %v6581 = vunpack.c.h.b16 %v6484
    %v6582 = vunpack.c.l.b16 %v6485
    %v6583 = vunpack.c.h.b16 %v6485
    %v6584 = vunpack.c.l.b16 %v6486
    %v6585 = vunpack.c.h.b16 %v6486
    %v6586 = vunpack.c.l.b16 %v6487
    %v6587 = vunpack.c.h.b16 %v6487
    %v6588 = vunpack.c.l.b16 %v6488
    %v6589 = vunpack.c.h.b16 %v6488
    %v6590 = vunpack.c.l.b16 %v6489
    %v6591 = vunpack.c.h.b16 %v6489
    %v6592 = vunpack.c.l.b16 %v6490
    %v6593 = vunpack.c.h.b16 %v6490
    %v6594 = vunpack.c.l.b16 %v6491
    %v6595 = vunpack.c.h.b16 %v6491
    %v6596 = vunpack.c.l.b16 %v6492
    %v6597 = vunpack.c.h.b16 %v6492
    %v6598 = vunpack.c.l.b16 %v6493
    %v6599 = vunpack.c.h.b16 %v6493
    %v6600 = vunpack.c.l.b16 %v6494
    %v6601 = vunpack.c.h.b16 %v6494
    %v6602 = vunpack.c.l.b16 %v6495
    %v6603 = vunpack.c.h.b16 %v6495
    %v6604 = vpack.c.b16 %v6542, %v6540
    %v6605 = vpack.c.b16 %v6543, %v6541
    %v6606 = vpack.c.b16 %v6546, %v6544
    %v6607 = vpack.c.b16 %v6547, %v6545
    %v6608 = vpack.c.b16 %v6550, %v6548
    %v6609 = vpack.c.b16 %v6551, %v6549
    %v6610 = vpack.c.b16 %v6554, %v6552
    %v6611 = vpack.c.b16 %v6555, %v6553
    %v6612 = vpack.c.b16 %v6558, %v6556
    %v6613 = vpack.c.b16 %v6559, %v6557
    %v6614 = vpack.c.b16 %v6562, %v6560
    %v6615 = vpack.c.b16 %v6563, %v6561
    %v6616 = vpack.c.b16 %v6566, %v6564
    %v6617 = vpack.c.b16 %v6567, %v6565
    %v6618 = vpack.c.b16 %v6570, %v6568
    %v6619 = vpack.c.b16 %v6571, %v6569
    %v6620 = vpack.c.b16 %v6574, %v6572
    %v6621 = vpack.c.b16 %v6575, %v6573
    %v6622 = vpack.c.b16 %v6578, %v6576
    %v6623 = vpack.c.b16 %v6579, %v6577
    %v6624 = vpack.c.b16 %v6582, %v6580
    %v6625 = vpack.c.b16 %v6583, %v6581
    %v6626 = vpack.c.b16 %v6586, %v6584
    %v6627 = vpack.c.b16 %v6587, %v6585
    %v6628 = vpack.c.b16 %v6590, %v6588
    %v6629 = vpack.c.b16 %v6591, %v6589
    %v6630 = vpack.c.b16 %v6594, %v6592
    %v6631 = vpack.c.b16 %v6595, %v6593
    %v6632 = vpack.c.b16 %v6598, %v6596
    %v6633 = vpack.c.b16 %v6599, %v6597
    %v6634 = vpack.c.b16 %v6602, %v6600
    %v6635 = vpack.c.b16 %v6603, %v6601
    %6668 = vmatprep.subr.bf16.mxu0 %v6605
    %6669 = vmatpush1.bf16.msra.mxu0 %v6604
    %6670 = vmatprep.subr.bf16.mxu0 %v6607
    %6671 = vmatpush1.bf16.msra.mxu0 %v6606
    %6672 = vmatprep.subr.bf16.mxu0 %v6609
    %6673 = vmatpush1.bf16.msra.mxu0 %v6608
    %6674 = vmatprep.subr.bf16.mxu0 %v6611
    %6675 = vmatpush1.bf16.msra.mxu0 %v6610
    %6676 = vmatprep.subr.bf16.mxu0 %v6613
    %6677 = vmatpush1.bf16.msra.mxu0 %v6612
    %6678 = vmatprep.subr.bf16.mxu0 %v6615
    %6679 = vmatpush1.bf16.msra.mxu0 %v6614
    %6680 = vmatprep.subr.bf16.mxu0 %v6617
    %6681 = vmatpush1.bf16.msra.mxu0 %v6616
    %6682 = vmatprep.subr.bf16.mxu0 %v6619
    %6683 = vmatpush1.bf16.msra.mxu0 %v6618
    %6684 = vmatprep.subr.bf16.mxu0 %v6621
    %6685 = vmatpush1.bf16.msra.mxu0 %v6620
    %6686 = vmatprep.subr.bf16.mxu0 %v6623
    %6687 = vmatpush1.bf16.msra.mxu0 %v6622
    %6688 = vmatprep.subr.bf16.mxu0 %v6625
    %6689 = vmatpush1.bf16.msra.mxu0 %v6624
    %6690 = vmatprep.subr.bf16.mxu0 %v6627
    %6691 = vmatpush1.bf16.msra.mxu0 %v6626
    %6692 = vmatprep.subr.bf16.mxu0 %v6629
    %6693 = vmatpush1.bf16.msra.mxu0 %v6628
    %6694 = vmatprep.subr.bf16.mxu0 %v6631
    %6695 = vmatpush1.bf16.msra.mxu0 %v6630
    %6696 = vmatprep.subr.bf16.mxu0 %v6633
    %6697 = vmatpush1.bf16.msra.mxu0 %v6632
    %6698 = vmatprep.subr.bf16.mxu0 %v6635
    %6699 = vmatpush1.bf16.msra.mxu0 %v6634
    %6700 = vmatprep.mubr.bf16.mxu0 %v6337
    %6701 = vmatmul.mubr.bf16.gmra.mrb[0].mxu0 %v6336
    %v6702 = vpop.f32.mrb[0].mxu0
    %v6703 = vadd.f32 %v6501, %v6702
    %v6704 = vpop.f32.mrb[0].mxu0
    %v6705 = vadd.f32 %v6505, %v6704
    %v6706 = vpop.f32.mrb[0].mxu0
    %v6707 = vadd.f32 %v6501, %v6706
    %v6708 = vpop.f32.mrb[0].mxu0
    %v6709 = vadd.f32 %v6505, %v6708
    %6710 = vmatprep.mubr.bf16.mxu0 %v6339
    %6711 = vmatmul.mubr.bf16.gmra.mrb[0].mxu0 %v6338
    %v6712 = vpop.f32.mrb[0].mxu0
    %v6713 = vadd.f32 %v6501, %v6712
    %v6714 = vpop.f32.mrb[0].mxu0
    %v6715 = vadd.f32 %v6505, %v6714
    %v6716 = vpop.f32.mrb[0].mxu0
    %v6717 = vadd.f32 %v6501, %v6716
    %v6718 = vpop.f32.mrb[0].mxu0
    %v6719 = vadd.f32 %v6505, %v6718
    %6720 = vmatprep.mubr.bf16.mxu0 %v6341
    %6721 = vmatmul.mubr.bf16.gmra.mrb[0].mxu0 %v6340
    %v6722 = vpop.f32.mrb[0].mxu0
    %v6723 = vadd.f32 %v6501, %v6722
    %v6724 = vpop.f32.mrb[0].mxu0
    %v6725 = vadd.f32 %v6505, %v6724
    %v6726 = vpop.f32.mrb[0].mxu0
    %v6727 = vadd.f32 %v6501, %v6726
    %v6728 = vpop.f32.mrb[0].mxu0
    %v6729 = vadd.f32 %v6505, %v6728
    %6730 = vmatprep.mubr.bf16.mxu0 %v6343
    %6731 = vmatmul.mubr.bf16.gmra.mrb[0].mxu0 %v6342
    %v6732 = vpop.f32.mrb[0].mxu0
    %v6733 = vadd.f32 %v6501, %v6732
    %v6734 = vpop.f32.mrb[0].mxu0
    %v6735 = vadd.f32 %v6505, %v6734
    %v6736 = vpop.f32.mrb[0].mxu0
    %v6737 = vadd.f32 %v6501, %v6736
    %v6738 = vpop.f32.mrb[0].mxu0
    %v6739 = vadd.f32 %v6505, %v6738
    %6740 = vmatprep.mubr.bf16.mxu0 %v6345
    %6741 = vmatmul.mubr.bf16.gmra.mrb[0].mxu0 %v6344
    %v6742 = vpop.f32.mrb[0].mxu0
    %v6743 = vadd.f32 %v6501, %v6742
    %v6744 = vpop.f32.mrb[0].mxu0
    %v6745 = vadd.f32 %v6505, %v6744
    %v6746 = vpop.f32.mrb[0].mxu0
    %v6747 = vadd.f32 %v6501, %v6746
    %v6748 = vpop.f32.mrb[0].mxu0
    %v6749 = vadd.f32 %v6505, %v6748
    %6750 = vmatprep.mubr.bf16.mxu0 %v6347
    %6751 = vmatmul.mubr.bf16.gmra.mrb[0].mxu0 %v6346
    %v6752 = vpop.f32.mrb[0].mxu0
    %v6753 = vadd.f32 %v6501, %v6752
    %v6754 = vpop.f32.mrb[0].mxu0
    %v6755 = vadd.f32 %v6505, %v6754
    %v6756 = vpop.f32.mrb[0].mxu0
    %v6757 = vadd.f32 %v6501, %v6756
    %v6758 = vpop.f32.mrb[0].mxu0
    %v6759 = vadd.f32 %v6505, %v6758
    %6760 = vmatprep.mubr.bf16.mxu0 %v6349
    %6761 = vmatmul.mubr.bf16.gmra.mrb[0].mxu0 %v6348
    %v6762 = vpop.f32.mrb[0].mxu0
    %v6763 = vadd.f32 %v6501, %v6762
    %v6764 = vpop.f32.mrb[0].mxu0
    %v6765 = vadd.f32 %v6505, %v6764
    %v6766 = vpop.f32.mrb[0].mxu0
    %v6767 = vadd.f32 %v6501, %v6766
    %v6768 = vpop.f32.mrb[0].mxu0
    %v6769 = vadd.f32 %v6505, %v6768
    %6770 = vmatprep.mubr.bf16.mxu0 %v6351
    %6771 = vmatmul.mubr.bf16.gmra.mrb[0].mxu0 %v6350
    %v6772 = vpop.f32.mrb[0].mxu0
    %v6773 = vadd.f32 %v6501, %v6772
    %v6774 = vpop.f32.mrb[0].mxu0
    %v6775 = vadd.f32 %v6505, %v6774
    %v6776 = vpop.f32.mrb[0].mxu0
    %v6777 = vadd.f32 %v6501, %v6776
    %v6778 = vpop.f32.mrb[0].mxu0
    %v6779 = vadd.f32 %v6505, %v6778
    %6780 = vmatprep.mubr.bf16.mxu0 %v6353
    %6781 = vmatmul.mubr.bf16.gmra.mrb[0].mxu0 %v6352
    %v6782 = vpop.f32.mrb[0].mxu0
    %v6783 = vadd.f32 %v6501, %v6782
    %v6784 = vpop.f32.mrb[0].mxu0
    %v6785 = vadd.f32 %v6505, %v6784
    %v6786 = vpop.f32.mrb[0].mxu0
    %v6787 = vadd.f32 %v6501, %v6786
    %v6788 = vpop.f32.mrb[0].mxu0
    %v6789 = vadd.f32 %v6505, %v6788
    %6790 = vmatprep.mubr.bf16.mxu0 %v6355
    %6791 = vmatmul.mubr.bf16.gmra.mrb[0].mxu0 %v6354
    %v6792 = vpop.f32.mrb[0].mxu0
    %v6793 = vadd.f32 %v6501, %v6792
    %v6794 = vpop.f32.mrb[0].mxu0
    %v6795 = vadd.f32 %v6505, %v6794
    %v6796 = vpop.f32.mrb[0].mxu0
    %v6797 = vadd.f32 %v6501, %v6796
    %v6798 = vpop.f32.mrb[0].mxu0
    %v6799 = vadd.f32 %v6505, %v6798
    %6800 = vmatprep.mubr.bf16.mxu0 %v6357
    %6801 = vmatmul.mubr.bf16.gmra.mrb[0].mxu0 %v6356
    %v6802 = vpop.f32.mrb[0].mxu0
    %v6803 = vadd.f32 %v6501, %v6802
    %v6804 = vpop.f32.mrb[0].mxu0
    %v6805 = vadd.f32 %v6505, %v6804
    %v6806 = vpop.f32.mrb[0].mxu0
    %v6807 = vadd.f32 %v6501, %v6806
    %v6808 = vpop.f32.mrb[0].mxu0
    %v6809 = vadd.f32 %v6505, %v6808
    %6810 = vmatprep.mubr.bf16.mxu0 %v6359
    %6811 = vmatmul.mubr.bf16.gmra.mrb[0].mxu0 %v6358
    %v6812 = vpop.f32.mrb[0].mxu0
    %v6813 = vadd.f32 %v6501, %v6812
    %v6814 = vpop.f32.mrb[0].mxu0
    %v6815 = vadd.f32 %v6505, %v6814
    %v6816 = vpop.f32.mrb[0].mxu0
    %v6817 = vadd.f32 %v6501, %v6816
    %v6818 = vpop.f32.mrb[0].mxu0
    %v6819 = vadd.f32 %v6505, %v6818
    %6820 = vmatprep.mubr.bf16.mxu0 %v6361
    %6821 = vmatmul.mubr.bf16.gmra.mrb[0].mxu0 %v6360
    %v6822 = vpop.f32.mrb[0].mxu0
    %v6823 = vadd.f32 %v6501, %v6822
    %v6824 = vpop.f32.mrb[0].mxu0
    %v6825 = vadd.f32 %v6505, %v6824
    %v6826 = vpop.f32.mrb[0].mxu0
    %v6827 = vadd.f32 %v6501, %v6826
    %v6828 = vpop.f32.mrb[0].mxu0
    %v6829 = vadd.f32 %v6505, %v6828
    %6830 = vmatprep.mubr.bf16.mxu0 %v6363
    %6831 = vmatmul.mubr.bf16.gmra.mrb[0].mxu0 %v6362
    %v6832 = vpop.f32.mrb[0].mxu0
    %v6833 = vadd.f32 %v6501, %v6832
    %v6834 = vpop.f32.mrb[0].mxu0
    %v6835 = vadd.f32 %v6505, %v6834
    %v6836 = vpop.f32.mrb[0].mxu0
    %v6837 = vadd.f32 %v6501, %v6836
    %v6838 = vpop.f32.mrb[0].mxu0
    %v6839 = vadd.f32 %v6505, %v6838
    %6840 = vmatprep.mubr.bf16.mxu0 %v6365
    %6841 = vmatmul.mubr.bf16.gmra.mrb[0].mxu0 %v6364
    %v6842 = vpop.f32.mrb[0].mxu0
    %v6843 = vadd.f32 %v6501, %v6842
    %v6844 = vpop.f32.mrb[0].mxu0
    %v6845 = vadd.f32 %v6505, %v6844
    %v6846 = vpop.f32.mrb[0].mxu0
    %v6847 = vadd.f32 %v6501, %v6846
    %v6848 = vpop.f32.mrb[0].mxu0
    %v6849 = vadd.f32 %v6505, %v6848
    %6850 = vmatprep.mubr.bf16.mxu0 %v6367
    %6851 = vmatmul.mubr.bf16.gmra.mrb[0].mxu0 %v6366
    %v6852 = vpop.f32.mrb[0].mxu0
    %v6853 = vadd.f32 %v6501, %v6852
    %v6854 = vpop.f32.mrb[0].mxu0
    %v6855 = vadd.f32 %v6505, %v6854
    %v6856 = vpop.f32.mrb[0].mxu0
    %v6857 = vadd.f32 %v6501, %v6856
    %v6858 = vpop.f32.mrb[0].mxu0
    %v6859 = vadd.f32 %v6505, %v6858
    %6860 = vmatprep.mubr.bf16.mxu0 %v6369
    %6861 = vmatmul.mubr.bf16.gmra.mrb[0].mxu0 %v6368
    %v6862 = vpop.f32.mrb[0].mxu0
    %v6863 = vadd.f32 %v6501, %v6862
    %v6864 = vpop.f32.mrb[0].mxu0
    %v6865 = vadd.f32 %v6505, %v6864
    %v6866 = vpop.f32.mrb[0].mxu0
    %v6867 = vadd.f32 %v6501, %v6866
    %v6868 = vpop.f32.mrb[0].mxu0
    %v6869 = vadd.f32 %v6505, %v6868
    %6870 = vmatprep.mubr.bf16.mxu0 %v6371
    %6871 = vmatmul.mubr.bf16.gmra.mrb[0].mxu0 %v6370
    %v6872 = vpop.f32.mrb[0].mxu0
    %v6873 = vadd.f32 %v6501, %v6872
    %v6874 = vpop.f32.mrb[0].mxu0
    %v6875 = vadd.f32 %v6505, %v6874
    %v6876 = vpop.f32.mrb[0].mxu0
    %v6877 = vadd.f32 %v6501, %v6876
    %v6878 = vpop.f32.mrb[0].mxu0
    %v6879 = vadd.f32 %v6505, %v6878
    %6880 = vmatprep.mubr.bf16.mxu0 %v6373
    %6881 = vmatmul.mubr.bf16.gmra.mrb[0].mxu0 %v6372
    %v6882 = vpop.f32.mrb[0].mxu0
    %v6883 = vadd.f32 %v6501, %v6882
    %v6884 = vpop.f32.mrb[0].mxu0
    %v6885 = vadd.f32 %v6505, %v6884
    %v6886 = vpop.f32.mrb[0].mxu0
    %v6887 = vadd.f32 %v6501, %v6886
    %v6888 = vpop.f32.mrb[0].mxu0
    %v6889 = vadd.f32 %v6505, %v6888
    %6890 = vmatprep.mubr.bf16.mxu0 %v6375
    %6891 = vmatmul.mubr.bf16.gmra.mrb[0].mxu0 %v6374
    %v6892 = vpop.f32.mrb[0].mxu0
    %v6893 = vadd.f32 %v6501, %v6892
    %v6894 = vpop.f32.mrb[0].mxu0
    %v6895 = vadd.f32 %v6505, %v6894
    %v6896 = vpop.f32.mrb[0].mxu0
    %v6897 = vadd.f32 %v6501, %v6896
    %v6898 = vpop.f32.mrb[0].mxu0
    %v6899 = vadd.f32 %v6505, %v6898
    %6900 = vmatprep.mubr.bf16.mxu0 %v6377
    %6901 = vmatmul.mubr.bf16.gmra.mrb[0].mxu0 %v6376
    %v6902 = vpop.f32.mrb[0].mxu0
    %v6903 = vadd.f32 %v6501, %v6902
    %v6904 = vpop.f32.mrb[0].mxu0
    %v6905 = vadd.f32 %v6505, %v6904
    %v6906 = vpop.f32.mrb[0].mxu0
    %v6907 = vadd.f32 %v6501, %v6906
    %v6908 = vpop.f32.mrb[0].mxu0
    %v6909 = vadd.f32 %v6505, %v6908
    %6910 = vmatprep.mubr.bf16.mxu0 %v6379
    %6911 = vmatmul.mubr.bf16.gmra.mrb[0].mxu0 %v6378
    %v6912 = vpop.f32.mrb[0].mxu0
    %v6913 = vadd.f32 %v6501, %v6912
    %v6914 = vpop.f32.mrb[0].mxu0
    %v6915 = vadd.f32 %v6505, %v6914
    %v6916 = vpop.f32.mrb[0].mxu0
    %v6917 = vadd.f32 %v6501, %v6916
    %v6918 = vpop.f32.mrb[0].mxu0
    %v6919 = vadd.f32 %v6505, %v6918
    %6920 = vmatprep.mubr.bf16.mxu0 %v6381
    %6921 = vmatmul.mubr.bf16.gmra.mrb[0].mxu0 %v6380
    %v6922 = vpop.f32.mrb[0].mxu0
    %v6923 = vadd.f32 %v6501, %v6922
    %v6924 = vpop.f32.mrb[0].mxu0
    %v6925 = vadd.f32 %v6505, %v6924
    %v6926 = vpop.f32.mrb[0].mxu0
    %v6927 = vadd.f32 %v6501, %v6926
    %v6928 = vpop.f32.mrb[0].mxu0
    %v6929 = vadd.f32 %v6505, %v6928
    %6930 = vmatprep.mubr.bf16.mxu0 %v6383
    %6931 = vmatmul.mubr.bf16.gmra.mrb[0].mxu0 %v6382
    %v6932 = vpop.f32.mrb[0].mxu0
    %v6933 = vadd.f32 %v6501, %v6932
    %v6934 = vpop.f32.mrb[0].mxu0
    %v6935 = vadd.f32 %v6505, %v6934
    %v6936 = vpop.f32.mrb[0].mxu0
    %v6937 = vadd.f32 %v6501, %v6936
    %v6938 = vpop.f32.mrb[0].mxu0
    %v6939 = vadd.f32 %v6505, %v6938
    %6940 = vmatprep.mubr.bf16.mxu0 %v6385
    %6941 = vmatmul.mubr.bf16.gmra.mrb[0].mxu0 %v6384
    %v6942 = vpop.f32.mrb[0].mxu0
    %v6943 = vadd.f32 %v6501, %v6942
    %v6944 = vpop.f32.mrb[0].mxu0
    %v6945 = vadd.f32 %v6505, %v6944
    %v6946 = vpop.f32.mrb[0].mxu0
    %v6947 = vadd.f32 %v6501, %v6946
    %v6948 = vpop.f32.mrb[0].mxu0
    %v6949 = vadd.f32 %v6505, %v6948
    %6950 = vmatprep.mubr.bf16.mxu0 %v6387
    %6951 = vmatmul.mubr.bf16.gmra.mrb[0].mxu0 %v6386
    %v6952 = vpop.f32.mrb[0].mxu0
    %v6953 = vadd.f32 %v6501, %v6952
    %v6954 = vpop.f32.mrb[0].mxu0
    %v6955 = vadd.f32 %v6505, %v6954
    %v6956 = vpop.f32.mrb[0].mxu0
    %v6957 = vadd.f32 %v6501, %v6956
    %v6958 = vpop.f32.mrb[0].mxu0
    %v6959 = vadd.f32 %v6505, %v6958
    %6960 = vmatprep.mubr.bf16.mxu0 %v6389
    %6961 = vmatmul.mubr.bf16.gmra.mrb[0].mxu0 %v6388
    %v6962 = vpop.f32.mrb[0].mxu0
    %v6963 = vadd.f32 %v6501, %v6962
    %v6964 = vpop.f32.mrb[0].mxu0
    %v6965 = vadd.f32 %v6505, %v6964
    %v6966 = vpop.f32.mrb[0].mxu0
    %v6967 = vadd.f32 %v6501, %v6966
    %v6968 = vpop.f32.mrb[0].mxu0
    %v6969 = vadd.f32 %v6505, %v6968
    %6970 = vmatprep.mubr.bf16.mxu0 %v6391
    %6971 = vmatmul.mubr.bf16.gmra.mrb[0].mxu0 %v6390
    %v6972 = vpop.f32.mrb[0].mxu0
    %v6973 = vadd.f32 %v6501, %v6972
    %v6974 = vpop.f32.mrb[0].mxu0
    %v6975 = vadd.f32 %v6505, %v6974
    %v6976 = vpop.f32.mrb[0].mxu0
    %v6977 = vadd.f32 %v6501, %v6976
    %v6978 = vpop.f32.mrb[0].mxu0
    %v6979 = vadd.f32 %v6505, %v6978
    %6980 = vmatprep.mubr.bf16.mxu0 %v6393
    %6981 = vmatmul.mubr.bf16.gmra.mrb[0].mxu0 %v6392
    %v6982 = vpop.f32.mrb[0].mxu0
    %v6983 = vadd.f32 %v6501, %v6982
    %v6984 = vpop.f32.mrb[0].mxu0
    %v6985 = vadd.f32 %v6505, %v6984
    %v6986 = vpop.f32.mrb[0].mxu0
    %v6987 = vadd.f32 %v6501, %v6986
    %v6988 = vpop.f32.mrb[0].mxu0
    %v6989 = vadd.f32 %v6505, %v6988
    %6990 = vmatprep.mubr.bf16.mxu0 %v6395
    %6991 = vmatmul.mubr.bf16.gmra.mrb[0].mxu0 %v6394
    %v6992 = vpop.f32.mrb[0].mxu0
    %v6993 = vadd.f32 %v6501, %v6992
    %v6994 = vpop.f32.mrb[0].mxu0
    %v6995 = vadd.f32 %v6505, %v6994
    %v6996 = vpop.f32.mrb[0].mxu0
    %v6997 = vadd.f32 %v6501, %v6996
    %v6998 = vpop.f32.mrb[0].mxu0
    %v6999 = vadd.f32 %v6505, %v6998
    %7000 = vmatprep.mubr.bf16.mxu0 %v6397
    %7001 = vmatmul.mubr.bf16.gmra.mrb[0].mxu0 %v6396
    %v7002 = vpop.f32.mrb[0].mxu0
    %v7003 = vadd.f32 %v6501, %v7002
    %v7004 = vpop.f32.mrb[0].mxu0
    %v7005 = vadd.f32 %v6505, %v7004
    %v7006 = vpop.f32.mrb[0].mxu0
    %v7007 = vadd.f32 %v6501, %v7006
    %v7008 = vpop.f32.mrb[0].mxu0
    %v7009 = vadd.f32 %v6505, %v7008
    %7010 = vmatprep.mubr.bf16.mxu0 %v6399
    %7011 = vmatmul.mubr.bf16.gmra.mrb[0].mxu0 %v6398
    %v7012 = vpop.f32.mrb[0].mxu0
    %v7013 = vadd.f32 %v6501, %v7012
    %v7014 = vpop.f32.mrb[0].mxu0
    %v7015 = vadd.f32 %v6505, %v7014
    %v7016 = vpop.f32.mrb[0].mxu0
    %v7017 = vadd.f32 %v6501, %v7016
    %v7018 = vpop.f32.mrb[0].mxu0
    %v7019 = vadd.f32 %v6505, %v7018
    %7020 = vmatprep.mubr.bf16.mxu0 %v6401
    %7021 = vmatmul.mubr.bf16.gmra.mrb[0].mxu0 %v6400
    %v7022 = vpop.f32.mrb[0].mxu0
    %v7023 = vadd.f32 %v6501, %v7022
    %v7024 = vpop.f32.mrb[0].mxu0
    %v7025 = vadd.f32 %v6505, %v7024
    %v7026 = vpop.f32.mrb[0].mxu0
    %v7027 = vadd.f32 %v6501, %v7026
    %v7028 = vpop.f32.mrb[0].mxu0
    %v7029 = vadd.f32 %v6505, %v7028
    %7030 = vmatprep.mubr.bf16.mxu0 %v6403
    %7031 = vmatmul.mubr.bf16.gmra.mrb[0].mxu0 %v6402
    %v7032 = vpop.f32.mrb[0].mxu0
    %v7033 = vadd.f32 %v6501, %v7032
    %v7034 = vpop.f32.mrb[0].mxu0
    %v7035 = vadd.f32 %v6505, %v7034
    %v7036 = vpop.f32.mrb[0].mxu0
    %v7037 = vadd.f32 %v6501, %v7036
    %v7038 = vpop.f32.mrb[0].mxu0
    %v7039 = vadd.f32 %v6505, %v7038
    %7040 = vmatprep.mubr.bf16.mxu0 %v6405
    %7041 = vmatmul.mubr.bf16.gmra.mrb[0].mxu0 %v6404
    %v7042 = vpop.f32.mrb[0].mxu0
    %v7043 = vadd.f32 %v6501, %v7042
    %v7044 = vpop.f32.mrb[0].mxu0
    %v7045 = vadd.f32 %v6505, %v7044
    %v7046 = vpop.f32.mrb[0].mxu0
    %v7047 = vadd.f32 %v6501, %v7046
    %v7048 = vpop.f32.mrb[0].mxu0
    %v7049 = vadd.f32 %v6505, %v7048
    %7050 = vmatprep.mubr.bf16.mxu0 %v6407
    %7051 = vmatmul.mubr.bf16.gmra.mrb[0].mxu0 %v6406
    %v7052 = vpop.f32.mrb[0].mxu0
    %v7053 = vadd.f32 %v6501, %v7052
    %v7054 = vpop.f32.mrb[0].mxu0
    %v7055 = vadd.f32 %v6505, %v7054
    %v7056 = vpop.f32.mrb[0].mxu0
    %v7057 = vadd.f32 %v6501, %v7056
    %v7058 = vpop.f32.mrb[0].mxu0
    %v7059 = vadd.f32 %v6505, %v7058
    %7060 = vmatprep.mubr.bf16.mxu0 %v6409
    %7061 = vmatmul.mubr.bf16.gmra.mrb[0].mxu0 %v6408
    %v7062 = vpop.f32.mrb[0].mxu0
    %v7063 = vadd.f32 %v6501, %v7062
    %v7064 = vpop.f32.mrb[0].mxu0
    %v7065 = vadd.f32 %v6505, %v7064
    %v7066 = vpop.f32.mrb[0].mxu0
    %v7067 = vadd.f32 %v6501, %v7066
    %v7068 = vpop.f32.mrb[0].mxu0
    %v7069 = vadd.f32 %v6505, %v7068
    %7070 = vmatprep.mubr.bf16.mxu0 %v6411
    %7071 = vmatmul.mubr.bf16.gmra.mrb[0].mxu0 %v6410
    %v7072 = vpop.f32.mrb[0].mxu0
    %v7073 = vadd.f32 %v6501, %v7072
    %v7074 = vpop.f32.mrb[0].mxu0
    %v7075 = vadd.f32 %v6505, %v7074
    %v7076 = vpop.f32.mrb[0].mxu0
    %v7077 = vadd.f32 %v6501, %v7076
    %v7078 = vpop.f32.mrb[0].mxu0
    %v7079 = vadd.f32 %v6505, %v7078
    %7080 = vmatprep.mubr.bf16.mxu0 %v6413
    %7081 = vmatmul.mubr.bf16.gmra.mrb[0].mxu0 %v6412
    %v7082 = vpop.f32.mrb[0].mxu0
    %v7083 = vadd.f32 %v6501, %v7082
    %v7084 = vpop.f32.mrb[0].mxu0
    %v7085 = vadd.f32 %v6505, %v7084
    %v7086 = vpop.f32.mrb[0].mxu0
    %v7087 = vadd.f32 %v6501, %v7086
    %v7088 = vpop.f32.mrb[0].mxu0
    %v7089 = vadd.f32 %v6505, %v7088
    %7090 = vmatprep.mubr.bf16.mxu0 %v6415
    %7091 = vmatmul.mubr.bf16.gmra.mrb[0].mxu0 %v6414
    %v7092 = vpop.f32.mrb[0].mxu0
    %v7093 = vadd.f32 %v6501, %v7092
    %v7094 = vpop.f32.mrb[0].mxu0
    %v7095 = vadd.f32 %v6505, %v7094
    %v7096 = vpop.f32.mrb[0].mxu0
    %v7097 = vadd.f32 %v6501, %v7096
    %v7098 = vpop.f32.mrb[0].mxu0
    %v7099 = vadd.f32 %v6505, %v7098
    %7100 = vmatprep.mubr.bf16.mxu0 %v6417
    %7101 = vmatmul.mubr.bf16.gmra.mrb[0].mxu0 %v6416
    %v7102 = vpop.f32.mrb[0].mxu0
    %v7103 = vadd.f32 %v6501, %v7102
    %v7104 = vpop.f32.mrb[0].mxu0
    %v7105 = vadd.f32 %v6505, %v7104
    %v7106 = vpop.f32.mrb[0].mxu0
    %v7107 = vadd.f32 %v6501, %v7106
    %v7108 = vpop.f32.mrb[0].mxu0
    %v7109 = vadd.f32 %v6505, %v7108
    %7110 = vmatprep.mubr.bf16.mxu0 %v6419
    %7111 = vmatmul.mubr.bf16.gmra.mrb[0].mxu0 %v6418
    %v7112 = vpop.f32.mrb[0].mxu0
    %v7113 = vadd.f32 %v6501, %v7112
    %v7114 = vpop.f32.mrb[0].mxu0
    %v7115 = vadd.f32 %v6505, %v7114
    %v7116 = vpop.f32.mrb[0].mxu0
    %v7117 = vadd.f32 %v6501, %v7116
    %v7118 = vpop.f32.mrb[0].mxu0
    %v7119 = vadd.f32 %v6505, %v7118
    %7120 = vmatprep.mubr.bf16.mxu0 %v6421
    %7121 = vmatmul.mubr.bf16.gmra.mrb[0].mxu0 %v6420
    %v7122 = vpop.f32.mrb[0].mxu0
    %v7123 = vadd.f32 %v6501, %v7122
    %v7124 = vpop.f32.mrb[0].mxu0
    %v7125 = vadd.f32 %v6505, %v7124
    %v7126 = vpop.f32.mrb[0].mxu0
    %v7127 = vadd.f32 %v6501, %v7126
    %v7128 = vpop.f32.mrb[0].mxu0
    %v7129 = vadd.f32 %v6505, %v7128
    %7130 = vmatprep.mubr.bf16.mxu0 %v6423
    %7131 = vmatmul.mubr.bf16.gmra.mrb[0].mxu0 %v6422
    %v7132 = vpop.f32.mrb[0].mxu0
    %v7133 = vadd.f32 %v6501, %v7132
    %v7134 = vpop.f32.mrb[0].mxu0
    %v7135 = vadd.f32 %v6505, %v7134
    %v7136 = vpop.f32.mrb[0].mxu0
    %v7137 = vadd.f32 %v6501, %v7136
    %v7138 = vpop.f32.mrb[0].mxu0
    %v7139 = vadd.f32 %v6505, %v7138
    %7140 = vmatprep.mubr.bf16.mxu0 %v6425
    %7141 = vmatmul.mubr.bf16.gmra.mrb[0].mxu0 %v6424
    %v7142 = vpop.f32.mrb[0].mxu0
    %v7143 = vadd.f32 %v6501, %v7142
    %v7144 = vpop.f32.mrb[0].mxu0
    %v7145 = vadd.f32 %v6505, %v7144
    %v7146 = vpop.f32.mrb[0].mxu0
    %v7147 = vadd.f32 %v6501, %v7146
    %v7148 = vpop.f32.mrb[0].mxu0
    %v7149 = vadd.f32 %v6505, %v7148
    %7150 = vmatprep.mubr.bf16.mxu0 %v6427
    %7151 = vmatmul.mubr.bf16.gmra.mrb[0].mxu0 %v6426
    %v7152 = vpop.f32.mrb[0].mxu0
    %v7153 = vadd.f32 %v6501, %v7152
    %v7154 = vpop.f32.mrb[0].mxu0
    %v7155 = vadd.f32 %v6505, %v7154
    %v7156 = vpop.f32.mrb[0].mxu0
    %v7157 = vadd.f32 %v6501, %v7156
    %v7158 = vpop.f32.mrb[0].mxu0
    %v7159 = vadd.f32 %v6505, %v7158
    %7160 = vmatprep.mubr.bf16.mxu0 %v6429
    %7161 = vmatmul.mubr.bf16.gmra.mrb[0].mxu0 %v6428
    %v7162 = vpop.f32.mrb[0].mxu0
    %v7163 = vadd.f32 %v6501, %v7162
    %v7164 = vpop.f32.mrb[0].mxu0
    %v7165 = vadd.f32 %v6505, %v7164
    %v7166 = vpop.f32.mrb[0].mxu0
    %v7167 = vadd.f32 %v6501, %v7166
    %v7168 = vpop.f32.mrb[0].mxu0
    %v7169 = vadd.f32 %v6505, %v7168
    %7170 = vmatprep.mubr.bf16.mxu0 %v6431
    %7171 = vmatmul.mubr.bf16.gmra.mrb[0].mxu0 %v6430
    %v7172 = vpop.f32.mrb[0].mxu0
    %v7173 = vadd.f32 %v6501, %v7172
    %v7174 = vpop.f32.mrb[0].mxu0
    %v7175 = vadd.f32 %v6505, %v7174
    %v7176 = vpop.f32.mrb[0].mxu0
    %v7177 = vadd.f32 %v6501, %v7176
    %v7178 = vpop.f32.mrb[0].mxu0
    %v7179 = vadd.f32 %v6505, %v7178
    %7180 = vmatprep.mubr.bf16.mxu0 %v6433
    %7181 = vmatmul.mubr.bf16.gmra.mrb[0].mxu0 %v6432
    %v7182 = vpop.f32.mrb[0].mxu0
    %v7183 = vadd.f32 %v6501, %v7182
    %v7184 = vpop.f32.mrb[0].mxu0
    %v7185 = vadd.f32 %v6505, %v7184
    %v7186 = vpop.f32.mrb[0].mxu0
    %v7187 = vadd.f32 %v6501, %v7186
    %v7188 = vpop.f32.mrb[0].mxu0
    %v7189 = vadd.f32 %v6505, %v7188
    %7190 = vmatprep.mubr.bf16.mxu0 %v6435
    %7191 = vmatmul.mubr.bf16.gmra.mrb[0].mxu0 %v6434
    %v7192 = vpop.f32.mrb[0].mxu0
    %v7193 = vadd.f32 %v6501, %v7192
    %v7194 = vpop.f32.mrb[0].mxu0
    %v7195 = vadd.f32 %v6505, %v7194
    %v7196 = vpop.f32.mrb[0].mxu0
    %v7197 = vadd.f32 %v6501, %v7196
    %v7198 = vpop.f32.mrb[0].mxu0
    %v7199 = vadd.f32 %v6505, %v7198
    %7200 = vmatprep.mubr.bf16.mxu0 %v6437
    %7201 = vmatmul.mubr.bf16.gmra.mrb[0].mxu0 %v6436
    %v7202 = vpop.f32.mrb[0].mxu0
    %v7203 = vadd.f32 %v6501, %v7202
    %v7204 = vpop.f32.mrb[0].mxu0
    %v7205 = vadd.f32 %v6505, %v7204
    %v7206 = vpop.f32.mrb[0].mxu0
    %v7207 = vadd.f32 %v6501, %v7206
    %v7208 = vpop.f32.mrb[0].mxu0
    %v7209 = vadd.f32 %v6505, %v7208
    %7210 = vmatprep.mubr.bf16.mxu0 %v6439
    %7211 = vmatmul.mubr.bf16.gmra.mrb[0].mxu0 %v6438
    %v7212 = vpop.f32.mrb[0].mxu0
    %v7213 = vadd.f32 %v6501, %v7212
    %v7214 = vpop.f32.mrb[0].mxu0
    %v7215 = vadd.f32 %v6505, %v7214
    %v7216 = vpop.f32.mrb[0].mxu0
    %v7217 = vadd.f32 %v6501, %v7216
    %v7218 = vpop.f32.mrb[0].mxu0
    %v7219 = vadd.f32 %v6505, %v7218
    %7220 = vmatprep.mubr.bf16.mxu0 %v6441
    %7221 = vmatmul.mubr.bf16.gmra.mrb[0].mxu0 %v6440
    %v7222 = vpop.f32.mrb[0].mxu0
    %v7223 = vadd.f32 %v6501, %v7222
    %v7224 = vpop.f32.mrb[0].mxu0
    %v7225 = vadd.f32 %v6505, %v7224
    %v7226 = vpop.f32.mrb[0].mxu0
    %v7227 = vadd.f32 %v6501, %v7226
    %v7228 = vpop.f32.mrb[0].mxu0
    %v7229 = vadd.f32 %v6505, %v7228
    %7230 = vmatprep.mubr.bf16.mxu0 %v6443
    %7231 = vmatmul.mubr.bf16.gmra.mrb[0].mxu0 %v6442
    %v7232 = vpop.f32.mrb[0].mxu0
    %v7233 = vadd.f32 %v6501, %v7232
    %v7234 = vpop.f32.mrb[0].mxu0
    %v7235 = vadd.f32 %v6505, %v7234
    %v7236 = vpop.f32.mrb[0].mxu0
    %v7237 = vadd.f32 %v6501, %v7236
    %v7238 = vpop.f32.mrb[0].mxu0
    %v7239 = vadd.f32 %v6505, %v7238
    %7240 = vmatprep.mubr.bf16.mxu0 %v6445
    %7241 = vmatmul.mubr.bf16.gmra.mrb[0].mxu0 %v6444
    %v7242 = vpop.f32.mrb[0].mxu0
    %v7243 = vadd.f32 %v6501, %v7242
    %v7244 = vpop.f32.mrb[0].mxu0
    %v7245 = vadd.f32 %v6505, %v7244
    %v7246 = vpop.f32.mrb[0].mxu0
    %v7247 = vadd.f32 %v6501, %v7246
    %v7248 = vpop.f32.mrb[0].mxu0
    %v7249 = vadd.f32 %v6505, %v7248
    %7250 = vmatprep.mubr.bf16.mxu0 %v6447
    %7251 = vmatmul.mubr.bf16.gmra.mrb[0].mxu0 %v6446
    %v7252 = vpop.f32.mrb[0].mxu0
    %v7253 = vadd.f32 %v6501, %v7252
    %v7254 = vpop.f32.mrb[0].mxu0
    %v7255 = vadd.f32 %v6505, %v7254
    %v7256 = vpop.f32.mrb[0].mxu0
    %v7257 = vadd.f32 %v6501, %v7256
    %v7258 = vpop.f32.mrb[0].mxu0
    %v7259 = vadd.f32 %v6505, %v7258
    %7260 = vmatprep.mubr.bf16.mxu0 %v6449
    %7261 = vmatmul.mubr.bf16.gmra.mrb[0].mxu0 %v6448
    %v7262 = vpop.f32.mrb[0].mxu0
    %v7263 = vadd.f32 %v6501, %v7262
    %v7264 = vpop.f32.mrb[0].mxu0
    %v7265 = vadd.f32 %v6505, %v7264
    %v7266 = vpop.f32.mrb[0].mxu0
    %v7267 = vadd.f32 %v6501, %v7266
    %v7268 = vpop.f32.mrb[0].mxu0
    %v7269 = vadd.f32 %v6505, %v7268
    %7270 = vmatprep.mubr.bf16.mxu0 %v6451
    %7271 = vmatmul.mubr.bf16.gmra.mrb[0].mxu0 %v6450
    %v7272 = vpop.f32.mrb[0].mxu0
    %v7273 = vadd.f32 %v6501, %v7272
    %v7274 = vpop.f32.mrb[0].mxu0
    %v7275 = vadd.f32 %v6505, %v7274
    %v7276 = vpop.f32.mrb[0].mxu0
    %v7277 = vadd.f32 %v6501, %v7276
    %v7278 = vpop.f32.mrb[0].mxu0
    %v7279 = vadd.f32 %v6505, %v7278
    %7280 = vmatprep.mubr.bf16.mxu0 %v6453
    %7281 = vmatmul.mubr.bf16.gmra.mrb[0].mxu0 %v6452
    %v7282 = vpop.f32.mrb[0].mxu0
    %v7283 = vadd.f32 %v6501, %v7282
    %v7284 = vpop.f32.mrb[0].mxu0
    %v7285 = vadd.f32 %v6505, %v7284
    %v7286 = vpop.f32.mrb[0].mxu0
    %v7287 = vadd.f32 %v6501, %v7286
    %v7288 = vpop.f32.mrb[0].mxu0
    %v7289 = vadd.f32 %v6505, %v7288
    %7290 = vmatprep.mubr.bf16.mxu0 %v6455
    %7291 = vmatmul.mubr.bf16.gmra.mrb[0].mxu0 %v6454
    %v7292 = vpop.f32.mrb[0].mxu0
    %v7293 = vadd.f32 %v6501, %v7292
    %v7294 = vpop.f32.mrb[0].mxu0
    %v7295 = vadd.f32 %v6505, %v7294
    %v7296 = vpop.f32.mrb[0].mxu0
    %v7297 = vadd.f32 %v6501, %v7296
    %v7298 = vpop.f32.mrb[0].mxu0
    %v7299 = vadd.f32 %v6505, %v7298
    %7300 = vmatprep.mubr.bf16.mxu0 %v6457
    %7301 = vmatmul.mubr.bf16.gmra.mrb[0].mxu0 %v6456
    %v7302 = vpop.f32.mrb[0].mxu0
    %v7303 = vadd.f32 %v6501, %v7302
    %v7304 = vpop.f32.mrb[0].mxu0
    %v7305 = vadd.f32 %v6505, %v7304
    %v7306 = vpop.f32.mrb[0].mxu0
    %v7307 = vadd.f32 %v6501, %v7306
    %v7308 = vpop.f32.mrb[0].mxu0
    %v7309 = vadd.f32 %v6505, %v7308
    %7310 = vmatprep.mubr.bf16.mxu0 %v6459
    %7311 = vmatmul.mubr.bf16.gmra.mrb[0].mxu0 %v6458
    %v7312 = vpop.f32.mrb[0].mxu0
    %v7313 = vadd.f32 %v6501, %v7312
    %v7314 = vpop.f32.mrb[0].mxu0
    %v7315 = vadd.f32 %v6505, %v7314
    %v7316 = vpop.f32.mrb[0].mxu0
    %v7317 = vadd.f32 %v6501, %v7316
    %v7318 = vpop.f32.mrb[0].mxu0
    %v7319 = vadd.f32 %v6505, %v7318
    %7320 = vmatprep.mubr.bf16.mxu0 %v6461
    %7321 = vmatmul.mubr.bf16.gmra.mrb[0].mxu0 %v6460
    %v7322 = vpop.f32.mrb[0].mxu0
    %v7323 = vadd.f32 %v6501, %v7322
    %v7324 = vpop.f32.mrb[0].mxu0
    %v7325 = vadd.f32 %v6505, %v7324
    %v7326 = vpop.f32.mrb[0].mxu0
    %v7327 = vadd.f32 %v6501, %v7326
    %v7328 = vpop.f32.mrb[0].mxu0
    %v7329 = vadd.f32 %v6505, %v7328
    %7330 = vmatprep.mubr.bf16.mxu0 %v6463
    %7331 = vmatmul.mubr.bf16.gmra.mrb[0].mxu0 %v6462
    %v7332 = vpop.f32.mrb[0].mxu0
    %v7333 = vadd.f32 %v6501, %v7332
    %v7334 = vpop.f32.mrb[0].mxu0
    %v7335 = vadd.f32 %v6505, %v7334
    %v7336 = vpop.f32.mrb[0].mxu0
    %v7337 = vadd.f32 %v6501, %v7336
    %v7338 = vpop.f32.mrb[0].mxu0
    %v7339 = vadd.f32 %v6505, %v7338
    %7340 = vdwg.mxu0
    %v7341 = vmax.f32 %v6703, 0.0
    %v7342 = vmax.f32 %v6705, 0.0
    %v7343 = vmax.f32 %v6707, 0.0
    %v7344 = vmax.f32 %v6709, 0.0
    %v7345 = vmax.f32 %v6713, 0.0
    %v7346 = vmax.f32 %v6715, 0.0
    %v7347 = vmax.f32 %v6717, 0.0
    %v7348 = vmax.f32 %v6719, 0.0
    %v7349 = vmax.f32 %v6723, 0.0
    %v7350 = vmax.f32 %v6725, 0.0
    %v7351 = vmax.f32 %v6727, 0.0
    %v7352 = vmax.f32 %v6729, 0.0
    %v7353 = vmax.f32 %v6733, 0.0
    %v7354 = vmax.f32 %v6735, 0.0
    %v7355 = vmax.f32 %v6737, 0.0
    %v7356 = vmax.f32 %v6739, 0.0
    %v7357 = vmax.f32 %v6743, 0.0
    %v7358 = vmax.f32 %v6745, 0.0
    %v7359 = vmax.f32 %v6747, 0.0
    %v7360 = vmax.f32 %v6749, 0.0
    %v7361 = vmax.f32 %v6753, 0.0
    %v7362 = vmax.f32 %v6755, 0.0
    %v7363 = vmax.f32 %v6757, 0.0
    %v7364 = vmax.f32 %v6759, 0.0
    %v7365 = vmax.f32 %v6763, 0.0
    %v7366 = vmax.f32 %v6765, 0.0
    %v7367 = vmax.f32 %v6767, 0.0
    %v7368 = vmax.f32 %v6769, 0.0
    %v7369 = vmax.f32 %v6773, 0.0
    %v7370 = vmax.f32 %v6775, 0.0
    %v7371 = vmax.f32 %v6777, 0.0
    %v7372 = vmax.f32 %v6779, 0.0
    %v7373 = vmax.f32 %v6783, 0.0
    %v7374 = vmax.f32 %v6785, 0.0
    %v7375 = vmax.f32 %v6787, 0.0
    %v7376 = vmax.f32 %v6789, 0.0
    %v7377 = vmax.f32 %v6793, 0.0
    %v7378 = vmax.f32 %v6795, 0.0
    %v7379 = vmax.f32 %v6797, 0.0
    %v7380 = vmax.f32 %v6799, 0.0
    %v7381 = vmax.f32 %v6803, 0.0
    %v7382 = vmax.f32 %v6805, 0.0
    %v7383 = vmax.f32 %v6807, 0.0
    %v7384 = vmax.f32 %v6809, 0.0
    %v7385 = vmax.f32 %v6813, 0.0
    %v7386 = vmax.f32 %v6815, 0.0
    %v7387 = vmax.f32 %v6817, 0.0
    %v7388 = vmax.f32 %v6819, 0.0
    %v7389 = vmax.f32 %v6823, 0.0
    %v7390 = vmax.f32 %v6825, 0.0
    %v7391 = vmax.f32 %v6827, 0.0
    %v7392 = vmax.f32 %v6829, 0.0
    %v7393 = vmax.f32 %v6833, 0.0
    %v7394 = vmax.f32 %v6835, 0.0
    %v7395 = vmax.f32 %v6837, 0.0
    %v7396 = vmax.f32 %v6839, 0.0
    %v7397 = vmax.f32 %v6843, 0.0
    %v7398 = vmax.f32 %v6845, 0.0
    %v7399 = vmax.f32 %v6847, 0.0
    %v7400 = vmax.f32 %v6849, 0.0
    %v7401 = vmax.f32 %v6853, 0.0
    %v7402 = vmax.f32 %v6855, 0.0
    %v7403 = vmax.f32 %v6857, 0.0
    %v7404 = vmax.f32 %v6859, 0.0
    %v7405 = vmax.f32 %v6863, 0.0
    %v7406 = vmax.f32 %v6865, 0.0
    %v7407 = vmax.f32 %v6867, 0.0
    %v7408 = vmax.f32 %v6869, 0.0
    %v7409 = vmax.f32 %v6873, 0.0
    %v7410 = vmax.f32 %v6875, 0.0
    %v7411 = vmax.f32 %v6877, 0.0
    %v7412 = vmax.f32 %v6879, 0.0
    %v7413 = vmax.f32 %v6883, 0.0
    %v7414 = vmax.f32 %v6885, 0.0
    %v7415 = vmax.f32 %v6887, 0.0
    %v7416 = vmax.f32 %v6889, 0.0
    %v7417 = vmax.f32 %v6893, 0.0
    %v7418 = vmax.f32 %v6895, 0.0
    %v7419 = vmax.f32 %v6897, 0.0
    %v7420 = vmax.f32 %v6899, 0.0
    %v7421 = vmax.f32 %v6903, 0.0
    %v7422 = vmax.f32 %v6905, 0.0
    %v7423 = vmax.f32 %v6907, 0.0
    %v7424 = vmax.f32 %v6909, 0.0
    %v7425 = vmax.f32 %v6913, 0.0
    %v7426 = vmax.f32 %v6915, 0.0
    %v7427 = vmax.f32 %v6917, 0.0
    %v7428 = vmax.f32 %v6919, 0.0
    %v7429 = vmax.f32 %v6923, 0.0
    %v7430 = vmax.f32 %v6925, 0.0
    %v7431 = vmax.f32 %v6927, 0.0
    %v7432 = vmax.f32 %v6929, 0.0
    %v7433 = vmax.f32 %v6933, 0.0
    %v7434 = vmax.f32 %v6935, 0.0
    %v7435 = vmax.f32 %v6937, 0.0
    %v7436 = vmax.f32 %v6939, 0.0
    %v7437 = vmax.f32 %v6943, 0.0
    %v7438 = vmax.f32 %v6945, 0.0
    %v7439 = vmax.f32 %v6947, 0.0
    %v7440 = vmax.f32 %v6949, 0.0
    %v7441 = vmax.f32 %v6953, 0.0
    %v7442 = vmax.f32 %v6955, 0.0
    %v7443 = vmax.f32 %v6957, 0.0
    %v7444 = vmax.f32 %v6959, 0.0
    %v7445 = vmax.f32 %v6963, 0.0
    %v7446 = vmax.f32 %v6965, 0.0
    %v7447 = vmax.f32 %v6967, 0.0
    %v7448 = vmax.f32 %v6969, 0.0
    %v7449 = vmax.f32 %v6973, 0.0
    %v7450 = vmax.f32 %v6975, 0.0
    %v7451 = vmax.f32 %v6977, 0.0
    %v7452 = vmax.f32 %v6979, 0.0
    %v7453 = vmax.f32 %v6983, 0.0
    %v7454 = vmax.f32 %v6985, 0.0
    %v7455 = vmax.f32 %v6987, 0.0
    %v7456 = vmax.f32 %v6989, 0.0
    %v7457 = vmax.f32 %v6993, 0.0
    %v7458 = vmax.f32 %v6995, 0.0
    %v7459 = vmax.f32 %v6997, 0.0
    %v7460 = vmax.f32 %v6999, 0.0
    %v7461 = vmax.f32 %v7003, 0.0
    %v7462 = vmax.f32 %v7005, 0.0
    %v7463 = vmax.f32 %v7007, 0.0
    %v7464 = vmax.f32 %v7009, 0.0
    %v7465 = vmax.f32 %v7013, 0.0
    %v7466 = vmax.f32 %v7015, 0.0
    %v7467 = vmax.f32 %v7017, 0.0
    %v7468 = vmax.f32 %v7019, 0.0
    %v7469 = vmax.f32 %v7023, 0.0
    %v7470 = vmax.f32 %v7025, 0.0
    %v7471 = vmax.f32 %v7027, 0.0
    %v7472 = vmax.f32 %v7029, 0.0
    %v7473 = vmax.f32 %v7033, 0.0
    %v7474 = vmax.f32 %v7035, 0.0
    %v7475 = vmax.f32 %v7037, 0.0
    %v7476 = vmax.f32 %v7039, 0.0
    %v7477 = vmax.f32 %v7043, 0.0
    %v7478 = vmax.f32 %v7045, 0.0
    %v7479 = vmax.f32 %v7047, 0.0
    %v7480 = vmax.f32 %v7049, 0.0
    %v7481 = vmax.f32 %v7053, 0.0
    %v7482 = vmax.f32 %v7055, 0.0
    %v7483 = vmax.f32 %v7057, 0.0
    %v7484 = vmax.f32 %v7059, 0.0
    %v7485 = vmax.f32 %v7063, 0.0
    %v7486 = vmax.f32 %v7065, 0.0
    %v7487 = vmax.f32 %v7067, 0.0
    %v7488 = vmax.f32 %v7069, 0.0
    %v7489 = vmax.f32 %v7073, 0.0
    %v7490 = vmax.f32 %v7075, 0.0
    %v7491 = vmax.f32 %v7077, 0.0
    %v7492 = vmax.f32 %v7079, 0.0
    %v7493 = vmax.f32 %v7083, 0.0
    %v7494 = vmax.f32 %v7085, 0.0
    %v7495 = vmax.f32 %v7087, 0.0
    %v7496 = vmax.f32 %v7089, 0.0
    %v7497 = vmax.f32 %v7093, 0.0
    %v7498 = vmax.f32 %v7095, 0.0
    %v7499 = vmax.f32 %v7097, 0.0
    %v7500 = vmax.f32 %v7099, 0.0
    %v7501 = vmax.f32 %v7103, 0.0
    %v7502 = vmax.f32 %v7105, 0.0
    %v7503 = vmax.f32 %v7107, 0.0
    %v7504 = vmax.f32 %v7109, 0.0
    %v7505 = vmax.f32 %v7113, 0.0
    %v7506 = vmax.f32 %v7115, 0.0
    %v7507 = vmax.f32 %v7117, 0.0
    %v7508 = vmax.f32 %v7119, 0.0
    %v7509 = vmax.f32 %v7123, 0.0
    %v7510 = vmax.f32 %v7125, 0.0
    %v7511 = vmax.f32 %v7127, 0.0
    %v7512 = vmax.f32 %v7129, 0.0
    %v7513 = vmax.f32 %v7133, 0.0
    %v7514 = vmax.f32 %v7135, 0.0
    %v7515 = vmax.f32 %v7137, 0.0
    %v7516 = vmax.f32 %v7139, 0.0
    %v7517 = vmax.f32 %v7143, 0.0
    %v7518 = vmax.f32 %v7145, 0.0
    %v7519 = vmax.f32 %v7147, 0.0
    %v7520 = vmax.f32 %v7149, 0.0
    %v7521 = vmax.f32 %v7153, 0.0
    %v7522 = vmax.f32 %v7155, 0.0
    %v7523 = vmax.f32 %v7157, 0.0
    %v7524 = vmax.f32 %v7159, 0.0
    %v7525 = vmax.f32 %v7163, 0.0
    %v7526 = vmax.f32 %v7165, 0.0
    %v7527 = vmax.f32 %v7167, 0.0
    %v7528 = vmax.f32 %v7169, 0.0
    %v7529 = vmax.f32 %v7173, 0.0
    %v7530 = vmax.f32 %v7175, 0.0
    %v7531 = vmax.f32 %v7177, 0.0
    %v7532 = vmax.f32 %v7179, 0.0
    %v7533 = vmax.f32 %v7183, 0.0
    %v7534 = vmax.f32 %v7185, 0.0
    %v7535 = vmax.f32 %v7187, 0.0
    %v7536 = vmax.f32 %v7189, 0.0
    %v7537 = vmax.f32 %v7193, 0.0
    %v7538 = vmax.f32 %v7195, 0.0
    %v7539 = vmax.f32 %v7197, 0.0
    %v7540 = vmax.f32 %v7199, 0.0
    %v7541 = vmax.f32 %v7203, 0.0
    %v7542 = vmax.f32 %v7205, 0.0
    %v7543 = vmax.f32 %v7207, 0.0
    %v7544 = vmax.f32 %v7209, 0.0
    %v7545 = vmax.f32 %v7213, 0.0
    %v7546 = vmax.f32 %v7215, 0.0
    %v7547 = vmax.f32 %v7217, 0.0
    %v7548 = vmax.f32 %v7219, 0.0
    %v7549 = vmax.f32 %v7223, 0.0
    %v7550 = vmax.f32 %v7225, 0.0
    %v7551 = vmax.f32 %v7227, 0.0
    %v7552 = vmax.f32 %v7229, 0.0
    %v7553 = vmax.f32 %v7233, 0.0
    %v7554 = vmax.f32 %v7235, 0.0
    %v7555 = vmax.f32 %v7237, 0.0
    %v7556 = vmax.f32 %v7239, 0.0
    %v7557 = vmax.f32 %v7243, 0.0
    %v7558 = vmax.f32 %v7245, 0.0
    %v7559 = vmax.f32 %v7247, 0.0
    %v7560 = vmax.f32 %v7249, 0.0
    %v7561 = vmax.f32 %v7253, 0.0
    %v7562 = vmax.f32 %v7255, 0.0
    %v7563 = vmax.f32 %v7257, 0.0
    %v7564 = vmax.f32 %v7259, 0.0
    %v7565 = vmax.f32 %v7263, 0.0
    %v7566 = vmax.f32 %v7265, 0.0
    %v7567 = vmax.f32 %v7267, 0.0
    %v7568 = vmax.f32 %v7269, 0.0
    %v7569 = vmax.f32 %v7273, 0.0
    %v7570 = vmax.f32 %v7275, 0.0
    %v7571 = vmax.f32 %v7277, 0.0
    %v7572 = vmax.f32 %v7279, 0.0
    %v7573 = vmax.f32 %v7283, 0.0
    %v7574 = vmax.f32 %v7285, 0.0
    %v7575 = vmax.f32 %v7287, 0.0
    %v7576 = vmax.f32 %v7289, 0.0
    %v7577 = vmax.f32 %v7293, 0.0
    %v7578 = vmax.f32 %v7295, 0.0
    %v7579 = vmax.f32 %v7297, 0.0
    %v7580 = vmax.f32 %v7299, 0.0
    %v7581 = vmax.f32 %v7303, 0.0
    %v7582 = vmax.f32 %v7305, 0.0
    %v7583 = vmax.f32 %v7307, 0.0
    %v7584 = vmax.f32 %v7309, 0.0
    %v7585 = vmax.f32 %v7313, 0.0
    %v7586 = vmax.f32 %v7315, 0.0
    %v7587 = vmax.f32 %v7317, 0.0
    %v7588 = vmax.f32 %v7319, 0.0
    %v7589 = vmax.f32 %v7323, 0.0
    %v7590 = vmax.f32 %v7325, 0.0
    %v7591 = vmax.f32 %v7327, 0.0
    %v7592 = vmax.f32 %v7329, 0.0
    %v7593 = vmax.f32 %v7333, 0.0
    %v7594 = vmax.f32 %v7335, 0.0
    %v7595 = vmax.f32 %v7337, 0.0
    %v7596 = vmax.f32 %v7339, 0.0
    %v7597 = vpack.c.bf16 %v7343, %v7341
    %v7598 = vpack.c.bf16 %v7344, %v7342
    %v7599 = vpack.c.bf16 %v7347, %v7345
    %v7600 = vpack.c.bf16 %v7348, %v7346
    %v7601 = vpack.c.bf16 %v7351, %v7349
    %v7602 = vpack.c.bf16 %v7352, %v7350
    %v7603 = vpack.c.bf16 %v7355, %v7353
    %v7604 = vpack.c.bf16 %v7356, %v7354
    %v7605 = vpack.c.bf16 %v7359, %v7357
    %v7606 = vpack.c.bf16 %v7360, %v7358
    %v7607 = vpack.c.bf16 %v7363, %v7361
    %v7608 = vpack.c.bf16 %v7364, %v7362
    %v7609 = vpack.c.bf16 %v7367, %v7365
    %v7610 = vpack.c.bf16 %v7368, %v7366
    %v7611 = vpack.c.bf16 %v7371, %v7369
    %v7612 = vpack.c.bf16 %v7372, %v7370
    %v7613 = vpack.c.bf16 %v7375, %v7373
    %v7614 = vpack.c.bf16 %v7376, %v7374
    %v7615 = vpack.c.bf16 %v7379, %v7377
    %v7616 = vpack.c.bf16 %v7380, %v7378
    %v7617 = vpack.c.bf16 %v7383, %v7381
    %v7618 = vpack.c.bf16 %v7384, %v7382
    %v7619 = vpack.c.bf16 %v7387, %v7385
    %v7620 = vpack.c.bf16 %v7388, %v7386
    %v7621 = vpack.c.bf16 %v7391, %v7389
    %v7622 = vpack.c.bf16 %v7392, %v7390
    %v7623 = vpack.c.bf16 %v7395, %v7393
    %v7624 = vpack.c.bf16 %v7396, %v7394
    %v7625 = vpack.c.bf16 %v7399, %v7397
    %v7626 = vpack.c.bf16 %v7400, %v7398
    %v7627 = vpack.c.bf16 %v7403, %v7401
    %v7628 = vpack.c.bf16 %v7404, %v7402
    %v7629 = vpack.c.bf16 %v7407, %v7405
    %v7630 = vpack.c.bf16 %v7408, %v7406
    %v7631 = vpack.c.bf16 %v7411, %v7409
    %v7632 = vpack.c.bf16 %v7412, %v7410
    %v7633 = vpack.c.bf16 %v7415, %v7413
    %v7634 = vpack.c.bf16 %v7416, %v7414
    %v7635 = vpack.c.bf16 %v7419, %v7417
    %v7636 = vpack.c.bf16 %v7420, %v7418
    %v7637 = vpack.c.bf16 %v7423, %v7421
    %v7638 = vpack.c.bf16 %v7424, %v7422
    %v7639 = vpack.c.bf16 %v7427, %v7425
    %v7640 = vpack.c.bf16 %v7428, %v7426
    %v7641 = vpack.c.bf16 %v7431, %v7429
    %v7642 = vpack.c.bf16 %v7432, %v7430
    %v7643 = vpack.c.bf16 %v7435, %v7433
    %v7644 = vpack.c.bf16 %v7436, %v7434
    %v7645 = vpack.c.bf16 %v7439, %v7437
    %v7646 = vpack.c.bf16 %v7440, %v7438
    %v7647 = vpack.c.bf16 %v7443, %v7441
    %v7648 = vpack.c.bf16 %v7444, %v7442
    %v7649 = vpack.c.bf16 %v7447, %v7445
    %v7650 = vpack.c.bf16 %v7448, %v7446
    %v7651 = vpack.c.bf16 %v7451, %v7449
    %v7652 = vpack.c.bf16 %v7452, %v7450
    %v7653 = vpack.c.bf16 %v7455, %v7453
    %v7654 = vpack.c.bf16 %v7456, %v7454
    %v7655 = vpack.c.bf16 %v7459, %v7457
    %v7656 = vpack.c.bf16 %v7460, %v7458
    %v7657 = vpack.c.bf16 %v7463, %v7461
    %v7658 = vpack.c.bf16 %v7464, %v7462
    %v7659 = vpack.c.bf16 %v7467, %v7465
    %v7660 = vpack.c.bf16 %v7468, %v7466
    %v7661 = vpack.c.bf16 %v7471, %v7469
    %v7662 = vpack.c.bf16 %v7472, %v7470
    %v7663 = vpack.c.bf16 %v7475, %v7473
    %v7664 = vpack.c.bf16 %v7476, %v7474
    %v7665 = vpack.c.bf16 %v7479, %v7477
    %v7666 = vpack.c.bf16 %v7480, %v7478
    %v7667 = vpack.c.bf16 %v7483, %v7481
    %v7668 = vpack.c.bf16 %v7484, %v7482
    %v7669 = vpack.c.bf16 %v7487, %v7485
    %v7670 = vpack.c.bf16 %v7488, %v7486
    %v7671 = vpack.c.bf16 %v7491, %v7489
    %v7672 = vpack.c.bf16 %v7492, %v7490
    %v7673 = vpack.c.bf16 %v7495, %v7493
    %v7674 = vpack.c.bf16 %v7496, %v7494
    %v7675 = vpack.c.bf16 %v7499, %v7497
    %v7676 = vpack.c.bf16 %v7500, %v7498
    %v7677 = vpack.c.bf16 %v7503, %v7501
    %v7678 = vpack.c.bf16 %v7504, %v7502
    %v7679 = vpack.c.bf16 %v7507, %v7505
    %v7680 = vpack.c.bf16 %v7508, %v7506
    %v7681 = vpack.c.bf16 %v7511, %v7509
    %v7682 = vpack.c.bf16 %v7512, %v7510
    %v7683 = vpack.c.bf16 %v7515, %v7513
    %v7684 = vpack.c.bf16 %v7516, %v7514
    %v7685 = vpack.c.bf16 %v7519, %v7517
    %v7686 = vpack.c.bf16 %v7520, %v7518
    %v7687 = vpack.c.bf16 %v7523, %v7521
    %v7688 = vpack.c.bf16 %v7524, %v7522
    %v7689 = vpack.c.bf16 %v7527, %v7525
    %v7690 = vpack.c.bf16 %v7528, %v7526
    %v7691 = vpack.c.bf16 %v7531, %v7529
    %v7692 = vpack.c.bf16 %v7532, %v7530
    %v7693 = vpack.c.bf16 %v7535, %v7533
    %v7694 = vpack.c.bf16 %v7536, %v7534
    %v7695 = vpack.c.bf16 %v7539, %v7537
    %v7696 = vpack.c.bf16 %v7540, %v7538
    %v7697 = vpack.c.bf16 %v7543, %v7541
    %v7698 = vpack.c.bf16 %v7544, %v7542
    %v7699 = vpack.c.bf16 %v7547, %v7545
    %v7700 = vpack.c.bf16 %v7548, %v7546
    %v7701 = vpack.c.bf16 %v7551, %v7549
    %v7702 = vpack.c.bf16 %v7552, %v7550
    %v7703 = vpack.c.bf16 %v7555, %v7553
    %v7704 = vpack.c.bf16 %v7556, %v7554
    %v7705 = vpack.c.bf16 %v7559, %v7557
    %v7706 = vpack.c.bf16 %v7560, %v7558
    %v7707 = vpack.c.bf16 %v7563, %v7561
    %v7708 = vpack.c.bf16 %v7564, %v7562
    %v7709 = vpack.c.bf16 %v7567, %v7565
    %v7710 = vpack.c.bf16 %v7568, %v7566
    %v7711 = vpack.c.bf16 %v7571, %v7569
    %v7712 = vpack.c.bf16 %v7572, %v7570
    %v7713 = vpack.c.bf16 %v7575, %v7573
    %v7714 = vpack.c.bf16 %v7576, %v7574
    %v7715 = vpack.c.bf16 %v7579, %v7577
    %v7716 = vpack.c.bf16 %v7580, %v7578
    %v7717 = vpack.c.bf16 %v7583, %v7581
    %v7718 = vpack.c.bf16 %v7584, %v7582
    %v7719 = vpack.c.bf16 %v7587, %v7585
    %v7720 = vpack.c.bf16 %v7588, %v7586
    %v7721 = vpack.c.bf16 %v7591, %v7589
    %v7722 = vpack.c.bf16 %v7592, %v7590
    %v7723 = vpack.c.bf16 %v7595, %v7593
    %v7724 = vpack.c.bf16 %v7596, %v7594
    %v7725 = vld [vmem:[#allocation10] sm:$0xff]
    %v7726 = vld [vmem:[#allocation10 + $0x8] sm:$0xff]
    %v7727 = vld [vmem:[#allocation10 + $0x10] sm:$0xff]
    %v7728 = vld [vmem:[#allocation10 + $0x18] sm:$0xff]
    %v7729 = vld [vmem:[#allocation10 + $0x20] sm:$0xff]
    %v7730 = vld [vmem:[#allocation10 + $0x28] sm:$0xff]
    %v7731 = vld [vmem:[#allocation10 + $0x30] sm:$0xff]
    %v7732 = vld [vmem:[#allocation10 + $0x38] sm:$0xff]
    %v7733 = vld [vmem:[#allocation10 + $0x40] sm:$0xff]
    %v7734 = vld [vmem:[#allocation10 + $0x48] sm:$0xff]
    %v7735 = vld [vmem:[#allocation10 + $0x50] sm:$0xff]
    %v7736 = vld [vmem:[#allocation10 + $0x58] sm:$0xff]
    %v7737 = vld [vmem:[#allocation10 + $0x60] sm:$0xff]
    %v7738 = vld [vmem:[#allocation10 + $0x68] sm:$0xff]
    %v7739 = vld [vmem:[#allocation10 + $0x70] sm:$0xff]
    %v7740 = vld [vmem:[#allocation10 + $0x78] sm:$0xff]
    %v7741 = vld [vmem:[#allocation10 + $0x80] sm:$0xff]
    %v7742 = vld [vmem:[#allocation10 + $0x88] sm:$0xff]
    %v7743 = vld [vmem:[#allocation10 + $0x90] sm:$0xff]
    %v7744 = vld [vmem:[#allocation10 + $0x98] sm:$0xff]
    %v7745 = vld [vmem:[#allocation10 + $0xa0] sm:$0xff]
    %v7746 = vld [vmem:[#allocation10 + $0xa8] sm:$0xff]
    %v7747 = vld [vmem:[#allocation10 + $0xb0] sm:$0xff]
    %v7748 = vld [vmem:[#allocation10 + $0xb8] sm:$0xff]
    %v7749 = vld [vmem:[#allocation10 + $0xc0] sm:$0xff]
    %v7750 = vld [vmem:[#allocation10 + $0xc8] sm:$0xff]
    %v7751 = vld [vmem:[#allocation10 + $0xd0] sm:$0xff]
    %v7752 = vld [vmem:[#allocation10 + $0xd8] sm:$0xff]
    %v7753 = vld [vmem:[#allocation10 + $0xe0] sm:$0xff]
    %v7754 = vld [vmem:[#allocation10 + $0xe8] sm:$0xff]
    %v7755 = vld [vmem:[#allocation10 + $0xf0] sm:$0xff]
    %v7756 = vld [vmem:[#allocation10 + $0xf8] sm:$0xff]
    %v7757 = vld [vmem:[%s18] sm:$0x3]
    %v7759 = vlaneseq
    %v7760 = vshrl.u32 %v7759, 7
    %v7761 = vsub.s32 0, %v7760
    %v7762 = vrot.slane %v7757, %v7761
    %v7763 = vlaneseq
    %v7764 = vshrl.u32 %v7763, 7
    %v7765 = vsub.s32 1, %v7764
    %v7766 = vrot.slane %v7757, %v7765
    %v7801 = vunpack.c.l.b16 %v7725
    %v7802 = vunpack.c.h.b16 %v7725
    %v7803 = vunpack.c.l.b16 %v7726
    %v7804 = vunpack.c.h.b16 %v7726
    %v7805 = vunpack.c.l.b16 %v7727
    %v7806 = vunpack.c.h.b16 %v7727
    %v7807 = vunpack.c.l.b16 %v7728
    %v7808 = vunpack.c.h.b16 %v7728
    %v7809 = vunpack.c.l.b16 %v7729
    %v7810 = vunpack.c.h.b16 %v7729
    %v7811 = vunpack.c.l.b16 %v7730
    %v7812 = vunpack.c.h.b16 %v7730
    %v7813 = vunpack.c.l.b16 %v7731
    %v7814 = vunpack.c.h.b16 %v7731
    %v7815 = vunpack.c.l.b16 %v7732
    %v7816 = vunpack.c.h.b16 %v7732
    %v7817 = vunpack.c.l.b16 %v7733
    %v7818 = vunpack.c.h.b16 %v7733
    %v7819 = vunpack.c.l.b16 %v7734
    %v7820 = vunpack.c.h.b16 %v7734
    %v7821 = vunpack.c.l.b16 %v7735
    %v7822 = vunpack.c.h.b16 %v7735
    %v7823 = vunpack.c.l.b16 %v7736
    %v7824 = vunpack.c.h.b16 %v7736
    %v7825 = vunpack.c.l.b16 %v7737
    %v7826 = vunpack.c.h.b16 %v7737
    %v7827 = vunpack.c.l.b16 %v7738
    %v7828 = vunpack.c.h.b16 %v7738
    %v7829 = vunpack.c.l.b16 %v7739
    %v7830 = vunpack.c.h.b16 %v7739
    %v7831 = vunpack.c.l.b16 %v7740
    %v7832 = vunpack.c.h.b16 %v7740
    %v7833 = vunpack.c.l.b16 %v7741
    %v7834 = vunpack.c.h.b16 %v7741
    %v7835 = vunpack.c.l.b16 %v7742
    %v7836 = vunpack.c.h.b16 %v7742
    %v7837 = vunpack.c.l.b16 %v7743
    %v7838 = vunpack.c.h.b16 %v7743
    %v7839 = vunpack.c.l.b16 %v7744
    %v7840 = vunpack.c.h.b16 %v7744
    %v7841 = vunpack.c.l.b16 %v7745
    %v7842 = vunpack.c.h.b16 %v7745
    %v7843 = vunpack.c.l.b16 %v7746
    %v7844 = vunpack.c.h.b16 %v7746
    %v7845 = vunpack.c.l.b16 %v7747
    %v7846 = vunpack.c.h.b16 %v7747
    %v7847 = vunpack.c.l.b16 %v7748
    %v7848 = vunpack.c.h.b16 %v7748
    %v7849 = vunpack.c.l.b16 %v7749
    %v7850 = vunpack.c.h.b16 %v7749
    %v7851 = vunpack.c.l.b16 %v7750
    %v7852 = vunpack.c.h.b16 %v7750
    %v7853 = vunpack.c.l.b16 %v7751
    %v7854 = vunpack.c.h.b16 %v7751
    %v7855 = vunpack.c.l.b16 %v7752
    %v7856 = vunpack.c.h.b16 %v7752
    %v7857 = vunpack.c.l.b16 %v7753
    %v7858 = vunpack.c.h.b16 %v7753
    %v7859 = vunpack.c.l.b16 %v7754
    %v7860 = vunpack.c.h.b16 %v7754
    %v7861 = vunpack.c.l.b16 %v7755
    %v7862 = vunpack.c.h.b16 %v7755
    %v7863 = vunpack.c.l.b16 %v7756
    %v7864 = vunpack.c.h.b16 %v7756
    %v7865 = vpack.c.b16 %v7803, %v7801
    %v7866 = vpack.c.b16 %v7804, %v7802
    %v7867 = vpack.c.b16 %v7807, %v7805
    %v7868 = vpack.c.b16 %v7808, %v7806
    %v7869 = vpack.c.b16 %v7811, %v7809
    %v7870 = vpack.c.b16 %v7812, %v7810
    %v7871 = vpack.c.b16 %v7815, %v7813
    %v7872 = vpack.c.b16 %v7816, %v7814
    %v7873 = vpack.c.b16 %v7819, %v7817
    %v7874 = vpack.c.b16 %v7820, %v7818
    %v7875 = vpack.c.b16 %v7823, %v7821
    %v7876 = vpack.c.b16 %v7824, %v7822
    %v7877 = vpack.c.b16 %v7827, %v7825
    %v7878 = vpack.c.b16 %v7828, %v7826
    %v7879 = vpack.c.b16 %v7831, %v7829
    %v7880 = vpack.c.b16 %v7832, %v7830
    %v7881 = vpack.c.b16 %v7835, %v7833
    %v7882 = vpack.c.b16 %v7836, %v7834
    %v7883 = vpack.c.b16 %v7839, %v7837
    %v7884 = vpack.c.b16 %v7840, %v7838
    %v7885 = vpack.c.b16 %v7843, %v7841
    %v7886 = vpack.c.b16 %v7844, %v7842
    %v7887 = vpack.c.b16 %v7847, %v7845
    %v7888 = vpack.c.b16 %v7848, %v7846
    %v7889 = vpack.c.b16 %v7851, %v7849
    %v7890 = vpack.c.b16 %v7852, %v7850
    %v7891 = vpack.c.b16 %v7855, %v7853
    %v7892 = vpack.c.b16 %v7856, %v7854
    %v7893 = vpack.c.b16 %v7859, %v7857
    %v7894 = vpack.c.b16 %v7860, %v7858
    %v7895 = vpack.c.b16 %v7863, %v7861
    %v7896 = vpack.c.b16 %v7864, %v7862
    %7929 = vmatprep.subr.bf16.mxu0 %v7866
    %7930 = vmatpush1.bf16.msra.mxu0 %v7865
    %7931 = vmatprep.subr.bf16.mxu0 %v7868
    %7932 = vmatpush1.bf16.msra.mxu0 %v7867
    %7933 = vmatprep.subr.bf16.mxu0 %v7870
    %7934 = vmatpush1.bf16.msra.mxu0 %v7869
    %7935 = vmatprep.subr.bf16.mxu0 %v7872
    %7936 = vmatpush1.bf16.msra.mxu0 %v7871
    %7937 = vmatprep.subr.bf16.mxu0 %v7874
    %7938 = vmatpush1.bf16.msra.mxu0 %v7873
    %7939 = vmatprep.subr.bf16.mxu0 %v7876
    %7940 = vmatpush1.bf16.msra.mxu0 %v7875
    %7941 = vmatprep.subr.bf16.mxu0 %v7878
    %7942 = vmatpush1.bf16.msra.mxu0 %v7877
    %7943 = vmatprep.subr.bf16.mxu0 %v7880
    %7944 = vmatpush1.bf16.msra.mxu0 %v7879
    %7945 = vmatprep.subr.bf16.mxu0 %v7882
    %7946 = vmatpush1.bf16.msra.mxu0 %v7881
    %7947 = vmatprep.subr.bf16.mxu0 %v7884
    %7948 = vmatpush1.bf16.msra.mxu0 %v7883
    %7949 = vmatprep.subr.bf16.mxu0 %v7886
    %7950 = vmatpush1.bf16.msra.mxu0 %v7885
    %7951 = vmatprep.subr.bf16.mxu0 %v7888
    %7952 = vmatpush1.bf16.msra.mxu0 %v7887
    %7953 = vmatprep.subr.bf16.mxu0 %v7890
    %7954 = vmatpush1.bf16.msra.mxu0 %v7889
    %7955 = vmatprep.subr.bf16.mxu0 %v7892
    %7956 = vmatpush1.bf16.msra.mxu0 %v7891
    %7957 = vmatprep.subr.bf16.mxu0 %v7894
    %7958 = vmatpush1.bf16.msra.mxu0 %v7893
    %7959 = vmatprep.subr.bf16.mxu0 %v7896
    %7960 = vmatpush1.bf16.msra.mxu0 %v7895
    %7961 = vmatprep.mubr.bf16.mxu0 %v7598
    %7962 = vmatmul.mubr.bf16.gmra.mrb[0].mxu0 %v7597
    %v7963 = vpop.f32.mrb[0].mxu0
    %v7964 = vadd.f32 %v7762, %v7963
    %v7965 = vpop.f32.mrb[0].mxu0
    %v7966 = vadd.f32 %v7766, %v7965
    %v7967 = vpop.f32.mrb[0].mxu0
    %v7968 = vadd.f32 %v7762, %v7967
    %v7969 = vpop.f32.mrb[0].mxu0
    %v7970 = vadd.f32 %v7766, %v7969
    %7971 = vmatprep.mubr.bf16.mxu0 %v7600
    %7972 = vmatmul.mubr.bf16.gmra.mrb[0].mxu0 %v7599
    %v7973 = vpop.f32.mrb[0].mxu0
    %v7974 = vadd.f32 %v7762, %v7973
    %v7975 = vpop.f32.mrb[0].mxu0
    %v7976 = vadd.f32 %v7766, %v7975
    %v7977 = vpop.f32.mrb[0].mxu0
    %v7978 = vadd.f32 %v7762, %v7977
    %v7979 = vpop.f32.mrb[0].mxu0
    %v7980 = vadd.f32 %v7766, %v7979
    %7981 = vmatprep.mubr.bf16.mxu0 %v7602
    %7982 = vmatmul.mubr.bf16.gmra.mrb[0].mxu0 %v7601
    %v7983 = vpop.f32.mrb[0].mxu0
    %v7984 = vadd.f32 %v7762, %v7983
    %v7985 = vpop.f32.mrb[0].mxu0
    %v7986 = vadd.f32 %v7766, %v7985
    %v7987 = vpop.f32.mrb[0].mxu0
    %v7988 = vadd.f32 %v7762, %v7987
    %v7989 = vpop.f32.mrb[0].mxu0
    %v7990 = vadd.f32 %v7766, %v7989
    %7991 = vmatprep.mubr.bf16.mxu0 %v7604
    %7992 = vmatmul.mubr.bf16.gmra.mrb[0].mxu0 %v7603
    %v7993 = vpop.f32.mrb[0].mxu0
    %v7994 = vadd.f32 %v7762, %v7993
    %v7995 = vpop.f32.mrb[0].mxu0
    %v7996 = vadd.f32 %v7766, %v7995
    %v7997 = vpop.f32.mrb[0].mxu0
    %v7998 = vadd.f32 %v7762, %v7997
    %v7999 = vpop.f32.mrb[0].mxu0
    %v8000 = vadd.f32 %v7766, %v7999
    %8001 = vmatprep.mubr.bf16.mxu0 %v7606
    %8002 = vmatmul.mubr.bf16.gmra.mrb[0].mxu0 %v7605
    %v8003 = vpop.f32.mrb[0].mxu0
    %v8004 = vadd.f32 %v7762, %v8003
    %v8005 = vpop.f32.mrb[0].mxu0
    %v8006 = vadd.f32 %v7766, %v8005
    %v8007 = vpop.f32.mrb[0].mxu0
    %v8008 = vadd.f32 %v7762, %v8007
    %v8009 = vpop.f32.mrb[0].mxu0
    %v8010 = vadd.f32 %v7766, %v8009
    %8011 = vmatprep.mubr.bf16.mxu0 %v7608
    %8012 = vmatmul.mubr.bf16.gmra.mrb[0].mxu0 %v7607
    %v8013 = vpop.f32.mrb[0].mxu0
    %v8014 = vadd.f32 %v7762, %v8013
    %v8015 = vpop.f32.mrb[0].mxu0
    %v8016 = vadd.f32 %v7766, %v8015
    %v8017 = vpop.f32.mrb[0].mxu0
    %v8018 = vadd.f32 %v7762, %v8017
    %v8019 = vpop.f32.mrb[0].mxu0
    %v8020 = vadd.f32 %v7766, %v8019
    %8021 = vmatprep.mubr.bf16.mxu0 %v7610
    %8022 = vmatmul.mubr.bf16.gmra.mrb[0].mxu0 %v7609
    %v8023 = vpop.f32.mrb[0].mxu0
    %v8024 = vadd.f32 %v7762, %v8023
    %v8025 = vpop.f32.mrb[0].mxu0
    %v8026 = vadd.f32 %v7766, %v8025
    %v8027 = vpop.f32.mrb[0].mxu0
    %v8028 = vadd.f32 %v7762, %v8027
    %v8029 = vpop.f32.mrb[0].mxu0
    %v8030 = vadd.f32 %v7766, %v8029
    %8031 = vmatprep.mubr.bf16.mxu0 %v7612
    %8032 = vmatmul.mubr.bf16.gmra.mrb[0].mxu0 %v7611
    %v8033 = vpop.f32.mrb[0].mxu0
    %v8034 = vadd.f32 %v7762, %v8033
    %v8035 = vpop.f32.mrb[0].mxu0
    %v8036 = vadd.f32 %v7766, %v8035
    %v8037 = vpop.f32.mrb[0].mxu0
    %v8038 = vadd.f32 %v7762, %v8037
    %v8039 = vpop.f32.mrb[0].mxu0
    %v8040 = vadd.f32 %v7766, %v8039
    %8041 = vmatprep.mubr.bf16.mxu0 %v7614
    %8042 = vmatmul.mubr.bf16.gmra.mrb[0].mxu0 %v7613
    %v8043 = vpop.f32.mrb[0].mxu0
    %v8044 = vadd.f32 %v7762, %v8043
    %v8045 = vpop.f32.mrb[0].mxu0
    %v8046 = vadd.f32 %v7766, %v8045
    %v8047 = vpop.f32.mrb[0].mxu0
    %v8048 = vadd.f32 %v7762, %v8047
    %v8049 = vpop.f32.mrb[0].mxu0
    %v8050 = vadd.f32 %v7766, %v8049
    %8051 = vmatprep.mubr.bf16.mxu0 %v7616
    %8052 = vmatmul.mubr.bf16.gmra.mrb[0].mxu0 %v7615
    %v8053 = vpop.f32.mrb[0].mxu0
    %v8054 = vadd.f32 %v7762, %v8053
    %v8055 = vpop.f32.mrb[0].mxu0
    %v8056 = vadd.f32 %v7766, %v8055
    %v8057 = vpop.f32.mrb[0].mxu0
    %v8058 = vadd.f32 %v7762, %v8057
    %v8059 = vpop.f32.mrb[0].mxu0
    %v8060 = vadd.f32 %v7766, %v8059
    %8061 = vmatprep.mubr.bf16.mxu0 %v7618
    %8062 = vmatmul.mubr.bf16.gmra.mrb[0].mxu0 %v7617
    %v8063 = vpop.f32.mrb[0].mxu0
    %v8064 = vadd.f32 %v7762, %v8063
    %v8065 = vpop.f32.mrb[0].mxu0
    %v8066 = vadd.f32 %v7766, %v8065
    %v8067 = vpop.f32.mrb[0].mxu0
    %v8068 = vadd.f32 %v7762, %v8067
    %v8069 = vpop.f32.mrb[0].mxu0
    %v8070 = vadd.f32 %v7766, %v8069
    %8071 = vmatprep.mubr.bf16.mxu0 %v7620
    %8072 = vmatmul.mubr.bf16.gmra.mrb[0].mxu0 %v7619
    %v8073 = vpop.f32.mrb[0].mxu0
    %v8074 = vadd.f32 %v7762, %v8073
    %v8075 = vpop.f32.mrb[0].mxu0
    %v8076 = vadd.f32 %v7766, %v8075
    %v8077 = vpop.f32.mrb[0].mxu0
    %v8078 = vadd.f32 %v7762, %v8077
    %v8079 = vpop.f32.mrb[0].mxu0
    %v8080 = vadd.f32 %v7766, %v8079
    %8081 = vmatprep.mubr.bf16.mxu0 %v7622
    %8082 = vmatmul.mubr.bf16.gmra.mrb[0].mxu0 %v7621
    %v8083 = vpop.f32.mrb[0].mxu0
    %v8084 = vadd.f32 %v7762, %v8083
    %v8085 = vpop.f32.mrb[0].mxu0
    %v8086 = vadd.f32 %v7766, %v8085
    %v8087 = vpop.f32.mrb[0].mxu0
    %v8088 = vadd.f32 %v7762, %v8087
    %v8089 = vpop.f32.mrb[0].mxu0
    %v8090 = vadd.f32 %v7766, %v8089
    %8091 = vmatprep.mubr.bf16.mxu0 %v7624
    %8092 = vmatmul.mubr.bf16.gmra.mrb[0].mxu0 %v7623
    %v8093 = vpop.f32.mrb[0].mxu0
    %v8094 = vadd.f32 %v7762, %v8093
    %v8095 = vpop.f32.mrb[0].mxu0
    %v8096 = vadd.f32 %v7766, %v8095
    %v8097 = vpop.f32.mrb[0].mxu0
    %v8098 = vadd.f32 %v7762, %v8097
    %v8099 = vpop.f32.mrb[0].mxu0
    %v8100 = vadd.f32 %v7766, %v8099
    %8101 = vmatprep.mubr.bf16.mxu0 %v7626
    %8102 = vmatmul.mubr.bf16.gmra.mrb[0].mxu0 %v7625
    %v8103 = vpop.f32.mrb[0].mxu0
    %v8104 = vadd.f32 %v7762, %v8103
    %v8105 = vpop.f32.mrb[0].mxu0
    %v8106 = vadd.f32 %v7766, %v8105
    %v8107 = vpop.f32.mrb[0].mxu0
    %v8108 = vadd.f32 %v7762, %v8107
    %v8109 = vpop.f32.mrb[0].mxu0
    %v8110 = vadd.f32 %v7766, %v8109
    %8111 = vmatprep.mubr.bf16.mxu0 %v7628
    %8112 = vmatmul.mubr.bf16.gmra.mrb[0].mxu0 %v7627
    %v8113 = vpop.f32.mrb[0].mxu0
    %v8114 = vadd.f32 %v7762, %v8113
    %v8115 = vpop.f32.mrb[0].mxu0
    %v8116 = vadd.f32 %v7766, %v8115
    %v8117 = vpop.f32.mrb[0].mxu0
    %v8118 = vadd.f32 %v7762, %v8117
    %v8119 = vpop.f32.mrb[0].mxu0
    %v8120 = vadd.f32 %v7766, %v8119
    %8121 = vmatprep.mubr.bf16.mxu0 %v7630
    %8122 = vmatmul.mubr.bf16.gmra.mrb[0].mxu0 %v7629
    %v8123 = vpop.f32.mrb[0].mxu0
    %v8124 = vadd.f32 %v7762, %v8123
    %v8125 = vpop.f32.mrb[0].mxu0
    %v8126 = vadd.f32 %v7766, %v8125
    %v8127 = vpop.f32.mrb[0].mxu0
    %v8128 = vadd.f32 %v7762, %v8127
    %v8129 = vpop.f32.mrb[0].mxu0
    %v8130 = vadd.f32 %v7766, %v8129
    %8131 = vmatprep.mubr.bf16.mxu0 %v7632
    %8132 = vmatmul.mubr.bf16.gmra.mrb[0].mxu0 %v7631
    %v8133 = vpop.f32.mrb[0].mxu0
    %v8134 = vadd.f32 %v7762, %v8133
    %v8135 = vpop.f32.mrb[0].mxu0
    %v8136 = vadd.f32 %v7766, %v8135
    %v8137 = vpop.f32.mrb[0].mxu0
    %v8138 = vadd.f32 %v7762, %v8137
    %v8139 = vpop.f32.mrb[0].mxu0
    %v8140 = vadd.f32 %v7766, %v8139
    %8141 = vmatprep.mubr.bf16.mxu0 %v7634
    %8142 = vmatmul.mubr.bf16.gmra.mrb[0].mxu0 %v7633
    %v8143 = vpop.f32.mrb[0].mxu0
    %v8144 = vadd.f32 %v7762, %v8143
    %v8145 = vpop.f32.mrb[0].mxu0
    %v8146 = vadd.f32 %v7766, %v8145
    %v8147 = vpop.f32.mrb[0].mxu0
    %v8148 = vadd.f32 %v7762, %v8147
    %v8149 = vpop.f32.mrb[0].mxu0
    %v8150 = vadd.f32 %v7766, %v8149
    %8151 = vmatprep.mubr.bf16.mxu0 %v7636
    %8152 = vmatmul.mubr.bf16.gmra.mrb[0].mxu0 %v7635
    %v8153 = vpop.f32.mrb[0].mxu0
    %v8154 = vadd.f32 %v7762, %v8153
    %v8155 = vpop.f32.mrb[0].mxu0
    %v8156 = vadd.f32 %v7766, %v8155
    %v8157 = vpop.f32.mrb[0].mxu0
    %v8158 = vadd.f32 %v7762, %v8157
    %v8159 = vpop.f32.mrb[0].mxu0
    %v8160 = vadd.f32 %v7766, %v8159
    %8161 = vmatprep.mubr.bf16.mxu0 %v7638
    %8162 = vmatmul.mubr.bf16.gmra.mrb[0].mxu0 %v7637
    %v8163 = vpop.f32.mrb[0].mxu0
    %v8164 = vadd.f32 %v7762, %v8163
    %v8165 = vpop.f32.mrb[0].mxu0
    %v8166 = vadd.f32 %v7766, %v8165
    %v8167 = vpop.f32.mrb[0].mxu0
    %v8168 = vadd.f32 %v7762, %v8167
    %v8169 = vpop.f32.mrb[0].mxu0
    %v8170 = vadd.f32 %v7766, %v8169
    %8171 = vmatprep.mubr.bf16.mxu0 %v7640
    %8172 = vmatmul.mubr.bf16.gmra.mrb[0].mxu0 %v7639
    %v8173 = vpop.f32.mrb[0].mxu0
    %v8174 = vadd.f32 %v7762, %v8173
    %v8175 = vpop.f32.mrb[0].mxu0
    %v8176 = vadd.f32 %v7766, %v8175
    %v8177 = vpop.f32.mrb[0].mxu0
    %v8178 = vadd.f32 %v7762, %v8177
    %v8179 = vpop.f32.mrb[0].mxu0
    %v8180 = vadd.f32 %v7766, %v8179
    %8181 = vmatprep.mubr.bf16.mxu0 %v7642
    %8182 = vmatmul.mubr.bf16.gmra.mrb[0].mxu0 %v7641
    %v8183 = vpop.f32.mrb[0].mxu0
    %v8184 = vadd.f32 %v7762, %v8183
    %v8185 = vpop.f32.mrb[0].mxu0
    %v8186 = vadd.f32 %v7766, %v8185
    %v8187 = vpop.f32.mrb[0].mxu0
    %v8188 = vadd.f32 %v7762, %v8187
    %v8189 = vpop.f32.mrb[0].mxu0
    %v8190 = vadd.f32 %v7766, %v8189
    %8191 = vmatprep.mubr.bf16.mxu0 %v7644
    %8192 = vmatmul.mubr.bf16.gmra.mrb[0].mxu0 %v7643
    %v8193 = vpop.f32.mrb[0].mxu0
    %v8194 = vadd.f32 %v7762, %v8193
    %v8195 = vpop.f32.mrb[0].mxu0
    %v8196 = vadd.f32 %v7766, %v8195
    %v8197 = vpop.f32.mrb[0].mxu0
    %v8198 = vadd.f32 %v7762, %v8197
    %v8199 = vpop.f32.mrb[0].mxu0
    %v8200 = vadd.f32 %v7766, %v8199
    %8201 = vmatprep.mubr.bf16.mxu0 %v7646
    %8202 = vmatmul.mubr.bf16.gmra.mrb[0].mxu0 %v7645
    %v8203 = vpop.f32.mrb[0].mxu0
    %v8204 = vadd.f32 %v7762, %v8203
    %v8205 = vpop.f32.mrb[0].mxu0
    %v8206 = vadd.f32 %v7766, %v8205
    %v8207 = vpop.f32.mrb[0].mxu0
    %v8208 = vadd.f32 %v7762, %v8207
    %v8209 = vpop.f32.mrb[0].mxu0
    %v8210 = vadd.f32 %v7766, %v8209
    %8211 = vmatprep.mubr.bf16.mxu0 %v7648
    %8212 = vmatmul.mubr.bf16.gmra.mrb[0].mxu0 %v7647
    %v8213 = vpop.f32.mrb[0].mxu0
    %v8214 = vadd.f32 %v7762, %v8213
    %v8215 = vpop.f32.mrb[0].mxu0
    %v8216 = vadd.f32 %v7766, %v8215
    %v8217 = vpop.f32.mrb[0].mxu0
    %v8218 = vadd.f32 %v7762, %v8217
    %v8219 = vpop.f32.mrb[0].mxu0
    %v8220 = vadd.f32 %v7766, %v8219
    %8221 = vmatprep.mubr.bf16.mxu0 %v7650
    %8222 = vmatmul.mubr.bf16.gmra.mrb[0].mxu0 %v7649
    %v8223 = vpop.f32.mrb[0].mxu0
    %v8224 = vadd.f32 %v7762, %v8223
    %v8225 = vpop.f32.mrb[0].mxu0
    %v8226 = vadd.f32 %v7766, %v8225
    %v8227 = vpop.f32.mrb[0].mxu0
    %v8228 = vadd.f32 %v7762, %v8227
    %v8229 = vpop.f32.mrb[0].mxu0
    %v8230 = vadd.f32 %v7766, %v8229
    %8231 = vmatprep.mubr.bf16.mxu0 %v7652
    %8232 = vmatmul.mubr.bf16.gmra.mrb[0].mxu0 %v7651
    %v8233 = vpop.f32.mrb[0].mxu0
    %v8234 = vadd.f32 %v7762, %v8233
    %v8235 = vpop.f32.mrb[0].mxu0
    %v8236 = vadd.f32 %v7766, %v8235
    %v8237 = vpop.f32.mrb[0].mxu0
    %v8238 = vadd.f32 %v7762, %v8237
    %v8239 = vpop.f32.mrb[0].mxu0
    %v8240 = vadd.f32 %v7766, %v8239
    %8241 = vmatprep.mubr.bf16.mxu0 %v7654
    %8242 = vmatmul.mubr.bf16.gmra.mrb[0].mxu0 %v7653
    %v8243 = vpop.f32.mrb[0].mxu0
    %v8244 = vadd.f32 %v7762, %v8243
    %v8245 = vpop.f32.mrb[0].mxu0
    %v8246 = vadd.f32 %v7766, %v8245
    %v8247 = vpop.f32.mrb[0].mxu0
    %v8248 = vadd.f32 %v7762, %v8247
    %v8249 = vpop.f32.mrb[0].mxu0
    %v8250 = vadd.f32 %v7766, %v8249
    %8251 = vmatprep.mubr.bf16.mxu0 %v7656
    %8252 = vmatmul.mubr.bf16.gmra.mrb[0].mxu0 %v7655
    %v8253 = vpop.f32.mrb[0].mxu0
    %v8254 = vadd.f32 %v7762, %v8253
    %v8255 = vpop.f32.mrb[0].mxu0
    %v8256 = vadd.f32 %v7766, %v8255
    %v8257 = vpop.f32.mrb[0].mxu0
    %v8258 = vadd.f32 %v7762, %v8257
    %v8259 = vpop.f32.mrb[0].mxu0
    %v8260 = vadd.f32 %v7766, %v8259
    %8261 = vmatprep.mubr.bf16.mxu0 %v7658
    %8262 = vmatmul.mubr.bf16.gmra.mrb[0].mxu0 %v7657
    %v8263 = vpop.f32.mrb[0].mxu0
    %v8264 = vadd.f32 %v7762, %v8263
    %v8265 = vpop.f32.mrb[0].mxu0
    %v8266 = vadd.f32 %v7766, %v8265
    %v8267 = vpop.f32.mrb[0].mxu0
    %v8268 = vadd.f32 %v7762, %v8267
    %v8269 = vpop.f32.mrb[0].mxu0
    %v8270 = vadd.f32 %v7766, %v8269
    %8271 = vmatprep.mubr.bf16.mxu0 %v7660
    %8272 = vmatmul.mubr.bf16.gmra.mrb[0].mxu0 %v7659
    %v8273 = vpop.f32.mrb[0].mxu0
    %v8274 = vadd.f32 %v7762, %v8273
    %v8275 = vpop.f32.mrb[0].mxu0
    %v8276 = vadd.f32 %v7766, %v8275
    %v8277 = vpop.f32.mrb[0].mxu0
    %v8278 = vadd.f32 %v7762, %v8277
    %v8279 = vpop.f32.mrb[0].mxu0
    %v8280 = vadd.f32 %v7766, %v8279
    %8281 = vmatprep.mubr.bf16.mxu0 %v7662
    %8282 = vmatmul.mubr.bf16.gmra.mrb[0].mxu0 %v7661
    %v8283 = vpop.f32.mrb[0].mxu0
    %v8284 = vadd.f32 %v7762, %v8283
    %v8285 = vpop.f32.mrb[0].mxu0
    %v8286 = vadd.f32 %v7766, %v8285
    %v8287 = vpop.f32.mrb[0].mxu0
    %v8288 = vadd.f32 %v7762, %v8287
    %v8289 = vpop.f32.mrb[0].mxu0
    %v8290 = vadd.f32 %v7766, %v8289
    %8291 = vmatprep.mubr.bf16.mxu0 %v7664
    %8292 = vmatmul.mubr.bf16.gmra.mrb[0].mxu0 %v7663
    %v8293 = vpop.f32.mrb[0].mxu0
    %v8294 = vadd.f32 %v7762, %v8293
    %v8295 = vpop.f32.mrb[0].mxu0
    %v8296 = vadd.f32 %v7766, %v8295
    %v8297 = vpop.f32.mrb[0].mxu0
    %v8298 = vadd.f32 %v7762, %v8297
    %v8299 = vpop.f32.mrb[0].mxu0
    %v8300 = vadd.f32 %v7766, %v8299
    %8301 = vmatprep.mubr.bf16.mxu0 %v7666
    %8302 = vmatmul.mubr.bf16.gmra.mrb[0].mxu0 %v7665
    %v8303 = vpop.f32.mrb[0].mxu0
    %v8304 = vadd.f32 %v7762, %v8303
    %v8305 = vpop.f32.mrb[0].mxu0
    %v8306 = vadd.f32 %v7766, %v8305
    %v8307 = vpop.f32.mrb[0].mxu0
    %v8308 = vadd.f32 %v7762, %v8307
    %v8309 = vpop.f32.mrb[0].mxu0
    %v8310 = vadd.f32 %v7766, %v8309
    %8311 = vmatprep.mubr.bf16.mxu0 %v7668
    %8312 = vmatmul.mubr.bf16.gmra.mrb[0].mxu0 %v7667
    %v8313 = vpop.f32.mrb[0].mxu0
    %v8314 = vadd.f32 %v7762, %v8313
    %v8315 = vpop.f32.mrb[0].mxu0
    %v8316 = vadd.f32 %v7766, %v8315
    %v8317 = vpop.f32.mrb[0].mxu0
    %v8318 = vadd.f32 %v7762, %v8317
    %v8319 = vpop.f32.mrb[0].mxu0
    %v8320 = vadd.f32 %v7766, %v8319
    %8321 = vmatprep.mubr.bf16.mxu0 %v7670
    %8322 = vmatmul.mubr.bf16.gmra.mrb[0].mxu0 %v7669
    %v8323 = vpop.f32.mrb[0].mxu0
    %v8324 = vadd.f32 %v7762, %v8323
    %v8325 = vpop.f32.mrb[0].mxu0
    %v8326 = vadd.f32 %v7766, %v8325
    %v8327 = vpop.f32.mrb[0].mxu0
    %v8328 = vadd.f32 %v7762, %v8327
    %v8329 = vpop.f32.mrb[0].mxu0
    %v8330 = vadd.f32 %v7766, %v8329
    %8331 = vmatprep.mubr.bf16.mxu0 %v7672
    %8332 = vmatmul.mubr.bf16.gmra.mrb[0].mxu0 %v7671
    %v8333 = vpop.f32.mrb[0].mxu0
    %v8334 = vadd.f32 %v7762, %v8333
    %v8335 = vpop.f32.mrb[0].mxu0
    %v8336 = vadd.f32 %v7766, %v8335
    %v8337 = vpop.f32.mrb[0].mxu0
    %v8338 = vadd.f32 %v7762, %v8337
    %v8339 = vpop.f32.mrb[0].mxu0
    %v8340 = vadd.f32 %v7766, %v8339
    %8341 = vmatprep.mubr.bf16.mxu0 %v7674
    %8342 = vmatmul.mubr.bf16.gmra.mrb[0].mxu0 %v7673
    %v8343 = vpop.f32.mrb[0].mxu0
    %v8344 = vadd.f32 %v7762, %v8343
    %v8345 = vpop.f32.mrb[0].mxu0
    %v8346 = vadd.f32 %v7766, %v8345
    %v8347 = vpop.f32.mrb[0].mxu0
    %v8348 = vadd.f32 %v7762, %v8347
    %v8349 = vpop.f32.mrb[0].mxu0
    %v8350 = vadd.f32 %v7766, %v8349
    %8351 = vmatprep.mubr.bf16.mxu0 %v7676
    %8352 = vmatmul.mubr.bf16.gmra.mrb[0].mxu0 %v7675
    %v8353 = vpop.f32.mrb[0].mxu0
    %v8354 = vadd.f32 %v7762, %v8353
    %v8355 = vpop.f32.mrb[0].mxu0
    %v8356 = vadd.f32 %v7766, %v8355
    %v8357 = vpop.f32.mrb[0].mxu0
    %v8358 = vadd.f32 %v7762, %v8357
    %v8359 = vpop.f32.mrb[0].mxu0
    %v8360 = vadd.f32 %v7766, %v8359
    %8361 = vmatprep.mubr.bf16.mxu0 %v7678
    %8362 = vmatmul.mubr.bf16.gmra.mrb[0].mxu0 %v7677
    %v8363 = vpop.f32.mrb[0].mxu0
    %v8364 = vadd.f32 %v7762, %v8363
    %v8365 = vpop.f32.mrb[0].mxu0
    %v8366 = vadd.f32 %v7766, %v8365
    %v8367 = vpop.f32.mrb[0].mxu0
    %v8368 = vadd.f32 %v7762, %v8367
    %v8369 = vpop.f32.mrb[0].mxu0
    %v8370 = vadd.f32 %v7766, %v8369
    %8371 = vmatprep.mubr.bf16.mxu0 %v7680
    %8372 = vmatmul.mubr.bf16.gmra.mrb[0].mxu0 %v7679
    %v8373 = vpop.f32.mrb[0].mxu0
    %v8374 = vadd.f32 %v7762, %v8373
    %v8375 = vpop.f32.mrb[0].mxu0
    %v8376 = vadd.f32 %v7766, %v8375
    %v8377 = vpop.f32.mrb[0].mxu0
    %v8378 = vadd.f32 %v7762, %v8377
    %v8379 = vpop.f32.mrb[0].mxu0
    %v8380 = vadd.f32 %v7766, %v8379
    %8381 = vmatprep.mubr.bf16.mxu0 %v7682
    %8382 = vmatmul.mubr.bf16.gmra.mrb[0].mxu0 %v7681
    %v8383 = vpop.f32.mrb[0].mxu0
    %v8384 = vadd.f32 %v7762, %v8383
    %v8385 = vpop.f32.mrb[0].mxu0
    %v8386 = vadd.f32 %v7766, %v8385
    %v8387 = vpop.f32.mrb[0].mxu0
    %v8388 = vadd.f32 %v7762, %v8387
    %v8389 = vpop.f32.mrb[0].mxu0
    %v8390 = vadd.f32 %v7766, %v8389
    %8391 = vmatprep.mubr.bf16.mxu0 %v7684
    %8392 = vmatmul.mubr.bf16.gmra.mrb[0].mxu0 %v7683
    %v8393 = vpop.f32.mrb[0].mxu0
    %v8394 = vadd.f32 %v7762, %v8393
    %v8395 = vpop.f32.mrb[0].mxu0
    %v8396 = vadd.f32 %v7766, %v8395
    %v8397 = vpop.f32.mrb[0].mxu0
    %v8398 = vadd.f32 %v7762, %v8397
    %v8399 = vpop.f32.mrb[0].mxu0
    %v8400 = vadd.f32 %v7766, %v8399
    %8401 = vmatprep.mubr.bf16.mxu0 %v7686
    %8402 = vmatmul.mubr.bf16.gmra.mrb[0].mxu0 %v7685
    %v8403 = vpop.f32.mrb[0].mxu0
    %v8404 = vadd.f32 %v7762, %v8403
    %v8405 = vpop.f32.mrb[0].mxu0
    %v8406 = vadd.f32 %v7766, %v8405
    %v8407 = vpop.f32.mrb[0].mxu0
    %v8408 = vadd.f32 %v7762, %v8407
    %v8409 = vpop.f32.mrb[0].mxu0
    %v8410 = vadd.f32 %v7766, %v8409
    %8411 = vmatprep.mubr.bf16.mxu0 %v7688
    %8412 = vmatmul.mubr.bf16.gmra.mrb[0].mxu0 %v7687
    %v8413 = vpop.f32.mrb[0].mxu0
    %v8414 = vadd.f32 %v7762, %v8413
    %v8415 = vpop.f32.mrb[0].mxu0
    %v8416 = vadd.f32 %v7766, %v8415
    %v8417 = vpop.f32.mrb[0].mxu0
    %v8418 = vadd.f32 %v7762, %v8417
    %v8419 = vpop.f32.mrb[0].mxu0
    %v8420 = vadd.f32 %v7766, %v8419
    %8421 = vmatprep.mubr.bf16.mxu0 %v7690
    %8422 = vmatmul.mubr.bf16.gmra.mrb[0].mxu0 %v7689
    %v8423 = vpop.f32.mrb[0].mxu0
    %v8424 = vadd.f32 %v7762, %v8423
    %v8425 = vpop.f32.mrb[0].mxu0
    %v8426 = vadd.f32 %v7766, %v8425
    %v8427 = vpop.f32.mrb[0].mxu0
    %v8428 = vadd.f32 %v7762, %v8427
    %v8429 = vpop.f32.mrb[0].mxu0
    %v8430 = vadd.f32 %v7766, %v8429
    %8431 = vmatprep.mubr.bf16.mxu0 %v7692
    %8432 = vmatmul.mubr.bf16.gmra.mrb[0].mxu0 %v7691
    %v8433 = vpop.f32.mrb[0].mxu0
    %v8434 = vadd.f32 %v7762, %v8433
    %v8435 = vpop.f32.mrb[0].mxu0
    %v8436 = vadd.f32 %v7766, %v8435
    %v8437 = vpop.f32.mrb[0].mxu0
    %v8438 = vadd.f32 %v7762, %v8437
    %v8439 = vpop.f32.mrb[0].mxu0
    %v8440 = vadd.f32 %v7766, %v8439
    %8441 = vmatprep.mubr.bf16.mxu0 %v7694
    %8442 = vmatmul.mubr.bf16.gmra.mrb[0].mxu0 %v7693
    %v8443 = vpop.f32.mrb[0].mxu0
    %v8444 = vadd.f32 %v7762, %v8443
    %v8445 = vpop.f32.mrb[0].mxu0
    %v8446 = vadd.f32 %v7766, %v8445
    %v8447 = vpop.f32.mrb[0].mxu0
    %v8448 = vadd.f32 %v7762, %v8447
    %v8449 = vpop.f32.mrb[0].mxu0
    %v8450 = vadd.f32 %v7766, %v8449
    %8451 = vmatprep.mubr.bf16.mxu0 %v7696
    %8452 = vmatmul.mubr.bf16.gmra.mrb[0].mxu0 %v7695
    %v8453 = vpop.f32.mrb[0].mxu0
    %v8454 = vadd.f32 %v7762, %v8453
    %v8455 = vpop.f32.mrb[0].mxu0
    %v8456 = vadd.f32 %v7766, %v8455
    %v8457 = vpop.f32.mrb[0].mxu0
    %v8458 = vadd.f32 %v7762, %v8457
    %v8459 = vpop.f32.mrb[0].mxu0
    %v8460 = vadd.f32 %v7766, %v8459
    %8461 = vmatprep.mubr.bf16.mxu0 %v7698
    %8462 = vmatmul.mubr.bf16.gmra.mrb[0].mxu0 %v7697
    %v8463 = vpop.f32.mrb[0].mxu0
    %v8464 = vadd.f32 %v7762, %v8463
    %v8465 = vpop.f32.mrb[0].mxu0
    %v8466 = vadd.f32 %v7766, %v8465
    %v8467 = vpop.f32.mrb[0].mxu0
    %v8468 = vadd.f32 %v7762, %v8467
    %v8469 = vpop.f32.mrb[0].mxu0
    %v8470 = vadd.f32 %v7766, %v8469
    %8471 = vmatprep.mubr.bf16.mxu0 %v7700
    %8472 = vmatmul.mubr.bf16.gmra.mrb[0].mxu0 %v7699
    %v8473 = vpop.f32.mrb[0].mxu0
    %v8474 = vadd.f32 %v7762, %v8473
    %v8475 = vpop.f32.mrb[0].mxu0
    %v8476 = vadd.f32 %v7766, %v8475
    %v8477 = vpop.f32.mrb[0].mxu0
    %v8478 = vadd.f32 %v7762, %v8477
    %v8479 = vpop.f32.mrb[0].mxu0
    %v8480 = vadd.f32 %v7766, %v8479
    %8481 = vmatprep.mubr.bf16.mxu0 %v7702
    %8482 = vmatmul.mubr.bf16.gmra.mrb[0].mxu0 %v7701
    %v8483 = vpop.f32.mrb[0].mxu0
    %v8484 = vadd.f32 %v7762, %v8483
    %v8485 = vpop.f32.mrb[0].mxu0
    %v8486 = vadd.f32 %v7766, %v8485
    %v8487 = vpop.f32.mrb[0].mxu0
    %v8488 = vadd.f32 %v7762, %v8487
    %v8489 = vpop.f32.mrb[0].mxu0
    %v8490 = vadd.f32 %v7766, %v8489
    %8491 = vmatprep.mubr.bf16.mxu0 %v7704
    %8492 = vmatmul.mubr.bf16.gmra.mrb[0].mxu0 %v7703
    %v8493 = vpop.f32.mrb[0].mxu0
    %v8494 = vadd.f32 %v7762, %v8493
    %v8495 = vpop.f32.mrb[0].mxu0
    %v8496 = vadd.f32 %v7766, %v8495
    %v8497 = vpop.f32.mrb[0].mxu0
    %v8498 = vadd.f32 %v7762, %v8497
    %v8499 = vpop.f32.mrb[0].mxu0
    %v8500 = vadd.f32 %v7766, %v8499
    %8501 = vmatprep.mubr.bf16.mxu0 %v7706
    %8502 = vmatmul.mubr.bf16.gmra.mrb[0].mxu0 %v7705
    %v8503 = vpop.f32.mrb[0].mxu0
    %v8504 = vadd.f32 %v7762, %v8503
    %v8505 = vpop.f32.mrb[0].mxu0
    %v8506 = vadd.f32 %v7766, %v8505
    %v8507 = vpop.f32.mrb[0].mxu0
    %v8508 = vadd.f32 %v7762, %v8507
    %v8509 = vpop.f32.mrb[0].mxu0
    %v8510 = vadd.f32 %v7766, %v8509
    %8511 = vmatprep.mubr.bf16.mxu0 %v7708
    %8512 = vmatmul.mubr.bf16.gmra.mrb[0].mxu0 %v7707
    %v8513 = vpop.f32.mrb[0].mxu0
    %v8514 = vadd.f32 %v7762, %v8513
    %v8515 = vpop.f32.mrb[0].mxu0
    %v8516 = vadd.f32 %v7766, %v8515
    %v8517 = vpop.f32.mrb[0].mxu0
    %v8518 = vadd.f32 %v7762, %v8517
    %v8519 = vpop.f32.mrb[0].mxu0
    %v8520 = vadd.f32 %v7766, %v8519
    %8521 = vmatprep.mubr.bf16.mxu0 %v7710
    %8522 = vmatmul.mubr.bf16.gmra.mrb[0].mxu0 %v7709
    %v8523 = vpop.f32.mrb[0].mxu0
    %v8524 = vadd.f32 %v7762, %v8523
    %v8525 = vpop.f32.mrb[0].mxu0
    %v8526 = vadd.f32 %v7766, %v8525
    %v8527 = vpop.f32.mrb[0].mxu0
    %v8528 = vadd.f32 %v7762, %v8527
    %v8529 = vpop.f32.mrb[0].mxu0
    %v8530 = vadd.f32 %v7766, %v8529
    %8531 = vmatprep.mubr.bf16.mxu0 %v7712
    %8532 = vmatmul.mubr.bf16.gmra.mrb[0].mxu0 %v7711
    %v8533 = vpop.f32.mrb[0].mxu0
    %v8534 = vadd.f32 %v7762, %v8533
    %v8535 = vpop.f32.mrb[0].mxu0
    %v8536 = vadd.f32 %v7766, %v8535
    %v8537 = vpop.f32.mrb[0].mxu0
    %v8538 = vadd.f32 %v7762, %v8537
    %v8539 = vpop.f32.mrb[0].mxu0
    %v8540 = vadd.f32 %v7766, %v8539
    %8541 = vmatprep.mubr.bf16.mxu0 %v7714
    %8542 = vmatmul.mubr.bf16.gmra.mrb[0].mxu0 %v7713
    %v8543 = vpop.f32.mrb[0].mxu0
    %v8544 = vadd.f32 %v7762, %v8543
    %v8545 = vpop.f32.mrb[0].mxu0
    %v8546 = vadd.f32 %v7766, %v8545
    %v8547 = vpop.f32.mrb[0].mxu0
    %v8548 = vadd.f32 %v7762, %v8547
    %v8549 = vpop.f32.mrb[0].mxu0
    %v8550 = vadd.f32 %v7766, %v8549
    %8551 = vmatprep.mubr.bf16.mxu0 %v7716
    %8552 = vmatmul.mubr.bf16.gmra.mrb[0].mxu0 %v7715
    %v8553 = vpop.f32.mrb[0].mxu0
    %v8554 = vadd.f32 %v7762, %v8553
    %v8555 = vpop.f32.mrb[0].mxu0
    %v8556 = vadd.f32 %v7766, %v8555
    %v8557 = vpop.f32.mrb[0].mxu0
    %v8558 = vadd.f32 %v7762, %v8557
    %v8559 = vpop.f32.mrb[0].mxu0
    %v8560 = vadd.f32 %v7766, %v8559
    %8561 = vmatprep.mubr.bf16.mxu0 %v7718
    %8562 = vmatmul.mubr.bf16.gmra.mrb[0].mxu0 %v7717
    %v8563 = vpop.f32.mrb[0].mxu0
    %v8564 = vadd.f32 %v7762, %v8563
    %v8565 = vpop.f32.mrb[0].mxu0
    %v8566 = vadd.f32 %v7766, %v8565
    %v8567 = vpop.f32.mrb[0].mxu0
    %v8568 = vadd.f32 %v7762, %v8567
    %v8569 = vpop.f32.mrb[0].mxu0
    %v8570 = vadd.f32 %v7766, %v8569
    %8571 = vmatprep.mubr.bf16.mxu0 %v7720
    %8572 = vmatmul.mubr.bf16.gmra.mrb[0].mxu0 %v7719
    %v8573 = vpop.f32.mrb[0].mxu0
    %v8574 = vadd.f32 %v7762, %v8573
    %v8575 = vpop.f32.mrb[0].mxu0
    %v8576 = vadd.f32 %v7766, %v8575
    %v8577 = vpop.f32.mrb[0].mxu0
    %v8578 = vadd.f32 %v7762, %v8577
    %v8579 = vpop.f32.mrb[0].mxu0
    %v8580 = vadd.f32 %v7766, %v8579
    %8581 = vmatprep.mubr.bf16.mxu0 %v7722
    %8582 = vmatmul.mubr.bf16.gmra.mrb[0].mxu0 %v7721
    %v8583 = vpop.f32.mrb[0].mxu0
    %v8584 = vadd.f32 %v7762, %v8583
    %v8585 = vpop.f32.mrb[0].mxu0
    %v8586 = vadd.f32 %v7766, %v8585
    %v8587 = vpop.f32.mrb[0].mxu0
    %v8588 = vadd.f32 %v7762, %v8587
    %v8589 = vpop.f32.mrb[0].mxu0
    %v8590 = vadd.f32 %v7766, %v8589
    %8591 = vmatprep.mubr.bf16.mxu0 %v7724
    %8592 = vmatmul.mubr.bf16.gmra.mrb[0].mxu0 %v7723
    %v8593 = vpop.f32.mrb[0].mxu0
    %v8594 = vadd.f32 %v7762, %v8593
    %v8595 = vpop.f32.mrb[0].mxu0
    %v8596 = vadd.f32 %v7766, %v8595
    %v8597 = vpop.f32.mrb[0].mxu0
    %v8598 = vadd.f32 %v7762, %v8597
    %v8599 = vpop.f32.mrb[0].mxu0
    %v8600 = vadd.f32 %v7766, %v8599
    %8601 = vdwg.mxu0
    %v8602 = vmax.f32 %v7964, 0.0
    %v8603 = vmax.f32 %v7966, 0.0
    %v8604 = vmax.f32 %v7968, 0.0
    %v8605 = vmax.f32 %v7970, 0.0
    %v8606 = vmax.f32 %v7974, 0.0
    %v8607 = vmax.f32 %v7976, 0.0
    %v8608 = vmax.f32 %v7978, 0.0
    %v8609 = vmax.f32 %v7980, 0.0
    %v8610 = vmax.f32 %v7984, 0.0
    %v8611 = vmax.f32 %v7986, 0.0
    %v8612 = vmax.f32 %v7988, 0.0
    %v8613 = vmax.f32 %v7990, 0.0
    %v8614 = vmax.f32 %v7994, 0.0
    %v8615 = vmax.f32 %v7996, 0.0
    %v8616 = vmax.f32 %v7998, 0.0
    %v8617 = vmax.f32 %v8000, 0.0
    %v8618 = vmax.f32 %v8004, 0.0
    %v8619 = vmax.f32 %v8006, 0.0
    %v8620 = vmax.f32 %v8008, 0.0
    %v8621 = vmax.f32 %v8010, 0.0
    %v8622 = vmax.f32 %v8014, 0.0
    %v8623 = vmax.f32 %v8016, 0.0
    %v8624 = vmax.f32 %v8018, 0.0
    %v8625 = vmax.f32 %v8020, 0.0
    %v8626 = vmax.f32 %v8024, 0.0
    %v8627 = vmax.f32 %v8026, 0.0
    %v8628 = vmax.f32 %v8028, 0.0
    %v8629 = vmax.f32 %v8030, 0.0
    %v8630 = vmax.f32 %v8034, 0.0
    %v8631 = vmax.f32 %v8036, 0.0
    %v8632 = vmax.f32 %v8038, 0.0
    %v8633 = vmax.f32 %v8040, 0.0
    %v8634 = vmax.f32 %v8044, 0.0
    %v8635 = vmax.f32 %v8046, 0.0
    %v8636 = vmax.f32 %v8048, 0.0
    %v8637 = vmax.f32 %v8050, 0.0
    %v8638 = vmax.f32 %v8054, 0.0
    %v8639 = vmax.f32 %v8056, 0.0
    %v8640 = vmax.f32 %v8058, 0.0
    %v8641 = vmax.f32 %v8060, 0.0
    %v8642 = vmax.f32 %v8064, 0.0
    %v8643 = vmax.f32 %v8066, 0.0
    %v8644 = vmax.f32 %v8068, 0.0
    %v8645 = vmax.f32 %v8070, 0.0
    %v8646 = vmax.f32 %v8074, 0.0
    %v8647 = vmax.f32 %v8076, 0.0
    %v8648 = vmax.f32 %v8078, 0.0
    %v8649 = vmax.f32 %v8080, 0.0
    %v8650 = vmax.f32 %v8084, 0.0
    %v8651 = vmax.f32 %v8086, 0.0
    %v8652 = vmax.f32 %v8088, 0.0
    %v8653 = vmax.f32 %v8090, 0.0
    %v8654 = vmax.f32 %v8094, 0.0
    %v8655 = vmax.f32 %v8096, 0.0
    %v8656 = vmax.f32 %v8098, 0.0
    %v8657 = vmax.f32 %v8100, 0.0
    %v8658 = vmax.f32 %v8104, 0.0
    %v8659 = vmax.f32 %v8106, 0.0
    %v8660 = vmax.f32 %v8108, 0.0
    %v8661 = vmax.f32 %v8110, 0.0
    %v8662 = vmax.f32 %v8114, 0.0
    %v8663 = vmax.f32 %v8116, 0.0
    %v8664 = vmax.f32 %v8118, 0.0
    %v8665 = vmax.f32 %v8120, 0.0
    %v8666 = vmax.f32 %v8124, 0.0
    %v8667 = vmax.f32 %v8126, 0.0
    %v8668 = vmax.f32 %v8128, 0.0
    %v8669 = vmax.f32 %v8130, 0.0
    %v8670 = vmax.f32 %v8134, 0.0
    %v8671 = vmax.f32 %v8136, 0.0
    %v8672 = vmax.f32 %v8138, 0.0
    %v8673 = vmax.f32 %v8140, 0.0
    %v8674 = vmax.f32 %v8144, 0.0
    %v8675 = vmax.f32 %v8146, 0.0
    %v8676 = vmax.f32 %v8148, 0.0
    %v8677 = vmax.f32 %v8150, 0.0
    %v8678 = vmax.f32 %v8154, 0.0
    %v8679 = vmax.f32 %v8156, 0.0
    %v8680 = vmax.f32 %v8158, 0.0
    %v8681 = vmax.f32 %v8160, 0.0
    %v8682 = vmax.f32 %v8164, 0.0
    %v8683 = vmax.f32 %v8166, 0.0
    %v8684 = vmax.f32 %v8168, 0.0
    %v8685 = vmax.f32 %v8170, 0.0
    %v8686 = vmax.f32 %v8174, 0.0
    %v8687 = vmax.f32 %v8176, 0.0
    %v8688 = vmax.f32 %v8178, 0.0
    %v8689 = vmax.f32 %v8180, 0.0
    %v8690 = vmax.f32 %v8184, 0.0
    %v8691 = vmax.f32 %v8186, 0.0
    %v8692 = vmax.f32 %v8188, 0.0
    %v8693 = vmax.f32 %v8190, 0.0
    %v8694 = vmax.f32 %v8194, 0.0
    %v8695 = vmax.f32 %v8196, 0.0
    %v8696 = vmax.f32 %v8198, 0.0
    %v8697 = vmax.f32 %v8200, 0.0
    %v8698 = vmax.f32 %v8204, 0.0
    %v8699 = vmax.f32 %v8206, 0.0
    %v8700 = vmax.f32 %v8208, 0.0
    %v8701 = vmax.f32 %v8210, 0.0
    %v8702 = vmax.f32 %v8214, 0.0
    %v8703 = vmax.f32 %v8216, 0.0
    %v8704 = vmax.f32 %v8218, 0.0
    %v8705 = vmax.f32 %v8220, 0.0
    %v8706 = vmax.f32 %v8224, 0.0
    %v8707 = vmax.f32 %v8226, 0.0
    %v8708 = vmax.f32 %v8228, 0.0
    %v8709 = vmax.f32 %v8230, 0.0
    %v8710 = vmax.f32 %v8234, 0.0
    %v8711 = vmax.f32 %v8236, 0.0
    %v8712 = vmax.f32 %v8238, 0.0
    %v8713 = vmax.f32 %v8240, 0.0
    %v8714 = vmax.f32 %v8244, 0.0
    %v8715 = vmax.f32 %v8246, 0.0
    %v8716 = vmax.f32 %v8248, 0.0
    %v8717 = vmax.f32 %v8250, 0.0
    %v8718 = vmax.f32 %v8254, 0.0
    %v8719 = vmax.f32 %v8256, 0.0
    %v8720 = vmax.f32 %v8258, 0.0
    %v8721 = vmax.f32 %v8260, 0.0
    %v8722 = vmax.f32 %v8264, 0.0
    %v8723 = vmax.f32 %v8266, 0.0
    %v8724 = vmax.f32 %v8268, 0.0
    %v8725 = vmax.f32 %v8270, 0.0
    %v8726 = vmax.f32 %v8274, 0.0
    %v8727 = vmax.f32 %v8276, 0.0
    %v8728 = vmax.f32 %v8278, 0.0
    %v8729 = vmax.f32 %v8280, 0.0
    %v8730 = vmax.f32 %v8284, 0.0
    %v8731 = vmax.f32 %v8286, 0.0
    %v8732 = vmax.f32 %v8288, 0.0
    %v8733 = vmax.f32 %v8290, 0.0
    %v8734 = vmax.f32 %v8294, 0.0
    %v8735 = vmax.f32 %v8296, 0.0
    %v8736 = vmax.f32 %v8298, 0.0
    %v8737 = vmax.f32 %v8300, 0.0
    %v8738 = vmax.f32 %v8304, 0.0
    %v8739 = vmax.f32 %v8306, 0.0
    %v8740 = vmax.f32 %v8308, 0.0
    %v8741 = vmax.f32 %v8310, 0.0
    %v8742 = vmax.f32 %v8314, 0.0
    %v8743 = vmax.f32 %v8316, 0.0
    %v8744 = vmax.f32 %v8318, 0.0
    %v8745 = vmax.f32 %v8320, 0.0
    %v8746 = vmax.f32 %v8324, 0.0
    %v8747 = vmax.f32 %v8326, 0.0
    %v8748 = vmax.f32 %v8328, 0.0
    %v8749 = vmax.f32 %v8330, 0.0
    %v8750 = vmax.f32 %v8334, 0.0
    %v8751 = vmax.f32 %v8336, 0.0
    %v8752 = vmax.f32 %v8338, 0.0
    %v8753 = vmax.f32 %v8340, 0.0
    %v8754 = vmax.f32 %v8344, 0.0
    %v8755 = vmax.f32 %v8346, 0.0
    %v8756 = vmax.f32 %v8348, 0.0
    %v8757 = vmax.f32 %v8350, 0.0
    %v8758 = vmax.f32 %v8354, 0.0
    %v8759 = vmax.f32 %v8356, 0.0
    %v8760 = vmax.f32 %v8358, 0.0
    %v8761 = vmax.f32 %v8360, 0.0
    %v8762 = vmax.f32 %v8364, 0.0
    %v8763 = vmax.f32 %v8366, 0.0
    %v8764 = vmax.f32 %v8368, 0.0
    %v8765 = vmax.f32 %v8370, 0.0
    %v8766 = vmax.f32 %v8374, 0.0
    %v8767 = vmax.f32 %v8376, 0.0
    %v8768 = vmax.f32 %v8378, 0.0
    %v8769 = vmax.f32 %v8380, 0.0
    %v8770 = vmax.f32 %v8384, 0.0
    %v8771 = vmax.f32 %v8386, 0.0
    %v8772 = vmax.f32 %v8388, 0.0
    %v8773 = vmax.f32 %v8390, 0.0
    %v8774 = vmax.f32 %v8394, 0.0
    %v8775 = vmax.f32 %v8396, 0.0
    %v8776 = vmax.f32 %v8398, 0.0
    %v8777 = vmax.f32 %v8400, 0.0
    %v8778 = vmax.f32 %v8404, 0.0
    %v8779 = vmax.f32 %v8406, 0.0
    %v8780 = vmax.f32 %v8408, 0.0
    %v8781 = vmax.f32 %v8410, 0.0
    %v8782 = vmax.f32 %v8414, 0.0
    %v8783 = vmax.f32 %v8416, 0.0
    %v8784 = vmax.f32 %v8418, 0.0
    %v8785 = vmax.f32 %v8420, 0.0
    %v8786 = vmax.f32 %v8424, 0.0
    %v8787 = vmax.f32 %v8426, 0.0
    %v8788 = vmax.f32 %v8428, 0.0
    %v8789 = vmax.f32 %v8430, 0.0
    %v8790 = vmax.f32 %v8434, 0.0
    %v8791 = vmax.f32 %v8436, 0.0
    %v8792 = vmax.f32 %v8438, 0.0
    %v8793 = vmax.f32 %v8440, 0.0
    %v8794 = vmax.f32 %v8444, 0.0
    %v8795 = vmax.f32 %v8446, 0.0
    %v8796 = vmax.f32 %v8448, 0.0
    %v8797 = vmax.f32 %v8450, 0.0
    %v8798 = vmax.f32 %v8454, 0.0
    %v8799 = vmax.f32 %v8456, 0.0
    %v8800 = vmax.f32 %v8458, 0.0
    %v8801 = vmax.f32 %v8460, 0.0
    %v8802 = vmax.f32 %v8464, 0.0
    %v8803 = vmax.f32 %v8466, 0.0
    %v8804 = vmax.f32 %v8468, 0.0
    %v8805 = vmax.f32 %v8470, 0.0
    %v8806 = vmax.f32 %v8474, 0.0
    %v8807 = vmax.f32 %v8476, 0.0
    %v8808 = vmax.f32 %v8478, 0.0
    %v8809 = vmax.f32 %v8480, 0.0
    %v8810 = vmax.f32 %v8484, 0.0
    %v8811 = vmax.f32 %v8486, 0.0
    %v8812 = vmax.f32 %v8488, 0.0
    %v8813 = vmax.f32 %v8490, 0.0
    %v8814 = vmax.f32 %v8494, 0.0
    %v8815 = vmax.f32 %v8496, 0.0
    %v8816 = vmax.f32 %v8498, 0.0
    %v8817 = vmax.f32 %v8500, 0.0
    %v8818 = vmax.f32 %v8504, 0.0
    %v8819 = vmax.f32 %v8506, 0.0
    %v8820 = vmax.f32 %v8508, 0.0
    %v8821 = vmax.f32 %v8510, 0.0
    %v8822 = vmax.f32 %v8514, 0.0
    %v8823 = vmax.f32 %v8516, 0.0
    %v8824 = vmax.f32 %v8518, 0.0
    %v8825 = vmax.f32 %v8520, 0.0
    %v8826 = vmax.f32 %v8524, 0.0
    %v8827 = vmax.f32 %v8526, 0.0
    %v8828 = vmax.f32 %v8528, 0.0
    %v8829 = vmax.f32 %v8530, 0.0
    %v8830 = vmax.f32 %v8534, 0.0
    %v8831 = vmax.f32 %v8536, 0.0
    %v8832 = vmax.f32 %v8538, 0.0
    %v8833 = vmax.f32 %v8540, 0.0
    %v8834 = vmax.f32 %v8544, 0.0
    %v8835 = vmax.f32 %v8546, 0.0
    %v8836 = vmax.f32 %v8548, 0.0
    %v8837 = vmax.f32 %v8550, 0.0
    %v8838 = vmax.f32 %v8554, 0.0
    %v8839 = vmax.f32 %v8556, 0.0
    %v8840 = vmax.f32 %v8558, 0.0
    %v8841 = vmax.f32 %v8560, 0.0
    %v8842 = vmax.f32 %v8564, 0.0
    %v8843 = vmax.f32 %v8566, 0.0
    %v8844 = vmax.f32 %v8568, 0.0
    %v8845 = vmax.f32 %v8570, 0.0
    %v8846 = vmax.f32 %v8574, 0.0
    %v8847 = vmax.f32 %v8576, 0.0
    %v8848 = vmax.f32 %v8578, 0.0
    %v8849 = vmax.f32 %v8580, 0.0
    %v8850 = vmax.f32 %v8584, 0.0
    %v8851 = vmax.f32 %v8586, 0.0
    %v8852 = vmax.f32 %v8588, 0.0
    %v8853 = vmax.f32 %v8590, 0.0
    %v8854 = vmax.f32 %v8594, 0.0
    %v8855 = vmax.f32 %v8596, 0.0
    %v8856 = vmax.f32 %v8598, 0.0
    %v8857 = vmax.f32 %v8600, 0.0
    %v8858 = vadd.f32 %v8602, %v8604
    %v8859 = vadd.f32 %v8858, %v8606
    %v8860 = vadd.f32 %v8859, %v8608
    %v8861 = vadd.f32 %v8860, %v8610
    %v8862 = vadd.f32 %v8861, %v8612
    %v8863 = vadd.f32 %v8862, %v8614
    %v8864 = vadd.f32 %v8863, %v8616
    %v8865 = vadd.f32 %v8864, %v8618
    %v8866 = vadd.f32 %v8865, %v8620
    %v8867 = vadd.f32 %v8866, %v8622
    %v8868 = vadd.f32 %v8867, %v8624
    %v8869 = vadd.f32 %v8868, %v8626
    %v8870 = vadd.f32 %v8869, %v8628
    %v8871 = vadd.f32 %v8870, %v8630
    %v8872 = vadd.f32 %v8871, %v8632
    %v8873 = vadd.f32 %v8872, %v8634
    %v8874 = vadd.f32 %v8873, %v8636
    %v8875 = vadd.f32 %v8874, %v8638
    %v8876 = vadd.f32 %v8875, %v8640
    %v8877 = vadd.f32 %v8876, %v8642
    %v8878 = vadd.f32 %v8877, %v8644
    %v8879 = vadd.f32 %v8878, %v8646
    %v8880 = vadd.f32 %v8879, %v8648
    %v8881 = vadd.f32 %v8880, %v8650
    %v8882 = vadd.f32 %v8881, %v8652
    %v8883 = vadd.f32 %v8882, %v8654
    %v8884 = vadd.f32 %v8883, %v8656
    %v8885 = vadd.f32 %v8884, %v8658
    %v8886 = vadd.f32 %v8885, %v8660
    %v8887 = vadd.f32 %v8886, %v8662
    %v8888 = vadd.f32 %v8887, %v8664
    %v8889 = vrot.slane %v8888, 4
    %v8890 = vadd.f32 %v8888, %v8889
    %v8891 = vrot.slane %v8890, 2
    %v8892 = vadd.f32 %v8890, %v8891
    %v8893 = vrot.slane %v8892, 1
    %v8894 = vadd.f32 %v8892, %v8893
    %v8895 = vadd.f32 %v8603, %v8605
    %v8896 = vadd.f32 %v8895, %v8607
    %v8897 = vadd.f32 %v8896, %v8609
    %v8898 = vadd.f32 %v8897, %v8611
    %v8899 = vadd.f32 %v8898, %v8613
    %v8900 = vadd.f32 %v8899, %v8615
    %v8901 = vadd.f32 %v8900, %v8617
    %v8902 = vadd.f32 %v8901, %v8619
    %v8903 = vadd.f32 %v8902, %v8621
    %v8904 = vadd.f32 %v8903, %v8623
    %v8905 = vadd.f32 %v8904, %v8625
    %v8906 = vadd.f32 %v8905, %v8627
    %v8907 = vadd.f32 %v8906, %v8629
    %v8908 = vadd.f32 %v8907, %v8631
    %v8909 = vadd.f32 %v8908, %v8633
    %v8910 = vadd.f32 %v8909, %v8635
    %v8911 = vadd.f32 %v8910, %v8637
    %v8912 = vadd.f32 %v8911, %v8639
    %v8913 = vadd.f32 %v8912, %v8641
    %v8914 = vadd.f32 %v8913, %v8643
    %v8915 = vadd.f32 %v8914, %v8645
    %v8916 = vadd.f32 %v8915, %v8647
    %v8917 = vadd.f32 %v8916, %v8649
    %v8918 = vadd.f32 %v8917, %v8651
    %v8919 = vadd.f32 %v8918, %v8653
    %v8920 = vadd.f32 %v8919, %v8655
    %v8921 = vadd.f32 %v8920, %v8657
    %v8922 = vadd.f32 %v8921, %v8659
    %v8923 = vadd.f32 %v8922, %v8661
    %v8924 = vadd.f32 %v8923, %v8663
    %v8925 = vadd.f32 %v8924, %v8665
    %v8926 = vrot.slane %v8925, 4
    %v8927 = vadd.f32 %v8925, %v8926
    %v8928 = vrot.slane %v8927, 2
    %v8929 = vadd.f32 %v8927, %v8928
    %v8930 = vrot.slane %v8929, 1
    %v8931 = vadd.f32 %v8929, %v8930
    %v8932 = vadd.f32 %v8666, %v8668
    %v8933 = vadd.f32 %v8932, %v8670
    %v8934 = vadd.f32 %v8933, %v8672
    %v8935 = vadd.f32 %v8934, %v8674
    %v8936 = vadd.f32 %v8935, %v8676
    %v8937 = vadd.f32 %v8936, %v8678
    %v8938 = vadd.f32 %v8937, %v8680
    %v8939 = vadd.f32 %v8938, %v8682
    %v8940 = vadd.f32 %v8939, %v8684
    %v8941 = vadd.f32 %v8940, %v8686
    %v8942 = vadd.f32 %v8941, %v8688
    %v8943 = vadd.f32 %v8942, %v8690
    %v8944 = vadd.f32 %v8943, %v8692
    %v8945 = vadd.f32 %v8944, %v8694
    %v8946 = vadd.f32 %v8945, %v8696
    %v8947 = vadd.f32 %v8946, %v8698
    %v8948 = vadd.f32 %v8947, %v8700
    %v8949 = vadd.f32 %v8948, %v8702
    %v8950 = vadd.f32 %v8949, %v8704
    %v8951 = vadd.f32 %v8950, %v8706
    %v8952 = vadd.f32 %v8951, %v8708
    %v8953 = vadd.f32 %v8952, %v8710
    %v8954 = vadd.f32 %v8953, %v8712
    %v8955 = vadd.f32 %v8954, %v8714
    %v8956 = vadd.f32 %v8955, %v8716
    %v8957 = vadd.f32 %v8956, %v8718
    %v8958 = vadd.f32 %v8957, %v8720
    %v8959 = vadd.f32 %v8958, %v8722
    %v8960 = vadd.f32 %v8959, %v8724
    %v8961 = vadd.f32 %v8960, %v8726
    %v8962 = vadd.f32 %v8961, %v8728
    %v8963 = vrot.slane %v8962, 4
    %v8964 = vadd.f32 %v8962, %v8963
    %v8965 = vrot.slane %v8964, 2
    %v8966 = vadd.f32 %v8964, %v8965
    %v8967 = vrot.slane %v8966, 1
    %v8968 = vadd.f32 %v8966, %v8967
    %v8969 = vadd.f32 %v8667, %v8669
    %v8970 = vadd.f32 %v8969, %v8671
    %v8971 = vadd.f32 %v8970, %v8673
    %v8972 = vadd.f32 %v8971, %v8675
    %v8973 = vadd.f32 %v8972, %v8677
    %v8974 = vadd.f32 %v8973, %v8679
    %v8975 = vadd.f32 %v8974, %v8681
    %v8976 = vadd.f32 %v8975, %v8683
    %v8977 = vadd.f32 %v8976, %v8685
    %v8978 = vadd.f32 %v8977, %v8687
    %v8979 = vadd.f32 %v8978, %v8689
    %v8980 = vadd.f32 %v8979, %v8691
    %v8981 = vadd.f32 %v8980, %v8693
    %v8982 = vadd.f32 %v8981, %v8695
    %v8983 = vadd.f32 %v8982, %v8697
    %v8984 = vadd.f32 %v8983, %v8699
    %v8985 = vadd.f32 %v8984, %v8701
    %v8986 = vadd.f32 %v8985, %v8703
    %v8987 = vadd.f32 %v8986, %v8705
    %v8988 = vadd.f32 %v8987, %v8707
    %v8989 = vadd.f32 %v8988, %v8709
    %v8990 = vadd.f32 %v8989, %v8711
    %v8991 = vadd.f32 %v8990, %v8713
    %v8992 = vadd.f32 %v8991, %v8715
    %v8993 = vadd.f32 %v8992, %v8717
    %v8994 = vadd.f32 %v8993, %v8719
    %v8995 = vadd.f32 %v8994, %v8721
    %v8996 = vadd.f32 %v8995, %v8723
    %v8997 = vadd.f32 %v8996, %v8725
    %v8998 = vadd.f32 %v8997, %v8727
    %v8999 = vadd.f32 %v8998, %v8729
    %v9000 = vrot.slane %v8999, 4
    %v9001 = vadd.f32 %v8999, %v9000
    %v9002 = vrot.slane %v9001, 2
    %v9003 = vadd.f32 %v9001, %v9002
    %v9004 = vrot.slane %v9003, 1
    %v9005 = vadd.f32 %v9003, %v9004
    %v9006 = vadd.f32 %v8730, %v8732
    %v9007 = vadd.f32 %v9006, %v8734
    %v9008 = vadd.f32 %v9007, %v8736
    %v9009 = vadd.f32 %v9008, %v8738
    %v9010 = vadd.f32 %v9009, %v8740
    %v9011 = vadd.f32 %v9010, %v8742
    %v9012 = vadd.f32 %v9011, %v8744
    %v9013 = vadd.f32 %v9012, %v8746
    %v9014 = vadd.f32 %v9013, %v8748
    %v9015 = vadd.f32 %v9014, %v8750
    %v9016 = vadd.f32 %v9015, %v8752
    %v9017 = vadd.f32 %v9016, %v8754
    %v9018 = vadd.f32 %v9017, %v8756
    %v9019 = vadd.f32 %v9018, %v8758
    %v9020 = vadd.f32 %v9019, %v8760
    %v9021 = vadd.f32 %v9020, %v8762
    %v9022 = vadd.f32 %v9021, %v8764
    %v9023 = vadd.f32 %v9022, %v8766
    %v9024 = vadd.f32 %v9023, %v8768
    %v9025 = vadd.f32 %v9024, %v8770
    %v9026 = vadd.f32 %v9025, %v8772
    %v9027 = vadd.f32 %v9026, %v8774
    %v9028 = vadd.f32 %v9027, %v8776
    %v9029 = vadd.f32 %v9028, %v8778
    %v9030 = vadd.f32 %v9029, %v8780
    %v9031 = vadd.f32 %v9030, %v8782
    %v9032 = vadd.f32 %v9031, %v8784
    %v9033 = vadd.f32 %v9032, %v8786
    %v9034 = vadd.f32 %v9033, %v8788
    %v9035 = vadd.f32 %v9034, %v8790
    %v9036 = vadd.f32 %v9035, %v8792
    %v9037 = vrot.slane %v9036, 4
    %v9038 = vadd.f32 %v9036, %v9037
    %v9039 = vrot.slane %v9038, 2
    %v9040 = vadd.f32 %v9038, %v9039
    %v9041 = vrot.slane %v9040, 1
    %v9042 = vadd.f32 %v9040, %v9041
    %v9043 = vadd.f32 %v8731, %v8733
    %v9044 = vadd.f32 %v9043, %v8735
    %v9045 = vadd.f32 %v9044, %v8737
    %v9046 = vadd.f32 %v9045, %v8739
    %v9047 = vadd.f32 %v9046, %v8741
    %v9048 = vadd.f32 %v9047, %v8743
    %v9049 = vadd.f32 %v9048, %v8745
    %v9050 = vadd.f32 %v9049, %v8747
    %v9051 = vadd.f32 %v9050, %v8749
    %v9052 = vadd.f32 %v9051, %v8751
    %v9053 = vadd.f32 %v9052, %v8753
    %v9054 = vadd.f32 %v9053, %v8755
    %v9055 = vadd.f32 %v9054, %v8757
    %v9056 = vadd.f32 %v9055, %v8759
    %v9057 = vadd.f32 %v9056, %v8761
    %v9058 = vadd.f32 %v9057, %v8763
    %v9059 = vadd.f32 %v9058, %v8765
    %v9060 = vadd.f32 %v9059, %v8767
    %v9061 = vadd.f32 %v9060, %v8769
    %v9062 = vadd.f32 %v9061, %v8771
    %v9063 = vadd.f32 %v9062, %v8773
    %v9064 = vadd.f32 %v9063, %v8775
    %v9065 = vadd.f32 %v9064, %v8777
    %v9066 = vadd.f32 %v9065, %v8779
    %v9067 = vadd.f32 %v9066, %v8781
    %v9068 = vadd.f32 %v9067, %v8783
    %v9069 = vadd.f32 %v9068, %v8785
    %v9070 = vadd.f32 %v9069, %v8787
    %v9071 = vadd.f32 %v9070, %v8789
    %v9072 = vadd.f32 %v9071, %v8791
    %v9073 = vadd.f32 %v9072, %v8793
    %v9074 = vrot.slane %v9073, 4
    %v9075 = vadd.f32 %v9073, %v9074
    %v9076 = vrot.slane %v9075, 2
    %v9077 = vadd.f32 %v9075, %v9076
    %v9078 = vrot.slane %v9077, 1
    %v9079 = vadd.f32 %v9077, %v9078
    %v9080 = vadd.f32 %v8794, %v8796
    %v9081 = vadd.f32 %v9080, %v8798
    %v9082 = vadd.f32 %v9081, %v8800
    %v9083 = vadd.f32 %v9082, %v8802
    %v9084 = vadd.f32 %v9083, %v8804
    %v9085 = vadd.f32 %v9084, %v8806
    %v9086 = vadd.f32 %v9085, %v8808
    %v9087 = vadd.f32 %v9086, %v8810
    %v9088 = vadd.f32 %v9087, %v8812
    %v9089 = vadd.f32 %v9088, %v8814
    %v9090 = vadd.f32 %v9089, %v8816
    %v9091 = vadd.f32 %v9090, %v8818
    %v9092 = vadd.f32 %v9091, %v8820
    %v9093 = vadd.f32 %v9092, %v8822
    %v9094 = vadd.f32 %v9093, %v8824
    %v9095 = vadd.f32 %v9094, %v8826
    %v9096 = vadd.f32 %v9095, %v8828
    %v9097 = vadd.f32 %v9096, %v8830
    %v9098 = vadd.f32 %v9097, %v8832
    %v9099 = vadd.f32 %v9098, %v8834
    %v9100 = vadd.f32 %v9099, %v8836
    %v9101 = vadd.f32 %v9100, %v8838
    %v9102 = vadd.f32 %v9101, %v8840
    %v9103 = vadd.f32 %v9102, %v8842
    %v9104 = vadd.f32 %v9103, %v8844
    %v9105 = vadd.f32 %v9104, %v8846
    %v9106 = vadd.f32 %v9105, %v8848
    %v9107 = vadd.f32 %v9106, %v8850
    %v9108 = vadd.f32 %v9107, %v8852
    %v9109 = vadd.f32 %v9108, %v8854
    %v9110 = vadd.f32 %v9109, %v8856
    %v9111 = vrot.slane %v9110, 4
    %v9112 = vadd.f32 %v9110, %v9111
    %v9113 = vrot.slane %v9112, 2
    %v9114 = vadd.f32 %v9112, %v9113
    %v9115 = vrot.slane %v9114, 1
    %v9116 = vadd.f32 %v9114, %v9115
    %v9117 = vadd.f32 %v8795, %v8797
    %v9118 = vadd.f32 %v9117, %v8799
    %v9119 = vadd.f32 %v9118, %v8801
    %v9120 = vadd.f32 %v9119, %v8803
    %v9121 = vadd.f32 %v9120, %v8805
    %v9122 = vadd.f32 %v9121, %v8807
    %v9123 = vadd.f32 %v9122, %v8809
    %v9124 = vadd.f32 %v9123, %v8811
    %v9125 = vadd.f32 %v9124, %v8813
    %v9126 = vadd.f32 %v9125, %v8815
    %v9127 = vadd.f32 %v9126, %v8817
    %v9128 = vadd.f32 %v9127, %v8819
    %v9129 = vadd.f32 %v9128, %v8821
    %v9130 = vadd.f32 %v9129, %v8823
    %v9131 = vadd.f32 %v9130, %v8825
    %v9132 = vadd.f32 %v9131, %v8827
    %v9133 = vadd.f32 %v9132, %v8829
    %v9134 = vadd.f32 %v9133, %v8831
    %v9135 = vadd.f32 %v9134, %v8833
    %v9136 = vadd.f32 %v9135, %v8835
    %v9137 = vadd.f32 %v9136, %v8837
    %v9138 = vadd.f32 %v9137, %v8839
    %v9139 = vadd.f32 %v9138, %v8841
    %v9140 = vadd.f32 %v9139, %v8843
    %v9141 = vadd.f32 %v9140, %v8845
    %v9142 = vadd.f32 %v9141, %v8847
    %v9143 = vadd.f32 %v9142, %v8849
    %v9144 = vadd.f32 %v9143, %v8851
    %v9145 = vadd.f32 %v9144, %v8853
    %v9146 = vadd.f32 %v9145, %v8855
    %v9147 = vadd.f32 %v9146, %v8857
    %v9148 = vrot.slane %v9147, 4
    %v9149 = vadd.f32 %v9147, %v9148
    %v9150 = vrot.slane %v9149, 2
    %v9151 = vadd.f32 %v9149, %v9150
    %v9152 = vrot.slane %v9151, 1
    %v9153 = vadd.f32 %v9151, %v9152
    %v9154 = vpack.c.bf16 %v8894, %v8894
    %v9155 = vpack.c.bf16 %v8931, %v8931
    %v9156 = vpack.c.bf16 %v8968, %v8968
    %v9157 = vpack.c.bf16 %v9005, %v9005
    %v9158 = vpack.c.bf16 %v9042, %v9042
    %v9159 = vpack.c.bf16 %v9079, %v9079
    %v9160 = vpack.c.bf16 %v9116, %v9116
    %v9161 = vpack.c.bf16 %v9153, %v9153
    %v9162 = vld [vmem:[#allocation11] sm:$0xff]
    %v9163 = vld [vmem:[#allocation11 + $0x8] sm:$0xff]
    %v9164 = vld [vmem:[#allocation11 + $0x10] sm:$0xff]
    %v9165 = vld [vmem:[#allocation11 + $0x18] sm:$0xff]
    %v9166 = vld [vmem:[#allocation11 + $0x20] sm:$0xff]
    %v9167 = vld [vmem:[#allocation11 + $0x28] sm:$0xff]
    %v9168 = vld [vmem:[#allocation11 + $0x30] sm:$0xff]
    %v9169 = vld [vmem:[#allocation11 + $0x38] sm:$0xff]
    %v9170 = vld [vmem:[#allocation11 + $0x40] sm:$0xff]
    %v9171 = vld [vmem:[#allocation11 + $0x48] sm:$0xff]
    %v9172 = vld [vmem:[#allocation11 + $0x50] sm:$0xff]
    %v9173 = vld [vmem:[#allocation11 + $0x58] sm:$0xff]
    %v9174 = vld [vmem:[#allocation11 + $0x60] sm:$0xff]
    %v9175 = vld [vmem:[#allocation11 + $0x68] sm:$0xff]
    %v9176 = vld [vmem:[#allocation11 + $0x70] sm:$0xff]
    %v9177 = vld [vmem:[#allocation11 + $0x78] sm:$0xff]
    %v9178 = vld [vmem:[#allocation11 + $0x80] sm:$0xff]
    %v9179 = vld [vmem:[#allocation11 + $0x88] sm:$0xff]
    %v9180 = vld [vmem:[#allocation11 + $0x90] sm:$0xff]
    %v9181 = vld [vmem:[#allocation11 + $0x98] sm:$0xff]
    %v9182 = vld [vmem:[#allocation11 + $0xa0] sm:$0xff]
    %v9183 = vld [vmem:[#allocation11 + $0xa8] sm:$0xff]
    %v9184 = vld [vmem:[#allocation11 + $0xb0] sm:$0xff]
    %v9185 = vld [vmem:[#allocation11 + $0xb8] sm:$0xff]
    %v9186 = vld [vmem:[#allocation11 + $0xc0] sm:$0xff]
    %v9187 = vld [vmem:[#allocation11 + $0xc8] sm:$0xff]
    %v9188 = vld [vmem:[#allocation11 + $0xd0] sm:$0xff]
    %v9189 = vld [vmem:[#allocation11 + $0xd8] sm:$0xff]
    %v9190 = vld [vmem:[#allocation11 + $0xe0] sm:$0xff]
    %v9191 = vld [vmem:[#allocation11 + $0xe8] sm:$0xff]
    %v9192 = vld [vmem:[#allocation11 + $0xf0] sm:$0xff]
    %v9193 = vld [vmem:[#allocation11 + $0xf8] sm:$0xff]
    %v9194 = vld [vmem:[%s20] sm:$0x3]
    %v9196 = vlaneseq
    %v9197 = vshrl.u32 %v9196, 7
    %v9198 = vsub.s32 0, %v9197
    %v9199 = vrot.slane %v9194, %v9198
    %v9200 = vlaneseq
    %v9201 = vshrl.u32 %v9200, 7
    %v9202 = vsub.s32 1, %v9201
    %v9203 = vrot.slane %v9194, %v9202
    %v9214 = vunpack.c.l.b16 %v9154
    %v9215 = vunpack.c.l.b16 %v9155
    %v9216 = vunpack.c.l.b16 %v9156
    %v9217 = vunpack.c.l.b16 %v9157
    %v9218 = vunpack.c.l.b16 %v9158
    %v9219 = vunpack.c.l.b16 %v9159
    %v9220 = vunpack.c.l.b16 %v9160
    %v9221 = vunpack.c.l.b16 %v9161
    %v9222 = vsel %vm249, %v9216, %v9214
    %v9223 = vsel %vm252, %v9218, %v9222
    %v9224 = vsel %vm255, %v9220, %v9223
    %v9225 = vsel %vm249, %v9217, %v9215
    %v9226 = vsel %vm252, %v9219, %v9225
    %v9227 = vsel %vm255, %v9221, %v9226
    %v9228 = vpack.c.b16 %v9224, %v9224
    %v9229 = vpack.c.b16 %v9227, %v9227
    %v9264 = vunpack.c.l.b16 %v9162
    %v9265 = vunpack.c.h.b16 %v9162
    %v9266 = vunpack.c.l.b16 %v9163
    %v9267 = vunpack.c.h.b16 %v9163
    %v9268 = vunpack.c.l.b16 %v9164
    %v9269 = vunpack.c.h.b16 %v9164
    %v9270 = vunpack.c.l.b16 %v9165
    %v9271 = vunpack.c.h.b16 %v9165
    %v9272 = vunpack.c.l.b16 %v9166
    %v9273 = vunpack.c.h.b16 %v9166
    %v9274 = vunpack.c.l.b16 %v9167
    %v9275 = vunpack.c.h.b16 %v9167
    %v9276 = vunpack.c.l.b16 %v9168
    %v9277 = vunpack.c.h.b16 %v9168
    %v9278 = vunpack.c.l.b16 %v9169
    %v9279 = vunpack.c.h.b16 %v9169
    %v9280 = vunpack.c.l.b16 %v9170
    %v9281 = vunpack.c.h.b16 %v9170
    %v9282 = vunpack.c.l.b16 %v9171
    %v9283 = vunpack.c.h.b16 %v9171
    %v9284 = vunpack.c.l.b16 %v9172
    %v9285 = vunpack.c.h.b16 %v9172
    %v9286 = vunpack.c.l.b16 %v9173
    %v9287 = vunpack.c.h.b16 %v9173
    %v9288 = vunpack.c.l.b16 %v9174
    %v9289 = vunpack.c.h.b16 %v9174
    %v9290 = vunpack.c.l.b16 %v9175
    %v9291 = vunpack.c.h.b16 %v9175
    %v9292 = vunpack.c.l.b16 %v9176
    %v9293 = vunpack.c.h.b16 %v9176
    %v9294 = vunpack.c.l.b16 %v9177
    %v9295 = vunpack.c.h.b16 %v9177
    %v9296 = vunpack.c.l.b16 %v9178
    %v9297 = vunpack.c.h.b16 %v9178
    %v9298 = vunpack.c.l.b16 %v9179
    %v9299 = vunpack.c.h.b16 %v9179
    %v9300 = vunpack.c.l.b16 %v9180
    %v9301 = vunpack.c.h.b16 %v9180
    %v9302 = vunpack.c.l.b16 %v9181
    %v9303 = vunpack.c.h.b16 %v9181
    %v9304 = vunpack.c.l.b16 %v9182
    %v9305 = vunpack.c.h.b16 %v9182
    %v9306 = vunpack.c.l.b16 %v9183
    %v9307 = vunpack.c.h.b16 %v9183
    %v9308 = vunpack.c.l.b16 %v9184
    %v9309 = vunpack.c.h.b16 %v9184
    %v9310 = vunpack.c.l.b16 %v9185
    %v9311 = vunpack.c.h.b16 %v9185
    %v9312 = vunpack.c.l.b16 %v9186
    %v9313 = vunpack.c.h.b16 %v9186
    %v9314 = vunpack.c.l.b16 %v9187
    %v9315 = vunpack.c.h.b16 %v9187
    %v9316 = vunpack.c.l.b16 %v9188
    %v9317 = vunpack.c.h.b16 %v9188
    %v9318 = vunpack.c.l.b16 %v9189
    %v9319 = vunpack.c.h.b16 %v9189
    %v9320 = vunpack.c.l.b16 %v9190
    %v9321 = vunpack.c.h.b16 %v9190
    %v9322 = vunpack.c.l.b16 %v9191
    %v9323 = vunpack.c.h.b16 %v9191
    %v9324 = vunpack.c.l.b16 %v9192
    %v9325 = vunpack.c.h.b16 %v9192
    %v9326 = vunpack.c.l.b16 %v9193
    %v9327 = vunpack.c.h.b16 %v9193
    %v9328 = vpack.c.b16 %v9266, %v9264
    %v9329 = vpack.c.b16 %v9267, %v9265
    %v9330 = vpack.c.b16 %v9270, %v9268
    %v9331 = vpack.c.b16 %v9271, %v9269
    %v9332 = vpack.c.b16 %v9274, %v9272
    %v9333 = vpack.c.b16 %v9275, %v9273
    %v9334 = vpack.c.b16 %v9278, %v9276
    %v9335 = vpack.c.b16 %v9279, %v9277
    %v9336 = vpack.c.b16 %v9282, %v9280
    %v9337 = vpack.c.b16 %v9283, %v9281
    %v9338 = vpack.c.b16 %v9286, %v9284
    %v9339 = vpack.c.b16 %v9287, %v9285
    %v9340 = vpack.c.b16 %v9290, %v9288
    %v9341 = vpack.c.b16 %v9291, %v9289
    %v9342 = vpack.c.b16 %v9294, %v9292
    %v9343 = vpack.c.b16 %v9295, %v9293
    %v9344 = vpack.c.b16 %v9298, %v9296
    %v9345 = vpack.c.b16 %v9299, %v9297
    %v9346 = vpack.c.b16 %v9302, %v9300
    %v9347 = vpack.c.b16 %v9303, %v9301
    %v9348 = vpack.c.b16 %v9306, %v9304
    %v9349 = vpack.c.b16 %v9307, %v9305
    %v9350 = vpack.c.b16 %v9310, %v9308
    %v9351 = vpack.c.b16 %v9311, %v9309
    %v9352 = vpack.c.b16 %v9314, %v9312
    %v9353 = vpack.c.b16 %v9315, %v9313
    %v9354 = vpack.c.b16 %v9318, %v9316
    %v9355 = vpack.c.b16 %v9319, %v9317
    %v9356 = vpack.c.b16 %v9322, %v9320
    %v9357 = vpack.c.b16 %v9323, %v9321
    %v9358 = vpack.c.b16 %v9326, %v9324
    %v9359 = vpack.c.b16 %v9327, %v9325
    %9392 = vmatprep.subr.bf16.mxu0 %v9329
    %9393 = vmatpush1.bf16.msra.mxu0 %v9328
    %9394 = vmatprep.subr.bf16.mxu0 %v9331
    %9395 = vmatpush1.bf16.msra.mxu0 %v9330
    %9396 = vmatprep.subr.bf16.mxu0 %v9333
    %9397 = vmatpush1.bf16.msra.mxu0 %v9332
    %9398 = vmatprep.subr.bf16.mxu0 %v9335
    %9399 = vmatpush1.bf16.msra.mxu0 %v9334
    %9400 = vmatprep.subr.bf16.mxu0 %v9337
    %9401 = vmatpush1.bf16.msra.mxu0 %v9336
    %9402 = vmatprep.subr.bf16.mxu0 %v9339
    %9403 = vmatpush1.bf16.msra.mxu0 %v9338
    %9404 = vmatprep.subr.bf16.mxu0 %v9341
    %9405 = vmatpush1.bf16.msra.mxu0 %v9340
    %9406 = vmatprep.subr.bf16.mxu0 %v9343
    %9407 = vmatpush1.bf16.msra.mxu0 %v9342
    %9408 = vmatprep.subr.bf16.mxu0 %v9345
    %9409 = vmatpush1.bf16.msra.mxu0 %v9344
    %9410 = vmatprep.subr.bf16.mxu0 %v9347
    %9411 = vmatpush1.bf16.msra.mxu0 %v9346
    %9412 = vmatprep.subr.bf16.mxu0 %v9349
    %9413 = vmatpush1.bf16.msra.mxu0 %v9348
    %9414 = vmatprep.subr.bf16.mxu0 %v9351
    %9415 = vmatpush1.bf16.msra.mxu0 %v9350
    %9416 = vmatprep.subr.bf16.mxu0 %v9353
    %9417 = vmatpush1.bf16.msra.mxu0 %v9352
    %9418 = vmatprep.subr.bf16.mxu0 %v9355
    %9419 = vmatpush1.bf16.msra.mxu0 %v9354
    %9420 = vmatprep.subr.bf16.mxu0 %v9357
    %9421 = vmatpush1.bf16.msra.mxu0 %v9356
    %9422 = vmatprep.subr.bf16.mxu0 %v9359
    %9423 = vmatpush1.bf16.msra.mxu0 %v9358
    %9424 = vmatprep.mubr.bf16.mxu0 %v9229
    %9425 = vmatmul.mubr.bf16.gmra.mrb[0].mxu0 %v9228
    %v9426 = vpop.f32.mrb[0].mxu0
    %v9427 = vadd.f32 %v9199, %v9426
    %v9428 = vpop.f32.mrb[0].mxu0
    %v9429 = vadd.f32 %v9203, %v9428
    %v9430 = vpop.f32.mrb[0].mxu0
    %v9431 = vpop.f32.mrb[0].mxu0
    %9432 = vdwg.mxu0
    %v9433 = vmax.f32 %v9427, 0.0
    %v9434 = vmax.f32 %v9429, 0.0
    %v9435 = vpack.c.bf16 %v9433, %v9433
    %v9436 = vpack.c.bf16 %v9434, %v9434
    %v9437 = vld [vmem:[%s21] sm:$0xf]
    %v9438 = vld [vmem:[%s21 + $0x4] sm:$0xf]
    %v9439 = vld [vmem:[%s21 + $0x8] sm:$0xf]
    %v9440 = vld [vmem:[%s21 + $0xc] sm:$0xf]
    %v9441 = vld [vmem:[%s21 + $0x10] sm:$0xf]
    %v9442 = vld [vmem:[%s21 + $0x14] sm:$0xf]
    %v9443 = vld [vmem:[%s21 + $0x18] sm:$0xf]
    %v9444 = vld [vmem:[%s21 + $0x1c] sm:$0xf]
    %v9445 = vld [vmem:[%s21 + $0x20] sm:$0xf]
    %v9446 = vld [vmem:[%s21 + $0x24] sm:$0xf]
    %v9447 = vld [vmem:[%s21 + $0x28] sm:$0xf]
    %v9448 = vld [vmem:[%s21 + $0x2c] sm:$0xf]
    %v9449 = vld [vmem:[%s21 + $0x30] sm:$0xf]
    %v9450 = vld [vmem:[%s21 + $0x34] sm:$0xf]
    %v9451 = vld [vmem:[%s21 + $0x38] sm:$0xf]
    %v9452 = vld [vmem:[%s21 + $0x3c] sm:$0xf]
    %v9453 = vld [vmem:[%s21 + $0x40] sm:$0xf]
    %v9454 = vld [vmem:[%s21 + $0x44] sm:$0xf]
    %v9455 = vld [vmem:[%s21 + $0x48] sm:$0xf]
    %v9456 = vld [vmem:[%s21 + $0x4c] sm:$0xf]
    %v9457 = vld [vmem:[%s21 + $0x50] sm:$0xf]
    %v9458 = vld [vmem:[%s21 + $0x54] sm:$0xf]
    %v9459 = vld [vmem:[%s21 + $0x58] sm:$0xf]
    %v9460 = vld [vmem:[%s21 + $0x5c] sm:$0xf]
    %v9461 = vld [vmem:[%s21 + $0x60] sm:$0xf]
    %v9462 = vld [vmem:[%s21 + $0x64] sm:$0xf]
    %v9463 = vld [vmem:[%s21 + $0x68] sm:$0xf]
    %v9464 = vld [vmem:[%s21 + $0x6c] sm:$0xf]
    %v9465 = vld [vmem:[%s21 + $0x70] sm:$0xf]
    %v9466 = vld [vmem:[%s21 + $0x74] sm:$0xf]
    %v9467 = vld [vmem:[%s21 + $0x78] sm:$0xf]
    %v9468 = vld [vmem:[%s21 + $0x7c] sm:$0xf]
    %v9469 = vld [vmem:[%s22] sm:$0x1]
    %v9471 = vlaneseq
    %v9472 = vshrl.u32 %v9471, 7
    %v9473 = vsub.s32 0, %v9472
    %v9474 = vrot.slane %v9469, %v9473
    %v9508 = vunpack.c.l.b16 %v9437
    %v9509 = vunpack.c.l.b16 %v9438
    %v9510 = vunpack.c.l.b16 %v9439
    %v9511 = vunpack.c.l.b16 %v9440
    %v9512 = vunpack.c.l.b16 %v9441
    %v9513 = vunpack.c.l.b16 %v9442
    %v9514 = vunpack.c.l.b16 %v9443
    %v9515 = vunpack.c.l.b16 %v9444
    %v9516 = vunpack.c.l.b16 %v9445
    %v9517 = vunpack.c.l.b16 %v9446
    %v9518 = vunpack.c.l.b16 %v9447
    %v9519 = vunpack.c.l.b16 %v9448
    %v9520 = vunpack.c.l.b16 %v9449
    %v9521 = vunpack.c.l.b16 %v9450
    %v9522 = vunpack.c.l.b16 %v9451
    %v9523 = vunpack.c.l.b16 %v9452
    %v9524 = vunpack.c.l.b16 %v9453
    %v9525 = vunpack.c.l.b16 %v9454
    %v9526 = vunpack.c.l.b16 %v9455
    %v9527 = vunpack.c.l.b16 %v9456
    %v9528 = vunpack.c.l.b16 %v9457
    %v9529 = vunpack.c.l.b16 %v9458
    %v9530 = vunpack.c.l.b16 %v9459
    %v9531 = vunpack.c.l.b16 %v9460
    %v9532 = vunpack.c.l.b16 %v9461
    %v9533 = vunpack.c.l.b16 %v9462
    %v9534 = vunpack.c.l.b16 %v9463
    %v9535 = vunpack.c.l.b16 %v9464
    %v9536 = vunpack.c.l.b16 %v9465
    %v9537 = vunpack.c.l.b16 %v9466
    %v9538 = vunpack.c.l.b16 %v9467
    %v9539 = vunpack.c.l.b16 %v9468
    %v9540 = vpack.c.b16 %v9509, %v9508
    %v9541 = vpack.c.b16 %v9511, %v9510
    %v9542 = vpack.c.b16 %v9513, %v9512
    %v9543 = vpack.c.b16 %v9515, %v9514
    %v9544 = vpack.c.b16 %v9517, %v9516
    %v9545 = vpack.c.b16 %v9519, %v9518
    %v9546 = vpack.c.b16 %v9521, %v9520
    %v9547 = vpack.c.b16 %v9523, %v9522
    %v9548 = vpack.c.b16 %v9525, %v9524
    %v9549 = vpack.c.b16 %v9527, %v9526
    %v9550 = vpack.c.b16 %v9529, %v9528
    %v9551 = vpack.c.b16 %v9531, %v9530
    %v9552 = vpack.c.b16 %v9533, %v9532
    %v9553 = vpack.c.b16 %v9535, %v9534
    %v9554 = vpack.c.b16 %v9537, %v9536
    %v9555 = vpack.c.b16 %v9539, %v9538
    %9572 = vmatprep.subr.bf16.mxu0 0
    %9573 = vmatpush1.bf16.msra.mxu0 %v9540
    %9574 = vmatprep.subr.bf16.mxu0 0
    %9575 = vmatpush1.bf16.msra.mxu0 %v9541
    %9576 = vmatprep.subr.bf16.mxu0 0
    %9577 = vmatpush1.bf16.msra.mxu0 %v9542
    %9578 = vmatprep.subr.bf16.mxu0 0
    %9579 = vmatpush1.bf16.msra.mxu0 %v9543
    %9580 = vmatprep.subr.bf16.mxu0 0
    %9581 = vmatpush1.bf16.msra.mxu0 %v9544
    %9582 = vmatprep.subr.bf16.mxu0 0
    %9583 = vmatpush1.bf16.msra.mxu0 %v9545
    %9584 = vmatprep.subr.bf16.mxu0 0
    %9585 = vmatpush1.bf16.msra.mxu0 %v9546
    %9586 = vmatprep.subr.bf16.mxu0 0
    %9587 = vmatpush1.bf16.msra.mxu0 %v9547
    %9588 = vmatprep.subr.bf16.mxu0 0
    %9589 = vmatpush1.bf16.msra.mxu0 %v9548
    %9590 = vmatprep.subr.bf16.mxu0 0
    %9591 = vmatpush1.bf16.msra.mxu0 %v9549
    %9592 = vmatprep.subr.bf16.mxu0 0
    %9593 = vmatpush1.bf16.msra.mxu0 %v9550
    %9594 = vmatprep.subr.bf16.mxu0 0
    %9595 = vmatpush1.bf16.msra.mxu0 %v9551
    %9596 = vmatprep.subr.bf16.mxu0 0
    %9597 = vmatpush1.bf16.msra.mxu0 %v9552
    %9598 = vmatprep.subr.bf16.mxu0 0
    %9599 = vmatpush1.bf16.msra.mxu0 %v9553
    %9600 = vmatprep.subr.bf16.mxu0 0
    %9601 = vmatpush1.bf16.msra.mxu0 %v9554
    %9602 = vmatprep.subr.bf16.mxu0 0
    %9603 = vmatpush1.bf16.msra.mxu0 %v9555
    %9604 = vmatprep.mubr.bf16.mxu0 %v9436
    %9605 = vmatmul.mubr.bf16.gmra.mrb[0].mxu0 %v9435
    %v9606 = vpop.f32.mrb[0].mxu0
    %v9607 = vadd.f32 %v9474, %v9606
    %v9608 = vpop.f32.mrb[0].mxu0
    %v9609 = vpop.f32.mrb[0].mxu0
    %v9610 = vpop.f32.mrb[0].mxu0
    %9611 = vdwg.mxu0
    %v9614 = vunpack.c.l.s4 1966171168
    %v9615 = vunpack.c.0.s8 %v9614
    %v9616 = vlaneseq
    %v9617 = vshrl.u32 %v9616, 7
    %v9618 = vsub.s32 %v9615, %v9617
    %v9619 = vrot.slane %v9607, %v9618
    %v9620 = vcombine.high %v9619, %v9619
    %v9622 = vunpack.c.l.s4 1966171168
    %v9623 = vunpack.c.0.s8 %v9622
    %v9624 = vlaneseq
    %v9625 = vshrl.u32 %v9624, 7
    %v9626 = vsub.s32 %v9623, %v9625
    %v9627 = vrot.slane %v9619, %v9626
    %v9629 = vunpack.c.l.s4 1966171168
    %v9630 = vunpack.c.0.s8 %v9629
    %v9631 = vlaneseq
    %v9632 = vshrl.u32 %v9631, 7
    %v9633 = vsub.s32 %v9630, %v9632
    %v9634 = vrot.slane %v9620, %v9633
    %v9635 = vcombine.high %v9627, %v9627
    %v9636 = vcombine.high %v9634, %v9634
    %vm9641 = vcmask 73728
    %9642 = vst.msk [vmem:[#allocation13] sm:$0x1] %vm9641, %v9627
    %9643 = vst.msk [vmem:[#allocation13 + $0x1] sm:$0x1] %vm9641, %v9634
    %9644 = vst.msk [vmem:[#allocation13 + $0x2] sm:$0x1] %vm9641, %v9635
    %9645 = vst.msk [vmem:[#allocation13 + $0x3] sm:$0x1] %vm9641, %v9636
    // Predicated region
    $region118: #{trn_forward.1} parent=1 // pred_check
      _
    $region119: #{trn_forward.1} parent=1 // pred_check_branch
      %9647 = sbr.rel (0) target = $region121
    $region120: #{trn_forward.1} parent=1 // pred_region
      %s9649 = ssub.s32 64, 64
      %9650 = vsyncadd [#allocation4], %s9649
      %s9651 = sshll.u32 [#allocation13], 4
      %s9652 = int_to_ptr.vmem [resolvable:$true] %s9651
      %9657 = dma.vmem_to_hbm [thread:$0]  %s9652, 64, %s23, [#allocation4], 16, 16, 1
    $region121: #{trn_forward.1} parent=1 // pred_fallthru
      _
    // Predicated region
    $region122: #{trn_forward.1} parent=1 // pred_check
      _
    $region123: #{trn_forward.1} parent=1 // pred_check_branch
      %9659 = sbr.rel (0) target = $region125
    $region124: #{trn_forward.1} parent=1 // pred_region
      %9660 = dma.done [#allocation4], 64
    $region125: #{trn_forward.1} parent=1 // pred_fallthru
      _
    %9661 = vsyncpa [#allocation3], 1
    %9662 = vsyncpa [#allocation6], 1
    %9663 = vsyncpa [#allocation9], 1
    %9664 = vsyncpa [#allocation12], 1
    %9665 = vsyncpa [#allocation4], 1

</llo_original>
